<compile_context>
chip_gen: v6e
topology: v6e:2x2x1
jax: 0.10.0
libtpu: 0.0.40
codegen_flags: <defaults>
</compile_context>

<pallas_src>
import functools
import math

import jax
import jax.numpy as jnp
from jax import lax
from jax.experimental import pallas as pl
from jax.experimental.pallas import tpu as pltpu


# ----------------------------------------------------------------------------
# VMEM budgeting
# ----------------------------------------------------------------------------
def _vmem_estimate(t_c, hw, kp):
    """Rough per-grid-step VMEM footprint (bytes) of the fused kernel."""
    slab = t_c * hw * 4                       # one f32 (t_c, HW) slab
    x_bufs = 2 * slab                         # double-buffered input tile
    out_bufs = 2 * slab                       # double-buffered output tile
    temps = 4 * slab                          # xc + gb(2 slabs f32) + elementwise headroom
    kp_pad = ((kp + 31) // 32) * 32           # bf16 sublane packing of the patch tile
    patches = 2 * kp_pad * hw * 2             # (KP, HW) bf16, double-buffered
    weights = 2 * (2 * t_c) * 128 * 2         # (2*t_c, KP) bf16, lanes padded to 128
    biases = 2 * (2 * t_c) * 128 * 4          # (2*t_c, 1) f32, lanes padded to 128
    return x_bufs + out_bufs + temps + patches + weights + biases


def _pick_channel_block(P, hw, kp, target_slab=2 << 20, budget=24 << 20):
    """Largest multiple-of-8 divisor of P whose full-HW f32 slab is ~target_slab
    and whose total per-step footprint stays inside the VMEM budget."""
    if P % 8 != 0:
        return P                              # tiny channel count: full-extent block
    best = 8
    for t in range(8, P + 1, 8):
        if P % t:
            continue
        if t * hw * 4 <= target_slab and _vmem_estimate(t, hw, kp) <= budget:
            best = t
    return best


# ----------------------------------------------------------------------------
# Fused kernel: instance-norm stats + 3x3 conv(gamma/beta) + modulation
# grid = (N, P // t_c), both axes parallel; each step owns a full-HW slab of
# t_c channels, so stats and apply happen on data resident in VMEM.
# ----------------------------------------------------------------------------
def _spade_fused_kernel(x_ref, p_ref, w_ref, b_ref, o_ref, *, t_c, inv_hw, eps):
    # x_ref: (t_c, HW)  f32       p_ref: (KP, HW) bf16
    # w_ref: (2*t_c, KP) bf16  -- gamma rows then beta rows for this channel block
    # b_ref: (2*t_c, 1)  f32
    x = x_ref[...]
    mean = jnp.sum(x, axis=-1, keepdims=True) * inv_hw
    xc = x - mean
    var = jnp.sum(xc * xc, axis=-1, keepdims=True) * inv_hw   # biased var, two-pass (stable)
    rstd = lax.rsqrt(var + eps)

    # one MXU pass for both convs: (2*t_c, KP) @ (KP, HW) -> (2*t_c, HW) f32
    gb = jnp.dot(w_ref[...], p_ref[...],
                 preferred_element_type=jnp.float32) + b_ref[...]
    gamma = gb[:t_c]
    beta = gb[t_c:]

    o_ref[...] = (xc * rstd * gamma + beta).astype(o_ref.dtype)


# ----------------------------------------------------------------------------
# BasicSPADE forward (NCHW in, NCHW out; no layout transposes anywhere)
# ----------------------------------------------------------------------------
def basic_spade(x_nchw, bound_nchw, params, eps=1e-5, out_dtype=jnp.float32):
    # out_dtype=jnp.bfloat16 halves output store traffic if the consumer tolerates it;
    # default f32 preserves the PyTorch module's semantics.
    N, P, H, W = x_nchw.shape
    Nb, Cin, Hb, Wb = bound_nchw.shape
    assert (Nb, Hb, Wb) == (N, H, W)
    HW = H * W
    KP = 9 * Cin

    # NCHW-native: pure reshape (contiguous), channels -> sublanes, HW -> lanes.
    x3 = x_nchw.reshape(N, P, HW)

    # im2col of the small bound tensor -> (N, KP, HW), tap-major / channel-minor,
    # HW dense in lanes, bf16 MXU operand (~54 B/px vs 512 B/px for x).
    bpad = jnp.pad(bound_nchw, ((0, 0), (0, 0), (1, 1), (1, 1)))
    taps = jnp.stack(
        [bpad[:, :, dy:dy + H, dx:dx + W] for dy in range(3) for dx in range(3)],
        axis=1)                                           # (N, 9, Cin, H, W)
    patches = taps.reshape(N, KP, HW).astype(jnp.bfloat16)
    # TODO(synk): build the 9 taps in-kernel from a haloed bound tile with pltpu.roll
    # to drop the host-side im2col materialization entirely.

    # conv weights OIHW -> (P, KP) with matching tap-major / channel-minor columns.
    def wmat(w):
        return jnp.transpose(w, (0, 2, 3, 1)).reshape(P, KP).astype(jnp.bfloat16)

    wg = wmat(params["conv_weight"]["w"])
    wb = wmat(params["conv_bias"]["w"])
    bg = params["conv_weight"]["b"].astype(jnp.float32)
    bb = params["conv_bias"]["b"].astype(jnp.float32)

    t_c = _pick_channel_block(P, HW, KP)
    n_c = P // t_c
    # TODO(synk): fall back to a two-pass (stats then apply) hw-tiled pipeline when even
    # the minimal (8, HW) channel slab exceeds the VMEM budget (very large H*W).

    # Interleave gamma/beta weights per channel block so each grid step reads one
    # contiguous (2*t_c, KP) slab and issues a single MXU dot.
    wcat = jnp.concatenate(
        [wg.reshape(n_c, t_c, KP), wb.reshape(n_c, t_c, KP)], axis=1
    ).reshape(2 * P, KP)
    bcat = jnp.concatenate(
        [bg.reshape(n_c, t_c, 1), bb.reshape(n_c, t_c, 1)], axis=1
    ).reshape(2 * P, 1)

    vmem_limit = int(min(56 << 20, max(32 << 20, 2 * _vmem_estimate(t_c, HW, KP))))

    out3 = pl.pallas_call(
        functools.partial(_spade_fused_kernel, t_c=t_c, inv_hw=1.0 / HW, eps=eps),
        out_shape=jax.ShapeDtypeStruct((N, P, HW), out_dtype),
        grid=(N, n_c),
        in_specs=[
            pl.BlockSpec((None, t_c, HW), lambda n, c: (n, c, 0)),    # x slab
            pl.BlockSpec((None, KP, HW), lambda n, c: (n, 0, 0)),     # patches (reused across c)
            pl.BlockSpec((2 * t_c, KP), lambda n, c: (c, 0)),         # concat conv weights
            pl.BlockSpec((2 * t_c, 1), lambda n, c: (c, 0)),          # concat conv biases
        ],
        out_specs=pl.BlockSpec((None, t_c, HW), lambda n, c: (n, c, 0)),
        compiler_params=pltpu.CompilerParams(
            dimension_semantics=("parallel", "parallel"),
            vmem_limit_bytes=vmem_limit),
    )(x3, patches, wcat, bcat)

    # pure reshape back to NCHW: no data movement.
    return out3.reshape(N, P, H, W).astype(out_dtype)


# ----------------------------------------------------------------------------
# Pure-JAX reference (same bf16 conv operands, f32 accumulation) for validation
# ----------------------------------------------------------------------------
def _reference(x_nchw, bound_nchw, params, eps=1e-5):
    mean = jnp.mean(x_nchw, axis=(2, 3), keepdims=True)
    var = jnp.mean((x_nchw - mean) ** 2, axis=(2, 3), keepdims=True)
    xn = (x_nchw - mean) * lax.rsqrt(var + eps)

    def conv(w, b):
        y = lax.conv_general_dilated(
            bound_nchw.astype(jnp.bfloat16), w.astype(jnp.bfloat16),
            window_strides=(1, 1), padding=((1, 1), (1, 1)),
            dimension_numbers=("NCHW", "OIHW", "NCHW"),
            preferred_element_type=jnp.float32)
        return y + b.reshape(1, -1, 1, 1)

    gamma = conv(params["conv_weight"]["w"], params["conv_weight"]["b"])
    beta = conv(params["conv_bias"]["w"], params["conv_bias"]["b"])
    return xn * gamma + beta


# ----------------------------------------------------------------------------
# Deterministic parameter init (shapes from BasicSPADE.__init__)
# ----------------------------------------------------------------------------
def init_params(key, input_nc, planes):
    k1, k2, k3, k4 = jax.random.split(key, 4)
    std = 1.0 / math.sqrt(input_nc * 9)
    return {
        "conv_weight": {
            "w": jax.random.normal(k1, (planes, input_nc, 3, 3), jnp.float32) * std,
            "b": jax.random.normal(k2, (planes,), jnp.float32) * 0.01,
        },
        "conv_bias": {
            "w": jax.random.normal(k3, (planes, input_nc, 3, 3), jnp.float32) * std,
            "b": jax.random.normal(k4, (planes,), jnp.float32) * 0.01,
        },
    }


if __name__ == "__main__":
    key = jax.random.PRNGKey(0)
    kx, kb, kp = jax.random.split(key, 3)

    N, input_nc, planes, H, W = 2, 3, 128, 64, 64
    x = jax.random.normal(kx, (N, planes, H, W), jnp.float32)
    bound = jax.random.normal(kb, (N, input_nc, H, W), jnp.float32)
    params = init_params(kp, input_nc, planes)

    fwd = jax.jit(basic_spade)
    out = jax.block_until_ready(fwd(x, bound, params))

    assert out.shape == (N, planes, H, W), out.shape
    assert bool(jnp.all(jnp.isfinite(out)))

    ref = _reference(x, bound, params)
    err = float(jnp.max(jnp.abs(out - ref)))
    assert err < 5e-2, f"max abs error vs reference: {err}"

    print("KERNEL_OK")
</pallas_src>

<mosaic_0001>
module attributes {stable_mosaic.version = 11 : i64} {
  func.func @_spade_fused_kernel(%arg0: i32, %arg1: i32, %arg2: memref<1x128x4096xf32, #tpu.memory_space<vmem>>, %arg3: memref<1x27x4096xbf16, #tpu.memory_space<vmem>>, %arg4: memref<256x27xbf16, #tpu.memory_space<vmem>>, %arg5: memref<256x1xf32, #tpu.memory_space<vmem>>, %arg6: memref<1x128x4096xf32, #tpu.memory_space<vmem>>) attributes {dimension_semantics = [#tpu.dimension_semantics<parallel>, #tpu.dimension_semantics<parallel>], iteration_bounds = array<i64: 2, 1>, scalar_prefetch = 0 : i64, scratch_operands = 0 : i64, tpu.core_type = #tpu.core_type<tc>, window_params = [{transform_indices = @transform_0, window_bounds = array<i64: 1, 128, 4096>}, {transform_indices = @transform_1, window_bounds = array<i64: 1, 27, 4096>}, {transform_indices = @transform_2, window_bounds = array<i64: 256, 27>}, {transform_indices = @transform_3, window_bounds = array<i64: 256, 1>}, {transform_indices = @transform_4, window_bounds = array<i64: 1, 128, 4096>}]} {
    %c0 = arith.constant 0 : index
    %c0_0 = arith.constant 0 : index
    %c0_1 = arith.constant 0 : index
    %0 = vector.load %arg2[%c0, %c0_0, %c0_1] : memref<1x128x4096xf32, #tpu.memory_space<vmem>>, vector<1x128x4096xf32>
    %1 = vector.shape_cast %0 : vector<1x128x4096xf32> to vector<128x4096xf32>
    %cst = arith.constant dense<0.000000e+00> : vector<128xf32>
    %2 = vector.multi_reduction <add>, %1, %cst [1] : vector<128x4096xf32> to vector<128xf32>
    %3 = vector.shape_cast %2 : vector<128xf32> to vector<128x1xf32>
    %cst_2 = arith.constant 2.44140625E-4 : f32
    %4 = vector.broadcast %cst_2 : f32 to vector<128x1xf32>
    %5 = arith.mulf %3, %4 : vector<128x1xf32>
    %6 = vector.broadcast %5 : vector<128x1xf32> to vector<128x4096xf32>
    %7 = arith.subf %1, %6 : vector<128x4096xf32>
    %8 = arith.mulf %7, %7 : vector<128x4096xf32>
    %cst_3 = arith.constant dense<0.000000e+00> : vector<128xf32>
    %9 = vector.multi_reduction <add>, %8, %cst_3 [1] : vector<128x4096xf32> to vector<128xf32>
    %10 = vector.shape_cast %9 : vector<128xf32> to vector<128x1xf32>
    %cst_4 = arith.constant 2.44140625E-4 : f32
    %11 = vector.broadcast %cst_4 : f32 to vector<128x1xf32>
    %12 = arith.mulf %10, %11 : vector<128x1xf32>
    %cst_5 = arith.constant 9.99999974E-6 : f32
    %13 = vector.broadcast %cst_5 : f32 to vector<128x1xf32>
    %14 = arith.addf %12, %13 : vector<128x1xf32>
    %15 = math.rsqrt %14 : vector<128x1xf32>
    %c0_6 = arith.constant 0 : index
    %c0_7 = arith.constant 0 : index
    %16 = vector.load %arg4[%c0_6, %c0_7] : memref<256x27xbf16, #tpu.memory_space<vmem>>, vector<256x27xbf16>
    %c0_8 = arith.constant 0 : index
    %c0_9 = arith.constant 0 : index
    %c0_10 = arith.constant 0 : index
    %17 = vector.load %arg3[%c0_8, %c0_9, %c0_10] : memref<1x27x4096xbf16, #tpu.memory_space<vmem>>, vector<1x27x4096xbf16>
    %18 = vector.shape_cast %17 : vector<1x27x4096xbf16> to vector<27x4096xbf16>
    %cst_11 = arith.constant dense<0.000000e+00> : vector<256x4096xf32>
    %19 = tpu.matmul %16, %18, %cst_11 {dimension_numbers = #tpu.dot_dimension_numbers<[1], [0], [0], [1], [0, 0, 1, 1], [], []>} : vector<256x27xbf16>, vector<27x4096xbf16>, vector<256x4096xf32> -> vector<256x4096xf32>
    %c0_12 = arith.constant 0 : index
    %c0_13 = arith.constant 0 : index
    %20 = vector.load %arg5[%c0_12, %c0_13] : memref<256x1xf32, #tpu.memory_space<vmem>>, vector<256x1xf32>
    %21 = vector.broadcast %20 : vector<256x1xf32> to vector<256x4096xf32>
    %22 = arith.addf %19, %21 : vector<256x4096xf32>
    %23 = vector.extract_strided_slice %22 {offsets = [0, 0], sizes = [128, 4096], strides = [1, 1]} : vector<256x4096xf32> to vector<128x4096xf32>
    %24 = vector.extract_strided_slice %22 {offsets = [128, 0], sizes = [128, 4096], strides = [1, 1]} : vector<256x4096xf32> to vector<128x4096xf32>
    %25 = vector.broadcast %15 : vector<128x1xf32> to vector<128x4096xf32>
    %26 = arith.mulf %7, %25 : vector<128x4096xf32>
    %27 = arith.mulf %26, %23 : vector<128x4096xf32>
    %28 = arith.addf %27, %24 : vector<128x4096xf32>
    %c0_14 = arith.constant 0 : index
    %c0_15 = arith.constant 0 : index
    %c0_16 = arith.constant 0 : index
    %29 = vector.load %arg6[%c0_14, %c0_15, %c0_16] : memref<1x128x4096xf32, #tpu.memory_space<vmem>>, vector<1x128x4096xf32>
    %30 = vector.shape_cast %29 : vector<1x128x4096xf32> to vector<128x4096xf32>
    %31 = vector.shape_cast %28 : vector<128x4096xf32> to vector<1x128x4096xf32>
    tpu.vector_store %arg6[%c0_14, %c0_15, %c0_16], %31 {strides = array<i32>} : memref<1x128x4096xf32, #tpu.memory_space<vmem>>, vector<1x128x4096xf32>,
    return
  }
  func.func @transform_0(%arg0: i32, %arg1: i32) -> (i32, i32, i32) {
    %c0_i32 = arith.constant 0 : i32
    %c0_i32_0 = arith.constant 0 : i32
    return %arg0, %arg1, %c0_i32 : i32, i32, i32
  }
  func.func @transform_1(%arg0: i32, %arg1: i32) -> (i32, i32, i32) {
    %c0_i32 = arith.constant 0 : i32
    %c0_i32_0 = arith.constant 0 : i32
    %c0_i32_1 = arith.constant 0 : i32
    return %arg0, %c0_i32, %c0_i32_0 : i32, i32, i32
  }
  func.func @transform_2(%arg0: i32, %arg1: i32) -> (i32, i32) {
    %c0_i32 = arith.constant 0 : i32
    %c0_i32_0 = arith.constant 0 : i32
    return %arg1, %c0_i32 : i32, i32
  }
  func.func @transform_3(%arg0: i32, %arg1: i32) -> (i32, i32) {
    %c0_i32 = arith.constant 0 : i32
    %c0_i32_0 = arith.constant 0 : i32
    return %arg1, %c0_i32 : i32, i32
  }
  func.func @transform_4(%arg0: i32, %arg1: i32) -> (i32, i32, i32) {
    %c0_i32 = arith.constant 0 : i32
    %c0_i32_0 = arith.constant 0 : i32
    return %arg0, %arg1, %c0_i32 : i32, i32, i32
  }
}

</mosaic_0001>

<llo_original>
// kernel: basic_spade.1
$region0: #{basic_spade.1}
  #allocation0 [shape = 'u32[]', space=smem, size = 0x4, offset = 0x4, fixed_abs, tag = 'smem constant byte address 0x4 - core index']
  #allocation1 [shape = 'u32[144,128]{1,0:T(1,128)}', space=vmem, size = 0x12000, scoped, tag = 'internal scratch']
  %s0 = inlined_call_operand.vmem [shape: f32[2,128,4096], index: 0, kind: input, shape index: {}]
  %s1 = inlined_call_operand.vmem [shape: bf16[2,27,4096], index: 1, kind: input, shape index: {}]
  %s2 = inlined_call_operand.vmem [shape: bf16[256,27], index: 2, kind: input, shape index: {}]
  %s3 = inlined_call_operand.vmem [shape: f32[256,1], index: 3, kind: input, shape index: {}]
  %s4 = inlined_call_operand.vmem [shape: f32[2,128,4096], index: 4, kind: output, shape index: {}]
  %s5 = sld [smem:[#allocation0]]
  $region49: #{basic_spade.1} parent=0
    _
  %s7 = ssub.s32 1, %s5
  %s8 = scalar_select 0, %s7, %s5
  loop: start=0, step=1, limit=4
  $region2: #{basic_spade.1} parent=0 // loop_pre_header
    _
  $region3: #{basic_spade.1} parent=0 // loop_header
    %s10 = sphi 0, %s14
    %p11 = scmp.ge.s32.totalorder %s10, 4
    %s17 = sphi 0, %s29
    %s18 = sphi 0, %s25
    %s19 = sphi 0, %s17
    %s20 = sphi 0, %s18
    %s21 = sphi 0, %s19
    %s22 = sphi 0, %s20
    %s34 = sphi 0, %s36
    %s37 = sphi 0, %s34
    %s38 = sphi 0, %s37
    %s54 = sphi 0, %s38
    %s60 = sphi 0, %s62
    %s63 = sphi 0, %s60
    %s64 = sphi 0, %s63
    %s80 = sphi 0, %s64
    %s86 = sphi 0, %s88
    %s89 = sphi 0, %s86
    %s90 = sphi 0, %s89
    %s106 = sphi 0, %s90
    %s112 = sphi 0, %s114
    %s115 = sphi 0, %s112
    %s116 = sphi 0, %s115
    %s132 = sphi 0, %s116
    %s140 = sphi 0, %s142
    %s143 = sphi 0, %s140
    %s144 = sphi 0, %s143
    %s160 = sphi 0, %s144
  $region4: #{basic_spade.1} parent=0 // loop_header_branch
    %13 = sbr.rel (%p11) target = $region8
  $region5: #{basic_spade.1} parent=0 // loop_body
    %s15 = ssub.s32 %s10, 1
    %s16 = ssub.s32 %s10, 2
    %s23 = sadd.s32 1, %s18
    %p24 = scmp.ge.s32.totalorder %s23, 1
    %s25 = scalar_select %p24, 0, %s23
    %s26 = sadd.s32 1, %s17
    %s27 = scalar_select %p24, %s26, %s17
    %p28 = scmp.ge.s32.totalorder %s27, 2
    %s29 = scalar_select %p28, 0, %s27
    %s30 = ssub.s32 %s17, %s29
    %s31 = ssub.s32 %s18, %s25
    %s32 = sor.u32 %s30, %s31
    %p33 = scmp.eq.s32.totalorder %s32, 0
    %s35 = sadd.s32 %s34, 1
    %s36 = scalar_select %p33, %s34, %s35
    %p39 = pneg %p33
    %p40 = scmp.eq.s32.totalorder %s10, 1
    %p41 = por %p39, %p40
    %p42 = scmp.ne.s32.totalorder %s34, %s37
    %p43 = scmp.eq.s32.totalorder %s10, 0
    %p44 = por %p42, %p43
    %p45 = scmp.ne.s32.totalorder %s34, %s37
    %p46 = scmp.eq.s32.totalorder %s15, 1
    %p47 = por %p45, %p46
    %p48 = scmp.ne.s32.totalorder %s37, %s38
    %p49 = scmp.eq.s32.totalorder %s15, 0
    %p50 = por %p48, %p49
    %p51 = scmp.ne.s32.totalorder %s37, %s38
    %p52 = scmp.eq.s32.totalorder %s16, 1
    %p53 = por %p51, %p52
    %p55 = scmp.ne.s32.totalorder %s38, %s54
    %p56 = scmp.eq.s32.totalorder %s16, 0
    %p57 = por %p55, %p56
    %s58 = ssub.s32 %s17, %s29
    %p59 = scmp.eq.s32.totalorder %s58, 0
    %s61 = sadd.s32 %s60, 1
    %s62 = scalar_select %p59, %s60, %s61
    %p65 = pneg %p59
    %p66 = scmp.eq.s32.totalorder %s10, 1
    %p67 = por %p65, %p66
    %p68 = scmp.ne.s32.totalorder %s60, %s63
    %p69 = scmp.eq.s32.totalorder %s10, 0
    %p70 = por %p68, %p69
    %p71 = scmp.ne.s32.totalorder %s60, %s63
    %p72 = scmp.eq.s32.totalorder %s15, 1
    %p73 = por %p71, %p72
    %p74 = scmp.ne.s32.totalorder %s63, %s64
    %p75 = scmp.eq.s32.totalorder %s15, 0
    %p76 = por %p74, %p75
    %p77 = scmp.ne.s32.totalorder %s63, %s64
    %p78 = scmp.eq.s32.totalorder %s16, 1
    %p79 = por %p77, %p78
    %p81 = scmp.ne.s32.totalorder %s64, %s80
    %p82 = scmp.eq.s32.totalorder %s16, 0
    %p83 = por %p81, %p82
    %s84 = ssub.s32 %s18, %s25
    %p85 = scmp.eq.s32.totalorder %s84, 0
    %s87 = sadd.s32 %s86, 1
    %s88 = scalar_select %p85, %s86, %s87
    %p91 = pneg %p85
    %p92 = scmp.eq.s32.totalorder %s10, 1
    %p93 = por %p91, %p92
    %p94 = scmp.ne.s32.totalorder %s86, %s89
    %p95 = scmp.eq.s32.totalorder %s10, 0
    %p96 = por %p94, %p95
    %p97 = scmp.ne.s32.totalorder %s86, %s89
    %p98 = scmp.eq.s32.totalorder %s15, 1
    %p99 = por %p97, %p98
    %p100 = scmp.ne.s32.totalorder %s89, %s90
    %p101 = scmp.eq.s32.totalorder %s15, 0
    %p102 = por %p100, %p101
    %p103 = scmp.ne.s32.totalorder %s89, %s90
    %p104 = scmp.eq.s32.totalorder %s16, 1
    %p105 = por %p103, %p104
    %p107 = scmp.ne.s32.totalorder %s90, %s106
    %p108 = scmp.eq.s32.totalorder %s16, 0
    %p109 = por %p107, %p108
    %s110 = ssub.s32 %s18, %s25
    %p111 = scmp.eq.s32.totalorder %s110, 0
    %s113 = sadd.s32 %s112, 1
    %s114 = scalar_select %p111, %s112, %s113
    %p117 = pneg %p111
    %p118 = scmp.eq.s32.totalorder %s10, 1
    %p119 = por %p117, %p118
    %p120 = scmp.ne.s32.totalorder %s112, %s115
    %p121 = scmp.eq.s32.totalorder %s10, 0
    %p122 = por %p120, %p121
    %p123 = scmp.ne.s32.totalorder %s112, %s115
    %p124 = scmp.eq.s32.totalorder %s15, 1
    %p125 = por %p123, %p124
    %p126 = scmp.ne.s32.totalorder %s115, %s116
    %p127 = scmp.eq.s32.totalorder %s15, 0
    %p128 = por %p126, %p127
    %p129 = scmp.ne.s32.totalorder %s115, %s116
    %p130 = scmp.eq.s32.totalorder %s16, 1
    %p131 = por %p129, %p130
    %p133 = scmp.ne.s32.totalorder %s116, %s132
    %p134 = scmp.eq.s32.totalorder %s16, 0
    %p135 = por %p133, %p134
    %s136 = ssub.s32 %s17, %s29
    %s137 = ssub.s32 %s18, %s25
    %s138 = sor.u32 %s136, %s137
    %p139 = scmp.eq.s32.totalorder %s138, 0
    %s141 = sadd.s32 %s140, 1
    %s142 = scalar_select %p139, %s140, %s141
    %p145 = pneg %p139
    %p146 = scmp.eq.s32.totalorder %s10, 1
    %p147 = por %p145, %p146
    %p148 = scmp.ne.s32.totalorder %s140, %s143
    %p149 = scmp.eq.s32.totalorder %s10, 0
    %p150 = por %p148, %p149
    %p151 = scmp.ne.s32.totalorder %s140, %s143
    %p152 = scmp.eq.s32.totalorder %s15, 1
    %p153 = por %p151, %p152
    %p154 = scmp.ne.s32.totalorder %s143, %s144
    %p155 = scmp.eq.s32.totalorder %s15, 0
    %p156 = por %p154, %p155
    %p157 = scmp.ne.s32.totalorder %s143, %s144
    %p158 = scmp.eq.s32.totalorder %s16, 1
    %p159 = por %p157, %p158
    %p161 = scmp.ne.s32.totalorder %s144, %s160
    %p162 = scmp.eq.s32.totalorder %s16, 0
    %p163 = por %p161, %p162
    %p164 = scmp.le.s32.totalorder 1, %s10
    %p165 = scmp.lt.s32.totalorder %s10, 3
    %p166 = pnand %p164, %p165
    %p167 = pneg %p166
    // Predicated region
    $region9: #{basic_spade.1} parent=5 // pred_check
      _
    $region10: #{basic_spade.1} parent=5 // pred_check_branch
      %169 = sbr.rel (%p166) target = $region12
    $region11: #{basic_spade.1} parent=5 // pred_region
      %s170 = ssub.s32 %s10, 1
      // Predicated region
      $region13: #{basic_spade.1} parent=11 // pred_check
        %p171 = pneg %p102
      $region14: #{basic_spade.1} parent=11 // pred_check_branch
        %173 = sbr.rel (%p171) target = $region16
      $region15: #{basic_spade.1} parent=11 // pred_region
        %s174 = smul.u32 32, %s20
        %p175 = scmp.lt.s32.totalorder %s174, 31
        %s176 = scalar_select %p175, %s174, 31
        %s177 = smul.addr %s176, 4
        %s178 = scalar_lea.vmem %s2, %s177
        %s179 = smul.u32 32, %s20
      $region16: #{basic_spade.1} parent=11 // pred_fallthru
        _
      // Predicated region
      $region17: #{basic_spade.1} parent=11 // pred_check
        %p180 = pneg %p128
      $region18: #{basic_spade.1} parent=11 // pred_check_branch
        %182 = sbr.rel (%p180) target = $region20
      $region19: #{basic_spade.1} parent=11 // pred_region
        %s183 = smul.u32 32, %s20
        %p184 = scmp.lt.s32.totalorder %s183, 31
        %s185 = scalar_select %p184, %s183, 31
        %s186 = smul.addr %s185, 8
        %s187 = scalar_lea.vmem %s3, %s186
        %s188 = smul.u32 32, %s20
      $region20: #{basic_spade.1} parent=11 // pred_fallthru
        _
    $region12: #{basic_spade.1} parent=5 // pred_fallthru
      _
    %p189 = scmp.lt.s32.totalorder %s10, 2
    // Predicated region
    $region21: #{basic_spade.1} parent=5 // pred_check
      %p190 = pneg %p189
    $region22: #{basic_spade.1} parent=5 // pred_check_branch
      %192 = sbr.rel (%p190) target = $region24
    $region23: #{basic_spade.1} parent=5 // pred_region
      // Predicated region
      $region25: #{basic_spade.1} parent=23 // pred_check
        %p193 = pneg %p44
      $region26: #{basic_spade.1} parent=23 // pred_check_branch
        %195 = sbr.rel (%p193) target = $region28
      $region27: #{basic_spade.1} parent=23 // pred_region
        %s196 = smul.u32 16, %s18
        %p197 = scmp.lt.s32.totalorder %s17, 1
        %s198 = scalar_select %p197, %s17, 1
        %p199 = scmp.lt.s32.totalorder %s196, 15
        %s200 = scalar_select %p199, %s196, 15
        %s201 = smul.addr %s200, 32
        %s202 = smul.addr %s198, 512
        %s203 = sadd.s32 %s201, %s202
        %s204 = smul.addr %s203, 8
        %s205 = scalar_lea.vmem %s0, %s204
        %s206 = smul.u32 16, %s18
      $region28: #{basic_spade.1} parent=23 // pred_fallthru
        _
      // Predicated region
      $region29: #{basic_spade.1} parent=23 // pred_check
        %p207 = pneg %p70
      $region30: #{basic_spade.1} parent=23 // pred_check_branch
        %209 = sbr.rel (%p207) target = $region32
      $region31: #{basic_spade.1} parent=23 // pred_region
        %p210 = scmp.lt.s32.totalorder %s17, 1
        %s211 = scalar_select %p210, %s17, 1
        %s212 = smul.addr %s211, 128
        %s213 = smul.addr %s212, 4
        %s214 = scalar_lea.vmem %s1, %s213
      $region32: #{basic_spade.1} parent=23 // pred_fallthru
        _
    $region24: #{basic_spade.1} parent=5 // pred_fallthru
      _
    %p215 = scmp.le.s32.totalorder 1, %s10
    %p216 = scmp.lt.s32.totalorder %s10, 3
    %p217 = pnand %p215, %p216
    %p218 = pneg %p217
    // Predicated region
    $region33: #{basic_spade.1} parent=5 // pred_check
      _
    $region34: #{basic_spade.1} parent=5 // pred_check_branch
      %220 = sbr.rel (%p217) target = $region36
    $region35: #{basic_spade.1} parent=5 // pred_region
      %s221 = ssub.s32 %s10, 1
      %s222 = smul.u32 16, %s20
      %p223 = scmp.lt.s32.totalorder %s19, 1
      %s224 = scalar_select %p223, %s19, 1
      %p225 = scmp.lt.s32.totalorder %s222, 15
      %s226 = scalar_select %p225, %s222, 15
      %s227 = smul.addr %s226, 32
      %s228 = smul.addr %s224, 512
      %s229 = sadd.s32 %s227, %s228
      %s230 = smul.addr %s229, 8
      %s231 = scalar_lea.vmem %s0, %s230
      %p232 = pneg %p50
      %p233 = pneg %p47
      %p234 = scmp.lt.s32.totalorder %s19, 1
      %s235 = scalar_select %p234, %s19, 1
      %s236 = smul.addr %s235, 128
      %s237 = smul.addr %s236, 4
      %s238 = scalar_lea.vmem %s1, %s237
      %p239 = pneg %p76
      %p240 = pneg %p73
      %s241 = smul.u32 32, %s20
      %p242 = scmp.lt.s32.totalorder %s241, 31
      %s243 = scalar_select %p242, %s241, 31
      %s244 = smul.addr %s243, 4
      %s245 = scalar_lea.vmem %s2, %s244
      %p246 = pneg %p102
      %p247 = pneg %p99
      %s248 = smul.u32 32, %s20
      %p249 = scmp.lt.s32.totalorder %s248, 31
      %s250 = scalar_select %p249, %s248, 31
      %s251 = smul.addr %s250, 8
      %s252 = scalar_lea.vmem %s3, %s251
      %p253 = pneg %p128
      %p254 = pneg %p125
      %p255 = pneg %p156
      %p256 = pneg %p153
      %s257 = smul.u32 16, %s20
      %p258 = scmp.lt.s32.totalorder %s19, 1
      %s259 = scalar_select %p258, %s19, 1
      %p260 = scmp.lt.s32.totalorder %s257, 15
      %s261 = scalar_select %p260, %s257, 15
      %s262 = smul.addr %s261, 32
      %s263 = smul.addr %s259, 512
      %s264 = sadd.s32 %s262, %s263
      %s265 = smul.addr %s264, 8
      %s266 = scalar_lea.vmem %s4, %s265
      %s267 = smul.u32 16, %s20
      %p268 = scmp.lt.s32.totalorder %s19, 1
      %s269 = scalar_select %p268, %s19, 1
      %p270 = scmp.lt.s32.totalorder %s267, 15
      %s271 = scalar_select %p270, %s267, 15
      %s272 = smul.addr %s271, 32
      %s273 = smul.addr %s269, 512
      %s274 = sadd.s32 %s272, %s273
      %s275 = smul.addr %s274, 8
      %s276 = scalar_lea.vmem %s0, %s275
      %s277 = smul.u32 16, %s20
      %p278 = scmp.lt.s32.totalorder %s19, 1
      %s279 = scalar_select %p278, %s19, 1
      %s280 = smul.addr %s279, 128
      %s281 = smul.addr %s280, 4
      %s282 = scalar_lea.vmem %s1, %s281
      %s283 = smul.u32 32, %s20
      %p284 = scmp.lt.s32.totalorder %s283, 31
      %s285 = scalar_select %p284, %s283, 31
      %s286 = smul.addr %s285, 4
      %s287 = scalar_lea.vmem %s2, %s286
      %s288 = smul.u32 32, %s20
      %s289 = smul.u32 32, %s20
      %p290 = scmp.lt.s32.totalorder %s289, 31
      %s291 = scalar_select %p290, %s289, 31
      %s292 = smul.addr %s291, 8
      %s293 = scalar_lea.vmem %s3, %s292
      %s294 = smul.u32 32, %s20
      %s295 = smul.u32 16, %s20
      %p296 = scmp.lt.s32.totalorder %s19, 1
      %s297 = scalar_select %p296, %s19, 1
      %p298 = scmp.lt.s32.totalorder %s295, 15
      %s299 = scalar_select %p298, %s295, 15
      %s300 = smul.addr %s299, 32
      %s301 = smul.addr %s297, 512
      %s302 = sadd.s32 %s300, %s301
      %s303 = smul.addr %s302, 8
      %s304 = scalar_lea.vmem %s4, %s303
      %s305 = smul.u32 16, %s20
      %v307 = vld [vmem:[%s276] sm:$0xff]
      %v308 = vld [vmem:[%s276 + $0x8] sm:$0xff]
      %v309 = vld [vmem:[%s276 + $0x10] sm:$0xff]
      %v310 = vld [vmem:[%s276 + $0x18] sm:$0xff]
      %v311 = vld [vmem:[%s276 + $0x20] sm:$0xff]
      %v312 = vld [vmem:[%s276 + $0x28] sm:$0xff]
      %v313 = vld [vmem:[%s276 + $0x30] sm:$0xff]
      %v314 = vld [vmem:[%s276 + $0x38] sm:$0xff]
      %v315 = vld [vmem:[%s276 + $0x40] sm:$0xff]
      %v316 = vld [vmem:[%s276 + $0x48] sm:$0xff]
      %v317 = vld [vmem:[%s276 + $0x50] sm:$0xff]
      %v318 = vld [vmem:[%s276 + $0x58] sm:$0xff]
      %v319 = vld [vmem:[%s276 + $0x60] sm:$0xff]
      %v320 = vld [vmem:[%s276 + $0x68] sm:$0xff]
      %v321 = vld [vmem:[%s276 + $0x70] sm:$0xff]
      %v322 = vld [vmem:[%s276 + $0x78] sm:$0xff]
      %v323 = vld [vmem:[%s276 + $0x80] sm:$0xff]
      %v324 = vld [vmem:[%s276 + $0x88] sm:$0xff]
      %v325 = vld [vmem:[%s276 + $0x90] sm:$0xff]
      %v326 = vld [vmem:[%s276 + $0x98] sm:$0xff]
      %v327 = vld [vmem:[%s276 + $0xa0] sm:$0xff]
      %v328 = vld [vmem:[%s276 + $0xa8] sm:$0xff]
      %v329 = vld [vmem:[%s276 + $0xb0] sm:$0xff]
      %v330 = vld [vmem:[%s276 + $0xb8] sm:$0xff]
      %v331 = vld [vmem:[%s276 + $0xc0] sm:$0xff]
      %v332 = vld [vmem:[%s276 + $0xc8] sm:$0xff]
      %v333 = vld [vmem:[%s276 + $0xd0] sm:$0xff]
      %v334 = vld [vmem:[%s276 + $0xd8] sm:$0xff]
      %v335 = vld [vmem:[%s276 + $0xe0] sm:$0xff]
      %v336 = vld [vmem:[%s276 + $0xe8] sm:$0xff]
      %v337 = vld [vmem:[%s276 + $0xf0] sm:$0xff]
      %v338 = vld [vmem:[%s276 + $0xf8] sm:$0xff]
      %v339 = vld [vmem:[%s276 + $0x100] sm:$0xff]
      %v340 = vld [vmem:[%s276 + $0x108] sm:$0xff]
      %v341 = vld [vmem:[%s276 + $0x110] sm:$0xff]
      %v342 = vld [vmem:[%s276 + $0x118] sm:$0xff]
      %v343 = vld [vmem:[%s276 + $0x120] sm:$0xff]
      %v344 = vld [vmem:[%s276 + $0x128] sm:$0xff]
      %v345 = vld [vmem:[%s276 + $0x130] sm:$0xff]
      %v346 = vld [vmem:[%s276 + $0x138] sm:$0xff]
      %v347 = vld [vmem:[%s276 + $0x140] sm:$0xff]
      %v348 = vld [vmem:[%s276 + $0x148] sm:$0xff]
      %v349 = vld [vmem:[%s276 + $0x150] sm:$0xff]
      %v350 = vld [vmem:[%s276 + $0x158] sm:$0xff]
      %v351 = vld [vmem:[%s276 + $0x160] sm:$0xff]
      %v352 = vld [vmem:[%s276 + $0x168] sm:$0xff]
      %v353 = vld [vmem:[%s276 + $0x170] sm:$0xff]
      %v354 = vld [vmem:[%s276 + $0x178] sm:$0xff]
      %v355 = vld [vmem:[%s276 + $0x180] sm:$0xff]
      %v356 = vld [vmem:[%s276 + $0x188] sm:$0xff]
      %v357 = vld [vmem:[%s276 + $0x190] sm:$0xff]
      %v358 = vld [vmem:[%s276 + $0x198] sm:$0xff]
      %v359 = vld [vmem:[%s276 + $0x1a0] sm:$0xff]
      %v360 = vld [vmem:[%s276 + $0x1a8] sm:$0xff]
      %v361 = vld [vmem:[%s276 + $0x1b0] sm:$0xff]
      %v362 = vld [vmem:[%s276 + $0x1b8] sm:$0xff]
      %v363 = vld [vmem:[%s276 + $0x1c0] sm:$0xff]
      %v364 = vld [vmem:[%s276 + $0x1c8] sm:$0xff]
      %v365 = vld [vmem:[%s276 + $0x1d0] sm:$0xff]
      %v366 = vld [vmem:[%s276 + $0x1d8] sm:$0xff]
      %v367 = vld [vmem:[%s276 + $0x1e0] sm:$0xff]
      %v368 = vld [vmem:[%s276 + $0x1e8] sm:$0xff]
      %v369 = vld [vmem:[%s276 + $0x1f0] sm:$0xff]
      %v370 = vld [vmem:[%s276 + $0x1f8] sm:$0xff]
      %v371 = vld [vmem:[%s276 + $0x200] sm:$0xff]
      %v372 = vld [vmem:[%s276 + $0x208] sm:$0xff]
      %v373 = vld [vmem:[%s276 + $0x210] sm:$0xff]
      %v374 = vld [vmem:[%s276 + $0x218] sm:$0xff]
      %v375 = vld [vmem:[%s276 + $0x220] sm:$0xff]
      %v376 = vld [vmem:[%s276 + $0x228] sm:$0xff]
      %v377 = vld [vmem:[%s276 + $0x230] sm:$0xff]
      %v378 = vld [vmem:[%s276 + $0x238] sm:$0xff]
      %v379 = vld [vmem:[%s276 + $0x240] sm:$0xff]
      %v380 = vld [vmem:[%s276 + $0x248] sm:$0xff]
      %v381 = vld [vmem:[%s276 + $0x250] sm:$0xff]
      %v382 = vld [vmem:[%s276 + $0x258] sm:$0xff]
      %v383 = vld [vmem:[%s276 + $0x260] sm:$0xff]
      %v384 = vld [vmem:[%s276 + $0x268] sm:$0xff]
      %v385 = vld [vmem:[%s276 + $0x270] sm:$0xff]
      %v386 = vld [vmem:[%s276 + $0x278] sm:$0xff]
      %v387 = vld [vmem:[%s276 + $0x280] sm:$0xff]
      %v388 = vld [vmem:[%s276 + $0x288] sm:$0xff]
      %v389 = vld [vmem:[%s276 + $0x290] sm:$0xff]
      %v390 = vld [vmem:[%s276 + $0x298] sm:$0xff]
      %v391 = vld [vmem:[%s276 + $0x2a0] sm:$0xff]
      %v392 = vld [vmem:[%s276 + $0x2a8] sm:$0xff]
      %v393 = vld [vmem:[%s276 + $0x2b0] sm:$0xff]
      %v394 = vld [vmem:[%s276 + $0x2b8] sm:$0xff]
      %v395 = vld [vmem:[%s276 + $0x2c0] sm:$0xff]
      %v396 = vld [vmem:[%s276 + $0x2c8] sm:$0xff]
      %v397 = vld [vmem:[%s276 + $0x2d0] sm:$0xff]
      %v398 = vld [vmem:[%s276 + $0x2d8] sm:$0xff]
      %v399 = vld [vmem:[%s276 + $0x2e0] sm:$0xff]
      %v400 = vld [vmem:[%s276 + $0x2e8] sm:$0xff]
      %v401 = vld [vmem:[%s276 + $0x2f0] sm:$0xff]
      %v402 = vld [vmem:[%s276 + $0x2f8] sm:$0xff]
      %v403 = vld [vmem:[%s276 + $0x300] sm:$0xff]
      %v404 = vld [vmem:[%s276 + $0x308] sm:$0xff]
      %v405 = vld [vmem:[%s276 + $0x310] sm:$0xff]
      %v406 = vld [vmem:[%s276 + $0x318] sm:$0xff]
      %v407 = vld [vmem:[%s276 + $0x320] sm:$0xff]
      %v408 = vld [vmem:[%s276 + $0x328] sm:$0xff]
      %v409 = vld [vmem:[%s276 + $0x330] sm:$0xff]
      %v410 = vld [vmem:[%s276 + $0x338] sm:$0xff]
      %v411 = vld [vmem:[%s276 + $0x340] sm:$0xff]
      %v412 = vld [vmem:[%s276 + $0x348] sm:$0xff]
      %v413 = vld [vmem:[%s276 + $0x350] sm:$0xff]
      %v414 = vld [vmem:[%s276 + $0x358] sm:$0xff]
      %v415 = vld [vmem:[%s276 + $0x360] sm:$0xff]
      %v416 = vld [vmem:[%s276 + $0x368] sm:$0xff]
      %v417 = vld [vmem:[%s276 + $0x370] sm:$0xff]
      %v418 = vld [vmem:[%s276 + $0x378] sm:$0xff]
      %v419 = vld [vmem:[%s276 + $0x380] sm:$0xff]
      %v420 = vld [vmem:[%s276 + $0x388] sm:$0xff]
      %v421 = vld [vmem:[%s276 + $0x390] sm:$0xff]
      %v422 = vld [vmem:[%s276 + $0x398] sm:$0xff]
      %v423 = vld [vmem:[%s276 + $0x3a0] sm:$0xff]
      %v424 = vld [vmem:[%s276 + $0x3a8] sm:$0xff]
      %v425 = vld [vmem:[%s276 + $0x3b0] sm:$0xff]
      %v426 = vld [vmem:[%s276 + $0x3b8] sm:$0xff]
      %v427 = vld [vmem:[%s276 + $0x3c0] sm:$0xff]
      %v428 = vld [vmem:[%s276 + $0x3c8] sm:$0xff]
      %v429 = vld [vmem:[%s276 + $0x3d0] sm:$0xff]
      %v430 = vld [vmem:[%s276 + $0x3d8] sm:$0xff]
      %v431 = vld [vmem:[%s276 + $0x3e0] sm:$0xff]
      %v432 = vld [vmem:[%s276 + $0x3e8] sm:$0xff]
      %v433 = vld [vmem:[%s276 + $0x3f0] sm:$0xff]
      %v434 = vld [vmem:[%s276 + $0x3f8] sm:$0xff]
      %v435 = vld [vmem:[%s276 + $0x400] sm:$0xff]
      %v436 = vld [vmem:[%s276 + $0x408] sm:$0xff]
      %v437 = vld [vmem:[%s276 + $0x410] sm:$0xff]
      %v438 = vld [vmem:[%s276 + $0x418] sm:$0xff]
      %v439 = vld [vmem:[%s276 + $0x420] sm:$0xff]
      %v440 = vld [vmem:[%s276 + $0x428] sm:$0xff]
      %v441 = vld [vmem:[%s276 + $0x430] sm:$0xff]
      %v442 = vld [vmem:[%s276 + $0x438] sm:$0xff]
      %v443 = vld [vmem:[%s276 + $0x440] sm:$0xff]
      %v444 = vld [vmem:[%s276 + $0x448] sm:$0xff]
      %v445 = vld [vmem:[%s276 + $0x450] sm:$0xff]
      %v446 = vld [vmem:[%s276 + $0x458] sm:$0xff]
      %v447 = vld [vmem:[%s276 + $0x460] sm:$0xff]
      %v448 = vld [vmem:[%s276 + $0x468] sm:$0xff]
      %v449 = vld [vmem:[%s276 + $0x470] sm:$0xff]
      %v450 = vld [vmem:[%s276 + $0x478] sm:$0xff]
      %v451 = vld [vmem:[%s276 + $0x480] sm:$0xff]
      %v452 = vld [vmem:[%s276 + $0x488] sm:$0xff]
      %v453 = vld [vmem:[%s276 + $0x490] sm:$0xff]
      %v454 = vld [vmem:[%s276 + $0x498] sm:$0xff]
      %v455 = vld [vmem:[%s276 + $0x4a0] sm:$0xff]
      %v456 = vld [vmem:[%s276 + $0x4a8] sm:$0xff]
      %v457 = vld [vmem:[%s276 + $0x4b0] sm:$0xff]
      %v458 = vld [vmem:[%s276 + $0x4b8] sm:$0xff]
      %v459 = vld [vmem:[%s276 + $0x4c0] sm:$0xff]
      %v460 = vld [vmem:[%s276 + $0x4c8] sm:$0xff]
      %v461 = vld [vmem:[%s276 + $0x4d0] sm:$0xff]
      %v462 = vld [vmem:[%s276 + $0x4d8] sm:$0xff]
      %v463 = vld [vmem:[%s276 + $0x4e0] sm:$0xff]
      %v464 = vld [vmem:[%s276 + $0x4e8] sm:$0xff]
      %v465 = vld [vmem:[%s276 + $0x4f0] sm:$0xff]
      %v466 = vld [vmem:[%s276 + $0x4f8] sm:$0xff]
      %v467 = vld [vmem:[%s276 + $0x500] sm:$0xff]
      %v468 = vld [vmem:[%s276 + $0x508] sm:$0xff]
      %v469 = vld [vmem:[%s276 + $0x510] sm:$0xff]
      %v470 = vld [vmem:[%s276 + $0x518] sm:$0xff]
      %v471 = vld [vmem:[%s276 + $0x520] sm:$0xff]
      %v472 = vld [vmem:[%s276 + $0x528] sm:$0xff]
      %v473 = vld [vmem:[%s276 + $0x530] sm:$0xff]
      %v474 = vld [vmem:[%s276 + $0x538] sm:$0xff]
      %v475 = vld [vmem:[%s276 + $0x540] sm:$0xff]
      %v476 = vld [vmem:[%s276 + $0x548] sm:$0xff]
      %v477 = vld [vmem:[%s276 + $0x550] sm:$0xff]
      %v478 = vld [vmem:[%s276 + $0x558] sm:$0xff]
      %v479 = vld [vmem:[%s276 + $0x560] sm:$0xff]
      %v480 = vld [vmem:[%s276 + $0x568] sm:$0xff]
      %v481 = vld [vmem:[%s276 + $0x570] sm:$0xff]
      %v482 = vld [vmem:[%s276 + $0x578] sm:$0xff]
      %v483 = vld [vmem:[%s276 + $0x580] sm:$0xff]
      %v484 = vld [vmem:[%s276 + $0x588] sm:$0xff]
      %v485 = vld [vmem:[%s276 + $0x590] sm:$0xff]
      %v486 = vld [vmem:[%s276 + $0x598] sm:$0xff]
      %v487 = vld [vmem:[%s276 + $0x5a0] sm:$0xff]
      %v488 = vld [vmem:[%s276 + $0x5a8] sm:$0xff]
      %v489 = vld [vmem:[%s276 + $0x5b0] sm:$0xff]
      %v490 = vld [vmem:[%s276 + $0x5b8] sm:$0xff]
      %v491 = vld [vmem:[%s276 + $0x5c0] sm:$0xff]
      %v492 = vld [vmem:[%s276 + $0x5c8] sm:$0xff]
      %v493 = vld [vmem:[%s276 + $0x5d0] sm:$0xff]
      %v494 = vld [vmem:[%s276 + $0x5d8] sm:$0xff]
      %v495 = vld [vmem:[%s276 + $0x5e0] sm:$0xff]
      %v496 = vld [vmem:[%s276 + $0x5e8] sm:$0xff]
      %v497 = vld [vmem:[%s276 + $0x5f0] sm:$0xff]
      %v498 = vld [vmem:[%s276 + $0x5f8] sm:$0xff]
      %v499 = vld [vmem:[%s276 + $0x600] sm:$0xff]
      %v500 = vld [vmem:[%s276 + $0x608] sm:$0xff]
      %v501 = vld [vmem:[%s276 + $0x610] sm:$0xff]
      %v502 = vld [vmem:[%s276 + $0x618] sm:$0xff]
      %v503 = vld [vmem:[%s276 + $0x620] sm:$0xff]
      %v504 = vld [vmem:[%s276 + $0x628] sm:$0xff]
      %v505 = vld [vmem:[%s276 + $0x630] sm:$0xff]
      %v506 = vld [vmem:[%s276 + $0x638] sm:$0xff]
      %v507 = vld [vmem:[%s276 + $0x640] sm:$0xff]
      %v508 = vld [vmem:[%s276 + $0x648] sm:$0xff]
      %v509 = vld [vmem:[%s276 + $0x650] sm:$0xff]
      %v510 = vld [vmem:[%s276 + $0x658] sm:$0xff]
      %v511 = vld [vmem:[%s276 + $0x660] sm:$0xff]
      %v512 = vld [vmem:[%s276 + $0x668] sm:$0xff]
      %v513 = vld [vmem:[%s276 + $0x670] sm:$0xff]
      %v514 = vld [vmem:[%s276 + $0x678] sm:$0xff]
      %v515 = vld [vmem:[%s276 + $0x680] sm:$0xff]
      %v516 = vld [vmem:[%s276 + $0x688] sm:$0xff]
      %v517 = vld [vmem:[%s276 + $0x690] sm:$0xff]
      %v518 = vld [vmem:[%s276 + $0x698] sm:$0xff]
      %v519 = vld [vmem:[%s276 + $0x6a0] sm:$0xff]
      %v520 = vld [vmem:[%s276 + $0x6a8] sm:$0xff]
      %v521 = vld [vmem:[%s276 + $0x6b0] sm:$0xff]
      %v522 = vld [vmem:[%s276 + $0x6b8] sm:$0xff]
      %v523 = vld [vmem:[%s276 + $0x6c0] sm:$0xff]
      %v524 = vld [vmem:[%s276 + $0x6c8] sm:$0xff]
      %v525 = vld [vmem:[%s276 + $0x6d0] sm:$0xff]
      %v526 = vld [vmem:[%s276 + $0x6d8] sm:$0xff]
      %v527 = vld [vmem:[%s276 + $0x6e0] sm:$0xff]
      %v528 = vld [vmem:[%s276 + $0x6e8] sm:$0xff]
      %v529 = vld [vmem:[%s276 + $0x6f0] sm:$0xff]
      %v530 = vld [vmem:[%s276 + $0x6f8] sm:$0xff]
      %v531 = vld [vmem:[%s276 + $0x700] sm:$0xff]
      %v532 = vld [vmem:[%s276 + $0x708] sm:$0xff]
      %v533 = vld [vmem:[%s276 + $0x710] sm:$0xff]
      %v534 = vld [vmem:[%s276 + $0x718] sm:$0xff]
      %v535 = vld [vmem:[%s276 + $0x720] sm:$0xff]
      %v536 = vld [vmem:[%s276 + $0x728] sm:$0xff]
      %v537 = vld [vmem:[%s276 + $0x730] sm:$0xff]
      %v538 = vld [vmem:[%s276 + $0x738] sm:$0xff]
      %v539 = vld [vmem:[%s276 + $0x740] sm:$0xff]
      %v540 = vld [vmem:[%s276 + $0x748] sm:$0xff]
      %v541 = vld [vmem:[%s276 + $0x750] sm:$0xff]
      %v542 = vld [vmem:[%s276 + $0x758] sm:$0xff]
      %v543 = vld [vmem:[%s276 + $0x760] sm:$0xff]
      %v544 = vld [vmem:[%s276 + $0x768] sm:$0xff]
      %v545 = vld [vmem:[%s276 + $0x770] sm:$0xff]
      %v546 = vld [vmem:[%s276 + $0x778] sm:$0xff]
      %v547 = vld [vmem:[%s276 + $0x780] sm:$0xff]
      %v548 = vld [vmem:[%s276 + $0x788] sm:$0xff]
      %v549 = vld [vmem:[%s276 + $0x790] sm:$0xff]
      %v550 = vld [vmem:[%s276 + $0x798] sm:$0xff]
      %v551 = vld [vmem:[%s276 + $0x7a0] sm:$0xff]
      %v552 = vld [vmem:[%s276 + $0x7a8] sm:$0xff]
      %v553 = vld [vmem:[%s276 + $0x7b0] sm:$0xff]
      %v554 = vld [vmem:[%s276 + $0x7b8] sm:$0xff]
      %v555 = vld [vmem:[%s276 + $0x7c0] sm:$0xff]
      %v556 = vld [vmem:[%s276 + $0x7c8] sm:$0xff]
      %v557 = vld [vmem:[%s276 + $0x7d0] sm:$0xff]
      %v558 = vld [vmem:[%s276 + $0x7d8] sm:$0xff]
      %v559 = vld [vmem:[%s276 + $0x7e0] sm:$0xff]
      %v560 = vld [vmem:[%s276 + $0x7e8] sm:$0xff]
      %v561 = vld [vmem:[%s276 + $0x7f0] sm:$0xff]
      %v562 = vld [vmem:[%s276 + $0x7f8] sm:$0xff]
      %v563 = vld [vmem:[%s276 + $0x800] sm:$0xff]
      %v564 = vld [vmem:[%s276 + $0x808] sm:$0xff]
      %v565 = vld [vmem:[%s276 + $0x810] sm:$0xff]
      %v566 = vld [vmem:[%s276 + $0x818] sm:$0xff]
      %v567 = vld [vmem:[%s276 + $0x820] sm:$0xff]
      %v568 = vld [vmem:[%s276 + $0x828] sm:$0xff]
      %v569 = vld [vmem:[%s276 + $0x830] sm:$0xff]
      %v570 = vld [vmem:[%s276 + $0x838] sm:$0xff]
      %v571 = vld [vmem:[%s276 + $0x840] sm:$0xff]
      %v572 = vld [vmem:[%s276 + $0x848] sm:$0xff]
      %v573 = vld [vmem:[%s276 + $0x850] sm:$0xff]
      %v574 = vld [vmem:[%s276 + $0x858] sm:$0xff]
      %v575 = vld [vmem:[%s276 + $0x860] sm:$0xff]
      %v576 = vld [vmem:[%s276 + $0x868] sm:$0xff]
      %v577 = vld [vmem:[%s276 + $0x870] sm:$0xff]
      %v578 = vld [vmem:[%s276 + $0x878] sm:$0xff]
      %v579 = vld [vmem:[%s276 + $0x880] sm:$0xff]
      %v580 = vld [vmem:[%s276 + $0x888] sm:$0xff]
      %v581 = vld [vmem:[%s276 + $0x890] sm:$0xff]
      %v582 = vld [vmem:[%s276 + $0x898] sm:$0xff]
      %v583 = vld [vmem:[%s276 + $0x8a0] sm:$0xff]
      %v584 = vld [vmem:[%s276 + $0x8a8] sm:$0xff]
      %v585 = vld [vmem:[%s276 + $0x8b0] sm:$0xff]
      %v586 = vld [vmem:[%s276 + $0x8b8] sm:$0xff]
      %v587 = vld [vmem:[%s276 + $0x8c0] sm:$0xff]
      %v588 = vld [vmem:[%s276 + $0x8c8] sm:$0xff]
      %v589 = vld [vmem:[%s276 + $0x8d0] sm:$0xff]
      %v590 = vld [vmem:[%s276 + $0x8d8] sm:$0xff]
      %v591 = vld [vmem:[%s276 + $0x8e0] sm:$0xff]
      %v592 = vld [vmem:[%s276 + $0x8e8] sm:$0xff]
      %v593 = vld [vmem:[%s276 + $0x8f0] sm:$0xff]
      %v594 = vld [vmem:[%s276 + $0x8f8] sm:$0xff]
      %v595 = vld [vmem:[%s276 + $0x900] sm:$0xff]
      %v596 = vld [vmem:[%s276 + $0x908] sm:$0xff]
      %v597 = vld [vmem:[%s276 + $0x910] sm:$0xff]
      %v598 = vld [vmem:[%s276 + $0x918] sm:$0xff]
      %v599 = vld [vmem:[%s276 + $0x920] sm:$0xff]
      %v600 = vld [vmem:[%s276 + $0x928] sm:$0xff]
      %v601 = vld [vmem:[%s276 + $0x930] sm:$0xff]
      %v602 = vld [vmem:[%s276 + $0x938] sm:$0xff]
      %v603 = vld [vmem:[%s276 + $0x940] sm:$0xff]
      %v604 = vld [vmem:[%s276 + $0x948] sm:$0xff]
      %v605 = vld [vmem:[%s276 + $0x950] sm:$0xff]
      %v606 = vld [vmem:[%s276 + $0x958] sm:$0xff]
      %v607 = vld [vmem:[%s276 + $0x960] sm:$0xff]
      %v608 = vld [vmem:[%s276 + $0x968] sm:$0xff]
      %v609 = vld [vmem:[%s276 + $0x970] sm:$0xff]
      %v610 = vld [vmem:[%s276 + $0x978] sm:$0xff]
      %v611 = vld [vmem:[%s276 + $0x980] sm:$0xff]
      %v612 = vld [vmem:[%s276 + $0x988] sm:$0xff]
      %v613 = vld [vmem:[%s276 + $0x990] sm:$0xff]
      %v614 = vld [vmem:[%s276 + $0x998] sm:$0xff]
      %v615 = vld [vmem:[%s276 + $0x9a0] sm:$0xff]
      %v616 = vld [vmem:[%s276 + $0x9a8] sm:$0xff]
      %v617 = vld [vmem:[%s276 + $0x9b0] sm:$0xff]
      %v618 = vld [vmem:[%s276 + $0x9b8] sm:$0xff]
      %v619 = vld [vmem:[%s276 + $0x9c0] sm:$0xff]
      %v620 = vld [vmem:[%s276 + $0x9c8] sm:$0xff]
      %v621 = vld [vmem:[%s276 + $0x9d0] sm:$0xff]
      %v622 = vld [vmem:[%s276 + $0x9d8] sm:$0xff]
      %v623 = vld [vmem:[%s276 + $0x9e0] sm:$0xff]
      %v624 = vld [vmem:[%s276 + $0x9e8] sm:$0xff]
      %v625 = vld [vmem:[%s276 + $0x9f0] sm:$0xff]
      %v626 = vld [vmem:[%s276 + $0x9f8] sm:$0xff]
      %v627 = vld [vmem:[%s276 + $0xa00] sm:$0xff]
      %v628 = vld [vmem:[%s276 + $0xa08] sm:$0xff]
      %v629 = vld [vmem:[%s276 + $0xa10] sm:$0xff]
      %v630 = vld [vmem:[%s276 + $0xa18] sm:$0xff]
      %v631 = vld [vmem:[%s276 + $0xa20] sm:$0xff]
      %v632 = vld [vmem:[%s276 + $0xa28] sm:$0xff]
      %v633 = vld [vmem:[%s276 + $0xa30] sm:$0xff]
      %v634 = vld [vmem:[%s276 + $0xa38] sm:$0xff]
      %v635 = vld [vmem:[%s276 + $0xa40] sm:$0xff]
      %v636 = vld [vmem:[%s276 + $0xa48] sm:$0xff]
      %v637 = vld [vmem:[%s276 + $0xa50] sm:$0xff]
      %v638 = vld [vmem:[%s276 + $0xa58] sm:$0xff]
      %v639 = vld [vmem:[%s276 + $0xa60] sm:$0xff]
      %v640 = vld [vmem:[%s276 + $0xa68] sm:$0xff]
      %v641 = vld [vmem:[%s276 + $0xa70] sm:$0xff]
      %v642 = vld [vmem:[%s276 + $0xa78] sm:$0xff]
      %v643 = vld [vmem:[%s276 + $0xa80] sm:$0xff]
      %v644 = vld [vmem:[%s276 + $0xa88] sm:$0xff]
      %v645 = vld [vmem:[%s276 + $0xa90] sm:$0xff]
      %v646 = vld [vmem:[%s276 + $0xa98] sm:$0xff]
      %v647 = vld [vmem:[%s276 + $0xaa0] sm:$0xff]
      %v648 = vld [vmem:[%s276 + $0xaa8] sm:$0xff]
      %v649 = vld [vmem:[%s276 + $0xab0] sm:$0xff]
      %v650 = vld [vmem:[%s276 + $0xab8] sm:$0xff]
      %v651 = vld [vmem:[%s276 + $0xac0] sm:$0xff]
      %v652 = vld [vmem:[%s276 + $0xac8] sm:$0xff]
      %v653 = vld [vmem:[%s276 + $0xad0] sm:$0xff]
      %v654 = vld [vmem:[%s276 + $0xad8] sm:$0xff]
      %v655 = vld [vmem:[%s276 + $0xae0] sm:$0xff]
      %v656 = vld [vmem:[%s276 + $0xae8] sm:$0xff]
      %v657 = vld [vmem:[%s276 + $0xaf0] sm:$0xff]
      %v658 = vld [vmem:[%s276 + $0xaf8] sm:$0xff]
      %v659 = vld [vmem:[%s276 + $0xb00] sm:$0xff]
      %v660 = vld [vmem:[%s276 + $0xb08] sm:$0xff]
      %v661 = vld [vmem:[%s276 + $0xb10] sm:$0xff]
      %v662 = vld [vmem:[%s276 + $0xb18] sm:$0xff]
      %v663 = vld [vmem:[%s276 + $0xb20] sm:$0xff]
      %v664 = vld [vmem:[%s276 + $0xb28] sm:$0xff]
      %v665 = vld [vmem:[%s276 + $0xb30] sm:$0xff]
      %v666 = vld [vmem:[%s276 + $0xb38] sm:$0xff]
      %v667 = vld [vmem:[%s276 + $0xb40] sm:$0xff]
      %v668 = vld [vmem:[%s276 + $0xb48] sm:$0xff]
      %v669 = vld [vmem:[%s276 + $0xb50] sm:$0xff]
      %v670 = vld [vmem:[%s276 + $0xb58] sm:$0xff]
      %v671 = vld [vmem:[%s276 + $0xb60] sm:$0xff]
      %v672 = vld [vmem:[%s276 + $0xb68] sm:$0xff]
      %v673 = vld [vmem:[%s276 + $0xb70] sm:$0xff]
      %v674 = vld [vmem:[%s276 + $0xb78] sm:$0xff]
      %v675 = vld [vmem:[%s276 + $0xb80] sm:$0xff]
      %v676 = vld [vmem:[%s276 + $0xb88] sm:$0xff]
      %v677 = vld [vmem:[%s276 + $0xb90] sm:$0xff]
      %v678 = vld [vmem:[%s276 + $0xb98] sm:$0xff]
      %v679 = vld [vmem:[%s276 + $0xba0] sm:$0xff]
      %v680 = vld [vmem:[%s276 + $0xba8] sm:$0xff]
      %v681 = vld [vmem:[%s276 + $0xbb0] sm:$0xff]
      %v682 = vld [vmem:[%s276 + $0xbb8] sm:$0xff]
      %v683 = vld [vmem:[%s276 + $0xbc0] sm:$0xff]
      %v684 = vld [vmem:[%s276 + $0xbc8] sm:$0xff]
      %v685 = vld [vmem:[%s276 + $0xbd0] sm:$0xff]
      %v686 = vld [vmem:[%s276 + $0xbd8] sm:$0xff]
      %v687 = vld [vmem:[%s276 + $0xbe0] sm:$0xff]
      %v688 = vld [vmem:[%s276 + $0xbe8] sm:$0xff]
      %v689 = vld [vmem:[%s276 + $0xbf0] sm:$0xff]
      %v690 = vld [vmem:[%s276 + $0xbf8] sm:$0xff]
      %v691 = vld [vmem:[%s276 + $0xc00] sm:$0xff]
      %v692 = vld [vmem:[%s276 + $0xc08] sm:$0xff]
      %v693 = vld [vmem:[%s276 + $0xc10] sm:$0xff]
      %v694 = vld [vmem:[%s276 + $0xc18] sm:$0xff]
      %v695 = vld [vmem:[%s276 + $0xc20] sm:$0xff]
      %v696 = vld [vmem:[%s276 + $0xc28] sm:$0xff]
      %v697 = vld [vmem:[%s276 + $0xc30] sm:$0xff]
      %v698 = vld [vmem:[%s276 + $0xc38] sm:$0xff]
      %v699 = vld [vmem:[%s276 + $0xc40] sm:$0xff]
      %v700 = vld [vmem:[%s276 + $0xc48] sm:$0xff]
      %v701 = vld [vmem:[%s276 + $0xc50] sm:$0xff]
      %v702 = vld [vmem:[%s276 + $0xc58] sm:$0xff]
      %v703 = vld [vmem:[%s276 + $0xc60] sm:$0xff]
      %v704 = vld [vmem:[%s276 + $0xc68] sm:$0xff]
      %v705 = vld [vmem:[%s276 + $0xc70] sm:$0xff]
      %v706 = vld [vmem:[%s276 + $0xc78] sm:$0xff]
      %v707 = vld [vmem:[%s276 + $0xc80] sm:$0xff]
      %v708 = vld [vmem:[%s276 + $0xc88] sm:$0xff]
      %v709 = vld [vmem:[%s276 + $0xc90] sm:$0xff]
      %v710 = vld [vmem:[%s276 + $0xc98] sm:$0xff]
      %v711 = vld [vmem:[%s276 + $0xca0] sm:$0xff]
      %v712 = vld [vmem:[%s276 + $0xca8] sm:$0xff]
      %v713 = vld [vmem:[%s276 + $0xcb0] sm:$0xff]
      %v714 = vld [vmem:[%s276 + $0xcb8] sm:$0xff]
      %v715 = vld [vmem:[%s276 + $0xcc0] sm:$0xff]
      %v716 = vld [vmem:[%s276 + $0xcc8] sm:$0xff]
      %v717 = vld [vmem:[%s276 + $0xcd0] sm:$0xff]
      %v718 = vld [vmem:[%s276 + $0xcd8] sm:$0xff]
      %v719 = vld [vmem:[%s276 + $0xce0] sm:$0xff]
      %v720 = vld [vmem:[%s276 + $0xce8] sm:$0xff]
      %v721 = vld [vmem:[%s276 + $0xcf0] sm:$0xff]
      %v722 = vld [vmem:[%s276 + $0xcf8] sm:$0xff]
      %v723 = vld [vmem:[%s276 + $0xd00] sm:$0xff]
      %v724 = vld [vmem:[%s276 + $0xd08] sm:$0xff]
      %v725 = vld [vmem:[%s276 + $0xd10] sm:$0xff]
      %v726 = vld [vmem:[%s276 + $0xd18] sm:$0xff]
      %v727 = vld [vmem:[%s276 + $0xd20] sm:$0xff]
      %v728 = vld [vmem:[%s276 + $0xd28] sm:$0xff]
      %v729 = vld [vmem:[%s276 + $0xd30] sm:$0xff]
      %v730 = vld [vmem:[%s276 + $0xd38] sm:$0xff]
      %v731 = vld [vmem:[%s276 + $0xd40] sm:$0xff]
      %v732 = vld [vmem:[%s276 + $0xd48] sm:$0xff]
      %v733 = vld [vmem:[%s276 + $0xd50] sm:$0xff]
      %v734 = vld [vmem:[%s276 + $0xd58] sm:$0xff]
      %v735 = vld [vmem:[%s276 + $0xd60] sm:$0xff]
      %v736 = vld [vmem:[%s276 + $0xd68] sm:$0xff]
      %v737 = vld [vmem:[%s276 + $0xd70] sm:$0xff]
      %v738 = vld [vmem:[%s276 + $0xd78] sm:$0xff]
      %v739 = vld [vmem:[%s276 + $0xd80] sm:$0xff]
      %v740 = vld [vmem:[%s276 + $0xd88] sm:$0xff]
      %v741 = vld [vmem:[%s276 + $0xd90] sm:$0xff]
      %v742 = vld [vmem:[%s276 + $0xd98] sm:$0xff]
      %v743 = vld [vmem:[%s276 + $0xda0] sm:$0xff]
      %v744 = vld [vmem:[%s276 + $0xda8] sm:$0xff]
      %v745 = vld [vmem:[%s276 + $0xdb0] sm:$0xff]
      %v746 = vld [vmem:[%s276 + $0xdb8] sm:$0xff]
      %v747 = vld [vmem:[%s276 + $0xdc0] sm:$0xff]
      %v748 = vld [vmem:[%s276 + $0xdc8] sm:$0xff]
      %v749 = vld [vmem:[%s276 + $0xdd0] sm:$0xff]
      %v750 = vld [vmem:[%s276 + $0xdd8] sm:$0xff]
      %v751 = vld [vmem:[%s276 + $0xde0] sm:$0xff]
      %v752 = vld [vmem:[%s276 + $0xde8] sm:$0xff]
      %v753 = vld [vmem:[%s276 + $0xdf0] sm:$0xff]
      %v754 = vld [vmem:[%s276 + $0xdf8] sm:$0xff]
      %v755 = vld [vmem:[%s276 + $0xe00] sm:$0xff]
      %v756 = vld [vmem:[%s276 + $0xe08] sm:$0xff]
      %v757 = vld [vmem:[%s276 + $0xe10] sm:$0xff]
      %v758 = vld [vmem:[%s276 + $0xe18] sm:$0xff]
      %v759 = vld [vmem:[%s276 + $0xe20] sm:$0xff]
      %v760 = vld [vmem:[%s276 + $0xe28] sm:$0xff]
      %v761 = vld [vmem:[%s276 + $0xe30] sm:$0xff]
      %v762 = vld [vmem:[%s276 + $0xe38] sm:$0xff]
      %v763 = vld [vmem:[%s276 + $0xe40] sm:$0xff]
      %v764 = vld [vmem:[%s276 + $0xe48] sm:$0xff]
      %v765 = vld [vmem:[%s276 + $0xe50] sm:$0xff]
      %v766 = vld [vmem:[%s276 + $0xe58] sm:$0xff]
      %v767 = vld [vmem:[%s276 + $0xe60] sm:$0xff]
      %v768 = vld [vmem:[%s276 + $0xe68] sm:$0xff]
      %v769 = vld [vmem:[%s276 + $0xe70] sm:$0xff]
      %v770 = vld [vmem:[%s276 + $0xe78] sm:$0xff]
      %v771 = vld [vmem:[%s276 + $0xe80] sm:$0xff]
      %v772 = vld [vmem:[%s276 + $0xe88] sm:$0xff]
      %v773 = vld [vmem:[%s276 + $0xe90] sm:$0xff]
      %v774 = vld [vmem:[%s276 + $0xe98] sm:$0xff]
      %v775 = vld [vmem:[%s276 + $0xea0] sm:$0xff]
      %v776 = vld [vmem:[%s276 + $0xea8] sm:$0xff]
      %v777 = vld [vmem:[%s276 + $0xeb0] sm:$0xff]
      %v778 = vld [vmem:[%s276 + $0xeb8] sm:$0xff]
      %v779 = vld [vmem:[%s276 + $0xec0] sm:$0xff]
      %v780 = vld [vmem:[%s276 + $0xec8] sm:$0xff]
      %v781 = vld [vmem:[%s276 + $0xed0] sm:$0xff]
      %v782 = vld [vmem:[%s276 + $0xed8] sm:$0xff]
      %v783 = vld [vmem:[%s276 + $0xee0] sm:$0xff]
      %v784 = vld [vmem:[%s276 + $0xee8] sm:$0xff]
      %v785 = vld [vmem:[%s276 + $0xef0] sm:$0xff]
      %v786 = vld [vmem:[%s276 + $0xef8] sm:$0xff]
      %v787 = vld [vmem:[%s276 + $0xf00] sm:$0xff]
      %v788 = vld [vmem:[%s276 + $0xf08] sm:$0xff]
      %v789 = vld [vmem:[%s276 + $0xf10] sm:$0xff]
      %v790 = vld [vmem:[%s276 + $0xf18] sm:$0xff]
      %v791 = vld [vmem:[%s276 + $0xf20] sm:$0xff]
      %v792 = vld [vmem:[%s276 + $0xf28] sm:$0xff]
      %v793 = vld [vmem:[%s276 + $0xf30] sm:$0xff]
      %v794 = vld [vmem:[%s276 + $0xf38] sm:$0xff]
      %v795 = vld [vmem:[%s276 + $0xf40] sm:$0xff]
      %v796 = vld [vmem:[%s276 + $0xf48] sm:$0xff]
      %v797 = vld [vmem:[%s276 + $0xf50] sm:$0xff]
      %v798 = vld [vmem:[%s276 + $0xf58] sm:$0xff]
      %v799 = vld [vmem:[%s276 + $0xf60] sm:$0xff]
      %v800 = vld [vmem:[%s276 + $0xf68] sm:$0xff]
      %v801 = vld [vmem:[%s276 + $0xf70] sm:$0xff]
      %v802 = vld [vmem:[%s276 + $0xf78] sm:$0xff]
      %v803 = vld [vmem:[%s276 + $0xf80] sm:$0xff]
      %v804 = vld [vmem:[%s276 + $0xf88] sm:$0xff]
      %v805 = vld [vmem:[%s276 + $0xf90] sm:$0xff]
      %v806 = vld [vmem:[%s276 + $0xf98] sm:$0xff]
      %v807 = vld [vmem:[%s276 + $0xfa0] sm:$0xff]
      %v808 = vld [vmem:[%s276 + $0xfa8] sm:$0xff]
      %v809 = vld [vmem:[%s276 + $0xfb0] sm:$0xff]
      %v810 = vld [vmem:[%s276 + $0xfb8] sm:$0xff]
      %v811 = vld [vmem:[%s276 + $0xfc0] sm:$0xff]
      %v812 = vld [vmem:[%s276 + $0xfc8] sm:$0xff]
      %v813 = vld [vmem:[%s276 + $0xfd0] sm:$0xff]
      %v814 = vld [vmem:[%s276 + $0xfd8] sm:$0xff]
      %v815 = vld [vmem:[%s276 + $0xfe0] sm:$0xff]
      %v816 = vld [vmem:[%s276 + $0xfe8] sm:$0xff]
      %v817 = vld [vmem:[%s276 + $0xff0] sm:$0xff]
      %v818 = vld [vmem:[%s276 + $0xff8] sm:$0xff]
      %v819 = vadd.f32 %v307, %v308
      %v820 = vadd.f32 %v819, %v309
      %v821 = vadd.f32 %v820, %v310
      %v822 = vadd.f32 %v821, %v311
      %v823 = vadd.f32 %v822, %v312
      %v824 = vadd.f32 %v823, %v313
      %v825 = vadd.f32 %v824, %v314
      %v826 = vadd.f32 %v825, %v315
      %v827 = vadd.f32 %v826, %v316
      %v828 = vadd.f32 %v827, %v317
      %v829 = vadd.f32 %v828, %v318
      %v830 = vadd.f32 %v829, %v319
      %v831 = vadd.f32 %v830, %v320
      %v832 = vadd.f32 %v831, %v321
      %v833 = vadd.f32 %v832, %v322
      %v834 = vadd.f32 %v833, %v323
      %v835 = vadd.f32 %v834, %v324
      %v836 = vadd.f32 %v835, %v325
      %v837 = vadd.f32 %v836, %v326
      %v838 = vadd.f32 %v837, %v327
      %v839 = vadd.f32 %v838, %v328
      %v840 = vadd.f32 %v839, %v329
      %v841 = vadd.f32 %v840, %v330
      %v842 = vadd.f32 %v841, %v331
      %v843 = vadd.f32 %v842, %v332
      %v844 = vadd.f32 %v843, %v333
      %v845 = vadd.f32 %v844, %v334
      %v846 = vadd.f32 %v845, %v335
      %v847 = vadd.f32 %v846, %v336
      %v848 = vadd.f32 %v847, %v337
      %v849 = vadd.f32 %v848, %v338
      %850 = vadd.xlane.f32.xlu0 %v849
      %v851 = vpop.xlane.xlu0 %850
      %v852 = vadd.f32 %v339, %v340
      %v853 = vadd.f32 %v852, %v341
      %v854 = vadd.f32 %v853, %v342
      %v855 = vadd.f32 %v854, %v343
      %v856 = vadd.f32 %v855, %v344
      %v857 = vadd.f32 %v856, %v345
      %v858 = vadd.f32 %v857, %v346
      %v859 = vadd.f32 %v858, %v347
      %v860 = vadd.f32 %v859, %v348
      %v861 = vadd.f32 %v860, %v349
      %v862 = vadd.f32 %v861, %v350
      %v863 = vadd.f32 %v862, %v351
      %v864 = vadd.f32 %v863, %v352
      %v865 = vadd.f32 %v864, %v353
      %v866 = vadd.f32 %v865, %v354
      %v867 = vadd.f32 %v866, %v355
      %v868 = vadd.f32 %v867, %v356
      %v869 = vadd.f32 %v868, %v357
      %v870 = vadd.f32 %v869, %v358
      %v871 = vadd.f32 %v870, %v359
      %v872 = vadd.f32 %v871, %v360
      %v873 = vadd.f32 %v872, %v361
      %v874 = vadd.f32 %v873, %v362
      %v875 = vadd.f32 %v874, %v363
      %v876 = vadd.f32 %v875, %v364
      %v877 = vadd.f32 %v876, %v365
      %v878 = vadd.f32 %v877, %v366
      %v879 = vadd.f32 %v878, %v367
      %v880 = vadd.f32 %v879, %v368
      %v881 = vadd.f32 %v880, %v369
      %v882 = vadd.f32 %v881, %v370
      %883 = vadd.xlane.f32.xlu0 %v882
      %v884 = vpop.xlane.xlu0 %883
      %v885 = vadd.f32 %v371, %v372
      %v886 = vadd.f32 %v885, %v373
      %v887 = vadd.f32 %v886, %v374
      %v888 = vadd.f32 %v887, %v375
      %v889 = vadd.f32 %v888, %v376
      %v890 = vadd.f32 %v889, %v377
      %v891 = vadd.f32 %v890, %v378
      %v892 = vadd.f32 %v891, %v379
      %v893 = vadd.f32 %v892, %v380
      %v894 = vadd.f32 %v893, %v381
      %v895 = vadd.f32 %v894, %v382
      %v896 = vadd.f32 %v895, %v383
      %v897 = vadd.f32 %v896, %v384
      %v898 = vadd.f32 %v897, %v385
      %v899 = vadd.f32 %v898, %v386
      %v900 = vadd.f32 %v899, %v387
      %v901 = vadd.f32 %v900, %v388
      %v902 = vadd.f32 %v901, %v389
      %v903 = vadd.f32 %v902, %v390
      %v904 = vadd.f32 %v903, %v391
      %v905 = vadd.f32 %v904, %v392
      %v906 = vadd.f32 %v905, %v393
      %v907 = vadd.f32 %v906, %v394
      %v908 = vadd.f32 %v907, %v395
      %v909 = vadd.f32 %v908, %v396
      %v910 = vadd.f32 %v909, %v397
      %v911 = vadd.f32 %v910, %v398
      %v912 = vadd.f32 %v911, %v399
      %v913 = vadd.f32 %v912, %v400
      %v914 = vadd.f32 %v913, %v401
      %v915 = vadd.f32 %v914, %v402
      %916 = vadd.xlane.f32.xlu0 %v915
      %v917 = vpop.xlane.xlu0 %916
      %v918 = vadd.f32 %v403, %v404
      %v919 = vadd.f32 %v918, %v405
      %v920 = vadd.f32 %v919, %v406
      %v921 = vadd.f32 %v920, %v407
      %v922 = vadd.f32 %v921, %v408
      %v923 = vadd.f32 %v922, %v409
      %v924 = vadd.f32 %v923, %v410
      %v925 = vadd.f32 %v924, %v411
      %v926 = vadd.f32 %v925, %v412
      %v927 = vadd.f32 %v926, %v413
      %v928 = vadd.f32 %v927, %v414
      %v929 = vadd.f32 %v928, %v415
      %v930 = vadd.f32 %v929, %v416
      %v931 = vadd.f32 %v930, %v417
      %v932 = vadd.f32 %v931, %v418
      %v933 = vadd.f32 %v932, %v419
      %v934 = vadd.f32 %v933, %v420
      %v935 = vadd.f32 %v934, %v421
      %v936 = vadd.f32 %v935, %v422
      %v937 = vadd.f32 %v936, %v423
      %v938 = vadd.f32 %v937, %v424
      %v939 = vadd.f32 %v938, %v425
      %v940 = vadd.f32 %v939, %v426
      %v941 = vadd.f32 %v940, %v427
      %v942 = vadd.f32 %v941, %v428
      %v943 = vadd.f32 %v942, %v429
      %v944 = vadd.f32 %v943, %v430
      %v945 = vadd.f32 %v944, %v431
      %v946 = vadd.f32 %v945, %v432
      %v947 = vadd.f32 %v946, %v433
      %v948 = vadd.f32 %v947, %v434
      %949 = vadd.xlane.f32.xlu0 %v948
      %v950 = vpop.xlane.xlu0 %949
      %v951 = vadd.f32 %v435, %v436
      %v952 = vadd.f32 %v951, %v437
      %v953 = vadd.f32 %v952, %v438
      %v954 = vadd.f32 %v953, %v439
      %v955 = vadd.f32 %v954, %v440
      %v956 = vadd.f32 %v955, %v441
      %v957 = vadd.f32 %v956, %v442
      %v958 = vadd.f32 %v957, %v443
      %v959 = vadd.f32 %v958, %v444
      %v960 = vadd.f32 %v959, %v445
      %v961 = vadd.f32 %v960, %v446
      %v962 = vadd.f32 %v961, %v447
      %v963 = vadd.f32 %v962, %v448
      %v964 = vadd.f32 %v963, %v449
      %v965 = vadd.f32 %v964, %v450
      %v966 = vadd.f32 %v965, %v451
      %v967 = vadd.f32 %v966, %v452
      %v968 = vadd.f32 %v967, %v453
      %v969 = vadd.f32 %v968, %v454
      %v970 = vadd.f32 %v969, %v455
      %v971 = vadd.f32 %v970, %v456
      %v972 = vadd.f32 %v971, %v457
      %v973 = vadd.f32 %v972, %v458
      %v974 = vadd.f32 %v973, %v459
      %v975 = vadd.f32 %v974, %v460
      %v976 = vadd.f32 %v975, %v461
      %v977 = vadd.f32 %v976, %v462
      %v978 = vadd.f32 %v977, %v463
      %v979 = vadd.f32 %v978, %v464
      %v980 = vadd.f32 %v979, %v465
      %v981 = vadd.f32 %v980, %v466
      %982 = vadd.xlane.f32.xlu0 %v981
      %v983 = vpop.xlane.xlu0 %982
      %v984 = vadd.f32 %v467, %v468
      %v985 = vadd.f32 %v984, %v469
      %v986 = vadd.f32 %v985, %v470
      %v987 = vadd.f32 %v986, %v471
      %v988 = vadd.f32 %v987, %v472
      %v989 = vadd.f32 %v988, %v473
      %v990 = vadd.f32 %v989, %v474
      %v991 = vadd.f32 %v990, %v475
      %v992 = vadd.f32 %v991, %v476
      %v993 = vadd.f32 %v992, %v477
      %v994 = vadd.f32 %v993, %v478
      %v995 = vadd.f32 %v994, %v479
      %v996 = vadd.f32 %v995, %v480
      %v997 = vadd.f32 %v996, %v481
      %v998 = vadd.f32 %v997, %v482
      %v999 = vadd.f32 %v998, %v483
      %v1000 = vadd.f32 %v999, %v484
      %v1001 = vadd.f32 %v1000, %v485
      %v1002 = vadd.f32 %v1001, %v486
      %v1003 = vadd.f32 %v1002, %v487
      %v1004 = vadd.f32 %v1003, %v488
      %v1005 = vadd.f32 %v1004, %v489
      %v1006 = vadd.f32 %v1005, %v490
      %v1007 = vadd.f32 %v1006, %v491
      %v1008 = vadd.f32 %v1007, %v492
      %v1009 = vadd.f32 %v1008, %v493
      %v1010 = vadd.f32 %v1009, %v494
      %v1011 = vadd.f32 %v1010, %v495
      %v1012 = vadd.f32 %v1011, %v496
      %v1013 = vadd.f32 %v1012, %v497
      %v1014 = vadd.f32 %v1013, %v498
      %1015 = vadd.xlane.f32.xlu0 %v1014
      %v1016 = vpop.xlane.xlu0 %1015
      %v1017 = vadd.f32 %v499, %v500
      %v1018 = vadd.f32 %v1017, %v501
      %v1019 = vadd.f32 %v1018, %v502
      %v1020 = vadd.f32 %v1019, %v503
      %v1021 = vadd.f32 %v1020, %v504
      %v1022 = vadd.f32 %v1021, %v505
      %v1023 = vadd.f32 %v1022, %v506
      %v1024 = vadd.f32 %v1023, %v507
      %v1025 = vadd.f32 %v1024, %v508
      %v1026 = vadd.f32 %v1025, %v509
      %v1027 = vadd.f32 %v1026, %v510
      %v1028 = vadd.f32 %v1027, %v511
      %v1029 = vadd.f32 %v1028, %v512
      %v1030 = vadd.f32 %v1029, %v513
      %v1031 = vadd.f32 %v1030, %v514
      %v1032 = vadd.f32 %v1031, %v515
      %v1033 = vadd.f32 %v1032, %v516
      %v1034 = vadd.f32 %v1033, %v517
      %v1035 = vadd.f32 %v1034, %v518
      %v1036 = vadd.f32 %v1035, %v519
      %v1037 = vadd.f32 %v1036, %v520
      %v1038 = vadd.f32 %v1037, %v521
      %v1039 = vadd.f32 %v1038, %v522
      %v1040 = vadd.f32 %v1039, %v523
      %v1041 = vadd.f32 %v1040, %v524
      %v1042 = vadd.f32 %v1041, %v525
      %v1043 = vadd.f32 %v1042, %v526
      %v1044 = vadd.f32 %v1043, %v527
      %v1045 = vadd.f32 %v1044, %v528
      %v1046 = vadd.f32 %v1045, %v529
      %v1047 = vadd.f32 %v1046, %v530
      %1048 = vadd.xlane.f32.xlu0 %v1047
      %v1049 = vpop.xlane.xlu0 %1048
      %v1050 = vadd.f32 %v531, %v532
      %v1051 = vadd.f32 %v1050, %v533
      %v1052 = vadd.f32 %v1051, %v534
      %v1053 = vadd.f32 %v1052, %v535
      %v1054 = vadd.f32 %v1053, %v536
      %v1055 = vadd.f32 %v1054, %v537
      %v1056 = vadd.f32 %v1055, %v538
      %v1057 = vadd.f32 %v1056, %v539
      %v1058 = vadd.f32 %v1057, %v540
      %v1059 = vadd.f32 %v1058, %v541
      %v1060 = vadd.f32 %v1059, %v542
      %v1061 = vadd.f32 %v1060, %v543
      %v1062 = vadd.f32 %v1061, %v544
      %v1063 = vadd.f32 %v1062, %v545
      %v1064 = vadd.f32 %v1063, %v546
      %v1065 = vadd.f32 %v1064, %v547
      %v1066 = vadd.f32 %v1065, %v548
      %v1067 = vadd.f32 %v1066, %v549
      %v1068 = vadd.f32 %v1067, %v550
      %v1069 = vadd.f32 %v1068, %v551
      %v1070 = vadd.f32 %v1069, %v552
      %v1071 = vadd.f32 %v1070, %v553
      %v1072 = vadd.f32 %v1071, %v554
      %v1073 = vadd.f32 %v1072, %v555
      %v1074 = vadd.f32 %v1073, %v556
      %v1075 = vadd.f32 %v1074, %v557
      %v1076 = vadd.f32 %v1075, %v558
      %v1077 = vadd.f32 %v1076, %v559
      %v1078 = vadd.f32 %v1077, %v560
      %v1079 = vadd.f32 %v1078, %v561
      %v1080 = vadd.f32 %v1079, %v562
      %1081 = vadd.xlane.f32.xlu0 %v1080
      %v1082 = vpop.xlane.xlu0 %1081
      %v1083 = vadd.f32 %v563, %v564
      %v1084 = vadd.f32 %v1083, %v565
      %v1085 = vadd.f32 %v1084, %v566
      %v1086 = vadd.f32 %v1085, %v567
      %v1087 = vadd.f32 %v1086, %v568
      %v1088 = vadd.f32 %v1087, %v569
      %v1089 = vadd.f32 %v1088, %v570
      %v1090 = vadd.f32 %v1089, %v571
      %v1091 = vadd.f32 %v1090, %v572
      %v1092 = vadd.f32 %v1091, %v573
      %v1093 = vadd.f32 %v1092, %v574
      %v1094 = vadd.f32 %v1093, %v575
      %v1095 = vadd.f32 %v1094, %v576
      %v1096 = vadd.f32 %v1095, %v577
      %v1097 = vadd.f32 %v1096, %v578
      %v1098 = vadd.f32 %v1097, %v579
      %v1099 = vadd.f32 %v1098, %v580
      %v1100 = vadd.f32 %v1099, %v581
      %v1101 = vadd.f32 %v1100, %v582
      %v1102 = vadd.f32 %v1101, %v583
      %v1103 = vadd.f32 %v1102, %v584
      %v1104 = vadd.f32 %v1103, %v585
      %v1105 = vadd.f32 %v1104, %v586
      %v1106 = vadd.f32 %v1105, %v587
      %v1107 = vadd.f32 %v1106, %v588
      %v1108 = vadd.f32 %v1107, %v589
      %v1109 = vadd.f32 %v1108, %v590
      %v1110 = vadd.f32 %v1109, %v591
      %v1111 = vadd.f32 %v1110, %v592
      %v1112 = vadd.f32 %v1111, %v593
      %v1113 = vadd.f32 %v1112, %v594
      %1114 = vadd.xlane.f32.xlu0 %v1113
      %v1115 = vpop.xlane.xlu0 %1114
      %v1116 = vadd.f32 %v595, %v596
      %v1117 = vadd.f32 %v1116, %v597
      %v1118 = vadd.f32 %v1117, %v598
      %v1119 = vadd.f32 %v1118, %v599
      %v1120 = vadd.f32 %v1119, %v600
      %v1121 = vadd.f32 %v1120, %v601
      %v1122 = vadd.f32 %v1121, %v602
      %v1123 = vadd.f32 %v1122, %v603
      %v1124 = vadd.f32 %v1123, %v604
      %v1125 = vadd.f32 %v1124, %v605
      %v1126 = vadd.f32 %v1125, %v606
      %v1127 = vadd.f32 %v1126, %v607
      %v1128 = vadd.f32 %v1127, %v608
      %v1129 = vadd.f32 %v1128, %v609
      %v1130 = vadd.f32 %v1129, %v610
      %v1131 = vadd.f32 %v1130, %v611
      %v1132 = vadd.f32 %v1131, %v612
      %v1133 = vadd.f32 %v1132, %v613
      %v1134 = vadd.f32 %v1133, %v614
      %v1135 = vadd.f32 %v1134, %v615
      %v1136 = vadd.f32 %v1135, %v616
      %v1137 = vadd.f32 %v1136, %v617
      %v1138 = vadd.f32 %v1137, %v618
      %v1139 = vadd.f32 %v1138, %v619
      %v1140 = vadd.f32 %v1139, %v620
      %v1141 = vadd.f32 %v1140, %v621
      %v1142 = vadd.f32 %v1141, %v622
      %v1143 = vadd.f32 %v1142, %v623
      %v1144 = vadd.f32 %v1143, %v624
      %v1145 = vadd.f32 %v1144, %v625
      %v1146 = vadd.f32 %v1145, %v626
      %1147 = vadd.xlane.f32.xlu0 %v1146
      %v1148 = vpop.xlane.xlu0 %1147
      %v1149 = vadd.f32 %v627, %v628
      %v1150 = vadd.f32 %v1149, %v629
      %v1151 = vadd.f32 %v1150, %v630
      %v1152 = vadd.f32 %v1151, %v631
      %v1153 = vadd.f32 %v1152, %v632
      %v1154 = vadd.f32 %v1153, %v633
      %v1155 = vadd.f32 %v1154, %v634
      %v1156 = vadd.f32 %v1155, %v635
      %v1157 = vadd.f32 %v1156, %v636
      %v1158 = vadd.f32 %v1157, %v637
      %v1159 = vadd.f32 %v1158, %v638
      %v1160 = vadd.f32 %v1159, %v639
      %v1161 = vadd.f32 %v1160, %v640
      %v1162 = vadd.f32 %v1161, %v641
      %v1163 = vadd.f32 %v1162, %v642
      %v1164 = vadd.f32 %v1163, %v643
      %v1165 = vadd.f32 %v1164, %v644
      %v1166 = vadd.f32 %v1165, %v645
      %v1167 = vadd.f32 %v1166, %v646
      %v1168 = vadd.f32 %v1167, %v647
      %v1169 = vadd.f32 %v1168, %v648
      %v1170 = vadd.f32 %v1169, %v649
      %v1171 = vadd.f32 %v1170, %v650
      %v1172 = vadd.f32 %v1171, %v651
      %v1173 = vadd.f32 %v1172, %v652
      %v1174 = vadd.f32 %v1173, %v653
      %v1175 = vadd.f32 %v1174, %v654
      %v1176 = vadd.f32 %v1175, %v655
      %v1177 = vadd.f32 %v1176, %v656
      %v1178 = vadd.f32 %v1177, %v657
      %v1179 = vadd.f32 %v1178, %v658
      %1180 = vadd.xlane.f32.xlu0 %v1179
      %v1181 = vpop.xlane.xlu0 %1180
      %v1182 = vadd.f32 %v659, %v660
      %v1183 = vadd.f32 %v1182, %v661
      %v1184 = vadd.f32 %v1183, %v662
      %v1185 = vadd.f32 %v1184, %v663
      %v1186 = vadd.f32 %v1185, %v664
      %v1187 = vadd.f32 %v1186, %v665
      %v1188 = vadd.f32 %v1187, %v666
      %v1189 = vadd.f32 %v1188, %v667
      %v1190 = vadd.f32 %v1189, %v668
      %v1191 = vadd.f32 %v1190, %v669
      %v1192 = vadd.f32 %v1191, %v670
      %v1193 = vadd.f32 %v1192, %v671
      %v1194 = vadd.f32 %v1193, %v672
      %v1195 = vadd.f32 %v1194, %v673
      %v1196 = vadd.f32 %v1195, %v674
      %v1197 = vadd.f32 %v1196, %v675
      %v1198 = vadd.f32 %v1197, %v676
      %v1199 = vadd.f32 %v1198, %v677
      %v1200 = vadd.f32 %v1199, %v678
      %v1201 = vadd.f32 %v1200, %v679
      %v1202 = vadd.f32 %v1201, %v680
      %v1203 = vadd.f32 %v1202, %v681
      %v1204 = vadd.f32 %v1203, %v682
      %v1205 = vadd.f32 %v1204, %v683
      %v1206 = vadd.f32 %v1205, %v684
      %v1207 = vadd.f32 %v1206, %v685
      %v1208 = vadd.f32 %v1207, %v686
      %v1209 = vadd.f32 %v1208, %v687
      %v1210 = vadd.f32 %v1209, %v688
      %v1211 = vadd.f32 %v1210, %v689
      %v1212 = vadd.f32 %v1211, %v690
      %1213 = vadd.xlane.f32.xlu0 %v1212
      %v1214 = vpop.xlane.xlu0 %1213
      %v1215 = vadd.f32 %v691, %v692
      %v1216 = vadd.f32 %v1215, %v693
      %v1217 = vadd.f32 %v1216, %v694
      %v1218 = vadd.f32 %v1217, %v695
      %v1219 = vadd.f32 %v1218, %v696
      %v1220 = vadd.f32 %v1219, %v697
      %v1221 = vadd.f32 %v1220, %v698
      %v1222 = vadd.f32 %v1221, %v699
      %v1223 = vadd.f32 %v1222, %v700
      %v1224 = vadd.f32 %v1223, %v701
      %v1225 = vadd.f32 %v1224, %v702
      %v1226 = vadd.f32 %v1225, %v703
      %v1227 = vadd.f32 %v1226, %v704
      %v1228 = vadd.f32 %v1227, %v705
      %v1229 = vadd.f32 %v1228, %v706
      %v1230 = vadd.f32 %v1229, %v707
      %v1231 = vadd.f32 %v1230, %v708
      %v1232 = vadd.f32 %v1231, %v709
      %v1233 = vadd.f32 %v1232, %v710
      %v1234 = vadd.f32 %v1233, %v711
      %v1235 = vadd.f32 %v1234, %v712
      %v1236 = vadd.f32 %v1235, %v713
      %v1237 = vadd.f32 %v1236, %v714
      %v1238 = vadd.f32 %v1237, %v715
      %v1239 = vadd.f32 %v1238, %v716
      %v1240 = vadd.f32 %v1239, %v717
      %v1241 = vadd.f32 %v1240, %v718
      %v1242 = vadd.f32 %v1241, %v719
      %v1243 = vadd.f32 %v1242, %v720
      %v1244 = vadd.f32 %v1243, %v721
      %v1245 = vadd.f32 %v1244, %v722
      %1246 = vadd.xlane.f32.xlu0 %v1245
      %v1247 = vpop.xlane.xlu0 %1246
      %v1248 = vadd.f32 %v723, %v724
      %v1249 = vadd.f32 %v1248, %v725
      %v1250 = vadd.f32 %v1249, %v726
      %v1251 = vadd.f32 %v1250, %v727
      %v1252 = vadd.f32 %v1251, %v728
      %v1253 = vadd.f32 %v1252, %v729
      %v1254 = vadd.f32 %v1253, %v730
      %v1255 = vadd.f32 %v1254, %v731
      %v1256 = vadd.f32 %v1255, %v732
      %v1257 = vadd.f32 %v1256, %v733
      %v1258 = vadd.f32 %v1257, %v734
      %v1259 = vadd.f32 %v1258, %v735
      %v1260 = vadd.f32 %v1259, %v736
      %v1261 = vadd.f32 %v1260, %v737
      %v1262 = vadd.f32 %v1261, %v738
      %v1263 = vadd.f32 %v1262, %v739
      %v1264 = vadd.f32 %v1263, %v740
      %v1265 = vadd.f32 %v1264, %v741
      %v1266 = vadd.f32 %v1265, %v742
      %v1267 = vadd.f32 %v1266, %v743
      %v1268 = vadd.f32 %v1267, %v744
      %v1269 = vadd.f32 %v1268, %v745
      %v1270 = vadd.f32 %v1269, %v746
      %v1271 = vadd.f32 %v1270, %v747
      %v1272 = vadd.f32 %v1271, %v748
      %v1273 = vadd.f32 %v1272, %v749
      %v1274 = vadd.f32 %v1273, %v750
      %v1275 = vadd.f32 %v1274, %v751
      %v1276 = vadd.f32 %v1275, %v752
      %v1277 = vadd.f32 %v1276, %v753
      %v1278 = vadd.f32 %v1277, %v754
      %1279 = vadd.xlane.f32.xlu0 %v1278
      %v1280 = vpop.xlane.xlu0 %1279
      %v1281 = vadd.f32 %v755, %v756
      %v1282 = vadd.f32 %v1281, %v757
      %v1283 = vadd.f32 %v1282, %v758
      %v1284 = vadd.f32 %v1283, %v759
      %v1285 = vadd.f32 %v1284, %v760
      %v1286 = vadd.f32 %v1285, %v761
      %v1287 = vadd.f32 %v1286, %v762
      %v1288 = vadd.f32 %v1287, %v763
      %v1289 = vadd.f32 %v1288, %v764
      %v1290 = vadd.f32 %v1289, %v765
      %v1291 = vadd.f32 %v1290, %v766
      %v1292 = vadd.f32 %v1291, %v767
      %v1293 = vadd.f32 %v1292, %v768
      %v1294 = vadd.f32 %v1293, %v769
      %v1295 = vadd.f32 %v1294, %v770
      %v1296 = vadd.f32 %v1295, %v771
      %v1297 = vadd.f32 %v1296, %v772
      %v1298 = vadd.f32 %v1297, %v773
      %v1299 = vadd.f32 %v1298, %v774
      %v1300 = vadd.f32 %v1299, %v775
      %v1301 = vadd.f32 %v1300, %v776
      %v1302 = vadd.f32 %v1301, %v777
      %v1303 = vadd.f32 %v1302, %v778
      %v1304 = vadd.f32 %v1303, %v779
      %v1305 = vadd.f32 %v1304, %v780
      %v1306 = vadd.f32 %v1305, %v781
      %v1307 = vadd.f32 %v1306, %v782
      %v1308 = vadd.f32 %v1307, %v783
      %v1309 = vadd.f32 %v1308, %v784
      %v1310 = vadd.f32 %v1309, %v785
      %v1311 = vadd.f32 %v1310, %v786
      %1312 = vadd.xlane.f32.xlu0 %v1311
      %v1313 = vpop.xlane.xlu0 %1312
      %v1314 = vadd.f32 %v787, %v788
      %v1315 = vadd.f32 %v1314, %v789
      %v1316 = vadd.f32 %v1315, %v790
      %v1317 = vadd.f32 %v1316, %v791
      %v1318 = vadd.f32 %v1317, %v792
      %v1319 = vadd.f32 %v1318, %v793
      %v1320 = vadd.f32 %v1319, %v794
      %v1321 = vadd.f32 %v1320, %v795
      %v1322 = vadd.f32 %v1321, %v796
      %v1323 = vadd.f32 %v1322, %v797
      %v1324 = vadd.f32 %v1323, %v798
      %v1325 = vadd.f32 %v1324, %v799
      %v1326 = vadd.f32 %v1325, %v800
      %v1327 = vadd.f32 %v1326, %v801
      %v1328 = vadd.f32 %v1327, %v802
      %v1329 = vadd.f32 %v1328, %v803
      %v1330 = vadd.f32 %v1329, %v804
      %v1331 = vadd.f32 %v1330, %v805
      %v1332 = vadd.f32 %v1331, %v806
      %v1333 = vadd.f32 %v1332, %v807
      %v1334 = vadd.f32 %v1333, %v808
      %v1335 = vadd.f32 %v1334, %v809
      %v1336 = vadd.f32 %v1335, %v810
      %v1337 = vadd.f32 %v1336, %v811
      %v1338 = vadd.f32 %v1337, %v812
      %v1339 = vadd.f32 %v1338, %v813
      %v1340 = vadd.f32 %v1339, %v814
      %v1341 = vadd.f32 %v1340, %v815
      %v1342 = vadd.f32 %v1341, %v816
      %v1343 = vadd.f32 %v1342, %v817
      %v1344 = vadd.f32 %v1343, %v818
      %1345 = vadd.xlane.f32.xlu0 %v1344
      %v1346 = vpop.xlane.xlu0 %1345
      %v1347 = vmul.f32 %v851, 0.00024414063
      %v1348 = vmul.f32 %v884, 0.00024414063
      %v1349 = vmul.f32 %v917, 0.00024414063
      %v1350 = vmul.f32 %v950, 0.00024414063
      %v1351 = vmul.f32 %v983, 0.00024414063
      %v1352 = vmul.f32 %v1016, 0.00024414063
      %v1353 = vmul.f32 %v1049, 0.00024414063
      %v1354 = vmul.f32 %v1082, 0.00024414063
      %v1355 = vmul.f32 %v1115, 0.00024414063
      %v1356 = vmul.f32 %v1148, 0.00024414063
      %v1357 = vmul.f32 %v1181, 0.00024414063
      %v1358 = vmul.f32 %v1214, 0.00024414063
      %v1359 = vmul.f32 %v1247, 0.00024414063
      %v1360 = vmul.f32 %v1280, 0.00024414063
      %v1361 = vmul.f32 %v1313, 0.00024414063
      %v1362 = vmul.f32 %v1346, 0.00024414063
      %v1363 = vsub.f32 %v307, %v1347
      %v1364 = vsub.f32 %v308, %v1347
      %v1365 = vsub.f32 %v309, %v1347
      %v1366 = vsub.f32 %v310, %v1347
      %v1367 = vsub.f32 %v311, %v1347
      %v1368 = vsub.f32 %v312, %v1347
      %v1369 = vsub.f32 %v313, %v1347
      %v1370 = vsub.f32 %v314, %v1347
      %v1371 = vsub.f32 %v315, %v1347
      %v1372 = vsub.f32 %v316, %v1347
      %v1373 = vsub.f32 %v317, %v1347
      %v1374 = vsub.f32 %v318, %v1347
      %v1375 = vsub.f32 %v319, %v1347
      %v1376 = vsub.f32 %v320, %v1347
      %v1377 = vsub.f32 %v321, %v1347
      %v1378 = vsub.f32 %v322, %v1347
      %v1379 = vsub.f32 %v323, %v1347
      %v1380 = vsub.f32 %v324, %v1347
      %v1381 = vsub.f32 %v325, %v1347
      %v1382 = vsub.f32 %v326, %v1347
      %v1383 = vsub.f32 %v327, %v1347
      %v1384 = vsub.f32 %v328, %v1347
      %v1385 = vsub.f32 %v329, %v1347
      %v1386 = vsub.f32 %v330, %v1347
      %v1387 = vsub.f32 %v331, %v1347
      %v1388 = vsub.f32 %v332, %v1347
      %v1389 = vsub.f32 %v333, %v1347
      %v1390 = vsub.f32 %v334, %v1347
      %v1391 = vsub.f32 %v335, %v1347
      %v1392 = vsub.f32 %v336, %v1347
      %v1393 = vsub.f32 %v337, %v1347
      %v1394 = vsub.f32 %v338, %v1347
      %v1395 = vsub.f32 %v339, %v1348
      %v1396 = vsub.f32 %v340, %v1348
      %v1397 = vsub.f32 %v341, %v1348
      %v1398 = vsub.f32 %v342, %v1348
      %v1399 = vsub.f32 %v343, %v1348
      %v1400 = vsub.f32 %v344, %v1348
      %v1401 = vsub.f32 %v345, %v1348
      %v1402 = vsub.f32 %v346, %v1348
      %v1403 = vsub.f32 %v347, %v1348
      %v1404 = vsub.f32 %v348, %v1348
      %v1405 = vsub.f32 %v349, %v1348
      %v1406 = vsub.f32 %v350, %v1348
      %v1407 = vsub.f32 %v351, %v1348
      %v1408 = vsub.f32 %v352, %v1348
      %v1409 = vsub.f32 %v353, %v1348
      %v1410 = vsub.f32 %v354, %v1348
      %v1411 = vsub.f32 %v355, %v1348
      %v1412 = vsub.f32 %v356, %v1348
      %v1413 = vsub.f32 %v357, %v1348
      %v1414 = vsub.f32 %v358, %v1348
      %v1415 = vsub.f32 %v359, %v1348
      %v1416 = vsub.f32 %v360, %v1348
      %v1417 = vsub.f32 %v361, %v1348
      %v1418 = vsub.f32 %v362, %v1348
      %v1419 = vsub.f32 %v363, %v1348
      %v1420 = vsub.f32 %v364, %v1348
      %v1421 = vsub.f32 %v365, %v1348
      %v1422 = vsub.f32 %v366, %v1348
      %v1423 = vsub.f32 %v367, %v1348
      %v1424 = vsub.f32 %v368, %v1348
      %v1425 = vsub.f32 %v369, %v1348
      %v1426 = vsub.f32 %v370, %v1348
      %v1427 = vsub.f32 %v371, %v1349
      %v1428 = vsub.f32 %v372, %v1349
      %v1429 = vsub.f32 %v373, %v1349
      %v1430 = vsub.f32 %v374, %v1349
      %v1431 = vsub.f32 %v375, %v1349
      %v1432 = vsub.f32 %v376, %v1349
      %v1433 = vsub.f32 %v377, %v1349
      %v1434 = vsub.f32 %v378, %v1349
      %v1435 = vsub.f32 %v379, %v1349
      %v1436 = vsub.f32 %v380, %v1349
      %v1437 = vsub.f32 %v381, %v1349
      %v1438 = vsub.f32 %v382, %v1349
      %v1439 = vsub.f32 %v383, %v1349
      %v1440 = vsub.f32 %v384, %v1349
      %v1441 = vsub.f32 %v385, %v1349
      %v1442 = vsub.f32 %v386, %v1349
      %v1443 = vsub.f32 %v387, %v1349
      %v1444 = vsub.f32 %v388, %v1349
      %v1445 = vsub.f32 %v389, %v1349
      %v1446 = vsub.f32 %v390, %v1349
      %v1447 = vsub.f32 %v391, %v1349
      %v1448 = vsub.f32 %v392, %v1349
      %v1449 = vsub.f32 %v393, %v1349
      %v1450 = vsub.f32 %v394, %v1349
      %v1451 = vsub.f32 %v395, %v1349
      %v1452 = vsub.f32 %v396, %v1349
      %v1453 = vsub.f32 %v397, %v1349
      %v1454 = vsub.f32 %v398, %v1349
      %v1455 = vsub.f32 %v399, %v1349
      %v1456 = vsub.f32 %v400, %v1349
      %v1457 = vsub.f32 %v401, %v1349
      %v1458 = vsub.f32 %v402, %v1349
      %v1459 = vsub.f32 %v403, %v1350
      %v1460 = vsub.f32 %v404, %v1350
      %v1461 = vsub.f32 %v405, %v1350
      %v1462 = vsub.f32 %v406, %v1350
      %v1463 = vsub.f32 %v407, %v1350
      %v1464 = vsub.f32 %v408, %v1350
      %v1465 = vsub.f32 %v409, %v1350
      %v1466 = vsub.f32 %v410, %v1350
      %v1467 = vsub.f32 %v411, %v1350
      %v1468 = vsub.f32 %v412, %v1350
      %v1469 = vsub.f32 %v413, %v1350
      %v1470 = vsub.f32 %v414, %v1350
      %v1471 = vsub.f32 %v415, %v1350
      %v1472 = vsub.f32 %v416, %v1350
      %v1473 = vsub.f32 %v417, %v1350
      %v1474 = vsub.f32 %v418, %v1350
      %v1475 = vsub.f32 %v419, %v1350
      %v1476 = vsub.f32 %v420, %v1350
      %v1477 = vsub.f32 %v421, %v1350
      %v1478 = vsub.f32 %v422, %v1350
      %v1479 = vsub.f32 %v423, %v1350
      %v1480 = vsub.f32 %v424, %v1350
      %v1481 = vsub.f32 %v425, %v1350
      %v1482 = vsub.f32 %v426, %v1350
      %v1483 = vsub.f32 %v427, %v1350
      %v1484 = vsub.f32 %v428, %v1350
      %v1485 = vsub.f32 %v429, %v1350
      %v1486 = vsub.f32 %v430, %v1350
      %v1487 = vsub.f32 %v431, %v1350
      %v1488 = vsub.f32 %v432, %v1350
      %v1489 = vsub.f32 %v433, %v1350
      %v1490 = vsub.f32 %v434, %v1350
      %v1491 = vsub.f32 %v435, %v1351
      %v1492 = vsub.f32 %v436, %v1351
      %v1493 = vsub.f32 %v437, %v1351
      %v1494 = vsub.f32 %v438, %v1351
      %v1495 = vsub.f32 %v439, %v1351
      %v1496 = vsub.f32 %v440, %v1351
      %v1497 = vsub.f32 %v441, %v1351
      %v1498 = vsub.f32 %v442, %v1351
      %v1499 = vsub.f32 %v443, %v1351
      %v1500 = vsub.f32 %v444, %v1351
      %v1501 = vsub.f32 %v445, %v1351
      %v1502 = vsub.f32 %v446, %v1351
      %v1503 = vsub.f32 %v447, %v1351
      %v1504 = vsub.f32 %v448, %v1351
      %v1505 = vsub.f32 %v449, %v1351
      %v1506 = vsub.f32 %v450, %v1351
      %v1507 = vsub.f32 %v451, %v1351
      %v1508 = vsub.f32 %v452, %v1351
      %v1509 = vsub.f32 %v453, %v1351
      %v1510 = vsub.f32 %v454, %v1351
      %v1511 = vsub.f32 %v455, %v1351
      %v1512 = vsub.f32 %v456, %v1351
      %v1513 = vsub.f32 %v457, %v1351
      %v1514 = vsub.f32 %v458, %v1351
      %v1515 = vsub.f32 %v459, %v1351
      %v1516 = vsub.f32 %v460, %v1351
      %v1517 = vsub.f32 %v461, %v1351
      %v1518 = vsub.f32 %v462, %v1351
      %v1519 = vsub.f32 %v463, %v1351
      %v1520 = vsub.f32 %v464, %v1351
      %v1521 = vsub.f32 %v465, %v1351
      %v1522 = vsub.f32 %v466, %v1351
      %v1523 = vsub.f32 %v467, %v1352
      %v1524 = vsub.f32 %v468, %v1352
      %v1525 = vsub.f32 %v469, %v1352
      %v1526 = vsub.f32 %v470, %v1352
      %v1527 = vsub.f32 %v471, %v1352
      %v1528 = vsub.f32 %v472, %v1352
      %v1529 = vsub.f32 %v473, %v1352
      %v1530 = vsub.f32 %v474, %v1352
      %v1531 = vsub.f32 %v475, %v1352
      %v1532 = vsub.f32 %v476, %v1352
      %v1533 = vsub.f32 %v477, %v1352
      %v1534 = vsub.f32 %v478, %v1352
      %v1535 = vsub.f32 %v479, %v1352
      %v1536 = vsub.f32 %v480, %v1352
      %v1537 = vsub.f32 %v481, %v1352
      %v1538 = vsub.f32 %v482, %v1352
      %v1539 = vsub.f32 %v483, %v1352
      %v1540 = vsub.f32 %v484, %v1352
      %v1541 = vsub.f32 %v485, %v1352
      %v1542 = vsub.f32 %v486, %v1352
      %v1543 = vsub.f32 %v487, %v1352
      %v1544 = vsub.f32 %v488, %v1352
      %v1545 = vsub.f32 %v489, %v1352
      %v1546 = vsub.f32 %v490, %v1352
      %v1547 = vsub.f32 %v491, %v1352
      %v1548 = vsub.f32 %v492, %v1352
      %v1549 = vsub.f32 %v493, %v1352
      %v1550 = vsub.f32 %v494, %v1352
      %v1551 = vsub.f32 %v495, %v1352
      %v1552 = vsub.f32 %v496, %v1352
      %v1553 = vsub.f32 %v497, %v1352
      %v1554 = vsub.f32 %v498, %v1352
      %v1555 = vsub.f32 %v499, %v1353
      %v1556 = vsub.f32 %v500, %v1353
      %v1557 = vsub.f32 %v501, %v1353
      %v1558 = vsub.f32 %v502, %v1353
      %v1559 = vsub.f32 %v503, %v1353
      %v1560 = vsub.f32 %v504, %v1353
      %v1561 = vsub.f32 %v505, %v1353
      %v1562 = vsub.f32 %v506, %v1353
      %v1563 = vsub.f32 %v507, %v1353
      %v1564 = vsub.f32 %v508, %v1353
      %v1565 = vsub.f32 %v509, %v1353
      %v1566 = vsub.f32 %v510, %v1353
      %v1567 = vsub.f32 %v511, %v1353
      %v1568 = vsub.f32 %v512, %v1353
      %v1569 = vsub.f32 %v513, %v1353
      %v1570 = vsub.f32 %v514, %v1353
      %v1571 = vsub.f32 %v515, %v1353
      %v1572 = vsub.f32 %v516, %v1353
      %v1573 = vsub.f32 %v517, %v1353
      %v1574 = vsub.f32 %v518, %v1353
      %v1575 = vsub.f32 %v519, %v1353
      %v1576 = vsub.f32 %v520, %v1353
      %v1577 = vsub.f32 %v521, %v1353
      %v1578 = vsub.f32 %v522, %v1353
      %v1579 = vsub.f32 %v523, %v1353
      %v1580 = vsub.f32 %v524, %v1353
      %v1581 = vsub.f32 %v525, %v1353
      %v1582 = vsub.f32 %v526, %v1353
      %v1583 = vsub.f32 %v527, %v1353
      %v1584 = vsub.f32 %v528, %v1353
      %v1585 = vsub.f32 %v529, %v1353
      %v1586 = vsub.f32 %v530, %v1353
      %v1587 = vsub.f32 %v531, %v1354
      %v1588 = vsub.f32 %v532, %v1354
      %v1589 = vsub.f32 %v533, %v1354
      %v1590 = vsub.f32 %v534, %v1354
      %v1591 = vsub.f32 %v535, %v1354
      %v1592 = vsub.f32 %v536, %v1354
      %v1593 = vsub.f32 %v537, %v1354
      %v1594 = vsub.f32 %v538, %v1354
      %v1595 = vsub.f32 %v539, %v1354
      %v1596 = vsub.f32 %v540, %v1354
      %v1597 = vsub.f32 %v541, %v1354
      %v1598 = vsub.f32 %v542, %v1354
      %v1599 = vsub.f32 %v543, %v1354
      %v1600 = vsub.f32 %v544, %v1354
      %v1601 = vsub.f32 %v545, %v1354
      %v1602 = vsub.f32 %v546, %v1354
      %v1603 = vsub.f32 %v547, %v1354
      %v1604 = vsub.f32 %v548, %v1354
      %v1605 = vsub.f32 %v549, %v1354
      %v1606 = vsub.f32 %v550, %v1354
      %v1607 = vsub.f32 %v551, %v1354
      %v1608 = vsub.f32 %v552, %v1354
      %v1609 = vsub.f32 %v553, %v1354
      %v1610 = vsub.f32 %v554, %v1354
      %v1611 = vsub.f32 %v555, %v1354
      %v1612 = vsub.f32 %v556, %v1354
      %v1613 = vsub.f32 %v557, %v1354
      %v1614 = vsub.f32 %v558, %v1354
      %v1615 = vsub.f32 %v559, %v1354
      %v1616 = vsub.f32 %v560, %v1354
      %v1617 = vsub.f32 %v561, %v1354
      %v1618 = vsub.f32 %v562, %v1354
      %v1619 = vsub.f32 %v563, %v1355
      %v1620 = vsub.f32 %v564, %v1355
      %v1621 = vsub.f32 %v565, %v1355
      %v1622 = vsub.f32 %v566, %v1355
      %v1623 = vsub.f32 %v567, %v1355
      %v1624 = vsub.f32 %v568, %v1355
      %v1625 = vsub.f32 %v569, %v1355
      %v1626 = vsub.f32 %v570, %v1355
      %v1627 = vsub.f32 %v571, %v1355
      %v1628 = vsub.f32 %v572, %v1355
      %v1629 = vsub.f32 %v573, %v1355
      %v1630 = vsub.f32 %v574, %v1355
      %v1631 = vsub.f32 %v575, %v1355
      %v1632 = vsub.f32 %v576, %v1355
      %v1633 = vsub.f32 %v577, %v1355
      %v1634 = vsub.f32 %v578, %v1355
      %v1635 = vsub.f32 %v579, %v1355
      %v1636 = vsub.f32 %v580, %v1355
      %v1637 = vsub.f32 %v581, %v1355
      %v1638 = vsub.f32 %v582, %v1355
      %v1639 = vsub.f32 %v583, %v1355
      %v1640 = vsub.f32 %v584, %v1355
      %v1641 = vsub.f32 %v585, %v1355
      %v1642 = vsub.f32 %v586, %v1355
      %v1643 = vsub.f32 %v587, %v1355
      %v1644 = vsub.f32 %v588, %v1355
      %v1645 = vsub.f32 %v589, %v1355
      %v1646 = vsub.f32 %v590, %v1355
      %v1647 = vsub.f32 %v591, %v1355
      %v1648 = vsub.f32 %v592, %v1355
      %v1649 = vsub.f32 %v593, %v1355
      %v1650 = vsub.f32 %v594, %v1355
      %v1651 = vsub.f32 %v595, %v1356
      %v1652 = vsub.f32 %v596, %v1356
      %v1653 = vsub.f32 %v597, %v1356
      %v1654 = vsub.f32 %v598, %v1356
      %v1655 = vsub.f32 %v599, %v1356
      %v1656 = vsub.f32 %v600, %v1356
      %v1657 = vsub.f32 %v601, %v1356
      %v1658 = vsub.f32 %v602, %v1356
      %v1659 = vsub.f32 %v603, %v1356
      %v1660 = vsub.f32 %v604, %v1356
      %v1661 = vsub.f32 %v605, %v1356
      %v1662 = vsub.f32 %v606, %v1356
      %v1663 = vsub.f32 %v607, %v1356
      %v1664 = vsub.f32 %v608, %v1356
      %v1665 = vsub.f32 %v609, %v1356
      %v1666 = vsub.f32 %v610, %v1356
      %v1667 = vsub.f32 %v611, %v1356
      %v1668 = vsub.f32 %v612, %v1356
      %v1669 = vsub.f32 %v613, %v1356
      %v1670 = vsub.f32 %v614, %v1356
      %v1671 = vsub.f32 %v615, %v1356
      %v1672 = vsub.f32 %v616, %v1356
      %v1673 = vsub.f32 %v617, %v1356
      %v1674 = vsub.f32 %v618, %v1356
      %v1675 = vsub.f32 %v619, %v1356
      %v1676 = vsub.f32 %v620, %v1356
      %v1677 = vsub.f32 %v621, %v1356
      %v1678 = vsub.f32 %v622, %v1356
      %v1679 = vsub.f32 %v623, %v1356
      %v1680 = vsub.f32 %v624, %v1356
      %v1681 = vsub.f32 %v625, %v1356
      %v1682 = vsub.f32 %v626, %v1356
      %v1683 = vsub.f32 %v627, %v1357
      %v1684 = vsub.f32 %v628, %v1357
      %v1685 = vsub.f32 %v629, %v1357
      %v1686 = vsub.f32 %v630, %v1357
      %v1687 = vsub.f32 %v631, %v1357
      %v1688 = vsub.f32 %v632, %v1357
      %v1689 = vsub.f32 %v633, %v1357
      %v1690 = vsub.f32 %v634, %v1357
      %v1691 = vsub.f32 %v635, %v1357
      %v1692 = vsub.f32 %v636, %v1357
      %v1693 = vsub.f32 %v637, %v1357
      %v1694 = vsub.f32 %v638, %v1357
      %v1695 = vsub.f32 %v639, %v1357
      %v1696 = vsub.f32 %v640, %v1357
      %v1697 = vsub.f32 %v641, %v1357
      %v1698 = vsub.f32 %v642, %v1357
      %v1699 = vsub.f32 %v643, %v1357
      %v1700 = vsub.f32 %v644, %v1357
      %v1701 = vsub.f32 %v645, %v1357
      %v1702 = vsub.f32 %v646, %v1357
      %v1703 = vsub.f32 %v647, %v1357
      %v1704 = vsub.f32 %v648, %v1357
      %v1705 = vsub.f32 %v649, %v1357
      %v1706 = vsub.f32 %v650, %v1357
      %v1707 = vsub.f32 %v651, %v1357
      %v1708 = vsub.f32 %v652, %v1357
      %v1709 = vsub.f32 %v653, %v1357
      %v1710 = vsub.f32 %v654, %v1357
      %v1711 = vsub.f32 %v655, %v1357
      %v1712 = vsub.f32 %v656, %v1357
      %v1713 = vsub.f32 %v657, %v1357
      %v1714 = vsub.f32 %v658, %v1357
      %v1715 = vsub.f32 %v659, %v1358
      %v1716 = vsub.f32 %v660, %v1358
      %v1717 = vsub.f32 %v661, %v1358
      %v1718 = vsub.f32 %v662, %v1358
      %v1719 = vsub.f32 %v663, %v1358
      %v1720 = vsub.f32 %v664, %v1358
      %v1721 = vsub.f32 %v665, %v1358
      %v1722 = vsub.f32 %v666, %v1358
      %v1723 = vsub.f32 %v667, %v1358
      %v1724 = vsub.f32 %v668, %v1358
      %v1725 = vsub.f32 %v669, %v1358
      %v1726 = vsub.f32 %v670, %v1358
      %v1727 = vsub.f32 %v671, %v1358
      %v1728 = vsub.f32 %v672, %v1358
      %v1729 = vsub.f32 %v673, %v1358
      %v1730 = vsub.f32 %v674, %v1358
      %v1731 = vsub.f32 %v675, %v1358
      %v1732 = vsub.f32 %v676, %v1358
      %v1733 = vsub.f32 %v677, %v1358
      %v1734 = vsub.f32 %v678, %v1358
      %v1735 = vsub.f32 %v679, %v1358
      %v1736 = vsub.f32 %v680, %v1358
      %v1737 = vsub.f32 %v681, %v1358
      %v1738 = vsub.f32 %v682, %v1358
      %v1739 = vsub.f32 %v683, %v1358
      %v1740 = vsub.f32 %v684, %v1358
      %v1741 = vsub.f32 %v685, %v1358
      %v1742 = vsub.f32 %v686, %v1358
      %v1743 = vsub.f32 %v687, %v1358
      %v1744 = vsub.f32 %v688, %v1358
      %v1745 = vsub.f32 %v689, %v1358
      %v1746 = vsub.f32 %v690, %v1358
      %v1747 = vsub.f32 %v691, %v1359
      %v1748 = vsub.f32 %v692, %v1359
      %v1749 = vsub.f32 %v693, %v1359
      %v1750 = vsub.f32 %v694, %v1359
      %v1751 = vsub.f32 %v695, %v1359
      %v1752 = vsub.f32 %v696, %v1359
      %v1753 = vsub.f32 %v697, %v1359
      %v1754 = vsub.f32 %v698, %v1359
      %v1755 = vsub.f32 %v699, %v1359
      %v1756 = vsub.f32 %v700, %v1359
      %v1757 = vsub.f32 %v701, %v1359
      %v1758 = vsub.f32 %v702, %v1359
      %v1759 = vsub.f32 %v703, %v1359
      %v1760 = vsub.f32 %v704, %v1359
      %v1761 = vsub.f32 %v705, %v1359
      %v1762 = vsub.f32 %v706, %v1359
      %v1763 = vsub.f32 %v707, %v1359
      %v1764 = vsub.f32 %v708, %v1359
      %v1765 = vsub.f32 %v709, %v1359
      %v1766 = vsub.f32 %v710, %v1359
      %v1767 = vsub.f32 %v711, %v1359
      %v1768 = vsub.f32 %v712, %v1359
      %v1769 = vsub.f32 %v713, %v1359
      %v1770 = vsub.f32 %v714, %v1359
      %v1771 = vsub.f32 %v715, %v1359
      %v1772 = vsub.f32 %v716, %v1359
      %v1773 = vsub.f32 %v717, %v1359
      %v1774 = vsub.f32 %v718, %v1359
      %v1775 = vsub.f32 %v719, %v1359
      %v1776 = vsub.f32 %v720, %v1359
      %v1777 = vsub.f32 %v721, %v1359
      %v1778 = vsub.f32 %v722, %v1359
      %v1779 = vsub.f32 %v723, %v1360
      %v1780 = vsub.f32 %v724, %v1360
      %v1781 = vsub.f32 %v725, %v1360
      %v1782 = vsub.f32 %v726, %v1360
      %v1783 = vsub.f32 %v727, %v1360
      %v1784 = vsub.f32 %v728, %v1360
      %v1785 = vsub.f32 %v729, %v1360
      %v1786 = vsub.f32 %v730, %v1360
      %v1787 = vsub.f32 %v731, %v1360
      %v1788 = vsub.f32 %v732, %v1360
      %v1789 = vsub.f32 %v733, %v1360
      %v1790 = vsub.f32 %v734, %v1360
      %v1791 = vsub.f32 %v735, %v1360
      %v1792 = vsub.f32 %v736, %v1360
      %v1793 = vsub.f32 %v737, %v1360
      %v1794 = vsub.f32 %v738, %v1360
      %v1795 = vsub.f32 %v739, %v1360
      %v1796 = vsub.f32 %v740, %v1360
      %v1797 = vsub.f32 %v741, %v1360
      %v1798 = vsub.f32 %v742, %v1360
      %v1799 = vsub.f32 %v743, %v1360
      %v1800 = vsub.f32 %v744, %v1360
      %v1801 = vsub.f32 %v745, %v1360
      %v1802 = vsub.f32 %v746, %v1360
      %v1803 = vsub.f32 %v747, %v1360
      %v1804 = vsub.f32 %v748, %v1360
      %v1805 = vsub.f32 %v749, %v1360
      %v1806 = vsub.f32 %v750, %v1360
      %v1807 = vsub.f32 %v751, %v1360
      %v1808 = vsub.f32 %v752, %v1360
      %v1809 = vsub.f32 %v753, %v1360
      %v1810 = vsub.f32 %v754, %v1360
      %v1811 = vsub.f32 %v755, %v1361
      %v1812 = vsub.f32 %v756, %v1361
      %v1813 = vsub.f32 %v757, %v1361
      %v1814 = vsub.f32 %v758, %v1361
      %v1815 = vsub.f32 %v759, %v1361
      %v1816 = vsub.f32 %v760, %v1361
      %v1817 = vsub.f32 %v761, %v1361
      %v1818 = vsub.f32 %v762, %v1361
      %v1819 = vsub.f32 %v763, %v1361
      %v1820 = vsub.f32 %v764, %v1361
      %v1821 = vsub.f32 %v765, %v1361
      %v1822 = vsub.f32 %v766, %v1361
      %v1823 = vsub.f32 %v767, %v1361
      %v1824 = vsub.f32 %v768, %v1361
      %v1825 = vsub.f32 %v769, %v1361
      %v1826 = vsub.f32 %v770, %v1361
      %v1827 = vsub.f32 %v771, %v1361
      %v1828 = vsub.f32 %v772, %v1361
      %v1829 = vsub.f32 %v773, %v1361
      %v1830 = vsub.f32 %v774, %v1361
      %v1831 = vsub.f32 %v775, %v1361
      %v1832 = vsub.f32 %v776, %v1361
      %v1833 = vsub.f32 %v777, %v1361
      %v1834 = vsub.f32 %v778, %v1361
      %v1835 = vsub.f32 %v779, %v1361
      %v1836 = vsub.f32 %v780, %v1361
      %v1837 = vsub.f32 %v781, %v1361
      %v1838 = vsub.f32 %v782, %v1361
      %v1839 = vsub.f32 %v783, %v1361
      %v1840 = vsub.f32 %v784, %v1361
      %v1841 = vsub.f32 %v785, %v1361
      %v1842 = vsub.f32 %v786, %v1361
      %v1843 = vsub.f32 %v787, %v1362
      %v1844 = vsub.f32 %v788, %v1362
      %v1845 = vsub.f32 %v789, %v1362
      %v1846 = vsub.f32 %v790, %v1362
      %v1847 = vsub.f32 %v791, %v1362
      %v1848 = vsub.f32 %v792, %v1362
      %v1849 = vsub.f32 %v793, %v1362
      %v1850 = vsub.f32 %v794, %v1362
      %v1851 = vsub.f32 %v795, %v1362
      %v1852 = vsub.f32 %v796, %v1362
      %v1853 = vsub.f32 %v797, %v1362
      %v1854 = vsub.f32 %v798, %v1362
      %v1855 = vsub.f32 %v799, %v1362
      %v1856 = vsub.f32 %v800, %v1362
      %v1857 = vsub.f32 %v801, %v1362
      %v1858 = vsub.f32 %v802, %v1362
      %v1859 = vsub.f32 %v803, %v1362
      %v1860 = vsub.f32 %v804, %v1362
      %v1861 = vsub.f32 %v805, %v1362
      %v1862 = vsub.f32 %v806, %v1362
      %v1863 = vsub.f32 %v807, %v1362
      %v1864 = vsub.f32 %v808, %v1362
      %v1865 = vsub.f32 %v809, %v1362
      %v1866 = vsub.f32 %v810, %v1362
      %v1867 = vsub.f32 %v811, %v1362
      %v1868 = vsub.f32 %v812, %v1362
      %v1869 = vsub.f32 %v813, %v1362
      %v1870 = vsub.f32 %v814, %v1362
      %v1871 = vsub.f32 %v815, %v1362
      %v1872 = vsub.f32 %v816, %v1362
      %v1873 = vsub.f32 %v817, %v1362
      %v1874 = vsub.f32 %v818, %v1362
      %v1875 = vmul.f32 %v1363, %v1363
      %v1876 = vmul.f32 %v1364, %v1364
      %v1877 = vmul.f32 %v1365, %v1365
      %v1878 = vmul.f32 %v1366, %v1366
      %v1879 = vmul.f32 %v1367, %v1367
      %v1880 = vmul.f32 %v1368, %v1368
      %v1881 = vmul.f32 %v1369, %v1369
      %v1882 = vmul.f32 %v1370, %v1370
      %v1883 = vmul.f32 %v1371, %v1371
      %v1884 = vmul.f32 %v1372, %v1372
      %v1885 = vmul.f32 %v1373, %v1373
      %v1886 = vmul.f32 %v1374, %v1374
      %v1887 = vmul.f32 %v1375, %v1375
      %v1888 = vmul.f32 %v1376, %v1376
      %v1889 = vmul.f32 %v1377, %v1377
      %v1890 = vmul.f32 %v1378, %v1378
      %v1891 = vmul.f32 %v1379, %v1379
      %v1892 = vmul.f32 %v1380, %v1380
      %v1893 = vmul.f32 %v1381, %v1381
      %v1894 = vmul.f32 %v1382, %v1382
      %v1895 = vmul.f32 %v1383, %v1383
      %v1896 = vmul.f32 %v1384, %v1384
      %v1897 = vmul.f32 %v1385, %v1385
      %v1898 = vmul.f32 %v1386, %v1386
      %v1899 = vmul.f32 %v1387, %v1387
      %v1900 = vmul.f32 %v1388, %v1388
      %v1901 = vmul.f32 %v1389, %v1389
      %v1902 = vmul.f32 %v1390, %v1390
      %v1903 = vmul.f32 %v1391, %v1391
      %v1904 = vmul.f32 %v1392, %v1392
      %v1905 = vmul.f32 %v1393, %v1393
      %v1906 = vmul.f32 %v1394, %v1394
      %v1907 = vmul.f32 %v1395, %v1395
      %v1908 = vmul.f32 %v1396, %v1396
      %v1909 = vmul.f32 %v1397, %v1397
      %v1910 = vmul.f32 %v1398, %v1398
      %v1911 = vmul.f32 %v1399, %v1399
      %v1912 = vmul.f32 %v1400, %v1400
      %v1913 = vmul.f32 %v1401, %v1401
      %v1914 = vmul.f32 %v1402, %v1402
      %v1915 = vmul.f32 %v1403, %v1403
      %v1916 = vmul.f32 %v1404, %v1404
      %v1917 = vmul.f32 %v1405, %v1405
      %v1918 = vmul.f32 %v1406, %v1406
      %v1919 = vmul.f32 %v1407, %v1407
      %v1920 = vmul.f32 %v1408, %v1408
      %v1921 = vmul.f32 %v1409, %v1409
      %v1922 = vmul.f32 %v1410, %v1410
      %v1923 = vmul.f32 %v1411, %v1411
      %v1924 = vmul.f32 %v1412, %v1412
      %v1925 = vmul.f32 %v1413, %v1413
      %v1926 = vmul.f32 %v1414, %v1414
      %v1927 = vmul.f32 %v1415, %v1415
      %v1928 = vmul.f32 %v1416, %v1416
      %v1929 = vmul.f32 %v1417, %v1417
      %v1930 = vmul.f32 %v1418, %v1418
      %v1931 = vmul.f32 %v1419, %v1419
      %v1932 = vmul.f32 %v1420, %v1420
      %v1933 = vmul.f32 %v1421, %v1421
      %v1934 = vmul.f32 %v1422, %v1422
      %v1935 = vmul.f32 %v1423, %v1423
      %v1936 = vmul.f32 %v1424, %v1424
      %v1937 = vmul.f32 %v1425, %v1425
      %v1938 = vmul.f32 %v1426, %v1426
      %v1939 = vmul.f32 %v1427, %v1427
      %v1940 = vmul.f32 %v1428, %v1428
      %v1941 = vmul.f32 %v1429, %v1429
      %v1942 = vmul.f32 %v1430, %v1430
      %v1943 = vmul.f32 %v1431, %v1431
      %v1944 = vmul.f32 %v1432, %v1432
      %v1945 = vmul.f32 %v1433, %v1433
      %v1946 = vmul.f32 %v1434, %v1434
      %v1947 = vmul.f32 %v1435, %v1435
      %v1948 = vmul.f32 %v1436, %v1436
      %v1949 = vmul.f32 %v1437, %v1437
      %v1950 = vmul.f32 %v1438, %v1438
      %v1951 = vmul.f32 %v1439, %v1439
      %v1952 = vmul.f32 %v1440, %v1440
      %v1953 = vmul.f32 %v1441, %v1441
      %v1954 = vmul.f32 %v1442, %v1442
      %v1955 = vmul.f32 %v1443, %v1443
      %v1956 = vmul.f32 %v1444, %v1444
      %v1957 = vmul.f32 %v1445, %v1445
      %v1958 = vmul.f32 %v1446, %v1446
      %v1959 = vmul.f32 %v1447, %v1447
      %v1960 = vmul.f32 %v1448, %v1448
      %v1961 = vmul.f32 %v1449, %v1449
      %v1962 = vmul.f32 %v1450, %v1450
      %v1963 = vmul.f32 %v1451, %v1451
      %v1964 = vmul.f32 %v1452, %v1452
      %v1965 = vmul.f32 %v1453, %v1453
      %v1966 = vmul.f32 %v1454, %v1454
      %v1967 = vmul.f32 %v1455, %v1455
      %v1968 = vmul.f32 %v1456, %v1456
      %v1969 = vmul.f32 %v1457, %v1457
      %v1970 = vmul.f32 %v1458, %v1458
      %v1971 = vmul.f32 %v1459, %v1459
      %v1972 = vmul.f32 %v1460, %v1460
      %v1973 = vmul.f32 %v1461, %v1461
      %v1974 = vmul.f32 %v1462, %v1462
      %v1975 = vmul.f32 %v1463, %v1463
      %v1976 = vmul.f32 %v1464, %v1464
      %v1977 = vmul.f32 %v1465, %v1465
      %v1978 = vmul.f32 %v1466, %v1466
      %v1979 = vmul.f32 %v1467, %v1467
      %v1980 = vmul.f32 %v1468, %v1468
      %v1981 = vmul.f32 %v1469, %v1469
      %v1982 = vmul.f32 %v1470, %v1470
      %v1983 = vmul.f32 %v1471, %v1471
      %v1984 = vmul.f32 %v1472, %v1472
      %v1985 = vmul.f32 %v1473, %v1473
      %v1986 = vmul.f32 %v1474, %v1474
      %v1987 = vmul.f32 %v1475, %v1475
      %v1988 = vmul.f32 %v1476, %v1476
      %v1989 = vmul.f32 %v1477, %v1477
      %v1990 = vmul.f32 %v1478, %v1478
      %v1991 = vmul.f32 %v1479, %v1479
      %v1992 = vmul.f32 %v1480, %v1480
      %v1993 = vmul.f32 %v1481, %v1481
      %v1994 = vmul.f32 %v1482, %v1482
      %v1995 = vmul.f32 %v1483, %v1483
      %v1996 = vmul.f32 %v1484, %v1484
      %v1997 = vmul.f32 %v1485, %v1485
      %v1998 = vmul.f32 %v1486, %v1486
      %v1999 = vmul.f32 %v1487, %v1487
      %v2000 = vmul.f32 %v1488, %v1488
      %v2001 = vmul.f32 %v1489, %v1489
      %v2002 = vmul.f32 %v1490, %v1490
      %v2003 = vmul.f32 %v1491, %v1491
      %v2004 = vmul.f32 %v1492, %v1492
      %v2005 = vmul.f32 %v1493, %v1493
      %v2006 = vmul.f32 %v1494, %v1494
      %v2007 = vmul.f32 %v1495, %v1495
      %v2008 = vmul.f32 %v1496, %v1496
      %v2009 = vmul.f32 %v1497, %v1497
      %v2010 = vmul.f32 %v1498, %v1498
      %v2011 = vmul.f32 %v1499, %v1499
      %v2012 = vmul.f32 %v1500, %v1500
      %v2013 = vmul.f32 %v1501, %v1501
      %v2014 = vmul.f32 %v1502, %v1502
      %v2015 = vmul.f32 %v1503, %v1503
      %v2016 = vmul.f32 %v1504, %v1504
      %v2017 = vmul.f32 %v1505, %v1505
      %v2018 = vmul.f32 %v1506, %v1506
      %v2019 = vmul.f32 %v1507, %v1507
      %v2020 = vmul.f32 %v1508, %v1508
      %v2021 = vmul.f32 %v1509, %v1509
      %v2022 = vmul.f32 %v1510, %v1510
      %v2023 = vmul.f32 %v1511, %v1511
      %v2024 = vmul.f32 %v1512, %v1512
      %v2025 = vmul.f32 %v1513, %v1513
      %v2026 = vmul.f32 %v1514, %v1514
      %v2027 = vmul.f32 %v1515, %v1515
      %v2028 = vmul.f32 %v1516, %v1516
      %v2029 = vmul.f32 %v1517, %v1517
      %v2030 = vmul.f32 %v1518, %v1518
      %v2031 = vmul.f32 %v1519, %v1519
      %v2032 = vmul.f32 %v1520, %v1520
      %v2033 = vmul.f32 %v1521, %v1521
      %v2034 = vmul.f32 %v1522, %v1522
      %v2035 = vmul.f32 %v1523, %v1523
      %v2036 = vmul.f32 %v1524, %v1524
      %v2037 = vmul.f32 %v1525, %v1525
      %v2038 = vmul.f32 %v1526, %v1526
      %v2039 = vmul.f32 %v1527, %v1527
      %v2040 = vmul.f32 %v1528, %v1528
      %v2041 = vmul.f32 %v1529, %v1529
      %v2042 = vmul.f32 %v1530, %v1530
      %v2043 = vmul.f32 %v1531, %v1531
      %v2044 = vmul.f32 %v1532, %v1532
      %v2045 = vmul.f32 %v1533, %v1533
      %v2046 = vmul.f32 %v1534, %v1534
      %v2047 = vmul.f32 %v1535, %v1535
      %v2048 = vmul.f32 %v1536, %v1536
      %v2049 = vmul.f32 %v1537, %v1537
      %v2050 = vmul.f32 %v1538, %v1538
      %v2051 = vmul.f32 %v1539, %v1539
      %v2052 = vmul.f32 %v1540, %v1540
      %v2053 = vmul.f32 %v1541, %v1541
      %v2054 = vmul.f32 %v1542, %v1542
      %v2055 = vmul.f32 %v1543, %v1543
      %v2056 = vmul.f32 %v1544, %v1544
      %v2057 = vmul.f32 %v1545, %v1545
      %v2058 = vmul.f32 %v1546, %v1546
      %v2059 = vmul.f32 %v1547, %v1547
      %v2060 = vmul.f32 %v1548, %v1548
      %v2061 = vmul.f32 %v1549, %v1549
      %v2062 = vmul.f32 %v1550, %v1550
      %v2063 = vmul.f32 %v1551, %v1551
      %v2064 = vmul.f32 %v1552, %v1552
      %v2065 = vmul.f32 %v1553, %v1553
      %v2066 = vmul.f32 %v1554, %v1554
      %v2067 = vmul.f32 %v1555, %v1555
      %v2068 = vmul.f32 %v1556, %v1556
      %v2069 = vmul.f32 %v1557, %v1557
      %v2070 = vmul.f32 %v1558, %v1558
      %v2071 = vmul.f32 %v1559, %v1559
      %v2072 = vmul.f32 %v1560, %v1560
      %v2073 = vmul.f32 %v1561, %v1561
      %v2074 = vmul.f32 %v1562, %v1562
      %v2075 = vmul.f32 %v1563, %v1563
      %v2076 = vmul.f32 %v1564, %v1564
      %v2077 = vmul.f32 %v1565, %v1565
      %v2078 = vmul.f32 %v1566, %v1566
      %v2079 = vmul.f32 %v1567, %v1567
      %v2080 = vmul.f32 %v1568, %v1568
      %v2081 = vmul.f32 %v1569, %v1569
      %v2082 = vmul.f32 %v1570, %v1570
      %v2083 = vmul.f32 %v1571, %v1571
      %v2084 = vmul.f32 %v1572, %v1572
      %v2085 = vmul.f32 %v1573, %v1573
      %v2086 = vmul.f32 %v1574, %v1574
      %v2087 = vmul.f32 %v1575, %v1575
      %v2088 = vmul.f32 %v1576, %v1576
      %v2089 = vmul.f32 %v1577, %v1577
      %v2090 = vmul.f32 %v1578, %v1578
      %v2091 = vmul.f32 %v1579, %v1579
      %v2092 = vmul.f32 %v1580, %v1580
      %v2093 = vmul.f32 %v1581, %v1581
      %v2094 = vmul.f32 %v1582, %v1582
      %v2095 = vmul.f32 %v1583, %v1583
      %v2096 = vmul.f32 %v1584, %v1584
      %v2097 = vmul.f32 %v1585, %v1585
      %v2098 = vmul.f32 %v1586, %v1586
      %v2099 = vmul.f32 %v1587, %v1587
      %v2100 = vmul.f32 %v1588, %v1588
      %v2101 = vmul.f32 %v1589, %v1589
      %v2102 = vmul.f32 %v1590, %v1590
      %v2103 = vmul.f32 %v1591, %v1591
      %v2104 = vmul.f32 %v1592, %v1592
      %v2105 = vmul.f32 %v1593, %v1593
      %v2106 = vmul.f32 %v1594, %v1594
      %v2107 = vmul.f32 %v1595, %v1595
      %v2108 = vmul.f32 %v1596, %v1596
      %v2109 = vmul.f32 %v1597, %v1597
      %v2110 = vmul.f32 %v1598, %v1598
      %v2111 = vmul.f32 %v1599, %v1599
      %v2112 = vmul.f32 %v1600, %v1600
      %v2113 = vmul.f32 %v1601, %v1601
      %v2114 = vmul.f32 %v1602, %v1602
      %v2115 = vmul.f32 %v1603, %v1603
      %v2116 = vmul.f32 %v1604, %v1604
      %v2117 = vmul.f32 %v1605, %v1605
      %v2118 = vmul.f32 %v1606, %v1606
      %v2119 = vmul.f32 %v1607, %v1607
      %v2120 = vmul.f32 %v1608, %v1608
      %v2121 = vmul.f32 %v1609, %v1609
      %v2122 = vmul.f32 %v1610, %v1610
      %v2123 = vmul.f32 %v1611, %v1611
      %v2124 = vmul.f32 %v1612, %v1612
      %v2125 = vmul.f32 %v1613, %v1613
      %v2126 = vmul.f32 %v1614, %v1614
      %v2127 = vmul.f32 %v1615, %v1615
      %v2128 = vmul.f32 %v1616, %v1616
      %v2129 = vmul.f32 %v1617, %v1617
      %v2130 = vmul.f32 %v1618, %v1618
      %v2131 = vmul.f32 %v1619, %v1619
      %v2132 = vmul.f32 %v1620, %v1620
      %v2133 = vmul.f32 %v1621, %v1621
      %v2134 = vmul.f32 %v1622, %v1622
      %v2135 = vmul.f32 %v1623, %v1623
      %v2136 = vmul.f32 %v1624, %v1624
      %v2137 = vmul.f32 %v1625, %v1625
      %v2138 = vmul.f32 %v1626, %v1626
      %v2139 = vmul.f32 %v1627, %v1627
      %v2140 = vmul.f32 %v1628, %v1628
      %v2141 = vmul.f32 %v1629, %v1629
      %v2142 = vmul.f32 %v1630, %v1630
      %v2143 = vmul.f32 %v1631, %v1631
      %v2144 = vmul.f32 %v1632, %v1632
      %v2145 = vmul.f32 %v1633, %v1633
      %v2146 = vmul.f32 %v1634, %v1634
      %v2147 = vmul.f32 %v1635, %v1635
      %v2148 = vmul.f32 %v1636, %v1636
      %v2149 = vmul.f32 %v1637, %v1637
      %v2150 = vmul.f32 %v1638, %v1638
      %v2151 = vmul.f32 %v1639, %v1639
      %v2152 = vmul.f32 %v1640, %v1640
      %v2153 = vmul.f32 %v1641, %v1641
      %v2154 = vmul.f32 %v1642, %v1642
      %v2155 = vmul.f32 %v1643, %v1643
      %v2156 = vmul.f32 %v1644, %v1644
      %v2157 = vmul.f32 %v1645, %v1645
      %v2158 = vmul.f32 %v1646, %v1646
      %v2159 = vmul.f32 %v1647, %v1647
      %v2160 = vmul.f32 %v1648, %v1648
      %v2161 = vmul.f32 %v1649, %v1649
      %v2162 = vmul.f32 %v1650, %v1650
      %v2163 = vmul.f32 %v1651, %v1651
      %v2164 = vmul.f32 %v1652, %v1652
      %v2165 = vmul.f32 %v1653, %v1653
      %v2166 = vmul.f32 %v1654, %v1654
      %v2167 = vmul.f32 %v1655, %v1655
      %v2168 = vmul.f32 %v1656, %v1656
      %v2169 = vmul.f32 %v1657, %v1657
      %v2170 = vmul.f32 %v1658, %v1658
      %v2171 = vmul.f32 %v1659, %v1659
      %v2172 = vmul.f32 %v1660, %v1660
      %v2173 = vmul.f32 %v1661, %v1661
      %v2174 = vmul.f32 %v1662, %v1662
      %v2175 = vmul.f32 %v1663, %v1663
      %v2176 = vmul.f32 %v1664, %v1664
      %v2177 = vmul.f32 %v1665, %v1665
      %v2178 = vmul.f32 %v1666, %v1666
      %v2179 = vmul.f32 %v1667, %v1667
      %v2180 = vmul.f32 %v1668, %v1668
      %v2181 = vmul.f32 %v1669, %v1669
      %v2182 = vmul.f32 %v1670, %v1670
      %v2183 = vmul.f32 %v1671, %v1671
      %v2184 = vmul.f32 %v1672, %v1672
      %v2185 = vmul.f32 %v1673, %v1673
      %v2186 = vmul.f32 %v1674, %v1674
      %v2187 = vmul.f32 %v1675, %v1675
      %v2188 = vmul.f32 %v1676, %v1676
      %v2189 = vmul.f32 %v1677, %v1677
      %v2190 = vmul.f32 %v1678, %v1678
      %v2191 = vmul.f32 %v1679, %v1679
      %v2192 = vmul.f32 %v1680, %v1680
      %v2193 = vmul.f32 %v1681, %v1681
      %v2194 = vmul.f32 %v1682, %v1682
      %v2195 = vmul.f32 %v1683, %v1683
      %v2196 = vmul.f32 %v1684, %v1684
      %v2197 = vmul.f32 %v1685, %v1685
      %v2198 = vmul.f32 %v1686, %v1686
      %v2199 = vmul.f32 %v1687, %v1687
      %v2200 = vmul.f32 %v1688, %v1688
      %v2201 = vmul.f32 %v1689, %v1689
      %v2202 = vmul.f32 %v1690, %v1690
      %v2203 = vmul.f32 %v1691, %v1691
      %v2204 = vmul.f32 %v1692, %v1692
      %v2205 = vmul.f32 %v1693, %v1693
      %v2206 = vmul.f32 %v1694, %v1694
      %v2207 = vmul.f32 %v1695, %v1695
      %v2208 = vmul.f32 %v1696, %v1696
      %v2209 = vmul.f32 %v1697, %v1697
      %v2210 = vmul.f32 %v1698, %v1698
      %v2211 = vmul.f32 %v1699, %v1699
      %v2212 = vmul.f32 %v1700, %v1700
      %v2213 = vmul.f32 %v1701, %v1701
      %v2214 = vmul.f32 %v1702, %v1702
      %v2215 = vmul.f32 %v1703, %v1703
      %v2216 = vmul.f32 %v1704, %v1704
      %v2217 = vmul.f32 %v1705, %v1705
      %v2218 = vmul.f32 %v1706, %v1706
      %v2219 = vmul.f32 %v1707, %v1707
      %v2220 = vmul.f32 %v1708, %v1708
      %v2221 = vmul.f32 %v1709, %v1709
      %v2222 = vmul.f32 %v1710, %v1710
      %v2223 = vmul.f32 %v1711, %v1711
      %v2224 = vmul.f32 %v1712, %v1712
      %v2225 = vmul.f32 %v1713, %v1713
      %v2226 = vmul.f32 %v1714, %v1714
      %v2227 = vmul.f32 %v1715, %v1715
      %v2228 = vmul.f32 %v1716, %v1716
      %v2229 = vmul.f32 %v1717, %v1717
      %v2230 = vmul.f32 %v1718, %v1718
      %v2231 = vmul.f32 %v1719, %v1719
      %v2232 = vmul.f32 %v1720, %v1720
      %v2233 = vmul.f32 %v1721, %v1721
      %v2234 = vmul.f32 %v1722, %v1722
      %v2235 = vmul.f32 %v1723, %v1723
      %v2236 = vmul.f32 %v1724, %v1724
      %v2237 = vmul.f32 %v1725, %v1725
      %v2238 = vmul.f32 %v1726, %v1726
      %v2239 = vmul.f32 %v1727, %v1727
      %v2240 = vmul.f32 %v1728, %v1728
      %v2241 = vmul.f32 %v1729, %v1729
      %v2242 = vmul.f32 %v1730, %v1730
      %v2243 = vmul.f32 %v1731, %v1731
      %v2244 = vmul.f32 %v1732, %v1732
      %v2245 = vmul.f32 %v1733, %v1733
      %v2246 = vmul.f32 %v1734, %v1734
      %v2247 = vmul.f32 %v1735, %v1735
      %v2248 = vmul.f32 %v1736, %v1736
      %v2249 = vmul.f32 %v1737, %v1737
      %v2250 = vmul.f32 %v1738, %v1738
      %v2251 = vmul.f32 %v1739, %v1739
      %v2252 = vmul.f32 %v1740, %v1740
      %v2253 = vmul.f32 %v1741, %v1741
      %v2254 = vmul.f32 %v1742, %v1742
      %v2255 = vmul.f32 %v1743, %v1743
      %v2256 = vmul.f32 %v1744, %v1744
      %v2257 = vmul.f32 %v1745, %v1745
      %v2258 = vmul.f32 %v1746, %v1746
      %v2259 = vmul.f32 %v1747, %v1747
      %v2260 = vmul.f32 %v1748, %v1748
      %v2261 = vmul.f32 %v1749, %v1749
      %v2262 = vmul.f32 %v1750, %v1750
      %v2263 = vmul.f32 %v1751, %v1751
      %v2264 = vmul.f32 %v1752, %v1752
      %v2265 = vmul.f32 %v1753, %v1753
      %v2266 = vmul.f32 %v1754, %v1754
      %v2267 = vmul.f32 %v1755, %v1755
      %v2268 = vmul.f32 %v1756, %v1756
      %v2269 = vmul.f32 %v1757, %v1757
      %v2270 = vmul.f32 %v1758, %v1758
      %v2271 = vmul.f32 %v1759, %v1759
      %v2272 = vmul.f32 %v1760, %v1760
      %v2273 = vmul.f32 %v1761, %v1761
      %v2274 = vmul.f32 %v1762, %v1762
      %v2275 = vmul.f32 %v1763, %v1763
      %v2276 = vmul.f32 %v1764, %v1764
      %v2277 = vmul.f32 %v1765, %v1765
      %v2278 = vmul.f32 %v1766, %v1766
      %v2279 = vmul.f32 %v1767, %v1767
      %v2280 = vmul.f32 %v1768, %v1768
      %v2281 = vmul.f32 %v1769, %v1769
      %v2282 = vmul.f32 %v1770, %v1770
      %v2283 = vmul.f32 %v1771, %v1771
      %v2284 = vmul.f32 %v1772, %v1772
      %v2285 = vmul.f32 %v1773, %v1773
      %v2286 = vmul.f32 %v1774, %v1774
      %v2287 = vmul.f32 %v1775, %v1775
      %v2288 = vmul.f32 %v1776, %v1776
      %v2289 = vmul.f32 %v1777, %v1777
      %v2290 = vmul.f32 %v1778, %v1778
      %v2291 = vmul.f32 %v1779, %v1779
      %v2292 = vmul.f32 %v1780, %v1780
      %v2293 = vmul.f32 %v1781, %v1781
      %v2294 = vmul.f32 %v1782, %v1782
      %v2295 = vmul.f32 %v1783, %v1783
      %v2296 = vmul.f32 %v1784, %v1784
      %v2297 = vmul.f32 %v1785, %v1785
      %v2298 = vmul.f32 %v1786, %v1786
      %v2299 = vmul.f32 %v1787, %v1787
      %v2300 = vmul.f32 %v1788, %v1788
      %v2301 = vmul.f32 %v1789, %v1789
      %v2302 = vmul.f32 %v1790, %v1790
      %v2303 = vmul.f32 %v1791, %v1791
      %v2304 = vmul.f32 %v1792, %v1792
      %v2305 = vmul.f32 %v1793, %v1793
      %v2306 = vmul.f32 %v1794, %v1794
      %v2307 = vmul.f32 %v1795, %v1795
      %v2308 = vmul.f32 %v1796, %v1796
      %v2309 = vmul.f32 %v1797, %v1797
      %v2310 = vmul.f32 %v1798, %v1798
      %v2311 = vmul.f32 %v1799, %v1799
      %v2312 = vmul.f32 %v1800, %v1800
      %v2313 = vmul.f32 %v1801, %v1801
      %v2314 = vmul.f32 %v1802, %v1802
      %v2315 = vmul.f32 %v1803, %v1803
      %v2316 = vmul.f32 %v1804, %v1804
      %v2317 = vmul.f32 %v1805, %v1805
      %v2318 = vmul.f32 %v1806, %v1806
      %v2319 = vmul.f32 %v1807, %v1807
      %v2320 = vmul.f32 %v1808, %v1808
      %v2321 = vmul.f32 %v1809, %v1809
      %v2322 = vmul.f32 %v1810, %v1810
      %v2323 = vmul.f32 %v1811, %v1811
      %v2324 = vmul.f32 %v1812, %v1812
      %v2325 = vmul.f32 %v1813, %v1813
      %v2326 = vmul.f32 %v1814, %v1814
      %v2327 = vmul.f32 %v1815, %v1815
      %v2328 = vmul.f32 %v1816, %v1816
      %v2329 = vmul.f32 %v1817, %v1817
      %v2330 = vmul.f32 %v1818, %v1818
      %v2331 = vmul.f32 %v1819, %v1819
      %v2332 = vmul.f32 %v1820, %v1820
      %v2333 = vmul.f32 %v1821, %v1821
      %v2334 = vmul.f32 %v1822, %v1822
      %v2335 = vmul.f32 %v1823, %v1823
      %v2336 = vmul.f32 %v1824, %v1824
      %v2337 = vmul.f32 %v1825, %v1825
      %v2338 = vmul.f32 %v1826, %v1826
      %v2339 = vmul.f32 %v1827, %v1827
      %v2340 = vmul.f32 %v1828, %v1828
      %v2341 = vmul.f32 %v1829, %v1829
      %v2342 = vmul.f32 %v1830, %v1830
      %v2343 = vmul.f32 %v1831, %v1831
      %v2344 = vmul.f32 %v1832, %v1832
      %v2345 = vmul.f32 %v1833, %v1833
      %v2346 = vmul.f32 %v1834, %v1834
      %v2347 = vmul.f32 %v1835, %v1835
      %v2348 = vmul.f32 %v1836, %v1836
      %v2349 = vmul.f32 %v1837, %v1837
      %v2350 = vmul.f32 %v1838, %v1838
      %v2351 = vmul.f32 %v1839, %v1839
      %v2352 = vmul.f32 %v1840, %v1840
      %v2353 = vmul.f32 %v1841, %v1841
      %v2354 = vmul.f32 %v1842, %v1842
      %v2355 = vmul.f32 %v1843, %v1843
      %v2356 = vmul.f32 %v1844, %v1844
      %v2357 = vmul.f32 %v1845, %v1845
      %v2358 = vmul.f32 %v1846, %v1846
      %v2359 = vmul.f32 %v1847, %v1847
      %v2360 = vmul.f32 %v1848, %v1848
      %v2361 = vmul.f32 %v1849, %v1849
      %v2362 = vmul.f32 %v1850, %v1850
      %v2363 = vmul.f32 %v1851, %v1851
      %v2364 = vmul.f32 %v1852, %v1852
      %v2365 = vmul.f32 %v1853, %v1853
      %v2366 = vmul.f32 %v1854, %v1854
      %v2367 = vmul.f32 %v1855, %v1855
      %v2368 = vmul.f32 %v1856, %v1856
      %v2369 = vmul.f32 %v1857, %v1857
      %v2370 = vmul.f32 %v1858, %v1858
      %v2371 = vmul.f32 %v1859, %v1859
      %v2372 = vmul.f32 %v1860, %v1860
      %v2373 = vmul.f32 %v1861, %v1861
      %v2374 = vmul.f32 %v1862, %v1862
      %v2375 = vmul.f32 %v1863, %v1863
      %v2376 = vmul.f32 %v1864, %v1864
      %v2377 = vmul.f32 %v1865, %v1865
      %v2378 = vmul.f32 %v1866, %v1866
      %v2379 = vmul.f32 %v1867, %v1867
      %v2380 = vmul.f32 %v1868, %v1868
      %v2381 = vmul.f32 %v1869, %v1869
      %v2382 = vmul.f32 %v1870, %v1870
      %v2383 = vmul.f32 %v1871, %v1871
      %v2384 = vmul.f32 %v1872, %v1872
      %v2385 = vmul.f32 %v1873, %v1873
      %v2386 = vmul.f32 %v1874, %v1874
      %v2387 = vadd.f32 %v1875, %v1876
      %v2388 = vadd.f32 %v2387, %v1877
      %v2389 = vadd.f32 %v2388, %v1878
      %v2390 = vadd.f32 %v2389, %v1879
      %v2391 = vadd.f32 %v2390, %v1880
      %v2392 = vadd.f32 %v2391, %v1881
      %v2393 = vadd.f32 %v2392, %v1882
      %v2394 = vadd.f32 %v2393, %v1883
      %v2395 = vadd.f32 %v2394, %v1884
      %v2396 = vadd.f32 %v2395, %v1885
      %v2397 = vadd.f32 %v2396, %v1886
      %v2398 = vadd.f32 %v2397, %v1887
      %v2399 = vadd.f32 %v2398, %v1888
      %v2400 = vadd.f32 %v2399, %v1889
      %v2401 = vadd.f32 %v2400, %v1890
      %v2402 = vadd.f32 %v2401, %v1891
      %v2403 = vadd.f32 %v2402, %v1892
      %v2404 = vadd.f32 %v2403, %v1893
      %v2405 = vadd.f32 %v2404, %v1894
      %v2406 = vadd.f32 %v2405, %v1895
      %v2407 = vadd.f32 %v2406, %v1896
      %v2408 = vadd.f32 %v2407, %v1897
      %v2409 = vadd.f32 %v2408, %v1898
      %v2410 = vadd.f32 %v2409, %v1899
      %v2411 = vadd.f32 %v2410, %v1900
      %v2412 = vadd.f32 %v2411, %v1901
      %v2413 = vadd.f32 %v2412, %v1902
      %v2414 = vadd.f32 %v2413, %v1903
      %v2415 = vadd.f32 %v2414, %v1904
      %v2416 = vadd.f32 %v2415, %v1905
      %v2417 = vadd.f32 %v2416, %v1906
      %2418 = vadd.xlane.f32.xlu0 %v2417
      %v2419 = vpop.xlane.xlu0 %2418
      %v2420 = vadd.f32 %v1907, %v1908
      %v2421 = vadd.f32 %v2420, %v1909
      %v2422 = vadd.f32 %v2421, %v1910
      %v2423 = vadd.f32 %v2422, %v1911
      %v2424 = vadd.f32 %v2423, %v1912
      %v2425 = vadd.f32 %v2424, %v1913
      %v2426 = vadd.f32 %v2425, %v1914
      %v2427 = vadd.f32 %v2426, %v1915
      %v2428 = vadd.f32 %v2427, %v1916
      %v2429 = vadd.f32 %v2428, %v1917
      %v2430 = vadd.f32 %v2429, %v1918
      %v2431 = vadd.f32 %v2430, %v1919
      %v2432 = vadd.f32 %v2431, %v1920
      %v2433 = vadd.f32 %v2432, %v1921
      %v2434 = vadd.f32 %v2433, %v1922
      %v2435 = vadd.f32 %v2434, %v1923
      %v2436 = vadd.f32 %v2435, %v1924
      %v2437 = vadd.f32 %v2436, %v1925
      %v2438 = vadd.f32 %v2437, %v1926
      %v2439 = vadd.f32 %v2438, %v1927
      %v2440 = vadd.f32 %v2439, %v1928
      %v2441 = vadd.f32 %v2440, %v1929
      %v2442 = vadd.f32 %v2441, %v1930
      %v2443 = vadd.f32 %v2442, %v1931
      %v2444 = vadd.f32 %v2443, %v1932
      %v2445 = vadd.f32 %v2444, %v1933
      %v2446 = vadd.f32 %v2445, %v1934
      %v2447 = vadd.f32 %v2446, %v1935
      %v2448 = vadd.f32 %v2447, %v1936
      %v2449 = vadd.f32 %v2448, %v1937
      %v2450 = vadd.f32 %v2449, %v1938
      %2451 = vadd.xlane.f32.xlu0 %v2450
      %v2452 = vpop.xlane.xlu0 %2451
      %v2453 = vadd.f32 %v1939, %v1940
      %v2454 = vadd.f32 %v2453, %v1941
      %v2455 = vadd.f32 %v2454, %v1942
      %v2456 = vadd.f32 %v2455, %v1943
      %v2457 = vadd.f32 %v2456, %v1944
      %v2458 = vadd.f32 %v2457, %v1945
      %v2459 = vadd.f32 %v2458, %v1946
      %v2460 = vadd.f32 %v2459, %v1947
      %v2461 = vadd.f32 %v2460, %v1948
      %v2462 = vadd.f32 %v2461, %v1949
      %v2463 = vadd.f32 %v2462, %v1950
      %v2464 = vadd.f32 %v2463, %v1951
      %v2465 = vadd.f32 %v2464, %v1952
      %v2466 = vadd.f32 %v2465, %v1953
      %v2467 = vadd.f32 %v2466, %v1954
      %v2468 = vadd.f32 %v2467, %v1955
      %v2469 = vadd.f32 %v2468, %v1956
      %v2470 = vadd.f32 %v2469, %v1957
      %v2471 = vadd.f32 %v2470, %v1958
      %v2472 = vadd.f32 %v2471, %v1959
      %v2473 = vadd.f32 %v2472, %v1960
      %v2474 = vadd.f32 %v2473, %v1961
      %v2475 = vadd.f32 %v2474, %v1962
      %v2476 = vadd.f32 %v2475, %v1963
      %v2477 = vadd.f32 %v2476, %v1964
      %v2478 = vadd.f32 %v2477, %v1965
      %v2479 = vadd.f32 %v2478, %v1966
      %v2480 = vadd.f32 %v2479, %v1967
      %v2481 = vadd.f32 %v2480, %v1968
      %v2482 = vadd.f32 %v2481, %v1969
      %v2483 = vadd.f32 %v2482, %v1970
      %2484 = vadd.xlane.f32.xlu0 %v2483
      %v2485 = vpop.xlane.xlu0 %2484
      %v2486 = vadd.f32 %v1971, %v1972
      %v2487 = vadd.f32 %v2486, %v1973
      %v2488 = vadd.f32 %v2487, %v1974
      %v2489 = vadd.f32 %v2488, %v1975
      %v2490 = vadd.f32 %v2489, %v1976
      %v2491 = vadd.f32 %v2490, %v1977
      %v2492 = vadd.f32 %v2491, %v1978
      %v2493 = vadd.f32 %v2492, %v1979
      %v2494 = vadd.f32 %v2493, %v1980
      %v2495 = vadd.f32 %v2494, %v1981
      %v2496 = vadd.f32 %v2495, %v1982
      %v2497 = vadd.f32 %v2496, %v1983
      %v2498 = vadd.f32 %v2497, %v1984
      %v2499 = vadd.f32 %v2498, %v1985
      %v2500 = vadd.f32 %v2499, %v1986
      %v2501 = vadd.f32 %v2500, %v1987
      %v2502 = vadd.f32 %v2501, %v1988
      %v2503 = vadd.f32 %v2502, %v1989
      %v2504 = vadd.f32 %v2503, %v1990
      %v2505 = vadd.f32 %v2504, %v1991
      %v2506 = vadd.f32 %v2505, %v1992
      %v2507 = vadd.f32 %v2506, %v1993
      %v2508 = vadd.f32 %v2507, %v1994
      %v2509 = vadd.f32 %v2508, %v1995
      %v2510 = vadd.f32 %v2509, %v1996
      %v2511 = vadd.f32 %v2510, %v1997
      %v2512 = vadd.f32 %v2511, %v1998
      %v2513 = vadd.f32 %v2512, %v1999
      %v2514 = vadd.f32 %v2513, %v2000
      %v2515 = vadd.f32 %v2514, %v2001
      %v2516 = vadd.f32 %v2515, %v2002
      %2517 = vadd.xlane.f32.xlu0 %v2516
      %v2518 = vpop.xlane.xlu0 %2517
      %v2519 = vadd.f32 %v2003, %v2004
      %v2520 = vadd.f32 %v2519, %v2005
      %v2521 = vadd.f32 %v2520, %v2006
      %v2522 = vadd.f32 %v2521, %v2007
      %v2523 = vadd.f32 %v2522, %v2008
      %v2524 = vadd.f32 %v2523, %v2009
      %v2525 = vadd.f32 %v2524, %v2010
      %v2526 = vadd.f32 %v2525, %v2011
      %v2527 = vadd.f32 %v2526, %v2012
      %v2528 = vadd.f32 %v2527, %v2013
      %v2529 = vadd.f32 %v2528, %v2014
      %v2530 = vadd.f32 %v2529, %v2015
      %v2531 = vadd.f32 %v2530, %v2016
      %v2532 = vadd.f32 %v2531, %v2017
      %v2533 = vadd.f32 %v2532, %v2018
      %v2534 = vadd.f32 %v2533, %v2019
      %v2535 = vadd.f32 %v2534, %v2020
      %v2536 = vadd.f32 %v2535, %v2021
      %v2537 = vadd.f32 %v2536, %v2022
      %v2538 = vadd.f32 %v2537, %v2023
      %v2539 = vadd.f32 %v2538, %v2024
      %v2540 = vadd.f32 %v2539, %v2025
      %v2541 = vadd.f32 %v2540, %v2026
      %v2542 = vadd.f32 %v2541, %v2027
      %v2543 = vadd.f32 %v2542, %v2028
      %v2544 = vadd.f32 %v2543, %v2029
      %v2545 = vadd.f32 %v2544, %v2030
      %v2546 = vadd.f32 %v2545, %v2031
      %v2547 = vadd.f32 %v2546, %v2032
      %v2548 = vadd.f32 %v2547, %v2033
      %v2549 = vadd.f32 %v2548, %v2034
      %2550 = vadd.xlane.f32.xlu0 %v2549
      %v2551 = vpop.xlane.xlu0 %2550
      %v2552 = vadd.f32 %v2035, %v2036
      %v2553 = vadd.f32 %v2552, %v2037
      %v2554 = vadd.f32 %v2553, %v2038
      %v2555 = vadd.f32 %v2554, %v2039
      %v2556 = vadd.f32 %v2555, %v2040
      %v2557 = vadd.f32 %v2556, %v2041
      %v2558 = vadd.f32 %v2557, %v2042
      %v2559 = vadd.f32 %v2558, %v2043
      %v2560 = vadd.f32 %v2559, %v2044
      %v2561 = vadd.f32 %v2560, %v2045
      %v2562 = vadd.f32 %v2561, %v2046
      %v2563 = vadd.f32 %v2562, %v2047
      %v2564 = vadd.f32 %v2563, %v2048
      %v2565 = vadd.f32 %v2564, %v2049
      %v2566 = vadd.f32 %v2565, %v2050
      %v2567 = vadd.f32 %v2566, %v2051
      %v2568 = vadd.f32 %v2567, %v2052
      %v2569 = vadd.f32 %v2568, %v2053
      %v2570 = vadd.f32 %v2569, %v2054
      %v2571 = vadd.f32 %v2570, %v2055
      %v2572 = vadd.f32 %v2571, %v2056
      %v2573 = vadd.f32 %v2572, %v2057
      %v2574 = vadd.f32 %v2573, %v2058
      %v2575 = vadd.f32 %v2574, %v2059
      %v2576 = vadd.f32 %v2575, %v2060
      %v2577 = vadd.f32 %v2576, %v2061
      %v2578 = vadd.f32 %v2577, %v2062
      %v2579 = vadd.f32 %v2578, %v2063
      %v2580 = vadd.f32 %v2579, %v2064
      %v2581 = vadd.f32 %v2580, %v2065
      %v2582 = vadd.f32 %v2581, %v2066
      %2583 = vadd.xlane.f32.xlu0 %v2582
      %v2584 = vpop.xlane.xlu0 %2583
      %v2585 = vadd.f32 %v2067, %v2068
      %v2586 = vadd.f32 %v2585, %v2069
      %v2587 = vadd.f32 %v2586, %v2070
      %v2588 = vadd.f32 %v2587, %v2071
      %v2589 = vadd.f32 %v2588, %v2072
      %v2590 = vadd.f32 %v2589, %v2073
      %v2591 = vadd.f32 %v2590, %v2074
      %v2592 = vadd.f32 %v2591, %v2075
      %v2593 = vadd.f32 %v2592, %v2076
      %v2594 = vadd.f32 %v2593, %v2077
      %v2595 = vadd.f32 %v2594, %v2078
      %v2596 = vadd.f32 %v2595, %v2079
      %v2597 = vadd.f32 %v2596, %v2080
      %v2598 = vadd.f32 %v2597, %v2081
      %v2599 = vadd.f32 %v2598, %v2082
      %v2600 = vadd.f32 %v2599, %v2083
      %v2601 = vadd.f32 %v2600, %v2084
      %v2602 = vadd.f32 %v2601, %v2085
      %v2603 = vadd.f32 %v2602, %v2086
      %v2604 = vadd.f32 %v2603, %v2087
      %v2605 = vadd.f32 %v2604, %v2088
      %v2606 = vadd.f32 %v2605, %v2089
      %v2607 = vadd.f32 %v2606, %v2090
      %v2608 = vadd.f32 %v2607, %v2091
      %v2609 = vadd.f32 %v2608, %v2092
      %v2610 = vadd.f32 %v2609, %v2093
      %v2611 = vadd.f32 %v2610, %v2094
      %v2612 = vadd.f32 %v2611, %v2095
      %v2613 = vadd.f32 %v2612, %v2096
      %v2614 = vadd.f32 %v2613, %v2097
      %v2615 = vadd.f32 %v2614, %v2098
      %2616 = vadd.xlane.f32.xlu0 %v2615
      %v2617 = vpop.xlane.xlu0 %2616
      %v2618 = vadd.f32 %v2099, %v2100
      %v2619 = vadd.f32 %v2618, %v2101
      %v2620 = vadd.f32 %v2619, %v2102
      %v2621 = vadd.f32 %v2620, %v2103
      %v2622 = vadd.f32 %v2621, %v2104
      %v2623 = vadd.f32 %v2622, %v2105
      %v2624 = vadd.f32 %v2623, %v2106
      %v2625 = vadd.f32 %v2624, %v2107
      %v2626 = vadd.f32 %v2625, %v2108
      %v2627 = vadd.f32 %v2626, %v2109
      %v2628 = vadd.f32 %v2627, %v2110
      %v2629 = vadd.f32 %v2628, %v2111
      %v2630 = vadd.f32 %v2629, %v2112
      %v2631 = vadd.f32 %v2630, %v2113
      %v2632 = vadd.f32 %v2631, %v2114
      %v2633 = vadd.f32 %v2632, %v2115
      %v2634 = vadd.f32 %v2633, %v2116
      %v2635 = vadd.f32 %v2634, %v2117
      %v2636 = vadd.f32 %v2635, %v2118
      %v2637 = vadd.f32 %v2636, %v2119
      %v2638 = vadd.f32 %v2637, %v2120
      %v2639 = vadd.f32 %v2638, %v2121
      %v2640 = vadd.f32 %v2639, %v2122
      %v2641 = vadd.f32 %v2640, %v2123
      %v2642 = vadd.f32 %v2641, %v2124
      %v2643 = vadd.f32 %v2642, %v2125
      %v2644 = vadd.f32 %v2643, %v2126
      %v2645 = vadd.f32 %v2644, %v2127
      %v2646 = vadd.f32 %v2645, %v2128
      %v2647 = vadd.f32 %v2646, %v2129
      %v2648 = vadd.f32 %v2647, %v2130
      %2649 = vadd.xlane.f32.xlu0 %v2648
      %v2650 = vpop.xlane.xlu0 %2649
      %v2651 = vadd.f32 %v2131, %v2132
      %v2652 = vadd.f32 %v2651, %v2133
      %v2653 = vadd.f32 %v2652, %v2134
      %v2654 = vadd.f32 %v2653, %v2135
      %v2655 = vadd.f32 %v2654, %v2136
      %v2656 = vadd.f32 %v2655, %v2137
      %v2657 = vadd.f32 %v2656, %v2138
      %v2658 = vadd.f32 %v2657, %v2139
      %v2659 = vadd.f32 %v2658, %v2140
      %v2660 = vadd.f32 %v2659, %v2141
      %v2661 = vadd.f32 %v2660, %v2142
      %v2662 = vadd.f32 %v2661, %v2143
      %v2663 = vadd.f32 %v2662, %v2144
      %v2664 = vadd.f32 %v2663, %v2145
      %v2665 = vadd.f32 %v2664, %v2146
      %v2666 = vadd.f32 %v2665, %v2147
      %v2667 = vadd.f32 %v2666, %v2148
      %v2668 = vadd.f32 %v2667, %v2149
      %v2669 = vadd.f32 %v2668, %v2150
      %v2670 = vadd.f32 %v2669, %v2151
      %v2671 = vadd.f32 %v2670, %v2152
      %v2672 = vadd.f32 %v2671, %v2153
      %v2673 = vadd.f32 %v2672, %v2154
      %v2674 = vadd.f32 %v2673, %v2155
      %v2675 = vadd.f32 %v2674, %v2156
      %v2676 = vadd.f32 %v2675, %v2157
      %v2677 = vadd.f32 %v2676, %v2158
      %v2678 = vadd.f32 %v2677, %v2159
      %v2679 = vadd.f32 %v2678, %v2160
      %v2680 = vadd.f32 %v2679, %v2161
      %v2681 = vadd.f32 %v2680, %v2162
      %2682 = vadd.xlane.f32.xlu0 %v2681
      %v2683 = vpop.xlane.xlu0 %2682
      %v2684 = vadd.f32 %v2163, %v2164
      %v2685 = vadd.f32 %v2684, %v2165
      %v2686 = vadd.f32 %v2685, %v2166
      %v2687 = vadd.f32 %v2686, %v2167
      %v2688 = vadd.f32 %v2687, %v2168
      %v2689 = vadd.f32 %v2688, %v2169
      %v2690 = vadd.f32 %v2689, %v2170
      %v2691 = vadd.f32 %v2690, %v2171
      %v2692 = vadd.f32 %v2691, %v2172
      %v2693 = vadd.f32 %v2692, %v2173
      %v2694 = vadd.f32 %v2693, %v2174
      %v2695 = vadd.f32 %v2694, %v2175
      %v2696 = vadd.f32 %v2695, %v2176
      %v2697 = vadd.f32 %v2696, %v2177
      %v2698 = vadd.f32 %v2697, %v2178
      %v2699 = vadd.f32 %v2698, %v2179
      %v2700 = vadd.f32 %v2699, %v2180
      %v2701 = vadd.f32 %v2700, %v2181
      %v2702 = vadd.f32 %v2701, %v2182
      %v2703 = vadd.f32 %v2702, %v2183
      %v2704 = vadd.f32 %v2703, %v2184
      %v2705 = vadd.f32 %v2704, %v2185
      %v2706 = vadd.f32 %v2705, %v2186
      %v2707 = vadd.f32 %v2706, %v2187
      %v2708 = vadd.f32 %v2707, %v2188
      %v2709 = vadd.f32 %v2708, %v2189
      %v2710 = vadd.f32 %v2709, %v2190
      %v2711 = vadd.f32 %v2710, %v2191
      %v2712 = vadd.f32 %v2711, %v2192
      %v2713 = vadd.f32 %v2712, %v2193
      %v2714 = vadd.f32 %v2713, %v2194
      %2715 = vadd.xlane.f32.xlu0 %v2714
      %v2716 = vpop.xlane.xlu0 %2715
      %v2717 = vadd.f32 %v2195, %v2196
      %v2718 = vadd.f32 %v2717, %v2197
      %v2719 = vadd.f32 %v2718, %v2198
      %v2720 = vadd.f32 %v2719, %v2199
      %v2721 = vadd.f32 %v2720, %v2200
      %v2722 = vadd.f32 %v2721, %v2201
      %v2723 = vadd.f32 %v2722, %v2202
      %v2724 = vadd.f32 %v2723, %v2203
      %v2725 = vadd.f32 %v2724, %v2204
      %v2726 = vadd.f32 %v2725, %v2205
      %v2727 = vadd.f32 %v2726, %v2206
      %v2728 = vadd.f32 %v2727, %v2207
      %v2729 = vadd.f32 %v2728, %v2208
      %v2730 = vadd.f32 %v2729, %v2209
      %v2731 = vadd.f32 %v2730, %v2210
      %v2732 = vadd.f32 %v2731, %v2211
      %v2733 = vadd.f32 %v2732, %v2212
      %v2734 = vadd.f32 %v2733, %v2213
      %v2735 = vadd.f32 %v2734, %v2214
      %v2736 = vadd.f32 %v2735, %v2215
      %v2737 = vadd.f32 %v2736, %v2216
      %v2738 = vadd.f32 %v2737, %v2217
      %v2739 = vadd.f32 %v2738, %v2218
      %v2740 = vadd.f32 %v2739, %v2219
      %v2741 = vadd.f32 %v2740, %v2220
      %v2742 = vadd.f32 %v2741, %v2221
      %v2743 = vadd.f32 %v2742, %v2222
      %v2744 = vadd.f32 %v2743, %v2223
      %v2745 = vadd.f32 %v2744, %v2224
      %v2746 = vadd.f32 %v2745, %v2225
      %v2747 = vadd.f32 %v2746, %v2226
      %2748 = vadd.xlane.f32.xlu0 %v2747
      %v2749 = vpop.xlane.xlu0 %2748
      %v2750 = vadd.f32 %v2227, %v2228
      %v2751 = vadd.f32 %v2750, %v2229
      %v2752 = vadd.f32 %v2751, %v2230
      %v2753 = vadd.f32 %v2752, %v2231
      %v2754 = vadd.f32 %v2753, %v2232
      %v2755 = vadd.f32 %v2754, %v2233
      %v2756 = vadd.f32 %v2755, %v2234
      %v2757 = vadd.f32 %v2756, %v2235
      %v2758 = vadd.f32 %v2757, %v2236
      %v2759 = vadd.f32 %v2758, %v2237
      %v2760 = vadd.f32 %v2759, %v2238
      %v2761 = vadd.f32 %v2760, %v2239
      %v2762 = vadd.f32 %v2761, %v2240
      %v2763 = vadd.f32 %v2762, %v2241
      %v2764 = vadd.f32 %v2763, %v2242
      %v2765 = vadd.f32 %v2764, %v2243
      %v2766 = vadd.f32 %v2765, %v2244
      %v2767 = vadd.f32 %v2766, %v2245
      %v2768 = vadd.f32 %v2767, %v2246
      %v2769 = vadd.f32 %v2768, %v2247
      %v2770 = vadd.f32 %v2769, %v2248
      %v2771 = vadd.f32 %v2770, %v2249
      %v2772 = vadd.f32 %v2771, %v2250
      %v2773 = vadd.f32 %v2772, %v2251
      %v2774 = vadd.f32 %v2773, %v2252
      %v2775 = vadd.f32 %v2774, %v2253
      %v2776 = vadd.f32 %v2775, %v2254
      %v2777 = vadd.f32 %v2776, %v2255
      %v2778 = vadd.f32 %v2777, %v2256
      %v2779 = vadd.f32 %v2778, %v2257
      %v2780 = vadd.f32 %v2779, %v2258
      %2781 = vadd.xlane.f32.xlu0 %v2780
      %v2782 = vpop.xlane.xlu0 %2781
      %v2783 = vadd.f32 %v2259, %v2260
      %v2784 = vadd.f32 %v2783, %v2261
      %v2785 = vadd.f32 %v2784, %v2262
      %v2786 = vadd.f32 %v2785, %v2263
      %v2787 = vadd.f32 %v2786, %v2264
      %v2788 = vadd.f32 %v2787, %v2265
      %v2789 = vadd.f32 %v2788, %v2266
      %v2790 = vadd.f32 %v2789, %v2267
      %v2791 = vadd.f32 %v2790, %v2268
      %v2792 = vadd.f32 %v2791, %v2269
      %v2793 = vadd.f32 %v2792, %v2270
      %v2794 = vadd.f32 %v2793, %v2271
      %v2795 = vadd.f32 %v2794, %v2272
      %v2796 = vadd.f32 %v2795, %v2273
      %v2797 = vadd.f32 %v2796, %v2274
      %v2798 = vadd.f32 %v2797, %v2275
      %v2799 = vadd.f32 %v2798, %v2276
      %v2800 = vadd.f32 %v2799, %v2277
      %v2801 = vadd.f32 %v2800, %v2278
      %v2802 = vadd.f32 %v2801, %v2279
      %v2803 = vadd.f32 %v2802, %v2280
      %v2804 = vadd.f32 %v2803, %v2281
      %v2805 = vadd.f32 %v2804, %v2282
      %v2806 = vadd.f32 %v2805, %v2283
      %v2807 = vadd.f32 %v2806, %v2284
      %v2808 = vadd.f32 %v2807, %v2285
      %v2809 = vadd.f32 %v2808, %v2286
      %v2810 = vadd.f32 %v2809, %v2287
      %v2811 = vadd.f32 %v2810, %v2288
      %v2812 = vadd.f32 %v2811, %v2289
      %v2813 = vadd.f32 %v2812, %v2290
      %2814 = vadd.xlane.f32.xlu0 %v2813
      %v2815 = vpop.xlane.xlu0 %2814
      %v2816 = vadd.f32 %v2291, %v2292
      %v2817 = vadd.f32 %v2816, %v2293
      %v2818 = vadd.f32 %v2817, %v2294
      %v2819 = vadd.f32 %v2818, %v2295
      %v2820 = vadd.f32 %v2819, %v2296
      %v2821 = vadd.f32 %v2820, %v2297
      %v2822 = vadd.f32 %v2821, %v2298
      %v2823 = vadd.f32 %v2822, %v2299
      %v2824 = vadd.f32 %v2823, %v2300
      %v2825 = vadd.f32 %v2824, %v2301
      %v2826 = vadd.f32 %v2825, %v2302
      %v2827 = vadd.f32 %v2826, %v2303
      %v2828 = vadd.f32 %v2827, %v2304
      %v2829 = vadd.f32 %v2828, %v2305
      %v2830 = vadd.f32 %v2829, %v2306
      %v2831 = vadd.f32 %v2830, %v2307
      %v2832 = vadd.f32 %v2831, %v2308
      %v2833 = vadd.f32 %v2832, %v2309
      %v2834 = vadd.f32 %v2833, %v2310
      %v2835 = vadd.f32 %v2834, %v2311
      %v2836 = vadd.f32 %v2835, %v2312
      %v2837 = vadd.f32 %v2836, %v2313
      %v2838 = vadd.f32 %v2837, %v2314
      %v2839 = vadd.f32 %v2838, %v2315
      %v2840 = vadd.f32 %v2839, %v2316
      %v2841 = vadd.f32 %v2840, %v2317
      %v2842 = vadd.f32 %v2841, %v2318
      %v2843 = vadd.f32 %v2842, %v2319
      %v2844 = vadd.f32 %v2843, %v2320
      %v2845 = vadd.f32 %v2844, %v2321
      %v2846 = vadd.f32 %v2845, %v2322
      %2847 = vadd.xlane.f32.xlu0 %v2846
      %v2848 = vpop.xlane.xlu0 %2847
      %v2849 = vadd.f32 %v2323, %v2324
      %v2850 = vadd.f32 %v2849, %v2325
      %v2851 = vadd.f32 %v2850, %v2326
      %v2852 = vadd.f32 %v2851, %v2327
      %v2853 = vadd.f32 %v2852, %v2328
      %v2854 = vadd.f32 %v2853, %v2329
      %v2855 = vadd.f32 %v2854, %v2330
      %v2856 = vadd.f32 %v2855, %v2331
      %v2857 = vadd.f32 %v2856, %v2332
      %v2858 = vadd.f32 %v2857, %v2333
      %v2859 = vadd.f32 %v2858, %v2334
      %v2860 = vadd.f32 %v2859, %v2335
      %v2861 = vadd.f32 %v2860, %v2336
      %v2862 = vadd.f32 %v2861, %v2337
      %v2863 = vadd.f32 %v2862, %v2338
      %v2864 = vadd.f32 %v2863, %v2339
      %v2865 = vadd.f32 %v2864, %v2340
      %v2866 = vadd.f32 %v2865, %v2341
      %v2867 = vadd.f32 %v2866, %v2342
      %v2868 = vadd.f32 %v2867, %v2343
      %v2869 = vadd.f32 %v2868, %v2344
      %v2870 = vadd.f32 %v2869, %v2345
      %v2871 = vadd.f32 %v2870, %v2346
      %v2872 = vadd.f32 %v2871, %v2347
      %v2873 = vadd.f32 %v2872, %v2348
      %v2874 = vadd.f32 %v2873, %v2349
      %v2875 = vadd.f32 %v2874, %v2350
      %v2876 = vadd.f32 %v2875, %v2351
      %v2877 = vadd.f32 %v2876, %v2352
      %v2878 = vadd.f32 %v2877, %v2353
      %v2879 = vadd.f32 %v2878, %v2354
      %2880 = vadd.xlane.f32.xlu0 %v2879
      %v2881 = vpop.xlane.xlu0 %2880
      %v2882 = vadd.f32 %v2355, %v2356
      %v2883 = vadd.f32 %v2882, %v2357
      %v2884 = vadd.f32 %v2883, %v2358
      %v2885 = vadd.f32 %v2884, %v2359
      %v2886 = vadd.f32 %v2885, %v2360
      %v2887 = vadd.f32 %v2886, %v2361
      %v2888 = vadd.f32 %v2887, %v2362
      %v2889 = vadd.f32 %v2888, %v2363
      %v2890 = vadd.f32 %v2889, %v2364
      %v2891 = vadd.f32 %v2890, %v2365
      %v2892 = vadd.f32 %v2891, %v2366
      %v2893 = vadd.f32 %v2892, %v2367
      %v2894 = vadd.f32 %v2893, %v2368
      %v2895 = vadd.f32 %v2894, %v2369
      %v2896 = vadd.f32 %v2895, %v2370
      %v2897 = vadd.f32 %v2896, %v2371
      %v2898 = vadd.f32 %v2897, %v2372
      %v2899 = vadd.f32 %v2898, %v2373
      %v2900 = vadd.f32 %v2899, %v2374
      %v2901 = vadd.f32 %v2900, %v2375
      %v2902 = vadd.f32 %v2901, %v2376
      %v2903 = vadd.f32 %v2902, %v2377
      %v2904 = vadd.f32 %v2903, %v2378
      %v2905 = vadd.f32 %v2904, %v2379
      %v2906 = vadd.f32 %v2905, %v2380
      %v2907 = vadd.f32 %v2906, %v2381
      %v2908 = vadd.f32 %v2907, %v2382
      %v2909 = vadd.f32 %v2908, %v2383
      %v2910 = vadd.f32 %v2909, %v2384
      %v2911 = vadd.f32 %v2910, %v2385
      %v2912 = vadd.f32 %v2911, %v2386
      %2913 = vadd.xlane.f32.xlu0 %v2912
      %v2914 = vpop.xlane.xlu0 %2913
      %v2915 = vmul.f32 %v2419, 0.00024414063
      %v2916 = vmul.f32 %v2452, 0.00024414063
      %v2917 = vmul.f32 %v2485, 0.00024414063
      %v2918 = vmul.f32 %v2518, 0.00024414063
      %v2919 = vmul.f32 %v2551, 0.00024414063
      %v2920 = vmul.f32 %v2584, 0.00024414063
      %v2921 = vmul.f32 %v2617, 0.00024414063
      %v2922 = vmul.f32 %v2650, 0.00024414063
      %v2923 = vmul.f32 %v2683, 0.00024414063
      %v2924 = vmul.f32 %v2716, 0.00024414063
      %v2925 = vmul.f32 %v2749, 0.00024414063
      %v2926 = vmul.f32 %v2782, 0.00024414063
      %v2927 = vmul.f32 %v2815, 0.00024414063
      %v2928 = vmul.f32 %v2848, 0.00024414063
      %v2929 = vmul.f32 %v2881, 0.00024414063
      %v2930 = vmul.f32 %v2914, 0.00024414063
      %v2931 = vadd.f32 %v2915, 1e-05
      %v2932 = vadd.f32 %v2916, 1e-05
      %v2933 = vadd.f32 %v2917, 1e-05
      %v2934 = vadd.f32 %v2918, 1e-05
      %v2935 = vadd.f32 %v2919, 1e-05
      %v2936 = vadd.f32 %v2920, 1e-05
      %v2937 = vadd.f32 %v2921, 1e-05
      %v2938 = vadd.f32 %v2922, 1e-05
      %v2939 = vadd.f32 %v2923, 1e-05
      %v2940 = vadd.f32 %v2924, 1e-05
      %v2941 = vadd.f32 %v2925, 1e-05
      %v2942 = vadd.f32 %v2926, 1e-05
      %v2943 = vadd.f32 %v2927, 1e-05
      %v2944 = vadd.f32 %v2928, 1e-05
      %v2945 = vadd.f32 %v2929, 1e-05
      %v2946 = vadd.f32 %v2930, 1e-05
      %v2947 = vrsqrt.pop %v2931
      %v2948 = vrsqrt.pop %v2932
      %v2949 = vrsqrt.pop %v2933
      %v2950 = vrsqrt.pop %v2934
      %v2951 = vrsqrt.pop %v2935
      %v2952 = vrsqrt.pop %v2936
      %v2953 = vrsqrt.pop %v2937
      %v2954 = vrsqrt.pop %v2938
      %v2955 = vrsqrt.pop %v2939
      %v2956 = vrsqrt.pop %v2940
      %v2957 = vrsqrt.pop %v2941
      %v2958 = vrsqrt.pop %v2942
      %v2959 = vrsqrt.pop %v2943
      %v2960 = vrsqrt.pop %v2944
      %v2961 = vrsqrt.pop %v2945
      %v2962 = vrsqrt.pop %v2946
      %v2963 = vld [vmem:[%s287] sm:$0xf]
      %v2964 = vld [vmem:[%s287 + $0x4] sm:$0xf]
      %v2965 = vld [vmem:[%s287 + $0x8] sm:$0xf]
      %v2966 = vld [vmem:[%s287 + $0xc] sm:$0xf]
      %v2967 = vld [vmem:[%s287 + $0x10] sm:$0xf]
      %v2968 = vld [vmem:[%s287 + $0x14] sm:$0xf]
      %v2969 = vld [vmem:[%s287 + $0x18] sm:$0xf]
      %v2970 = vld [vmem:[%s287 + $0x1c] sm:$0xf]
      %v2971 = vld [vmem:[%s287 + $0x20] sm:$0xf]
      %v2972 = vld [vmem:[%s287 + $0x24] sm:$0xf]
      %v2973 = vld [vmem:[%s287 + $0x28] sm:$0xf]
      %v2974 = vld [vmem:[%s287 + $0x2c] sm:$0xf]
      %v2975 = vld [vmem:[%s287 + $0x30] sm:$0xf]
      %v2976 = vld [vmem:[%s287 + $0x34] sm:$0xf]
      %v2977 = vld [vmem:[%s287 + $0x38] sm:$0xf]
      %v2978 = vld [vmem:[%s287 + $0x3c] sm:$0xf]
      %v2979 = vld [vmem:[%s287 + $0x40] sm:$0xf]
      %v2980 = vld [vmem:[%s287 + $0x44] sm:$0xf]
      %v2981 = vld [vmem:[%s287 + $0x48] sm:$0xf]
      %v2982 = vld [vmem:[%s287 + $0x4c] sm:$0xf]
      %v2983 = vld [vmem:[%s287 + $0x50] sm:$0xf]
      %v2984 = vld [vmem:[%s287 + $0x54] sm:$0xf]
      %v2985 = vld [vmem:[%s287 + $0x58] sm:$0xf]
      %v2986 = vld [vmem:[%s287 + $0x5c] sm:$0xf]
      %v2987 = vld [vmem:[%s287 + $0x60] sm:$0xf]
      %v2988 = vld [vmem:[%s287 + $0x64] sm:$0xf]
      %v2989 = vld [vmem:[%s287 + $0x68] sm:$0xf]
      %v2990 = vld [vmem:[%s287 + $0x6c] sm:$0xf]
      %v2991 = vld [vmem:[%s287 + $0x70] sm:$0xf]
      %v2992 = vld [vmem:[%s287 + $0x74] sm:$0xf]
      %v2993 = vld [vmem:[%s287 + $0x78] sm:$0xf]
      %v2994 = vld [vmem:[%s287 + $0x7c] sm:$0xf]
      %v2995 = vld [vmem:[%s282] sm:$0xff]
      %v2996 = vld [vmem:[%s282 + $0x8] sm:$0xff]
      %v2997 = vld [vmem:[%s282 + $0x10] sm:$0xff]
      %v2998 = vld [vmem:[%s282 + $0x18] sm:$0xff]
      %v2999 = vld [vmem:[%s282 + $0x20] sm:$0xff]
      %v3000 = vld [vmem:[%s282 + $0x28] sm:$0xff]
      %v3001 = vld [vmem:[%s282 + $0x30] sm:$0xff]
      %v3002 = vld [vmem:[%s282 + $0x38] sm:$0xff]
      %v3003 = vld [vmem:[%s282 + $0x40] sm:$0xff]
      %v3004 = vld [vmem:[%s282 + $0x48] sm:$0xff]
      %v3005 = vld [vmem:[%s282 + $0x50] sm:$0xff]
      %v3006 = vld [vmem:[%s282 + $0x58] sm:$0xff]
      %v3007 = vld [vmem:[%s282 + $0x60] sm:$0xff]
      %v3008 = vld [vmem:[%s282 + $0x68] sm:$0xff]
      %v3009 = vld [vmem:[%s282 + $0x70] sm:$0xff]
      %v3010 = vld [vmem:[%s282 + $0x78] sm:$0xff]
      %v3011 = vld [vmem:[%s282 + $0x80] sm:$0xff]
      %v3012 = vld [vmem:[%s282 + $0x88] sm:$0xff]
      %v3013 = vld [vmem:[%s282 + $0x90] sm:$0xff]
      %v3014 = vld [vmem:[%s282 + $0x98] sm:$0xff]
      %v3015 = vld [vmem:[%s282 + $0xa0] sm:$0xff]
      %v3016 = vld [vmem:[%s282 + $0xa8] sm:$0xff]
      %v3017 = vld [vmem:[%s282 + $0xb0] sm:$0xff]
      %v3018 = vld [vmem:[%s282 + $0xb8] sm:$0xff]
      %v3019 = vld [vmem:[%s282 + $0xc0] sm:$0xff]
      %v3020 = vld [vmem:[%s282 + $0xc8] sm:$0xff]
      %v3021 = vld [vmem:[%s282 + $0xd0] sm:$0xff]
      %v3022 = vld [vmem:[%s282 + $0xd8] sm:$0xff]
      %v3023 = vld [vmem:[%s282 + $0xe0] sm:$0xff]
      %v3024 = vld [vmem:[%s282 + $0xe8] sm:$0xff]
      %v3025 = vld [vmem:[%s282 + $0xf0] sm:$0xff]
      %v3026 = vld [vmem:[%s282 + $0xf8] sm:$0xff]
      %v3027 = vld [vmem:[%s282 + $0x100] sm:$0xff]
      %v3028 = vld [vmem:[%s282 + $0x108] sm:$0xff]
      %v3029 = vld [vmem:[%s282 + $0x110] sm:$0xff]
      %v3030 = vld [vmem:[%s282 + $0x118] sm:$0xff]
      %v3031 = vld [vmem:[%s282 + $0x120] sm:$0xff]
      %v3032 = vld [vmem:[%s282 + $0x128] sm:$0xff]
      %v3033 = vld [vmem:[%s282 + $0x130] sm:$0xff]
      %v3034 = vld [vmem:[%s282 + $0x138] sm:$0xff]
      %v3035 = vld [vmem:[%s282 + $0x140] sm:$0xff]
      %v3036 = vld [vmem:[%s282 + $0x148] sm:$0xff]
      %v3037 = vld [vmem:[%s282 + $0x150] sm:$0xff]
      %v3038 = vld [vmem:[%s282 + $0x158] sm:$0xff]
      %v3039 = vld [vmem:[%s282 + $0x160] sm:$0xff]
      %v3040 = vld [vmem:[%s282 + $0x168] sm:$0xff]
      %v3041 = vld [vmem:[%s282 + $0x170] sm:$0xff]
      %v3042 = vld [vmem:[%s282 + $0x178] sm:$0xff]
      %v3043 = vld [vmem:[%s282 + $0x180] sm:$0x33]
      %v3044 = vld [vmem:[%s282 + $0x188] sm:$0x33]
      %v3045 = vld [vmem:[%s282 + $0x190] sm:$0x33]
      %v3046 = vld [vmem:[%s282 + $0x198] sm:$0x33]
      %v3047 = vld [vmem:[%s282 + $0x1a0] sm:$0x33]
      %v3048 = vld [vmem:[%s282 + $0x1a8] sm:$0x33]
      %v3049 = vld [vmem:[%s282 + $0x1b0] sm:$0x33]
      %v3050 = vld [vmem:[%s282 + $0x1b8] sm:$0x33]
      %v3051 = vld [vmem:[%s282 + $0x1c0] sm:$0x33]
      %v3052 = vld [vmem:[%s282 + $0x1c8] sm:$0x33]
      %v3053 = vld [vmem:[%s282 + $0x1d0] sm:$0x33]
      %v3054 = vld [vmem:[%s282 + $0x1d8] sm:$0x33]
      %v3055 = vld [vmem:[%s282 + $0x1e0] sm:$0x33]
      %v3056 = vld [vmem:[%s282 + $0x1e8] sm:$0x33]
      %v3057 = vld [vmem:[%s282 + $0x1f0] sm:$0x33]
      %v3058 = vld [vmem:[%s282 + $0x1f8] sm:$0x33]
      %v3059 = vld [vmem:[%s293] sm:$0xff]
      %v3060 = vld [vmem:[%s293 + $0x8] sm:$0xff]
      %v3061 = vld [vmem:[%s293 + $0x10] sm:$0xff]
      %v3062 = vld [vmem:[%s293 + $0x18] sm:$0xff]
      %v3063 = vld [vmem:[%s293 + $0x20] sm:$0xff]
      %v3064 = vld [vmem:[%s293 + $0x28] sm:$0xff]
      %v3065 = vld [vmem:[%s293 + $0x30] sm:$0xff]
      %v3066 = vld [vmem:[%s293 + $0x38] sm:$0xff]
      %v3067 = vld [vmem:[%s293 + $0x40] sm:$0xff]
      %v3068 = vld [vmem:[%s293 + $0x48] sm:$0xff]
      %v3069 = vld [vmem:[%s293 + $0x50] sm:$0xff]
      %v3070 = vld [vmem:[%s293 + $0x58] sm:$0xff]
      %v3071 = vld [vmem:[%s293 + $0x60] sm:$0xff]
      %v3072 = vld [vmem:[%s293 + $0x68] sm:$0xff]
      %v3073 = vld [vmem:[%s293 + $0x70] sm:$0xff]
      %v3074 = vld [vmem:[%s293 + $0x78] sm:$0xff]
      %v3075 = vld [vmem:[%s293 + $0x80] sm:$0xff]
      %v3076 = vld [vmem:[%s293 + $0x88] sm:$0xff]
      %v3077 = vld [vmem:[%s293 + $0x90] sm:$0xff]
      %v3078 = vld [vmem:[%s293 + $0x98] sm:$0xff]
      %v3079 = vld [vmem:[%s293 + $0xa0] sm:$0xff]
      %v3080 = vld [vmem:[%s293 + $0xa8] sm:$0xff]
      %v3081 = vld [vmem:[%s293 + $0xb0] sm:$0xff]
      %v3082 = vld [vmem:[%s293 + $0xb8] sm:$0xff]
      %v3083 = vld [vmem:[%s293 + $0xc0] sm:$0xff]
      %v3084 = vld [vmem:[%s293 + $0xc8] sm:$0xff]
      %v3085 = vld [vmem:[%s293 + $0xd0] sm:$0xff]
      %v3086 = vld [vmem:[%s293 + $0xd8] sm:$0xff]
      %v3087 = vld [vmem:[%s293 + $0xe0] sm:$0xff]
      %v3088 = vld [vmem:[%s293 + $0xe8] sm:$0xff]
      %v3089 = vld [vmem:[%s293 + $0xf0] sm:$0xff]
      %v3090 = vld [vmem:[%s293 + $0xf8] sm:$0xff]
      %3092 = vset.pattern.permute.xlu0 0
      %3093 = vperm.xlu0 %3092, %v3059
      %v3094 = vpop.permute.xlu0 %3093
      %3097 = vset.pattern.permute.xlu0 0
      %3098 = vperm.xlu0 %3097, %v3060
      %v3099 = vpop.permute.xlu0 %3098
      %3102 = vset.pattern.permute.xlu0 0
      %3103 = vperm.xlu0 %3102, %v3061
      %v3104 = vpop.permute.xlu0 %3103
      %3107 = vset.pattern.permute.xlu0 0
      %3108 = vperm.xlu0 %3107, %v3062
      %v3109 = vpop.permute.xlu0 %3108
      %3112 = vset.pattern.permute.xlu0 0
      %3113 = vperm.xlu0 %3112, %v3063
      %v3114 = vpop.permute.xlu0 %3113
      %3117 = vset.pattern.permute.xlu0 0
      %3118 = vperm.xlu0 %3117, %v3064
      %v3119 = vpop.permute.xlu0 %3118
      %3122 = vset.pattern.permute.xlu0 0
      %3123 = vperm.xlu0 %3122, %v3065
      %v3124 = vpop.permute.xlu0 %3123
      %3127 = vset.pattern.permute.xlu0 0
      %3128 = vperm.xlu0 %3127, %v3066
      %v3129 = vpop.permute.xlu0 %3128
      %3132 = vset.pattern.permute.xlu0 0
      %3133 = vperm.xlu0 %3132, %v3067
      %v3134 = vpop.permute.xlu0 %3133
      %3137 = vset.pattern.permute.xlu0 0
      %3138 = vperm.xlu0 %3137, %v3068
      %v3139 = vpop.permute.xlu0 %3138
      %3142 = vset.pattern.permute.xlu0 0
      %3143 = vperm.xlu0 %3142, %v3069
      %v3144 = vpop.permute.xlu0 %3143
      %3147 = vset.pattern.permute.xlu0 0
      %3148 = vperm.xlu0 %3147, %v3070
      %v3149 = vpop.permute.xlu0 %3148
      %3152 = vset.pattern.permute.xlu0 0
      %3153 = vperm.xlu0 %3152, %v3071
      %v3154 = vpop.permute.xlu0 %3153
      %3157 = vset.pattern.permute.xlu0 0
      %3158 = vperm.xlu0 %3157, %v3072
      %v3159 = vpop.permute.xlu0 %3158
      %3162 = vset.pattern.permute.xlu0 0
      %3163 = vperm.xlu0 %3162, %v3073
      %v3164 = vpop.permute.xlu0 %3163
      %3167 = vset.pattern.permute.xlu0 0
      %3168 = vperm.xlu0 %3167, %v3074
      %v3169 = vpop.permute.xlu0 %3168
      %3172 = vset.pattern.permute.xlu0 0
      %3173 = vperm.xlu0 %3172, %v3075
      %v3174 = vpop.permute.xlu0 %3173
      %3177 = vset.pattern.permute.xlu0 0
      %3178 = vperm.xlu0 %3177, %v3076
      %v3179 = vpop.permute.xlu0 %3178
      %3182 = vset.pattern.permute.xlu0 0
      %3183 = vperm.xlu0 %3182, %v3077
      %v3184 = vpop.permute.xlu0 %3183
      %3187 = vset.pattern.permute.xlu0 0
      %3188 = vperm.xlu0 %3187, %v3078
      %v3189 = vpop.permute.xlu0 %3188
      %3192 = vset.pattern.permute.xlu0 0
      %3193 = vperm.xlu0 %3192, %v3079
      %v3194 = vpop.permute.xlu0 %3193
      %3197 = vset.pattern.permute.xlu0 0
      %3198 = vperm.xlu0 %3197, %v3080
      %v3199 = vpop.permute.xlu0 %3198
      %3202 = vset.pattern.permute.xlu0 0
      %3203 = vperm.xlu0 %3202, %v3081
      %v3204 = vpop.permute.xlu0 %3203
      %3207 = vset.pattern.permute.xlu0 0
      %3208 = vperm.xlu0 %3207, %v3082
      %v3209 = vpop.permute.xlu0 %3208
      %3212 = vset.pattern.permute.xlu0 0
      %3213 = vperm.xlu0 %3212, %v3083
      %v3214 = vpop.permute.xlu0 %3213
      %3217 = vset.pattern.permute.xlu0 0
      %3218 = vperm.xlu0 %3217, %v3084
      %v3219 = vpop.permute.xlu0 %3218
      %3222 = vset.pattern.permute.xlu0 0
      %3223 = vperm.xlu0 %3222, %v3085
      %v3224 = vpop.permute.xlu0 %3223
      %3227 = vset.pattern.permute.xlu0 0
      %3228 = vperm.xlu0 %3227, %v3086
      %v3229 = vpop.permute.xlu0 %3228
      %3232 = vset.pattern.permute.xlu0 0
      %3233 = vperm.xlu0 %3232, %v3087
      %v3234 = vpop.permute.xlu0 %3233
      %3237 = vset.pattern.permute.xlu0 0
      %3238 = vperm.xlu0 %3237, %v3088
      %v3239 = vpop.permute.xlu0 %3238
      %3242 = vset.pattern.permute.xlu0 0
      %3243 = vperm.xlu0 %3242, %v3089
      %v3244 = vpop.permute.xlu0 %3243
      %3247 = vset.pattern.permute.xlu0 0
      %3248 = vperm.xlu0 %3247, %v3090
      %v3249 = vpop.permute.xlu0 %3248
      %v3283 = vunpack.c.l.b16 %v2963
      %v3284 = vunpack.c.l.b16 %v2964
      %v3285 = vunpack.c.l.b16 %v2965
      %v3286 = vunpack.c.l.b16 %v2966
      %v3287 = vunpack.c.l.b16 %v2967
      %v3288 = vunpack.c.l.b16 %v2968
      %v3289 = vunpack.c.l.b16 %v2969
      %v3290 = vunpack.c.l.b16 %v2970
      %v3291 = vunpack.c.l.b16 %v2971
      %v3292 = vunpack.c.l.b16 %v2972
      %v3293 = vunpack.c.l.b16 %v2973
      %v3294 = vunpack.c.l.b16 %v2974
      %v3295 = vunpack.c.l.b16 %v2975
      %v3296 = vunpack.c.l.b16 %v2976
      %v3297 = vunpack.c.l.b16 %v2977
      %v3298 = vunpack.c.l.b16 %v2978
      %v3299 = vunpack.c.l.b16 %v2979
      %v3300 = vunpack.c.l.b16 %v2980
      %v3301 = vunpack.c.l.b16 %v2981
      %v3302 = vunpack.c.l.b16 %v2982
      %v3303 = vunpack.c.l.b16 %v2983
      %v3304 = vunpack.c.l.b16 %v2984
      %v3305 = vunpack.c.l.b16 %v2985
      %v3306 = vunpack.c.l.b16 %v2986
      %v3307 = vunpack.c.l.b16 %v2987
      %v3308 = vunpack.c.l.b16 %v2988
      %v3309 = vunpack.c.l.b16 %v2989
      %v3310 = vunpack.c.l.b16 %v2990
      %v3311 = vunpack.c.l.b16 %v2991
      %v3312 = vunpack.c.l.b16 %v2992
      %v3313 = vunpack.c.l.b16 %v2993
      %v3314 = vunpack.c.l.b16 %v2994
      %v3315 = vpack.c.b16 %v3284, %v3283
      %v3316 = vpack.c.b16 %v3286, %v3285
      %v3317 = vpack.c.b16 %v3288, %v3287
      %v3318 = vpack.c.b16 %v3290, %v3289
      %v3319 = vpack.c.b16 %v3292, %v3291
      %v3320 = vpack.c.b16 %v3294, %v3293
      %v3321 = vpack.c.b16 %v3296, %v3295
      %v3322 = vpack.c.b16 %v3298, %v3297
      %v3323 = vpack.c.b16 %v3300, %v3299
      %v3324 = vpack.c.b16 %v3302, %v3301
      %v3325 = vpack.c.b16 %v3304, %v3303
      %v3326 = vpack.c.b16 %v3306, %v3305
      %v3327 = vpack.c.b16 %v3308, %v3307
      %v3328 = vpack.c.b16 %v3310, %v3309
      %v3329 = vpack.c.b16 %v3312, %v3311
      %v3330 = vpack.c.b16 %v3314, %v3313
      %v3395 = vunpack.c.l.b16 %v2995
      %v3396 = vunpack.c.h.b16 %v2995
      %v3397 = vunpack.c.l.b16 %v2996
      %v3398 = vunpack.c.h.b16 %v2996
      %v3399 = vunpack.c.l.b16 %v2997
      %v3400 = vunpack.c.h.b16 %v2997
      %v3401 = vunpack.c.l.b16 %v2998
      %v3402 = vunpack.c.h.b16 %v2998
      %v3403 = vunpack.c.l.b16 %v2999
      %v3404 = vunpack.c.h.b16 %v2999
      %v3405 = vunpack.c.l.b16 %v3000
      %v3406 = vunpack.c.h.b16 %v3000
      %v3407 = vunpack.c.l.b16 %v3001
      %v3408 = vunpack.c.h.b16 %v3001
      %v3409 = vunpack.c.l.b16 %v3002
      %v3410 = vunpack.c.h.b16 %v3002
      %v3411 = vunpack.c.l.b16 %v3003
      %v3412 = vunpack.c.h.b16 %v3003
      %v3413 = vunpack.c.l.b16 %v3004
      %v3414 = vunpack.c.h.b16 %v3004
      %v3415 = vunpack.c.l.b16 %v3005
      %v3416 = vunpack.c.h.b16 %v3005
      %v3417 = vunpack.c.l.b16 %v3006
      %v3418 = vunpack.c.h.b16 %v3006
      %v3419 = vunpack.c.l.b16 %v3007
      %v3420 = vunpack.c.h.b16 %v3007
      %v3421 = vunpack.c.l.b16 %v3008
      %v3422 = vunpack.c.h.b16 %v3008
      %v3423 = vunpack.c.l.b16 %v3009
      %v3424 = vunpack.c.h.b16 %v3009
      %v3425 = vunpack.c.l.b16 %v3010
      %v3426 = vunpack.c.h.b16 %v3010
      %v3427 = vunpack.c.l.b16 %v3011
      %v3428 = vunpack.c.h.b16 %v3011
      %v3429 = vunpack.c.l.b16 %v3012
      %v3430 = vunpack.c.h.b16 %v3012
      %v3431 = vunpack.c.l.b16 %v3013
      %v3432 = vunpack.c.h.b16 %v3013
      %v3433 = vunpack.c.l.b16 %v3014
      %v3434 = vunpack.c.h.b16 %v3014
      %v3435 = vunpack.c.l.b16 %v3015
      %v3436 = vunpack.c.h.b16 %v3015
      %v3437 = vunpack.c.l.b16 %v3016
      %v3438 = vunpack.c.h.b16 %v3016
      %v3439 = vunpack.c.l.b16 %v3017
      %v3440 = vunpack.c.h.b16 %v3017
      %v3441 = vunpack.c.l.b16 %v3018
      %v3442 = vunpack.c.h.b16 %v3018
      %v3443 = vunpack.c.l.b16 %v3019
      %v3444 = vunpack.c.h.b16 %v3019
      %v3445 = vunpack.c.l.b16 %v3020
      %v3446 = vunpack.c.h.b16 %v3020
      %v3447 = vunpack.c.l.b16 %v3021
      %v3448 = vunpack.c.h.b16 %v3021
      %v3449 = vunpack.c.l.b16 %v3022
      %v3450 = vunpack.c.h.b16 %v3022
      %v3451 = vunpack.c.l.b16 %v3023
      %v3452 = vunpack.c.h.b16 %v3023
      %v3453 = vunpack.c.l.b16 %v3024
      %v3454 = vunpack.c.h.b16 %v3024
      %v3455 = vunpack.c.l.b16 %v3025
      %v3456 = vunpack.c.h.b16 %v3025
      %v3457 = vunpack.c.l.b16 %v3026
      %v3458 = vunpack.c.h.b16 %v3026
      %v3459 = vunpack.c.l.b16 %v3027
      %v3460 = vunpack.c.h.b16 %v3027
      %v3461 = vunpack.c.l.b16 %v3028
      %v3462 = vunpack.c.h.b16 %v3028
      %v3463 = vunpack.c.l.b16 %v3029
      %v3464 = vunpack.c.h.b16 %v3029
      %v3465 = vunpack.c.l.b16 %v3030
      %v3466 = vunpack.c.h.b16 %v3030
      %v3467 = vunpack.c.l.b16 %v3031
      %v3468 = vunpack.c.h.b16 %v3031
      %v3469 = vunpack.c.l.b16 %v3032
      %v3470 = vunpack.c.h.b16 %v3032
      %v3471 = vunpack.c.l.b16 %v3033
      %v3472 = vunpack.c.h.b16 %v3033
      %v3473 = vunpack.c.l.b16 %v3034
      %v3474 = vunpack.c.h.b16 %v3034
      %v3475 = vunpack.c.l.b16 %v3035
      %v3476 = vunpack.c.h.b16 %v3035
      %v3477 = vunpack.c.l.b16 %v3036
      %v3478 = vunpack.c.h.b16 %v3036
      %v3479 = vunpack.c.l.b16 %v3037
      %v3480 = vunpack.c.h.b16 %v3037
      %v3481 = vunpack.c.l.b16 %v3038
      %v3482 = vunpack.c.h.b16 %v3038
      %v3483 = vunpack.c.l.b16 %v3039
      %v3484 = vunpack.c.h.b16 %v3039
      %v3485 = vunpack.c.l.b16 %v3040
      %v3486 = vunpack.c.h.b16 %v3040
      %v3487 = vunpack.c.l.b16 %v3041
      %v3488 = vunpack.c.h.b16 %v3041
      %v3489 = vunpack.c.l.b16 %v3042
      %v3490 = vunpack.c.h.b16 %v3042
      %v3491 = vunpack.c.l.b16 %v3043
      %v3492 = vunpack.c.h.b16 %v3043
      %v3493 = vunpack.c.l.b16 %v3044
      %v3494 = vunpack.c.h.b16 %v3044
      %v3495 = vunpack.c.l.b16 %v3045
      %v3496 = vunpack.c.h.b16 %v3045
      %v3497 = vunpack.c.l.b16 %v3046
      %v3498 = vunpack.c.h.b16 %v3046
      %v3499 = vunpack.c.l.b16 %v3047
      %v3500 = vunpack.c.h.b16 %v3047
      %v3501 = vunpack.c.l.b16 %v3048
      %v3502 = vunpack.c.h.b16 %v3048
      %v3503 = vunpack.c.l.b16 %v3049
      %v3504 = vunpack.c.h.b16 %v3049
      %v3505 = vunpack.c.l.b16 %v3050
      %v3506 = vunpack.c.h.b16 %v3050
      %v3507 = vunpack.c.l.b16 %v3051
      %v3508 = vunpack.c.h.b16 %v3051
      %v3509 = vunpack.c.l.b16 %v3052
      %v3510 = vunpack.c.h.b16 %v3052
      %v3511 = vunpack.c.l.b16 %v3053
      %v3512 = vunpack.c.h.b16 %v3053
      %v3513 = vunpack.c.l.b16 %v3054
      %v3514 = vunpack.c.h.b16 %v3054
      %v3515 = vunpack.c.l.b16 %v3055
      %v3516 = vunpack.c.h.b16 %v3055
      %v3517 = vunpack.c.l.b16 %v3056
      %v3518 = vunpack.c.h.b16 %v3056
      %v3519 = vunpack.c.l.b16 %v3057
      %v3520 = vunpack.c.h.b16 %v3057
      %v3521 = vunpack.c.l.b16 %v3058
      %v3522 = vunpack.c.h.b16 %v3058
      %v3523 = vpack.c.b16 %v3427, %v3395
      %v3524 = vpack.c.b16 %v3428, %v3396
      %v3525 = vpack.c.b16 %v3429, %v3397
      %v3526 = vpack.c.b16 %v3430, %v3398
      %v3527 = vpack.c.b16 %v3431, %v3399
      %v3528 = vpack.c.b16 %v3432, %v3400
      %v3529 = vpack.c.b16 %v3433, %v3401
      %v3530 = vpack.c.b16 %v3434, %v3402
      %v3531 = vpack.c.b16 %v3435, %v3403
      %v3532 = vpack.c.b16 %v3436, %v3404
      %v3533 = vpack.c.b16 %v3437, %v3405
      %v3534 = vpack.c.b16 %v3438, %v3406
      %v3535 = vpack.c.b16 %v3439, %v3407
      %v3536 = vpack.c.b16 %v3440, %v3408
      %v3537 = vpack.c.b16 %v3441, %v3409
      %v3538 = vpack.c.b16 %v3442, %v3410
      %v3539 = vpack.c.b16 %v3443, %v3411
      %v3540 = vpack.c.b16 %v3444, %v3412
      %v3541 = vpack.c.b16 %v3445, %v3413
      %v3542 = vpack.c.b16 %v3446, %v3414
      %v3543 = vpack.c.b16 %v3447, %v3415
      %v3544 = vpack.c.b16 %v3448, %v3416
      %v3545 = vpack.c.b16 %v3449, %v3417
      %v3546 = vpack.c.b16 %v3450, %v3418
      %v3547 = vpack.c.b16 %v3451, %v3419
      %v3548 = vpack.c.b16 %v3452, %v3420
      %v3549 = vpack.c.b16 %v3453, %v3421
      %v3550 = vpack.c.b16 %v3454, %v3422
      %v3551 = vpack.c.b16 %v3455, %v3423
      %v3552 = vpack.c.b16 %v3456, %v3424
      %v3553 = vpack.c.b16 %v3457, %v3425
      %v3554 = vpack.c.b16 %v3458, %v3426
      %v3555 = vpack.c.b16 %v3491, %v3459
      %v3556 = vpack.c.b16 %v3492, %v3460
      %v3557 = vpack.c.b16 %v3493, %v3461
      %v3558 = vpack.c.b16 %v3494, %v3462
      %v3559 = vpack.c.b16 %v3495, %v3463
      %v3560 = vpack.c.b16 %v3496, %v3464
      %v3561 = vpack.c.b16 %v3497, %v3465
      %v3562 = vpack.c.b16 %v3498, %v3466
      %v3563 = vpack.c.b16 %v3499, %v3467
      %v3564 = vpack.c.b16 %v3500, %v3468
      %v3565 = vpack.c.b16 %v3501, %v3469
      %v3566 = vpack.c.b16 %v3502, %v3470
      %v3567 = vpack.c.b16 %v3503, %v3471
      %v3568 = vpack.c.b16 %v3504, %v3472
      %v3569 = vpack.c.b16 %v3505, %v3473
      %v3570 = vpack.c.b16 %v3506, %v3474
      %v3571 = vpack.c.b16 %v3507, %v3475
      %v3572 = vpack.c.b16 %v3508, %v3476
      %v3573 = vpack.c.b16 %v3509, %v3477
      %v3574 = vpack.c.b16 %v3510, %v3478
      %v3575 = vpack.c.b16 %v3511, %v3479
      %v3576 = vpack.c.b16 %v3512, %v3480
      %v3577 = vpack.c.b16 %v3513, %v3481
      %v3578 = vpack.c.b16 %v3514, %v3482
      %v3579 = vpack.c.b16 %v3515, %v3483
      %v3580 = vpack.c.b16 %v3516, %v3484
      %v3581 = vpack.c.b16 %v3517, %v3485
      %v3582 = vpack.c.b16 %v3518, %v3486
      %v3583 = vpack.c.b16 %v3519, %v3487
      %v3584 = vpack.c.b16 %v3520, %v3488
      %v3585 = vpack.c.b16 %v3521, %v3489
      %v3586 = vpack.c.b16 %v3522, %v3490
      %vm3619 = vcmask 220160
      %v3621 = vsel %vm3619, %v3315, 0
      %v3624 = vsel %vm3619, %v3316, 0
      %v3627 = vsel %vm3619, %v3317, 0
      %v3630 = vsel %vm3619, %v3318, 0
      %v3633 = vsel %vm3619, %v3319, 0
      %v3636 = vsel %vm3619, %v3320, 0
      %v3639 = vsel %vm3619, %v3321, 0
      %v3642 = vsel %vm3619, %v3322, 0
      %v3645 = vsel %vm3619, %v3323, 0
      %v3648 = vsel %vm3619, %v3324, 0
      %v3651 = vsel %vm3619, %v3325, 0
      %v3654 = vsel %vm3619, %v3326, 0
      %v3657 = vsel %vm3619, %v3327, 0
      %v3660 = vsel %vm3619, %v3328, 0
      %v3663 = vsel %vm3619, %v3329, 0
      %v3666 = vsel %vm3619, %v3330, 0
      %vm3668 = vcmask 1044480
      %vm3669 = vcmask 1045504
      %v3670 = vsel %vm3668, 4294967295, 65535
      %v3671 = vsel %vm3669, %v3670, 0
      %v3673 = vand.u32 %v3555, %v3671
      %v3676 = vand.u32 %v3556, %v3671
      %v3679 = vand.u32 %v3557, %v3671
      %v3682 = vand.u32 %v3558, %v3671
      %v3685 = vand.u32 %v3559, %v3671
      %v3688 = vand.u32 %v3560, %v3671
      %v3691 = vand.u32 %v3561, %v3671
      %v3694 = vand.u32 %v3562, %v3671
      %v3697 = vand.u32 %v3563, %v3671
      %v3700 = vand.u32 %v3564, %v3671
      %v3703 = vand.u32 %v3565, %v3671
      %v3706 = vand.u32 %v3566, %v3671
      %v3709 = vand.u32 %v3567, %v3671
      %v3712 = vand.u32 %v3568, %v3671
      %v3715 = vand.u32 %v3569, %v3671
      %v3718 = vand.u32 %v3570, %v3671
      %v3721 = vand.u32 %v3571, %v3671
      %v3724 = vand.u32 %v3572, %v3671
      %v3727 = vand.u32 %v3573, %v3671
      %v3730 = vand.u32 %v3574, %v3671
      %v3733 = vand.u32 %v3575, %v3671
      %v3736 = vand.u32 %v3576, %v3671
      %v3739 = vand.u32 %v3577, %v3671
      %v3742 = vand.u32 %v3578, %v3671
      %v3745 = vand.u32 %v3579, %v3671
      %v3748 = vand.u32 %v3580, %v3671
      %v3751 = vand.u32 %v3581, %v3671
      %v3754 = vand.u32 %v3582, %v3671
      %v3757 = vand.u32 %v3583, %v3671
      %v3760 = vand.u32 %v3584, %v3671
      %v3763 = vand.u32 %v3585, %v3671
      %v3766 = vand.u32 %v3586, %v3671
      %3768 = vmatprep.subr.bf16.mxu0 0
      %3769 = vmatpush1.bf16.msra.mxu0 0
      %3770 = vmatprep.subr.bf16.mxu0 0
      %3771 = vmatpush1.bf16.msra.mxu0 0
      %3772 = vmatprep.subr.bf16.mxu0 0
      %3773 = vmatpush1.bf16.msra.mxu0 0
      %3774 = vmatprep.subr.bf16.mxu0 0
      %3775 = vmatpush1.bf16.msra.mxu0 0
      %3776 = vmatprep.subr.bf16.mxu0 0
      %3777 = vmatpush1.bf16.msra.mxu0 0
      %3778 = vmatprep.subr.bf16.mxu0 0
      %3779 = vmatpush1.bf16.msra.mxu0 0
      %3780 = vmatprep.subr.bf16.mxu0 %v3676
      %3781 = vmatpush1.bf16.msra.mxu0 %v3673
      %3782 = vmatprep.subr.bf16.mxu0 %v3524
      %3783 = vmatpush1.bf16.msra.mxu0 %v3523
      %3784 = vmatprep.subr.bf16.mxu0 0
      %3785 = vmatpush2.bf16.msra.mxu0 0
      %3786 = vmatprep.subr.bf16.mxu0 0
      %3787 = vmatpush2.bf16.msra.mxu0 0
      %3788 = vmatprep.subr.bf16.mxu0 0
      %3789 = vmatpush2.bf16.msra.mxu0 0
      %3790 = vmatprep.subr.bf16.mxu0 0
      %3791 = vmatpush2.bf16.msra.mxu0 0
      %3792 = vmatprep.subr.bf16.mxu0 0
      %3793 = vmatpush2.bf16.msra.mxu0 0
      %3794 = vmatprep.subr.bf16.mxu0 0
      %3795 = vmatpush2.bf16.msra.mxu0 0
      %3796 = vmatprep.subr.bf16.mxu0 0
      %3797 = vmatpush2.bf16.msra.mxu0 0
      %3798 = vmatprep.subr.bf16.mxu0 0
      %3799 = vmatpush2.bf16.msra.mxu0 0
      %3800 = vmatprep.mubr.bf16.mxu0 0
      %3801 = vmatmul.mubr.bf16.gmra.mxu0 %v3621
      %v3802 = vpop.f32.mrf.mxu0
      %v3803 = vadd.f32 %v3094, %v3802
      %v3804 = vpop.f32.mrf.mxu0
      %v3805 = vadd.f32 %v3094, %v3804
      %v3806 = vpop.f32.mrf.mxu0
      %v3807 = vadd.f32 %v3099, %v3806
      %v3808 = vpop.f32.mrf.mxu0
      %v3809 = vadd.f32 %v3099, %v3808
      %3810 = vmatprep.mubr.bf16.mxu0 0
      %3811 = vmatmul.mubr.bf16.gmra.mxu0 %v3624
      %v3812 = vpop.f32.mrf.mxu0
      %v3813 = vadd.f32 %v3104, %v3812
      %v3814 = vpop.f32.mrf.mxu0
      %v3815 = vadd.f32 %v3104, %v3814
      %v3816 = vpop.f32.mrf.mxu0
      %v3817 = vadd.f32 %v3109, %v3816
      %v3818 = vpop.f32.mrf.mxu0
      %v3819 = vadd.f32 %v3109, %v3818
      %3820 = vmatprep.mubr.bf16.mxu0 0
      %3821 = vmatmul.mubr.bf16.gmra.mxu0 %v3627
      %v3822 = vpop.f32.mrf.mxu0
      %v3823 = vadd.f32 %v3114, %v3822
      %v3824 = vpop.f32.mrf.mxu0
      %v3825 = vadd.f32 %v3114, %v3824
      %v3826 = vpop.f32.mrf.mxu0
      %v3827 = vadd.f32 %v3119, %v3826
      %v3828 = vpop.f32.mrf.mxu0
      %v3829 = vadd.f32 %v3119, %v3828
      %3830 = vmatprep.mubr.bf16.mxu0 0
      %3831 = vmatmul.mubr.bf16.gmra.mxu0 %v3630
      %v3832 = vpop.f32.mrf.mxu0
      %v3833 = vadd.f32 %v3124, %v3832
      %v3834 = vpop.f32.mrf.mxu0
      %v3835 = vadd.f32 %v3124, %v3834
      %v3836 = vpop.f32.mrf.mxu0
      %v3837 = vadd.f32 %v3129, %v3836
      %v3838 = vpop.f32.mrf.mxu0
      %v3839 = vadd.f32 %v3129, %v3838
      %3840 = vmatprep.mubr.bf16.mxu0 0
      %3841 = vmatmul.mubr.bf16.gmra.mxu0 %v3633
      %v3842 = vpop.f32.mrf.mxu0
      %v3843 = vadd.f32 %v3134, %v3842
      %v3844 = vpop.f32.mrf.mxu0
      %v3845 = vadd.f32 %v3134, %v3844
      %v3846 = vpop.f32.mrf.mxu0
      %v3847 = vadd.f32 %v3139, %v3846
      %v3848 = vpop.f32.mrf.mxu0
      %v3849 = vadd.f32 %v3139, %v3848
      %3850 = vmatprep.mubr.bf16.mxu0 0
      %3851 = vmatmul.mubr.bf16.gmra.mxu0 %v3636
      %v3852 = vpop.f32.mrf.mxu0
      %v3853 = vadd.f32 %v3144, %v3852
      %v3854 = vpop.f32.mrf.mxu0
      %v3855 = vadd.f32 %v3144, %v3854
      %v3856 = vpop.f32.mrf.mxu0
      %v3857 = vadd.f32 %v3149, %v3856
      %v3858 = vpop.f32.mrf.mxu0
      %v3859 = vadd.f32 %v3149, %v3858
      %3860 = vmatprep.mubr.bf16.mxu0 0
      %3861 = vmatmul.mubr.bf16.gmra.mxu0 %v3639
      %v3862 = vpop.f32.mrf.mxu0
      %v3863 = vadd.f32 %v3154, %v3862
      %v3864 = vpop.f32.mrf.mxu0
      %v3865 = vadd.f32 %v3154, %v3864
      %v3866 = vpop.f32.mrf.mxu0
      %v3867 = vadd.f32 %v3159, %v3866
      %v3868 = vpop.f32.mrf.mxu0
      %v3869 = vadd.f32 %v3159, %v3868
      %3870 = vmatprep.mubr.bf16.mxu0 0
      %3871 = vmatmul.mubr.bf16.gmra.mxu0 %v3642
      %v3872 = vpop.f32.mrf.mxu0
      %v3873 = vadd.f32 %v3164, %v3872
      %v3874 = vpop.f32.mrf.mxu0
      %v3875 = vadd.f32 %v3164, %v3874
      %v3876 = vpop.f32.mrf.mxu0
      %v3877 = vadd.f32 %v3169, %v3876
      %v3878 = vpop.f32.mrf.mxu0
      %v3879 = vadd.f32 %v3169, %v3878
      %3880 = vmatprep.mubr.bf16.mxu0 0
      %3881 = vmatmul.mubr.bf16.gmra.mxu0 %v3645
      %v3882 = vpop.f32.mrf.mxu0
      %v3883 = vadd.f32 %v3174, %v3882
      %v3884 = vpop.f32.mrf.mxu0
      %v3885 = vadd.f32 %v3174, %v3884
      %v3886 = vpop.f32.mrf.mxu0
      %v3887 = vadd.f32 %v3179, %v3886
      %v3888 = vpop.f32.mrf.mxu0
      %v3889 = vadd.f32 %v3179, %v3888
      %3890 = vmatprep.mubr.bf16.mxu0 0
      %3891 = vmatmul.mubr.bf16.gmra.mxu0 %v3648
      %v3892 = vpop.f32.mrf.mxu0
      %v3893 = vadd.f32 %v3184, %v3892
      %v3894 = vpop.f32.mrf.mxu0
      %v3895 = vadd.f32 %v3184, %v3894
      %v3896 = vpop.f32.mrf.mxu0
      %v3897 = vadd.f32 %v3189, %v3896
      %v3898 = vpop.f32.mrf.mxu0
      %v3899 = vadd.f32 %v3189, %v3898
      %3900 = vmatprep.mubr.bf16.mxu0 0
      %3901 = vmatmul.mubr.bf16.gmra.mxu0 %v3651
      %v3902 = vpop.f32.mrf.mxu0
      %v3903 = vadd.f32 %v3194, %v3902
      %v3904 = vpop.f32.mrf.mxu0
      %v3905 = vadd.f32 %v3194, %v3904
      %v3906 = vpop.f32.mrf.mxu0
      %v3907 = vadd.f32 %v3199, %v3906
      %v3908 = vpop.f32.mrf.mxu0
      %v3909 = vadd.f32 %v3199, %v3908
      %3910 = vmatprep.mubr.bf16.mxu0 0
      %3911 = vmatmul.mubr.bf16.gmra.mxu0 %v3654
      %v3912 = vpop.f32.mrf.mxu0
      %v3913 = vadd.f32 %v3204, %v3912
      %v3914 = vpop.f32.mrf.mxu0
      %v3915 = vadd.f32 %v3204, %v3914
      %v3916 = vpop.f32.mrf.mxu0
      %v3917 = vadd.f32 %v3209, %v3916
      %v3918 = vpop.f32.mrf.mxu0
      %v3919 = vadd.f32 %v3209, %v3918
      %3920 = vmatprep.mubr.bf16.mxu0 0
      %3921 = vmatmul.mubr.bf16.gmra.mxu0 %v3657
      %v3922 = vpop.f32.mrf.mxu0
      %v3923 = vadd.f32 %v3214, %v3922
      %v3924 = vpop.f32.mrf.mxu0
      %v3925 = vadd.f32 %v3214, %v3924
      %v3926 = vpop.f32.mrf.mxu0
      %v3927 = vadd.f32 %v3219, %v3926
      %v3928 = vpop.f32.mrf.mxu0
      %v3929 = vadd.f32 %v3219, %v3928
      %3930 = vmatprep.mubr.bf16.mxu0 0
      %3931 = vmatmul.mubr.bf16.gmra.mxu0 %v3660
      %v3932 = vpop.f32.mrf.mxu0
      %v3933 = vadd.f32 %v3224, %v3932
      %v3934 = vpop.f32.mrf.mxu0
      %v3935 = vadd.f32 %v3224, %v3934
      %v3936 = vpop.f32.mrf.mxu0
      %v3937 = vadd.f32 %v3229, %v3936
      %v3938 = vpop.f32.mrf.mxu0
      %v3939 = vadd.f32 %v3229, %v3938
      %3940 = vmatprep.mubr.bf16.mxu0 0
      %3941 = vmatmul.mubr.bf16.gmra.mxu0 %v3663
      %v3942 = vpop.f32.mrf.mxu0
      %v3943 = vadd.f32 %v3234, %v3942
      %v3944 = vpop.f32.mrf.mxu0
      %v3945 = vadd.f32 %v3234, %v3944
      %v3946 = vpop.f32.mrf.mxu0
      %v3947 = vadd.f32 %v3239, %v3946
      %v3948 = vpop.f32.mrf.mxu0
      %v3949 = vadd.f32 %v3239, %v3948
      %3950 = vmatprep.mubr.bf16.mxu0 0
      %3951 = vmatmul.mubr.bf16.gmra.mxu0 %v3666
      %v3952 = vpop.f32.mrf.mxu0
      %v3953 = vadd.f32 %v3244, %v3952
      %v3954 = vpop.f32.mrf.mxu0
      %v3955 = vadd.f32 %v3244, %v3954
      %v3956 = vpop.f32.mrf.mxu0
      %v3957 = vadd.f32 %v3249, %v3956
      %v3958 = vpop.f32.mrf.mxu0
      %v3959 = vadd.f32 %v3249, %v3958
      %3960 = vdwg.mxu0
      %3961 = vmatprep.subr.bf16.mxu0 0
      %3962 = vmatpush1.bf16.msra.mxu0 0
      %3963 = vmatprep.subr.bf16.mxu0 0
      %3964 = vmatpush1.bf16.msra.mxu0 0
      %3965 = vmatprep.subr.bf16.mxu0 0
      %3966 = vmatpush1.bf16.msra.mxu0 0
      %3967 = vmatprep.subr.bf16.mxu0 0
      %3968 = vmatpush1.bf16.msra.mxu0 0
      %3969 = vmatprep.subr.bf16.mxu0 0
      %3970 = vmatpush1.bf16.msra.mxu0 0
      %3971 = vmatprep.subr.bf16.mxu0 0
      %3972 = vmatpush1.bf16.msra.mxu0 0
      %3973 = vmatprep.subr.bf16.mxu0 %v3682
      %3974 = vmatpush1.bf16.msra.mxu0 %v3679
      %3975 = vmatprep.subr.bf16.mxu0 %v3526
      %3976 = vmatpush1.bf16.msra.mxu0 %v3525
      %3977 = vmatprep.subr.bf16.mxu0 0
      %3978 = vmatpush2.bf16.msra.mxu0 0
      %3979 = vmatprep.subr.bf16.mxu0 0
      %3980 = vmatpush2.bf16.msra.mxu0 0
      %3981 = vmatprep.subr.bf16.mxu0 0
      %3982 = vmatpush2.bf16.msra.mxu0 0
      %3983 = vmatprep.subr.bf16.mxu0 0
      %3984 = vmatpush2.bf16.msra.mxu0 0
      %3985 = vmatprep.subr.bf16.mxu0 0
      %3986 = vmatpush2.bf16.msra.mxu0 0
      %3987 = vmatprep.subr.bf16.mxu0 0
      %3988 = vmatpush2.bf16.msra.mxu0 0
      %3989 = vmatprep.subr.bf16.mxu0 0
      %3990 = vmatpush2.bf16.msra.mxu0 0
      %3991 = vmatprep.subr.bf16.mxu0 0
      %3992 = vmatpush2.bf16.msra.mxu0 0
      %3993 = vmatprep.mubr.bf16.mxu0 0
      %3994 = vmatmul.mubr.bf16.gmra.mxu0 %v3621
      %v3995 = vpop.f32.mrf.mxu0
      %v3996 = vadd.f32 %v3094, %v3995
      %v3997 = vpop.f32.mrf.mxu0
      %v3998 = vadd.f32 %v3094, %v3997
      %v3999 = vpop.f32.mrf.mxu0
      %v4000 = vadd.f32 %v3099, %v3999
      %v4001 = vpop.f32.mrf.mxu0
      %v4002 = vadd.f32 %v3099, %v4001
      %4003 = vmatprep.mubr.bf16.mxu0 0
      %4004 = vmatmul.mubr.bf16.gmra.mxu0 %v3624
      %v4005 = vpop.f32.mrf.mxu0
      %v4006 = vadd.f32 %v3104, %v4005
      %v4007 = vpop.f32.mrf.mxu0
      %v4008 = vadd.f32 %v3104, %v4007
      %v4009 = vpop.f32.mrf.mxu0
      %v4010 = vadd.f32 %v3109, %v4009
      %v4011 = vpop.f32.mrf.mxu0
      %v4012 = vadd.f32 %v3109, %v4011
      %4013 = vmatprep.mubr.bf16.mxu0 0
      %4014 = vmatmul.mubr.bf16.gmra.mxu0 %v3627
      %v4015 = vpop.f32.mrf.mxu0
      %v4016 = vadd.f32 %v3114, %v4015
      %v4017 = vpop.f32.mrf.mxu0
      %v4018 = vadd.f32 %v3114, %v4017
      %v4019 = vpop.f32.mrf.mxu0
      %v4020 = vadd.f32 %v3119, %v4019
      %v4021 = vpop.f32.mrf.mxu0
      %v4022 = vadd.f32 %v3119, %v4021
      %4023 = vmatprep.mubr.bf16.mxu0 0
      %4024 = vmatmul.mubr.bf16.gmra.mxu0 %v3630
      %v4025 = vpop.f32.mrf.mxu0
      %v4026 = vadd.f32 %v3124, %v4025
      %v4027 = vpop.f32.mrf.mxu0
      %v4028 = vadd.f32 %v3124, %v4027
      %v4029 = vpop.f32.mrf.mxu0
      %v4030 = vadd.f32 %v3129, %v4029
      %v4031 = vpop.f32.mrf.mxu0
      %v4032 = vadd.f32 %v3129, %v4031
      %4033 = vmatprep.mubr.bf16.mxu0 0
      %4034 = vmatmul.mubr.bf16.gmra.mxu0 %v3633
      %v4035 = vpop.f32.mrf.mxu0
      %v4036 = vadd.f32 %v3134, %v4035
      %v4037 = vpop.f32.mrf.mxu0
      %v4038 = vadd.f32 %v3134, %v4037
      %v4039 = vpop.f32.mrf.mxu0
      %v4040 = vadd.f32 %v3139, %v4039
      %v4041 = vpop.f32.mrf.mxu0
      %v4042 = vadd.f32 %v3139, %v4041
      %4043 = vmatprep.mubr.bf16.mxu0 0
      %4044 = vmatmul.mubr.bf16.gmra.mxu0 %v3636
      %v4045 = vpop.f32.mrf.mxu0
      %v4046 = vadd.f32 %v3144, %v4045
      %v4047 = vpop.f32.mrf.mxu0
      %v4048 = vadd.f32 %v3144, %v4047
      %v4049 = vpop.f32.mrf.mxu0
      %v4050 = vadd.f32 %v3149, %v4049
      %v4051 = vpop.f32.mrf.mxu0
      %v4052 = vadd.f32 %v3149, %v4051
      %4053 = vmatprep.mubr.bf16.mxu0 0
      %4054 = vmatmul.mubr.bf16.gmra.mxu0 %v3639
      %v4055 = vpop.f32.mrf.mxu0
      %v4056 = vadd.f32 %v3154, %v4055
      %v4057 = vpop.f32.mrf.mxu0
      %v4058 = vadd.f32 %v3154, %v4057
      %v4059 = vpop.f32.mrf.mxu0
      %v4060 = vadd.f32 %v3159, %v4059
      %v4061 = vpop.f32.mrf.mxu0
      %v4062 = vadd.f32 %v3159, %v4061
      %4063 = vmatprep.mubr.bf16.mxu0 0
      %4064 = vmatmul.mubr.bf16.gmra.mxu0 %v3642
      %v4065 = vpop.f32.mrf.mxu0
      %v4066 = vadd.f32 %v3164, %v4065
      %v4067 = vpop.f32.mrf.mxu0
      %v4068 = vadd.f32 %v3164, %v4067
      %v4069 = vpop.f32.mrf.mxu0
      %v4070 = vadd.f32 %v3169, %v4069
      %v4071 = vpop.f32.mrf.mxu0
      %v4072 = vadd.f32 %v3169, %v4071
      %4073 = vmatprep.mubr.bf16.mxu0 0
      %4074 = vmatmul.mubr.bf16.gmra.mxu0 %v3645
      %v4075 = vpop.f32.mrf.mxu0
      %v4076 = vadd.f32 %v3174, %v4075
      %v4077 = vpop.f32.mrf.mxu0
      %v4078 = vadd.f32 %v3174, %v4077
      %v4079 = vpop.f32.mrf.mxu0
      %v4080 = vadd.f32 %v3179, %v4079
      %v4081 = vpop.f32.mrf.mxu0
      %v4082 = vadd.f32 %v3179, %v4081
      %4083 = vmatprep.mubr.bf16.mxu0 0
      %4084 = vmatmul.mubr.bf16.gmra.mxu0 %v3648
      %v4085 = vpop.f32.mrf.mxu0
      %v4086 = vadd.f32 %v3184, %v4085
      %v4087 = vpop.f32.mrf.mxu0
      %v4088 = vadd.f32 %v3184, %v4087
      %v4089 = vpop.f32.mrf.mxu0
      %v4090 = vadd.f32 %v3189, %v4089
      %v4091 = vpop.f32.mrf.mxu0
      %v4092 = vadd.f32 %v3189, %v4091
      %4093 = vmatprep.mubr.bf16.mxu0 0
      %4094 = vmatmul.mubr.bf16.gmra.mxu0 %v3651
      %v4095 = vpop.f32.mrf.mxu0
      %v4096 = vadd.f32 %v3194, %v4095
      %v4097 = vpop.f32.mrf.mxu0
      %v4098 = vadd.f32 %v3194, %v4097
      %v4099 = vpop.f32.mrf.mxu0
      %v4100 = vadd.f32 %v3199, %v4099
      %v4101 = vpop.f32.mrf.mxu0
      %v4102 = vadd.f32 %v3199, %v4101
      %4103 = vmatprep.mubr.bf16.mxu0 0
      %4104 = vmatmul.mubr.bf16.gmra.mxu0 %v3654
      %v4105 = vpop.f32.mrf.mxu0
      %v4106 = vadd.f32 %v3204, %v4105
      %v4107 = vpop.f32.mrf.mxu0
      %v4108 = vadd.f32 %v3204, %v4107
      %v4109 = vpop.f32.mrf.mxu0
      %v4110 = vadd.f32 %v3209, %v4109
      %v4111 = vpop.f32.mrf.mxu0
      %v4112 = vadd.f32 %v3209, %v4111
      %4113 = vmatprep.mubr.bf16.mxu0 0
      %4114 = vmatmul.mubr.bf16.gmra.mxu0 %v3657
      %v4115 = vpop.f32.mrf.mxu0
      %v4116 = vadd.f32 %v3214, %v4115
      %v4117 = vpop.f32.mrf.mxu0
      %v4118 = vadd.f32 %v3214, %v4117
      %v4119 = vpop.f32.mrf.mxu0
      %v4120 = vadd.f32 %v3219, %v4119
      %v4121 = vpop.f32.mrf.mxu0
      %v4122 = vadd.f32 %v3219, %v4121
      %4123 = vmatprep.mubr.bf16.mxu0 0
      %4124 = vmatmul.mubr.bf16.gmra.mxu0 %v3660
      %v4125 = vpop.f32.mrf.mxu0
      %v4126 = vadd.f32 %v3224, %v4125
      %v4127 = vpop.f32.mrf.mxu0
      %v4128 = vadd.f32 %v3224, %v4127
      %v4129 = vpop.f32.mrf.mxu0
      %v4130 = vadd.f32 %v3229, %v4129
      %v4131 = vpop.f32.mrf.mxu0
      %v4132 = vadd.f32 %v3229, %v4131
      %4133 = vmatprep.mubr.bf16.mxu0 0
      %4134 = vmatmul.mubr.bf16.gmra.mxu0 %v3663
      %v4135 = vpop.f32.mrf.mxu0
      %v4136 = vadd.f32 %v3234, %v4135
      %v4137 = vpop.f32.mrf.mxu0
      %v4138 = vadd.f32 %v3234, %v4137
      %v4139 = vpop.f32.mrf.mxu0
      %v4140 = vadd.f32 %v3239, %v4139
      %v4141 = vpop.f32.mrf.mxu0
      %v4142 = vadd.f32 %v3239, %v4141
      %4143 = vmatprep.mubr.bf16.mxu0 0
      %4144 = vmatmul.mubr.bf16.gmra.mxu0 %v3666
      %v4145 = vpop.f32.mrf.mxu0
      %v4146 = vadd.f32 %v3244, %v4145
      %v4147 = vpop.f32.mrf.mxu0
      %v4148 = vadd.f32 %v3244, %v4147
      %v4149 = vpop.f32.mrf.mxu0
      %v4150 = vadd.f32 %v3249, %v4149
      %v4151 = vpop.f32.mrf.mxu0
      %v4152 = vadd.f32 %v3249, %v4151
      %4153 = vdwg.mxu0
      %4154 = vmatprep.subr.bf16.mxu0 0
      %4155 = vmatpush1.bf16.msra.mxu0 0
      %4156 = vmatprep.subr.bf16.mxu0 0
      %4157 = vmatpush1.bf16.msra.mxu0 0
      %4158 = vmatprep.subr.bf16.mxu0 0
      %4159 = vmatpush1.bf16.msra.mxu0 0
      %4160 = vmatprep.subr.bf16.mxu0 0
      %4161 = vmatpush1.bf16.msra.mxu0 0
      %4162 = vmatprep.subr.bf16.mxu0 0
      %4163 = vmatpush1.bf16.msra.mxu0 0
      %4164 = vmatprep.subr.bf16.mxu0 0
      %4165 = vmatpush1.bf16.msra.mxu0 0
      %4166 = vmatprep.subr.bf16.mxu0 %v3688
      %4167 = vmatpush1.bf16.msra.mxu0 %v3685
      %4168 = vmatprep.subr.bf16.mxu0 %v3528
      %4169 = vmatpush1.bf16.msra.mxu0 %v3527
      %4170 = vmatprep.subr.bf16.mxu0 0
      %4171 = vmatpush2.bf16.msra.mxu0 0
      %4172 = vmatprep.subr.bf16.mxu0 0
      %4173 = vmatpush2.bf16.msra.mxu0 0
      %4174 = vmatprep.subr.bf16.mxu0 0
      %4175 = vmatpush2.bf16.msra.mxu0 0
      %4176 = vmatprep.subr.bf16.mxu0 0
      %4177 = vmatpush2.bf16.msra.mxu0 0
      %4178 = vmatprep.subr.bf16.mxu0 0
      %4179 = vmatpush2.bf16.msra.mxu0 0
      %4180 = vmatprep.subr.bf16.mxu0 0
      %4181 = vmatpush2.bf16.msra.mxu0 0
      %4182 = vmatprep.subr.bf16.mxu0 0
      %4183 = vmatpush2.bf16.msra.mxu0 0
      %4184 = vmatprep.subr.bf16.mxu0 0
      %4185 = vmatpush2.bf16.msra.mxu0 0
      %4186 = vmatprep.mubr.bf16.mxu0 0
      %4187 = vmatmul.mubr.bf16.gmra.mxu0 %v3621
      %v4188 = vpop.f32.mrf.mxu0
      %v4189 = vadd.f32 %v3094, %v4188
      %v4190 = vpop.f32.mrf.mxu0
      %v4191 = vadd.f32 %v3094, %v4190
      %v4192 = vpop.f32.mrf.mxu0
      %v4193 = vadd.f32 %v3099, %v4192
      %v4194 = vpop.f32.mrf.mxu0
      %v4195 = vadd.f32 %v3099, %v4194
      %4196 = vmatprep.mubr.bf16.mxu0 0
      %4197 = vmatmul.mubr.bf16.gmra.mxu0 %v3624
      %v4198 = vpop.f32.mrf.mxu0
      %v4199 = vadd.f32 %v3104, %v4198
      %v4200 = vpop.f32.mrf.mxu0
      %v4201 = vadd.f32 %v3104, %v4200
      %v4202 = vpop.f32.mrf.mxu0
      %v4203 = vadd.f32 %v3109, %v4202
      %v4204 = vpop.f32.mrf.mxu0
      %v4205 = vadd.f32 %v3109, %v4204
      %4206 = vmatprep.mubr.bf16.mxu0 0
      %4207 = vmatmul.mubr.bf16.gmra.mxu0 %v3627
      %v4208 = vpop.f32.mrf.mxu0
      %v4209 = vadd.f32 %v3114, %v4208
      %v4210 = vpop.f32.mrf.mxu0
      %v4211 = vadd.f32 %v3114, %v4210
      %v4212 = vpop.f32.mrf.mxu0
      %v4213 = vadd.f32 %v3119, %v4212
      %v4214 = vpop.f32.mrf.mxu0
      %v4215 = vadd.f32 %v3119, %v4214
      %4216 = vmatprep.mubr.bf16.mxu0 0
      %4217 = vmatmul.mubr.bf16.gmra.mxu0 %v3630
      %v4218 = vpop.f32.mrf.mxu0
      %v4219 = vadd.f32 %v3124, %v4218
      %v4220 = vpop.f32.mrf.mxu0
      %v4221 = vadd.f32 %v3124, %v4220
      %v4222 = vpop.f32.mrf.mxu0
      %v4223 = vadd.f32 %v3129, %v4222
      %v4224 = vpop.f32.mrf.mxu0
      %v4225 = vadd.f32 %v3129, %v4224
      %4226 = vmatprep.mubr.bf16.mxu0 0
      %4227 = vmatmul.mubr.bf16.gmra.mxu0 %v3633
      %v4228 = vpop.f32.mrf.mxu0
      %v4229 = vadd.f32 %v3134, %v4228
      %v4230 = vpop.f32.mrf.mxu0
      %v4231 = vadd.f32 %v3134, %v4230
      %v4232 = vpop.f32.mrf.mxu0
      %v4233 = vadd.f32 %v3139, %v4232
      %v4234 = vpop.f32.mrf.mxu0
      %v4235 = vadd.f32 %v3139, %v4234
      %4236 = vmatprep.mubr.bf16.mxu0 0
      %4237 = vmatmul.mubr.bf16.gmra.mxu0 %v3636
      %v4238 = vpop.f32.mrf.mxu0
      %v4239 = vadd.f32 %v3144, %v4238
      %v4240 = vpop.f32.mrf.mxu0
      %v4241 = vadd.f32 %v3144, %v4240
      %v4242 = vpop.f32.mrf.mxu0
      %v4243 = vadd.f32 %v3149, %v4242
      %v4244 = vpop.f32.mrf.mxu0
      %v4245 = vadd.f32 %v3149, %v4244
      %4246 = vmatprep.mubr.bf16.mxu0 0
      %4247 = vmatmul.mubr.bf16.gmra.mxu0 %v3639
      %v4248 = vpop.f32.mrf.mxu0
      %v4249 = vadd.f32 %v3154, %v4248
      %v4250 = vpop.f32.mrf.mxu0
      %v4251 = vadd.f32 %v3154, %v4250
      %v4252 = vpop.f32.mrf.mxu0
      %v4253 = vadd.f32 %v3159, %v4252
      %v4254 = vpop.f32.mrf.mxu0
      %v4255 = vadd.f32 %v3159, %v4254
      %4256 = vmatprep.mubr.bf16.mxu0 0
      %4257 = vmatmul.mubr.bf16.gmra.mxu0 %v3642
      %v4258 = vpop.f32.mrf.mxu0
      %v4259 = vadd.f32 %v3164, %v4258
      %v4260 = vpop.f32.mrf.mxu0
      %v4261 = vadd.f32 %v3164, %v4260
      %v4262 = vpop.f32.mrf.mxu0
      %v4263 = vadd.f32 %v3169, %v4262
      %v4264 = vpop.f32.mrf.mxu0
      %v4265 = vadd.f32 %v3169, %v4264
      %4266 = vmatprep.mubr.bf16.mxu0 0
      %4267 = vmatmul.mubr.bf16.gmra.mxu0 %v3645
      %v4268 = vpop.f32.mrf.mxu0
      %v4269 = vadd.f32 %v3174, %v4268
      %v4270 = vpop.f32.mrf.mxu0
      %v4271 = vadd.f32 %v3174, %v4270
      %v4272 = vpop.f32.mrf.mxu0
      %v4273 = vadd.f32 %v3179, %v4272
      %v4274 = vpop.f32.mrf.mxu0
      %v4275 = vadd.f32 %v3179, %v4274
      %4276 = vmatprep.mubr.bf16.mxu0 0
      %4277 = vmatmul.mubr.bf16.gmra.mxu0 %v3648
      %v4278 = vpop.f32.mrf.mxu0
      %v4279 = vadd.f32 %v3184, %v4278
      %v4280 = vpop.f32.mrf.mxu0
      %v4281 = vadd.f32 %v3184, %v4280
      %v4282 = vpop.f32.mrf.mxu0
      %v4283 = vadd.f32 %v3189, %v4282
      %v4284 = vpop.f32.mrf.mxu0
      %v4285 = vadd.f32 %v3189, %v4284
      %4286 = vmatprep.mubr.bf16.mxu0 0
      %4287 = vmatmul.mubr.bf16.gmra.mxu0 %v3651
      %v4288 = vpop.f32.mrf.mxu0
      %v4289 = vadd.f32 %v3194, %v4288
      %v4290 = vpop.f32.mrf.mxu0
      %v4291 = vadd.f32 %v3194, %v4290
      %v4292 = vpop.f32.mrf.mxu0
      %v4293 = vadd.f32 %v3199, %v4292
      %v4294 = vpop.f32.mrf.mxu0
      %v4295 = vadd.f32 %v3199, %v4294
      %4296 = vmatprep.mubr.bf16.mxu0 0
      %4297 = vmatmul.mubr.bf16.gmra.mxu0 %v3654
      %v4298 = vpop.f32.mrf.mxu0
      %v4299 = vadd.f32 %v3204, %v4298
      %v4300 = vpop.f32.mrf.mxu0
      %v4301 = vadd.f32 %v3204, %v4300
      %v4302 = vpop.f32.mrf.mxu0
      %v4303 = vadd.f32 %v3209, %v4302
      %v4304 = vpop.f32.mrf.mxu0
      %v4305 = vadd.f32 %v3209, %v4304
      %4306 = vmatprep.mubr.bf16.mxu0 0
      %4307 = vmatmul.mubr.bf16.gmra.mxu0 %v3657
      %v4308 = vpop.f32.mrf.mxu0
      %v4309 = vadd.f32 %v3214, %v4308
      %v4310 = vpop.f32.mrf.mxu0
      %v4311 = vadd.f32 %v3214, %v4310
      %v4312 = vpop.f32.mrf.mxu0
      %v4313 = vadd.f32 %v3219, %v4312
      %v4314 = vpop.f32.mrf.mxu0
      %v4315 = vadd.f32 %v3219, %v4314
      %4316 = vmatprep.mubr.bf16.mxu0 0
      %4317 = vmatmul.mubr.bf16.gmra.mxu0 %v3660
      %v4318 = vpop.f32.mrf.mxu0
      %v4319 = vadd.f32 %v3224, %v4318
      %v4320 = vpop.f32.mrf.mxu0
      %v4321 = vadd.f32 %v3224, %v4320
      %v4322 = vpop.f32.mrf.mxu0
      %v4323 = vadd.f32 %v3229, %v4322
      %v4324 = vpop.f32.mrf.mxu0
      %v4325 = vadd.f32 %v3229, %v4324
      %4326 = vmatprep.mubr.bf16.mxu0 0
      %4327 = vmatmul.mubr.bf16.gmra.mxu0 %v3663
      %v4328 = vpop.f32.mrf.mxu0
      %v4329 = vadd.f32 %v3234, %v4328
      %v4330 = vpop.f32.mrf.mxu0
      %v4331 = vadd.f32 %v3234, %v4330
      %v4332 = vpop.f32.mrf.mxu0
      %v4333 = vadd.f32 %v3239, %v4332
      %v4334 = vpop.f32.mrf.mxu0
      %v4335 = vadd.f32 %v3239, %v4334
      %4336 = vmatprep.mubr.bf16.mxu0 0
      %4337 = vmatmul.mubr.bf16.gmra.mxu0 %v3666
      %v4338 = vpop.f32.mrf.mxu0
      %v4339 = vadd.f32 %v3244, %v4338
      %v4340 = vpop.f32.mrf.mxu0
      %v4341 = vadd.f32 %v3244, %v4340
      %v4342 = vpop.f32.mrf.mxu0
      %v4343 = vadd.f32 %v3249, %v4342
      %v4344 = vpop.f32.mrf.mxu0
      %v4345 = vadd.f32 %v3249, %v4344
      %4346 = vdwg.mxu0
      %4347 = vmatprep.subr.bf16.mxu0 0
      %4348 = vmatpush1.bf16.msra.mxu0 0
      %4349 = vmatprep.subr.bf16.mxu0 0
      %4350 = vmatpush1.bf16.msra.mxu0 0
      %4351 = vmatprep.subr.bf16.mxu0 0
      %4352 = vmatpush1.bf16.msra.mxu0 0
      %4353 = vmatprep.subr.bf16.mxu0 0
      %4354 = vmatpush1.bf16.msra.mxu0 0
      %4355 = vmatprep.subr.bf16.mxu0 0
      %4356 = vmatpush1.bf16.msra.mxu0 0
      %4357 = vmatprep.subr.bf16.mxu0 0
      %4358 = vmatpush1.bf16.msra.mxu0 0
      %4359 = vmatprep.subr.bf16.mxu0 %v3694
      %4360 = vmatpush1.bf16.msra.mxu0 %v3691
      %4361 = vmatprep.subr.bf16.mxu0 %v3530
      %4362 = vmatpush1.bf16.msra.mxu0 %v3529
      %4363 = vmatprep.subr.bf16.mxu0 0
      %4364 = vmatpush2.bf16.msra.mxu0 0
      %4365 = vmatprep.subr.bf16.mxu0 0
      %4366 = vmatpush2.bf16.msra.mxu0 0
      %4367 = vmatprep.subr.bf16.mxu0 0
      %4368 = vmatpush2.bf16.msra.mxu0 0
      %4369 = vmatprep.subr.bf16.mxu0 0
      %4370 = vmatpush2.bf16.msra.mxu0 0
      %4371 = vmatprep.subr.bf16.mxu0 0
      %4372 = vmatpush2.bf16.msra.mxu0 0
      %4373 = vmatprep.subr.bf16.mxu0 0
      %4374 = vmatpush2.bf16.msra.mxu0 0
      %4375 = vmatprep.subr.bf16.mxu0 0
      %4376 = vmatpush2.bf16.msra.mxu0 0
      %4377 = vmatprep.subr.bf16.mxu0 0
      %4378 = vmatpush2.bf16.msra.mxu0 0
      %4379 = vmatprep.mubr.bf16.mxu0 0
      %4380 = vmatmul.mubr.bf16.gmra.mxu0 %v3621
      %v4381 = vpop.f32.mrf.mxu0
      %v4382 = vadd.f32 %v3094, %v4381
      %v4383 = vpop.f32.mrf.mxu0
      %v4384 = vadd.f32 %v3094, %v4383
      %v4385 = vpop.f32.mrf.mxu0
      %v4386 = vadd.f32 %v3099, %v4385
      %v4387 = vpop.f32.mrf.mxu0
      %v4388 = vadd.f32 %v3099, %v4387
      %4389 = vmatprep.mubr.bf16.mxu0 0
      %4390 = vmatmul.mubr.bf16.gmra.mxu0 %v3624
      %v4391 = vpop.f32.mrf.mxu0
      %v4392 = vadd.f32 %v3104, %v4391
      %v4393 = vpop.f32.mrf.mxu0
      %v4394 = vadd.f32 %v3104, %v4393
      %v4395 = vpop.f32.mrf.mxu0
      %v4396 = vadd.f32 %v3109, %v4395
      %v4397 = vpop.f32.mrf.mxu0
      %v4398 = vadd.f32 %v3109, %v4397
      %4399 = vmatprep.mubr.bf16.mxu0 0
      %4400 = vmatmul.mubr.bf16.gmra.mxu0 %v3627
      %v4401 = vpop.f32.mrf.mxu0
      %v4402 = vadd.f32 %v3114, %v4401
      %v4403 = vpop.f32.mrf.mxu0
      %v4404 = vadd.f32 %v3114, %v4403
      %v4405 = vpop.f32.mrf.mxu0
      %v4406 = vadd.f32 %v3119, %v4405
      %v4407 = vpop.f32.mrf.mxu0
      %v4408 = vadd.f32 %v3119, %v4407
      %4409 = vmatprep.mubr.bf16.mxu0 0
      %4410 = vmatmul.mubr.bf16.gmra.mxu0 %v3630
      %v4411 = vpop.f32.mrf.mxu0
      %v4412 = vadd.f32 %v3124, %v4411
      %v4413 = vpop.f32.mrf.mxu0
      %v4414 = vadd.f32 %v3124, %v4413
      %v4415 = vpop.f32.mrf.mxu0
      %v4416 = vadd.f32 %v3129, %v4415
      %v4417 = vpop.f32.mrf.mxu0
      %v4418 = vadd.f32 %v3129, %v4417
      %4419 = vmatprep.mubr.bf16.mxu0 0
      %4420 = vmatmul.mubr.bf16.gmra.mxu0 %v3633
      %v4421 = vpop.f32.mrf.mxu0
      %v4422 = vadd.f32 %v3134, %v4421
      %v4423 = vpop.f32.mrf.mxu0
      %v4424 = vadd.f32 %v3134, %v4423
      %v4425 = vpop.f32.mrf.mxu0
      %v4426 = vadd.f32 %v3139, %v4425
      %v4427 = vpop.f32.mrf.mxu0
      %v4428 = vadd.f32 %v3139, %v4427
      %4429 = vmatprep.mubr.bf16.mxu0 0
      %4430 = vmatmul.mubr.bf16.gmra.mxu0 %v3636
      %v4431 = vpop.f32.mrf.mxu0
      %v4432 = vadd.f32 %v3144, %v4431
      %v4433 = vpop.f32.mrf.mxu0
      %v4434 = vadd.f32 %v3144, %v4433
      %v4435 = vpop.f32.mrf.mxu0
      %v4436 = vadd.f32 %v3149, %v4435
      %v4437 = vpop.f32.mrf.mxu0
      %v4438 = vadd.f32 %v3149, %v4437
      %4439 = vmatprep.mubr.bf16.mxu0 0
      %4440 = vmatmul.mubr.bf16.gmra.mxu0 %v3639
      %v4441 = vpop.f32.mrf.mxu0
      %v4442 = vadd.f32 %v3154, %v4441
      %v4443 = vpop.f32.mrf.mxu0
      %v4444 = vadd.f32 %v3154, %v4443
      %v4445 = vpop.f32.mrf.mxu0
      %v4446 = vadd.f32 %v3159, %v4445
      %v4447 = vpop.f32.mrf.mxu0
      %v4448 = vadd.f32 %v3159, %v4447
      %4449 = vmatprep.mubr.bf16.mxu0 0
      %4450 = vmatmul.mubr.bf16.gmra.mxu0 %v3642
      %v4451 = vpop.f32.mrf.mxu0
      %v4452 = vadd.f32 %v3164, %v4451
      %v4453 = vpop.f32.mrf.mxu0
      %v4454 = vadd.f32 %v3164, %v4453
      %v4455 = vpop.f32.mrf.mxu0
      %v4456 = vadd.f32 %v3169, %v4455
      %v4457 = vpop.f32.mrf.mxu0
      %v4458 = vadd.f32 %v3169, %v4457
      %4459 = vmatprep.mubr.bf16.mxu0 0
      %4460 = vmatmul.mubr.bf16.gmra.mxu0 %v3645
      %v4461 = vpop.f32.mrf.mxu0
      %v4462 = vadd.f32 %v3174, %v4461
      %v4463 = vpop.f32.mrf.mxu0
      %v4464 = vadd.f32 %v3174, %v4463
      %v4465 = vpop.f32.mrf.mxu0
      %v4466 = vadd.f32 %v3179, %v4465
      %v4467 = vpop.f32.mrf.mxu0
      %v4468 = vadd.f32 %v3179, %v4467
      %4469 = vmatprep.mubr.bf16.mxu0 0
      %4470 = vmatmul.mubr.bf16.gmra.mxu0 %v3648
      %v4471 = vpop.f32.mrf.mxu0
      %v4472 = vadd.f32 %v3184, %v4471
      %v4473 = vpop.f32.mrf.mxu0
      %v4474 = vadd.f32 %v3184, %v4473
      %v4475 = vpop.f32.mrf.mxu0
      %v4476 = vadd.f32 %v3189, %v4475
      %v4477 = vpop.f32.mrf.mxu0
      %v4478 = vadd.f32 %v3189, %v4477
      %4479 = vmatprep.mubr.bf16.mxu0 0
      %4480 = vmatmul.mubr.bf16.gmra.mxu0 %v3651
      %v4481 = vpop.f32.mrf.mxu0
      %v4482 = vadd.f32 %v3194, %v4481
      %v4483 = vpop.f32.mrf.mxu0
      %v4484 = vadd.f32 %v3194, %v4483
      %v4485 = vpop.f32.mrf.mxu0
      %v4486 = vadd.f32 %v3199, %v4485
      %v4487 = vpop.f32.mrf.mxu0
      %v4488 = vadd.f32 %v3199, %v4487
      %4489 = vmatprep.mubr.bf16.mxu0 0
      %4490 = vmatmul.mubr.bf16.gmra.mxu0 %v3654
      %v4491 = vpop.f32.mrf.mxu0
      %v4492 = vadd.f32 %v3204, %v4491
      %v4493 = vpop.f32.mrf.mxu0
      %v4494 = vadd.f32 %v3204, %v4493
      %v4495 = vpop.f32.mrf.mxu0
      %v4496 = vadd.f32 %v3209, %v4495
      %v4497 = vpop.f32.mrf.mxu0
      %v4498 = vadd.f32 %v3209, %v4497
      %4499 = vmatprep.mubr.bf16.mxu0 0
      %4500 = vmatmul.mubr.bf16.gmra.mxu0 %v3657
      %v4501 = vpop.f32.mrf.mxu0
      %v4502 = vadd.f32 %v3214, %v4501
      %v4503 = vpop.f32.mrf.mxu0
      %v4504 = vadd.f32 %v3214, %v4503
      %v4505 = vpop.f32.mrf.mxu0
      %v4506 = vadd.f32 %v3219, %v4505
      %v4507 = vpop.f32.mrf.mxu0
      %v4508 = vadd.f32 %v3219, %v4507
      %4509 = vmatprep.mubr.bf16.mxu0 0
      %4510 = vmatmul.mubr.bf16.gmra.mxu0 %v3660
      %v4511 = vpop.f32.mrf.mxu0
      %v4512 = vadd.f32 %v3224, %v4511
      %v4513 = vpop.f32.mrf.mxu0
      %v4514 = vadd.f32 %v3224, %v4513
      %v4515 = vpop.f32.mrf.mxu0
      %v4516 = vadd.f32 %v3229, %v4515
      %v4517 = vpop.f32.mrf.mxu0
      %v4518 = vadd.f32 %v3229, %v4517
      %4519 = vmatprep.mubr.bf16.mxu0 0
      %4520 = vmatmul.mubr.bf16.gmra.mxu0 %v3663
      %v4521 = vpop.f32.mrf.mxu0
      %v4522 = vadd.f32 %v3234, %v4521
      %v4523 = vpop.f32.mrf.mxu0
      %v4524 = vadd.f32 %v3234, %v4523
      %v4525 = vpop.f32.mrf.mxu0
      %v4526 = vadd.f32 %v3239, %v4525
      %v4527 = vpop.f32.mrf.mxu0
      %v4528 = vadd.f32 %v3239, %v4527
      %4529 = vmatprep.mubr.bf16.mxu0 0
      %4530 = vmatmul.mubr.bf16.gmra.mxu0 %v3666
      %v4531 = vpop.f32.mrf.mxu0
      %v4532 = vadd.f32 %v3244, %v4531
      %v4533 = vpop.f32.mrf.mxu0
      %v4534 = vadd.f32 %v3244, %v4533
      %v4535 = vpop.f32.mrf.mxu0
      %v4536 = vadd.f32 %v3249, %v4535
      %v4537 = vpop.f32.mrf.mxu0
      %v4538 = vadd.f32 %v3249, %v4537
      %4539 = vdwg.mxu0
      %4540 = vmatprep.subr.bf16.mxu0 0
      %4541 = vmatpush1.bf16.msra.mxu0 0
      %4542 = vmatprep.subr.bf16.mxu0 0
      %4543 = vmatpush1.bf16.msra.mxu0 0
      %4544 = vmatprep.subr.bf16.mxu0 0
      %4545 = vmatpush1.bf16.msra.mxu0 0
      %4546 = vmatprep.subr.bf16.mxu0 0
      %4547 = vmatpush1.bf16.msra.mxu0 0
      %4548 = vmatprep.subr.bf16.mxu0 0
      %4549 = vmatpush1.bf16.msra.mxu0 0
      %4550 = vmatprep.subr.bf16.mxu0 0
      %4551 = vmatpush1.bf16.msra.mxu0 0
      %4552 = vmatprep.subr.bf16.mxu0 %v3700
      %4553 = vmatpush1.bf16.msra.mxu0 %v3697
      %4554 = vmatprep.subr.bf16.mxu0 %v3532
      %4555 = vmatpush1.bf16.msra.mxu0 %v3531
      %4556 = vmatprep.subr.bf16.mxu0 0
      %4557 = vmatpush2.bf16.msra.mxu0 0
      %4558 = vmatprep.subr.bf16.mxu0 0
      %4559 = vmatpush2.bf16.msra.mxu0 0
      %4560 = vmatprep.subr.bf16.mxu0 0
      %4561 = vmatpush2.bf16.msra.mxu0 0
      %4562 = vmatprep.subr.bf16.mxu0 0
      %4563 = vmatpush2.bf16.msra.mxu0 0
      %4564 = vmatprep.subr.bf16.mxu0 0
      %4565 = vmatpush2.bf16.msra.mxu0 0
      %4566 = vmatprep.subr.bf16.mxu0 0
      %4567 = vmatpush2.bf16.msra.mxu0 0
      %4568 = vmatprep.subr.bf16.mxu0 0
      %4569 = vmatpush2.bf16.msra.mxu0 0
      %4570 = vmatprep.subr.bf16.mxu0 0
      %4571 = vmatpush2.bf16.msra.mxu0 0
      %4572 = vmatprep.mubr.bf16.mxu0 0
      %4573 = vmatmul.mubr.bf16.gmra.mxu0 %v3621
      %v4574 = vpop.f32.mrf.mxu0
      %v4575 = vadd.f32 %v3094, %v4574
      %v4576 = vpop.f32.mrf.mxu0
      %v4577 = vadd.f32 %v3094, %v4576
      %v4578 = vpop.f32.mrf.mxu0
      %v4579 = vadd.f32 %v3099, %v4578
      %v4580 = vpop.f32.mrf.mxu0
      %v4581 = vadd.f32 %v3099, %v4580
      %4582 = vmatprep.mubr.bf16.mxu0 0
      %4583 = vmatmul.mubr.bf16.gmra.mxu0 %v3624
      %v4584 = vpop.f32.mrf.mxu0
      %v4585 = vadd.f32 %v3104, %v4584
      %v4586 = vpop.f32.mrf.mxu0
      %v4587 = vadd.f32 %v3104, %v4586
      %v4588 = vpop.f32.mrf.mxu0
      %v4589 = vadd.f32 %v3109, %v4588
      %v4590 = vpop.f32.mrf.mxu0
      %v4591 = vadd.f32 %v3109, %v4590
      %4592 = vmatprep.mubr.bf16.mxu0 0
      %4593 = vmatmul.mubr.bf16.gmra.mxu0 %v3627
      %v4594 = vpop.f32.mrf.mxu0
      %v4595 = vadd.f32 %v3114, %v4594
      %v4596 = vpop.f32.mrf.mxu0
      %v4597 = vadd.f32 %v3114, %v4596
      %v4598 = vpop.f32.mrf.mxu0
      %v4599 = vadd.f32 %v3119, %v4598
      %v4600 = vpop.f32.mrf.mxu0
      %v4601 = vadd.f32 %v3119, %v4600
      %4602 = vmatprep.mubr.bf16.mxu0 0
      %4603 = vmatmul.mubr.bf16.gmra.mxu0 %v3630
      %v4604 = vpop.f32.mrf.mxu0
      %v4605 = vadd.f32 %v3124, %v4604
      %v4606 = vpop.f32.mrf.mxu0
      %v4607 = vadd.f32 %v3124, %v4606
      %v4608 = vpop.f32.mrf.mxu0
      %v4609 = vadd.f32 %v3129, %v4608
      %v4610 = vpop.f32.mrf.mxu0
      %v4611 = vadd.f32 %v3129, %v4610
      %4612 = vmatprep.mubr.bf16.mxu0 0
      %4613 = vmatmul.mubr.bf16.gmra.mxu0 %v3633
      %v4614 = vpop.f32.mrf.mxu0
      %v4615 = vadd.f32 %v3134, %v4614
      %v4616 = vpop.f32.mrf.mxu0
      %v4617 = vadd.f32 %v3134, %v4616
      %v4618 = vpop.f32.mrf.mxu0
      %v4619 = vadd.f32 %v3139, %v4618
      %v4620 = vpop.f32.mrf.mxu0
      %v4621 = vadd.f32 %v3139, %v4620
      %4622 = vmatprep.mubr.bf16.mxu0 0
      %4623 = vmatmul.mubr.bf16.gmra.mxu0 %v3636
      %v4624 = vpop.f32.mrf.mxu0
      %v4625 = vadd.f32 %v3144, %v4624
      %v4626 = vpop.f32.mrf.mxu0
      %v4627 = vadd.f32 %v3144, %v4626
      %v4628 = vpop.f32.mrf.mxu0
      %v4629 = vadd.f32 %v3149, %v4628
      %v4630 = vpop.f32.mrf.mxu0
      %v4631 = vadd.f32 %v3149, %v4630
      %4632 = vmatprep.mubr.bf16.mxu0 0
      %4633 = vmatmul.mubr.bf16.gmra.mxu0 %v3639
      %v4634 = vpop.f32.mrf.mxu0
      %v4635 = vadd.f32 %v3154, %v4634
      %v4636 = vpop.f32.mrf.mxu0
      %v4637 = vadd.f32 %v3154, %v4636
      %v4638 = vpop.f32.mrf.mxu0
      %v4639 = vadd.f32 %v3159, %v4638
      %v4640 = vpop.f32.mrf.mxu0
      %v4641 = vadd.f32 %v3159, %v4640
      %4642 = vmatprep.mubr.bf16.mxu0 0
      %4643 = vmatmul.mubr.bf16.gmra.mxu0 %v3642
      %v4644 = vpop.f32.mrf.mxu0
      %v4645 = vadd.f32 %v3164, %v4644
      %v4646 = vpop.f32.mrf.mxu0
      %v4647 = vadd.f32 %v3164, %v4646
      %v4648 = vpop.f32.mrf.mxu0
      %v4649 = vadd.f32 %v3169, %v4648
      %v4650 = vpop.f32.mrf.mxu0
      %v4651 = vadd.f32 %v3169, %v4650
      %4652 = vmatprep.mubr.bf16.mxu0 0
      %4653 = vmatmul.mubr.bf16.gmra.mxu0 %v3645
      %v4654 = vpop.f32.mrf.mxu0
      %v4655 = vadd.f32 %v3174, %v4654
      %v4656 = vpop.f32.mrf.mxu0
      %v4657 = vadd.f32 %v3174, %v4656
      %v4658 = vpop.f32.mrf.mxu0
      %v4659 = vadd.f32 %v3179, %v4658
      %v4660 = vpop.f32.mrf.mxu0
      %v4661 = vadd.f32 %v3179, %v4660
      %4662 = vmatprep.mubr.bf16.mxu0 0
      %4663 = vmatmul.mubr.bf16.gmra.mxu0 %v3648
      %v4664 = vpop.f32.mrf.mxu0
      %v4665 = vadd.f32 %v3184, %v4664
      %v4666 = vpop.f32.mrf.mxu0
      %v4667 = vadd.f32 %v3184, %v4666
      %v4668 = vpop.f32.mrf.mxu0
      %v4669 = vadd.f32 %v3189, %v4668
      %v4670 = vpop.f32.mrf.mxu0
      %v4671 = vadd.f32 %v3189, %v4670
      %4672 = vmatprep.mubr.bf16.mxu0 0
      %4673 = vmatmul.mubr.bf16.gmra.mxu0 %v3651
      %v4674 = vpop.f32.mrf.mxu0
      %v4675 = vadd.f32 %v3194, %v4674
      %v4676 = vpop.f32.mrf.mxu0
      %v4677 = vadd.f32 %v3194, %v4676
      %v4678 = vpop.f32.mrf.mxu0
      %v4679 = vadd.f32 %v3199, %v4678
      %v4680 = vpop.f32.mrf.mxu0
      %v4681 = vadd.f32 %v3199, %v4680
      %4682 = vmatprep.mubr.bf16.mxu0 0
      %4683 = vmatmul.mubr.bf16.gmra.mxu0 %v3654
      %v4684 = vpop.f32.mrf.mxu0
      %v4685 = vadd.f32 %v3204, %v4684
      %v4686 = vpop.f32.mrf.mxu0
      %v4687 = vadd.f32 %v3204, %v4686
      %v4688 = vpop.f32.mrf.mxu0
      %v4689 = vadd.f32 %v3209, %v4688
      %v4690 = vpop.f32.mrf.mxu0
      %v4691 = vadd.f32 %v3209, %v4690
      %4692 = vmatprep.mubr.bf16.mxu0 0
      %4693 = vmatmul.mubr.bf16.gmra.mxu0 %v3657
      %v4694 = vpop.f32.mrf.mxu0
      %v4695 = vadd.f32 %v3214, %v4694
      %v4696 = vpop.f32.mrf.mxu0
      %v4697 = vadd.f32 %v3214, %v4696
      %v4698 = vpop.f32.mrf.mxu0
      %v4699 = vadd.f32 %v3219, %v4698
      %v4700 = vpop.f32.mrf.mxu0
      %v4701 = vadd.f32 %v3219, %v4700
      %4702 = vmatprep.mubr.bf16.mxu0 0
      %4703 = vmatmul.mubr.bf16.gmra.mxu0 %v3660
      %v4704 = vpop.f32.mrf.mxu0
      %v4705 = vadd.f32 %v3224, %v4704
      %v4706 = vpop.f32.mrf.mxu0
      %v4707 = vadd.f32 %v3224, %v4706
      %v4708 = vpop.f32.mrf.mxu0
      %v4709 = vadd.f32 %v3229, %v4708
      %v4710 = vpop.f32.mrf.mxu0
      %v4711 = vadd.f32 %v3229, %v4710
      %4712 = vmatprep.mubr.bf16.mxu0 0
      %4713 = vmatmul.mubr.bf16.gmra.mxu0 %v3663
      %v4714 = vpop.f32.mrf.mxu0
      %v4715 = vadd.f32 %v3234, %v4714
      %v4716 = vpop.f32.mrf.mxu0
      %v4717 = vadd.f32 %v3234, %v4716
      %v4718 = vpop.f32.mrf.mxu0
      %v4719 = vadd.f32 %v3239, %v4718
      %v4720 = vpop.f32.mrf.mxu0
      %v4721 = vadd.f32 %v3239, %v4720
      %4722 = vmatprep.mubr.bf16.mxu0 0
      %4723 = vmatmul.mubr.bf16.gmra.mxu0 %v3666
      %v4724 = vpop.f32.mrf.mxu0
      %v4725 = vadd.f32 %v3244, %v4724
      %v4726 = vpop.f32.mrf.mxu0
      %v4727 = vadd.f32 %v3244, %v4726
      %v4728 = vpop.f32.mrf.mxu0
      %v4729 = vadd.f32 %v3249, %v4728
      %v4730 = vpop.f32.mrf.mxu0
      %v4731 = vadd.f32 %v3249, %v4730
      %4732 = vdwg.mxu0
      %4733 = vmatprep.subr.bf16.mxu0 0
      %4734 = vmatpush1.bf16.msra.mxu0 0
      %4735 = vmatprep.subr.bf16.mxu0 0
      %4736 = vmatpush1.bf16.msra.mxu0 0
      %4737 = vmatprep.subr.bf16.mxu0 0
      %4738 = vmatpush1.bf16.msra.mxu0 0
      %4739 = vmatprep.subr.bf16.mxu0 0
      %4740 = vmatpush1.bf16.msra.mxu0 0
      %4741 = vmatprep.subr.bf16.mxu0 0
      %4742 = vmatpush1.bf16.msra.mxu0 0
      %4743 = vmatprep.subr.bf16.mxu0 0
      %4744 = vmatpush1.bf16.msra.mxu0 0
      %4745 = vmatprep.subr.bf16.mxu0 %v3706
      %4746 = vmatpush1.bf16.msra.mxu0 %v3703
      %4747 = vmatprep.subr.bf16.mxu0 %v3534
      %4748 = vmatpush1.bf16.msra.mxu0 %v3533
      %4749 = vmatprep.subr.bf16.mxu0 0
      %4750 = vmatpush2.bf16.msra.mxu0 0
      %4751 = vmatprep.subr.bf16.mxu0 0
      %4752 = vmatpush2.bf16.msra.mxu0 0
      %4753 = vmatprep.subr.bf16.mxu0 0
      %4754 = vmatpush2.bf16.msra.mxu0 0
      %4755 = vmatprep.subr.bf16.mxu0 0
      %4756 = vmatpush2.bf16.msra.mxu0 0
      %4757 = vmatprep.subr.bf16.mxu0 0
      %4758 = vmatpush2.bf16.msra.mxu0 0
      %4759 = vmatprep.subr.bf16.mxu0 0
      %4760 = vmatpush2.bf16.msra.mxu0 0
      %4761 = vmatprep.subr.bf16.mxu0 0
      %4762 = vmatpush2.bf16.msra.mxu0 0
      %4763 = vmatprep.subr.bf16.mxu0 0
      %4764 = vmatpush2.bf16.msra.mxu0 0
      %4765 = vmatprep.mubr.bf16.mxu0 0
      %4766 = vmatmul.mubr.bf16.gmra.mxu0 %v3621
      %v4767 = vpop.f32.mrf.mxu0
      %v4768 = vadd.f32 %v3094, %v4767
      %v4769 = vpop.f32.mrf.mxu0
      %v4770 = vadd.f32 %v3094, %v4769
      %v4771 = vpop.f32.mrf.mxu0
      %v4772 = vadd.f32 %v3099, %v4771
      %v4773 = vpop.f32.mrf.mxu0
      %v4774 = vadd.f32 %v3099, %v4773
      %4775 = vmatprep.mubr.bf16.mxu0 0
      %4776 = vmatmul.mubr.bf16.gmra.mxu0 %v3624
      %v4777 = vpop.f32.mrf.mxu0
      %v4778 = vadd.f32 %v3104, %v4777
      %v4779 = vpop.f32.mrf.mxu0
      %v4780 = vadd.f32 %v3104, %v4779
      %v4781 = vpop.f32.mrf.mxu0
      %v4782 = vadd.f32 %v3109, %v4781
      %v4783 = vpop.f32.mrf.mxu0
      %v4784 = vadd.f32 %v3109, %v4783
      %4785 = vmatprep.mubr.bf16.mxu0 0
      %4786 = vmatmul.mubr.bf16.gmra.mxu0 %v3627
      %v4787 = vpop.f32.mrf.mxu0
      %v4788 = vadd.f32 %v3114, %v4787
      %v4789 = vpop.f32.mrf.mxu0
      %v4790 = vadd.f32 %v3114, %v4789
      %v4791 = vpop.f32.mrf.mxu0
      %v4792 = vadd.f32 %v3119, %v4791
      %v4793 = vpop.f32.mrf.mxu0
      %v4794 = vadd.f32 %v3119, %v4793
      %4795 = vmatprep.mubr.bf16.mxu0 0
      %4796 = vmatmul.mubr.bf16.gmra.mxu0 %v3630
      %v4797 = vpop.f32.mrf.mxu0
      %v4798 = vadd.f32 %v3124, %v4797
      %v4799 = vpop.f32.mrf.mxu0
      %v4800 = vadd.f32 %v3124, %v4799
      %v4801 = vpop.f32.mrf.mxu0
      %v4802 = vadd.f32 %v3129, %v4801
      %v4803 = vpop.f32.mrf.mxu0
      %v4804 = vadd.f32 %v3129, %v4803
      %4805 = vmatprep.mubr.bf16.mxu0 0
      %4806 = vmatmul.mubr.bf16.gmra.mxu0 %v3633
      %v4807 = vpop.f32.mrf.mxu0
      %v4808 = vadd.f32 %v3134, %v4807
      %v4809 = vpop.f32.mrf.mxu0
      %v4810 = vadd.f32 %v3134, %v4809
      %v4811 = vpop.f32.mrf.mxu0
      %v4812 = vadd.f32 %v3139, %v4811
      %v4813 = vpop.f32.mrf.mxu0
      %v4814 = vadd.f32 %v3139, %v4813
      %4815 = vmatprep.mubr.bf16.mxu0 0
      %4816 = vmatmul.mubr.bf16.gmra.mxu0 %v3636
      %v4817 = vpop.f32.mrf.mxu0
      %v4818 = vadd.f32 %v3144, %v4817
      %v4819 = vpop.f32.mrf.mxu0
      %v4820 = vadd.f32 %v3144, %v4819
      %v4821 = vpop.f32.mrf.mxu0
      %v4822 = vadd.f32 %v3149, %v4821
      %v4823 = vpop.f32.mrf.mxu0
      %v4824 = vadd.f32 %v3149, %v4823
      %4825 = vmatprep.mubr.bf16.mxu0 0
      %4826 = vmatmul.mubr.bf16.gmra.mxu0 %v3639
      %v4827 = vpop.f32.mrf.mxu0
      %v4828 = vadd.f32 %v3154, %v4827
      %v4829 = vpop.f32.mrf.mxu0
      %v4830 = vadd.f32 %v3154, %v4829
      %v4831 = vpop.f32.mrf.mxu0
      %v4832 = vadd.f32 %v3159, %v4831
      %v4833 = vpop.f32.mrf.mxu0
      %v4834 = vadd.f32 %v3159, %v4833
      %4835 = vmatprep.mubr.bf16.mxu0 0
      %4836 = vmatmul.mubr.bf16.gmra.mxu0 %v3642
      %v4837 = vpop.f32.mrf.mxu0
      %v4838 = vadd.f32 %v3164, %v4837
      %v4839 = vpop.f32.mrf.mxu0
      %v4840 = vadd.f32 %v3164, %v4839
      %v4841 = vpop.f32.mrf.mxu0
      %v4842 = vadd.f32 %v3169, %v4841
      %v4843 = vpop.f32.mrf.mxu0
      %v4844 = vadd.f32 %v3169, %v4843
      %4845 = vmatprep.mubr.bf16.mxu0 0
      %4846 = vmatmul.mubr.bf16.gmra.mxu0 %v3645
      %v4847 = vpop.f32.mrf.mxu0
      %v4848 = vadd.f32 %v3174, %v4847
      %v4849 = vpop.f32.mrf.mxu0
      %v4850 = vadd.f32 %v3174, %v4849
      %v4851 = vpop.f32.mrf.mxu0
      %v4852 = vadd.f32 %v3179, %v4851
      %v4853 = vpop.f32.mrf.mxu0
      %v4854 = vadd.f32 %v3179, %v4853
      %4855 = vmatprep.mubr.bf16.mxu0 0
      %4856 = vmatmul.mubr.bf16.gmra.mxu0 %v3648
      %v4857 = vpop.f32.mrf.mxu0
      %v4858 = vadd.f32 %v3184, %v4857
      %v4859 = vpop.f32.mrf.mxu0
      %v4860 = vadd.f32 %v3184, %v4859
      %v4861 = vpop.f32.mrf.mxu0
      %v4862 = vadd.f32 %v3189, %v4861
      %v4863 = vpop.f32.mrf.mxu0
      %v4864 = vadd.f32 %v3189, %v4863
      %4865 = vmatprep.mubr.bf16.mxu0 0
      %4866 = vmatmul.mubr.bf16.gmra.mxu0 %v3651
      %v4867 = vpop.f32.mrf.mxu0
      %v4868 = vadd.f32 %v3194, %v4867
      %v4869 = vpop.f32.mrf.mxu0
      %v4870 = vadd.f32 %v3194, %v4869
      %v4871 = vpop.f32.mrf.mxu0
      %v4872 = vadd.f32 %v3199, %v4871
      %v4873 = vpop.f32.mrf.mxu0
      %v4874 = vadd.f32 %v3199, %v4873
      %4875 = vmatprep.mubr.bf16.mxu0 0
      %4876 = vmatmul.mubr.bf16.gmra.mxu0 %v3654
      %v4877 = vpop.f32.mrf.mxu0
      %v4878 = vadd.f32 %v3204, %v4877
      %v4879 = vpop.f32.mrf.mxu0
      %v4880 = vadd.f32 %v3204, %v4879
      %v4881 = vpop.f32.mrf.mxu0
      %v4882 = vadd.f32 %v3209, %v4881
      %v4883 = vpop.f32.mrf.mxu0
      %v4884 = vadd.f32 %v3209, %v4883
      %4885 = vmatprep.mubr.bf16.mxu0 0
      %4886 = vmatmul.mubr.bf16.gmra.mxu0 %v3657
      %v4887 = vpop.f32.mrf.mxu0
      %v4888 = vadd.f32 %v3214, %v4887
      %v4889 = vpop.f32.mrf.mxu0
      %v4890 = vadd.f32 %v3214, %v4889
      %v4891 = vpop.f32.mrf.mxu0
      %v4892 = vadd.f32 %v3219, %v4891
      %v4893 = vpop.f32.mrf.mxu0
      %v4894 = vadd.f32 %v3219, %v4893
      %4895 = vmatprep.mubr.bf16.mxu0 0
      %4896 = vmatmul.mubr.bf16.gmra.mxu0 %v3660
      %v4897 = vpop.f32.mrf.mxu0
      %v4898 = vadd.f32 %v3224, %v4897
      %v4899 = vpop.f32.mrf.mxu0
      %v4900 = vadd.f32 %v3224, %v4899
      %v4901 = vpop.f32.mrf.mxu0
      %v4902 = vadd.f32 %v3229, %v4901
      %v4903 = vpop.f32.mrf.mxu0
      %v4904 = vadd.f32 %v3229, %v4903
      %4905 = vmatprep.mubr.bf16.mxu0 0
      %4906 = vmatmul.mubr.bf16.gmra.mxu0 %v3663
      %v4907 = vpop.f32.mrf.mxu0
      %v4908 = vadd.f32 %v3234, %v4907
      %v4909 = vpop.f32.mrf.mxu0
      %v4910 = vadd.f32 %v3234, %v4909
      %v4911 = vpop.f32.mrf.mxu0
      %v4912 = vadd.f32 %v3239, %v4911
      %v4913 = vpop.f32.mrf.mxu0
      %v4914 = vadd.f32 %v3239, %v4913
      %4915 = vmatprep.mubr.bf16.mxu0 0
      %4916 = vmatmul.mubr.bf16.gmra.mxu0 %v3666
      %v4917 = vpop.f32.mrf.mxu0
      %v4918 = vadd.f32 %v3244, %v4917
      %v4919 = vpop.f32.mrf.mxu0
      %v4920 = vadd.f32 %v3244, %v4919
      %v4921 = vpop.f32.mrf.mxu0
      %v4922 = vadd.f32 %v3249, %v4921
      %v4923 = vpop.f32.mrf.mxu0
      %v4924 = vadd.f32 %v3249, %v4923
      %4925 = vdwg.mxu0
      %4926 = vmatprep.subr.bf16.mxu0 0
      %4927 = vmatpush1.bf16.msra.mxu0 0
      %4928 = vmatprep.subr.bf16.mxu0 0
      %4929 = vmatpush1.bf16.msra.mxu0 0
      %4930 = vmatprep.subr.bf16.mxu0 0
      %4931 = vmatpush1.bf16.msra.mxu0 0
      %4932 = vmatprep.subr.bf16.mxu0 0
      %4933 = vmatpush1.bf16.msra.mxu0 0
      %4934 = vmatprep.subr.bf16.mxu0 0
      %4935 = vmatpush1.bf16.msra.mxu0 0
      %4936 = vmatprep.subr.bf16.mxu0 0
      %4937 = vmatpush1.bf16.msra.mxu0 0
      %4938 = vmatprep.subr.bf16.mxu0 %v3712
      %4939 = vmatpush1.bf16.msra.mxu0 %v3709
      %4940 = vmatprep.subr.bf16.mxu0 %v3536
      %4941 = vmatpush1.bf16.msra.mxu0 %v3535
      %4942 = vmatprep.subr.bf16.mxu0 0
      %4943 = vmatpush2.bf16.msra.mxu0 0
      %4944 = vmatprep.subr.bf16.mxu0 0
      %4945 = vmatpush2.bf16.msra.mxu0 0
      %4946 = vmatprep.subr.bf16.mxu0 0
      %4947 = vmatpush2.bf16.msra.mxu0 0
      %4948 = vmatprep.subr.bf16.mxu0 0
      %4949 = vmatpush2.bf16.msra.mxu0 0
      %4950 = vmatprep.subr.bf16.mxu0 0
      %4951 = vmatpush2.bf16.msra.mxu0 0
      %4952 = vmatprep.subr.bf16.mxu0 0
      %4953 = vmatpush2.bf16.msra.mxu0 0
      %4954 = vmatprep.subr.bf16.mxu0 0
      %4955 = vmatpush2.bf16.msra.mxu0 0
      %4956 = vmatprep.subr.bf16.mxu0 0
      %4957 = vmatpush2.bf16.msra.mxu0 0
      %4958 = vmatprep.mubr.bf16.mxu0 0
      %4959 = vmatmul.mubr.bf16.gmra.mxu0 %v3621
      %v4960 = vpop.f32.mrf.mxu0
      %v4961 = vadd.f32 %v3094, %v4960
      %v4962 = vpop.f32.mrf.mxu0
      %v4963 = vadd.f32 %v3094, %v4962
      %v4964 = vpop.f32.mrf.mxu0
      %v4965 = vadd.f32 %v3099, %v4964
      %v4966 = vpop.f32.mrf.mxu0
      %v4967 = vadd.f32 %v3099, %v4966
      %4968 = vmatprep.mubr.bf16.mxu0 0
      %4969 = vmatmul.mubr.bf16.gmra.mxu0 %v3624
      %v4970 = vpop.f32.mrf.mxu0
      %v4971 = vadd.f32 %v3104, %v4970
      %v4972 = vpop.f32.mrf.mxu0
      %v4973 = vadd.f32 %v3104, %v4972
      %v4974 = vpop.f32.mrf.mxu0
      %v4975 = vadd.f32 %v3109, %v4974
      %v4976 = vpop.f32.mrf.mxu0
      %v4977 = vadd.f32 %v3109, %v4976
      %4978 = vmatprep.mubr.bf16.mxu0 0
      %4979 = vmatmul.mubr.bf16.gmra.mxu0 %v3627
      %v4980 = vpop.f32.mrf.mxu0
      %v4981 = vadd.f32 %v3114, %v4980
      %v4982 = vpop.f32.mrf.mxu0
      %v4983 = vadd.f32 %v3114, %v4982
      %v4984 = vpop.f32.mrf.mxu0
      %v4985 = vadd.f32 %v3119, %v4984
      %v4986 = vpop.f32.mrf.mxu0
      %v4987 = vadd.f32 %v3119, %v4986
      %4988 = vmatprep.mubr.bf16.mxu0 0
      %4989 = vmatmul.mubr.bf16.gmra.mxu0 %v3630
      %v4990 = vpop.f32.mrf.mxu0
      %v4991 = vadd.f32 %v3124, %v4990
      %v4992 = vpop.f32.mrf.mxu0
      %v4993 = vadd.f32 %v3124, %v4992
      %v4994 = vpop.f32.mrf.mxu0
      %v4995 = vadd.f32 %v3129, %v4994
      %v4996 = vpop.f32.mrf.mxu0
      %v4997 = vadd.f32 %v3129, %v4996
      %4998 = vmatprep.mubr.bf16.mxu0 0
      %4999 = vmatmul.mubr.bf16.gmra.mxu0 %v3633
      %v5000 = vpop.f32.mrf.mxu0
      %v5001 = vadd.f32 %v3134, %v5000
      %v5002 = vpop.f32.mrf.mxu0
      %v5003 = vadd.f32 %v3134, %v5002
      %v5004 = vpop.f32.mrf.mxu0
      %v5005 = vadd.f32 %v3139, %v5004
      %v5006 = vpop.f32.mrf.mxu0
      %v5007 = vadd.f32 %v3139, %v5006
      %5008 = vmatprep.mubr.bf16.mxu0 0
      %5009 = vmatmul.mubr.bf16.gmra.mxu0 %v3636
      %v5010 = vpop.f32.mrf.mxu0
      %v5011 = vadd.f32 %v3144, %v5010
      %v5012 = vpop.f32.mrf.mxu0
      %v5013 = vadd.f32 %v3144, %v5012
      %v5014 = vpop.f32.mrf.mxu0
      %v5015 = vadd.f32 %v3149, %v5014
      %v5016 = vpop.f32.mrf.mxu0
      %v5017 = vadd.f32 %v3149, %v5016
      %5018 = vmatprep.mubr.bf16.mxu0 0
      %5019 = vmatmul.mubr.bf16.gmra.mxu0 %v3639
      %v5020 = vpop.f32.mrf.mxu0
      %v5021 = vadd.f32 %v3154, %v5020
      %v5022 = vpop.f32.mrf.mxu0
      %v5023 = vadd.f32 %v3154, %v5022
      %v5024 = vpop.f32.mrf.mxu0
      %v5025 = vadd.f32 %v3159, %v5024
      %v5026 = vpop.f32.mrf.mxu0
      %v5027 = vadd.f32 %v3159, %v5026
      %5028 = vmatprep.mubr.bf16.mxu0 0
      %5029 = vmatmul.mubr.bf16.gmra.mxu0 %v3642
      %v5030 = vpop.f32.mrf.mxu0
      %v5031 = vadd.f32 %v3164, %v5030
      %v5032 = vpop.f32.mrf.mxu0
      %v5033 = vadd.f32 %v3164, %v5032
      %v5034 = vpop.f32.mrf.mxu0
      %v5035 = vadd.f32 %v3169, %v5034
      %v5036 = vpop.f32.mrf.mxu0
      %v5037 = vadd.f32 %v3169, %v5036
      %5038 = vmatprep.mubr.bf16.mxu0 0
      %5039 = vmatmul.mubr.bf16.gmra.mxu0 %v3645
      %v5040 = vpop.f32.mrf.mxu0
      %v5041 = vadd.f32 %v3174, %v5040
      %v5042 = vpop.f32.mrf.mxu0
      %v5043 = vadd.f32 %v3174, %v5042
      %v5044 = vpop.f32.mrf.mxu0
      %v5045 = vadd.f32 %v3179, %v5044
      %v5046 = vpop.f32.mrf.mxu0
      %v5047 = vadd.f32 %v3179, %v5046
      %5048 = vmatprep.mubr.bf16.mxu0 0
      %5049 = vmatmul.mubr.bf16.gmra.mxu0 %v3648
      %v5050 = vpop.f32.mrf.mxu0
      %v5051 = vadd.f32 %v3184, %v5050
      %v5052 = vpop.f32.mrf.mxu0
      %v5053 = vadd.f32 %v3184, %v5052
      %v5054 = vpop.f32.mrf.mxu0
      %v5055 = vadd.f32 %v3189, %v5054
      %v5056 = vpop.f32.mrf.mxu0
      %v5057 = vadd.f32 %v3189, %v5056
      %5058 = vmatprep.mubr.bf16.mxu0 0
      %5059 = vmatmul.mubr.bf16.gmra.mxu0 %v3651
      %v5060 = vpop.f32.mrf.mxu0
      %v5061 = vadd.f32 %v3194, %v5060
      %v5062 = vpop.f32.mrf.mxu0
      %v5063 = vadd.f32 %v3194, %v5062
      %v5064 = vpop.f32.mrf.mxu0
      %v5065 = vadd.f32 %v3199, %v5064
      %v5066 = vpop.f32.mrf.mxu0
      %v5067 = vadd.f32 %v3199, %v5066
      %5068 = vmatprep.mubr.bf16.mxu0 0
      %5069 = vmatmul.mubr.bf16.gmra.mxu0 %v3654
      %v5070 = vpop.f32.mrf.mxu0
      %v5071 = vadd.f32 %v3204, %v5070
      %v5072 = vpop.f32.mrf.mxu0
      %v5073 = vadd.f32 %v3204, %v5072
      %v5074 = vpop.f32.mrf.mxu0
      %v5075 = vadd.f32 %v3209, %v5074
      %v5076 = vpop.f32.mrf.mxu0
      %v5077 = vadd.f32 %v3209, %v5076
      %5078 = vmatprep.mubr.bf16.mxu0 0
      %5079 = vmatmul.mubr.bf16.gmra.mxu0 %v3657
      %v5080 = vpop.f32.mrf.mxu0
      %v5081 = vadd.f32 %v3214, %v5080
      %v5082 = vpop.f32.mrf.mxu0
      %v5083 = vadd.f32 %v3214, %v5082
      %v5084 = vpop.f32.mrf.mxu0
      %v5085 = vadd.f32 %v3219, %v5084
      %v5086 = vpop.f32.mrf.mxu0
      %v5087 = vadd.f32 %v3219, %v5086
      %5088 = vmatprep.mubr.bf16.mxu0 0
      %5089 = vmatmul.mubr.bf16.gmra.mxu0 %v3660
      %v5090 = vpop.f32.mrf.mxu0
      %v5091 = vadd.f32 %v3224, %v5090
      %v5092 = vpop.f32.mrf.mxu0
      %v5093 = vadd.f32 %v3224, %v5092
      %v5094 = vpop.f32.mrf.mxu0
      %v5095 = vadd.f32 %v3229, %v5094
      %v5096 = vpop.f32.mrf.mxu0
      %v5097 = vadd.f32 %v3229, %v5096
      %5098 = vmatprep.mubr.bf16.mxu0 0
      %5099 = vmatmul.mubr.bf16.gmra.mxu0 %v3663
      %v5100 = vpop.f32.mrf.mxu0
      %v5101 = vadd.f32 %v3234, %v5100
      %v5102 = vpop.f32.mrf.mxu0
      %v5103 = vadd.f32 %v3234, %v5102
      %v5104 = vpop.f32.mrf.mxu0
      %v5105 = vadd.f32 %v3239, %v5104
      %v5106 = vpop.f32.mrf.mxu0
      %v5107 = vadd.f32 %v3239, %v5106
      %5108 = vmatprep.mubr.bf16.mxu0 0
      %5109 = vmatmul.mubr.bf16.gmra.mxu0 %v3666
      %v5110 = vpop.f32.mrf.mxu0
      %v5111 = vadd.f32 %v3244, %v5110
      %v5112 = vpop.f32.mrf.mxu0
      %v5113 = vadd.f32 %v3244, %v5112
      %v5114 = vpop.f32.mrf.mxu0
      %v5115 = vadd.f32 %v3249, %v5114
      %v5116 = vpop.f32.mrf.mxu0
      %v5117 = vadd.f32 %v3249, %v5116
      %5118 = vdwg.mxu0
      %5119 = vmatprep.subr.bf16.mxu0 0
      %5120 = vmatpush1.bf16.msra.mxu0 0
      %5121 = vmatprep.subr.bf16.mxu0 0
      %5122 = vmatpush1.bf16.msra.mxu0 0
      %5123 = vmatprep.subr.bf16.mxu0 0
      %5124 = vmatpush1.bf16.msra.mxu0 0
      %5125 = vmatprep.subr.bf16.mxu0 0
      %5126 = vmatpush1.bf16.msra.mxu0 0
      %5127 = vmatprep.subr.bf16.mxu0 0
      %5128 = vmatpush1.bf16.msra.mxu0 0
      %5129 = vmatprep.subr.bf16.mxu0 0
      %5130 = vmatpush1.bf16.msra.mxu0 0
      %5131 = vmatprep.subr.bf16.mxu0 %v3718
      %5132 = vmatpush1.bf16.msra.mxu0 %v3715
      %5133 = vmatprep.subr.bf16.mxu0 %v3538
      %5134 = vmatpush1.bf16.msra.mxu0 %v3537
      %5135 = vmatprep.subr.bf16.mxu0 0
      %5136 = vmatpush2.bf16.msra.mxu0 0
      %5137 = vmatprep.subr.bf16.mxu0 0
      %5138 = vmatpush2.bf16.msra.mxu0 0
      %5139 = vmatprep.subr.bf16.mxu0 0
      %5140 = vmatpush2.bf16.msra.mxu0 0
      %5141 = vmatprep.subr.bf16.mxu0 0
      %5142 = vmatpush2.bf16.msra.mxu0 0
      %5143 = vmatprep.subr.bf16.mxu0 0
      %5144 = vmatpush2.bf16.msra.mxu0 0
      %5145 = vmatprep.subr.bf16.mxu0 0
      %5146 = vmatpush2.bf16.msra.mxu0 0
      %5147 = vmatprep.subr.bf16.mxu0 0
      %5148 = vmatpush2.bf16.msra.mxu0 0
      %5149 = vmatprep.subr.bf16.mxu0 0
      %5150 = vmatpush2.bf16.msra.mxu0 0
      %5151 = vmatprep.mubr.bf16.mxu0 0
      %5152 = vmatmul.mubr.bf16.gmra.mxu0 %v3621
      %v5153 = vpop.f32.mrf.mxu0
      %v5154 = vadd.f32 %v3094, %v5153
      %v5155 = vpop.f32.mrf.mxu0
      %v5156 = vadd.f32 %v3094, %v5155
      %v5157 = vpop.f32.mrf.mxu0
      %v5158 = vadd.f32 %v3099, %v5157
      %v5159 = vpop.f32.mrf.mxu0
      %v5160 = vadd.f32 %v3099, %v5159
      %5161 = vmatprep.mubr.bf16.mxu0 0
      %5162 = vmatmul.mubr.bf16.gmra.mxu0 %v3624
      %v5163 = vpop.f32.mrf.mxu0
      %v5164 = vadd.f32 %v3104, %v5163
      %v5165 = vpop.f32.mrf.mxu0
      %v5166 = vadd.f32 %v3104, %v5165
      %v5167 = vpop.f32.mrf.mxu0
      %v5168 = vadd.f32 %v3109, %v5167
      %v5169 = vpop.f32.mrf.mxu0
      %v5170 = vadd.f32 %v3109, %v5169
      %5171 = vmatprep.mubr.bf16.mxu0 0
      %5172 = vmatmul.mubr.bf16.gmra.mxu0 %v3627
      %v5173 = vpop.f32.mrf.mxu0
      %v5174 = vadd.f32 %v3114, %v5173
      %v5175 = vpop.f32.mrf.mxu0
      %v5176 = vadd.f32 %v3114, %v5175
      %v5177 = vpop.f32.mrf.mxu0
      %v5178 = vadd.f32 %v3119, %v5177
      %v5179 = vpop.f32.mrf.mxu0
      %v5180 = vadd.f32 %v3119, %v5179
      %5181 = vmatprep.mubr.bf16.mxu0 0
      %5182 = vmatmul.mubr.bf16.gmra.mxu0 %v3630
      %v5183 = vpop.f32.mrf.mxu0
      %v5184 = vadd.f32 %v3124, %v5183
      %v5185 = vpop.f32.mrf.mxu0
      %v5186 = vadd.f32 %v3124, %v5185
      %v5187 = vpop.f32.mrf.mxu0
      %v5188 = vadd.f32 %v3129, %v5187
      %v5189 = vpop.f32.mrf.mxu0
      %v5190 = vadd.f32 %v3129, %v5189
      %5191 = vmatprep.mubr.bf16.mxu0 0
      %5192 = vmatmul.mubr.bf16.gmra.mxu0 %v3633
      %v5193 = vpop.f32.mrf.mxu0
      %v5194 = vadd.f32 %v3134, %v5193
      %v5195 = vpop.f32.mrf.mxu0
      %v5196 = vadd.f32 %v3134, %v5195
      %v5197 = vpop.f32.mrf.mxu0
      %v5198 = vadd.f32 %v3139, %v5197
      %v5199 = vpop.f32.mrf.mxu0
      %v5200 = vadd.f32 %v3139, %v5199
      %5201 = vmatprep.mubr.bf16.mxu0 0
      %5202 = vmatmul.mubr.bf16.gmra.mxu0 %v3636
      %v5203 = vpop.f32.mrf.mxu0
      %v5204 = vadd.f32 %v3144, %v5203
      %v5205 = vpop.f32.mrf.mxu0
      %v5206 = vadd.f32 %v3144, %v5205
      %v5207 = vpop.f32.mrf.mxu0
      %v5208 = vadd.f32 %v3149, %v5207
      %v5209 = vpop.f32.mrf.mxu0
      %v5210 = vadd.f32 %v3149, %v5209
      %5211 = vmatprep.mubr.bf16.mxu0 0
      %5212 = vmatmul.mubr.bf16.gmra.mxu0 %v3639
      %v5213 = vpop.f32.mrf.mxu0
      %v5214 = vadd.f32 %v3154, %v5213
      %v5215 = vpop.f32.mrf.mxu0
      %v5216 = vadd.f32 %v3154, %v5215
      %v5217 = vpop.f32.mrf.mxu0
      %v5218 = vadd.f32 %v3159, %v5217
      %v5219 = vpop.f32.mrf.mxu0
      %v5220 = vadd.f32 %v3159, %v5219
      %5221 = vmatprep.mubr.bf16.mxu0 0
      %5222 = vmatmul.mubr.bf16.gmra.mxu0 %v3642
      %v5223 = vpop.f32.mrf.mxu0
      %v5224 = vadd.f32 %v3164, %v5223
      %v5225 = vpop.f32.mrf.mxu0
      %v5226 = vadd.f32 %v3164, %v5225
      %v5227 = vpop.f32.mrf.mxu0
      %v5228 = vadd.f32 %v3169, %v5227
      %v5229 = vpop.f32.mrf.mxu0
      %v5230 = vadd.f32 %v3169, %v5229
      %5231 = vmatprep.mubr.bf16.mxu0 0
      %5232 = vmatmul.mubr.bf16.gmra.mxu0 %v3645
      %v5233 = vpop.f32.mrf.mxu0
      %v5234 = vadd.f32 %v3174, %v5233
      %v5235 = vpop.f32.mrf.mxu0
      %v5236 = vadd.f32 %v3174, %v5235
      %v5237 = vpop.f32.mrf.mxu0
      %v5238 = vadd.f32 %v3179, %v5237
      %v5239 = vpop.f32.mrf.mxu0
      %v5240 = vadd.f32 %v3179, %v5239
      %5241 = vmatprep.mubr.bf16.mxu0 0
      %5242 = vmatmul.mubr.bf16.gmra.mxu0 %v3648
      %v5243 = vpop.f32.mrf.mxu0
      %v5244 = vadd.f32 %v3184, %v5243
      %v5245 = vpop.f32.mrf.mxu0
      %v5246 = vadd.f32 %v3184, %v5245
      %v5247 = vpop.f32.mrf.mxu0
      %v5248 = vadd.f32 %v3189, %v5247
      %v5249 = vpop.f32.mrf.mxu0
      %v5250 = vadd.f32 %v3189, %v5249
      %5251 = vmatprep.mubr.bf16.mxu0 0
      %5252 = vmatmul.mubr.bf16.gmra.mxu0 %v3651
      %v5253 = vpop.f32.mrf.mxu0
      %v5254 = vadd.f32 %v3194, %v5253
      %v5255 = vpop.f32.mrf.mxu0
      %v5256 = vadd.f32 %v3194, %v5255
      %v5257 = vpop.f32.mrf.mxu0
      %v5258 = vadd.f32 %v3199, %v5257
      %v5259 = vpop.f32.mrf.mxu0
      %v5260 = vadd.f32 %v3199, %v5259
      %5261 = vmatprep.mubr.bf16.mxu0 0
      %5262 = vmatmul.mubr.bf16.gmra.mxu0 %v3654
      %v5263 = vpop.f32.mrf.mxu0
      %v5264 = vadd.f32 %v3204, %v5263
      %v5265 = vpop.f32.mrf.mxu0
      %v5266 = vadd.f32 %v3204, %v5265
      %v5267 = vpop.f32.mrf.mxu0
      %v5268 = vadd.f32 %v3209, %v5267
      %v5269 = vpop.f32.mrf.mxu0
      %v5270 = vadd.f32 %v3209, %v5269
      %5271 = vmatprep.mubr.bf16.mxu0 0
      %5272 = vmatmul.mubr.bf16.gmra.mxu0 %v3657
      %v5273 = vpop.f32.mrf.mxu0
      %v5274 = vadd.f32 %v3214, %v5273
      %v5275 = vpop.f32.mrf.mxu0
      %v5276 = vadd.f32 %v3214, %v5275
      %v5277 = vpop.f32.mrf.mxu0
      %v5278 = vadd.f32 %v3219, %v5277
      %v5279 = vpop.f32.mrf.mxu0
      %v5280 = vadd.f32 %v3219, %v5279
      %5281 = vmatprep.mubr.bf16.mxu0 0
      %5282 = vmatmul.mubr.bf16.gmra.mxu0 %v3660
      %v5283 = vpop.f32.mrf.mxu0
      %v5284 = vadd.f32 %v3224, %v5283
      %v5285 = vpop.f32.mrf.mxu0
      %v5286 = vadd.f32 %v3224, %v5285
      %v5287 = vpop.f32.mrf.mxu0
      %v5288 = vadd.f32 %v3229, %v5287
      %v5289 = vpop.f32.mrf.mxu0
      %v5290 = vadd.f32 %v3229, %v5289
      %5291 = vmatprep.mubr.bf16.mxu0 0
      %5292 = vmatmul.mubr.bf16.gmra.mxu0 %v3663
      %v5293 = vpop.f32.mrf.mxu0
      %v5294 = vadd.f32 %v3234, %v5293
      %v5295 = vpop.f32.mrf.mxu0
      %v5296 = vadd.f32 %v3234, %v5295
      %v5297 = vpop.f32.mrf.mxu0
      %v5298 = vadd.f32 %v3239, %v5297
      %v5299 = vpop.f32.mrf.mxu0
      %v5300 = vadd.f32 %v3239, %v5299
      %5301 = vmatprep.mubr.bf16.mxu0 0
      %5302 = vmatmul.mubr.bf16.gmra.mxu0 %v3666
      %v5303 = vpop.f32.mrf.mxu0
      %v5304 = vadd.f32 %v3244, %v5303
      %v5305 = vpop.f32.mrf.mxu0
      %v5306 = vadd.f32 %v3244, %v5305
      %v5307 = vpop.f32.mrf.mxu0
      %v5308 = vadd.f32 %v3249, %v5307
      %v5309 = vpop.f32.mrf.mxu0
      %v5310 = vadd.f32 %v3249, %v5309
      %5311 = vdwg.mxu0
      %5312 = vmatprep.subr.bf16.mxu0 0
      %5313 = vmatpush1.bf16.msra.mxu0 0
      %5314 = vmatprep.subr.bf16.mxu0 0
      %5315 = vmatpush1.bf16.msra.mxu0 0
      %5316 = vmatprep.subr.bf16.mxu0 0
      %5317 = vmatpush1.bf16.msra.mxu0 0
      %5318 = vmatprep.subr.bf16.mxu0 0
      %5319 = vmatpush1.bf16.msra.mxu0 0
      %5320 = vmatprep.subr.bf16.mxu0 0
      %5321 = vmatpush1.bf16.msra.mxu0 0
      %5322 = vmatprep.subr.bf16.mxu0 0
      %5323 = vmatpush1.bf16.msra.mxu0 0
      %5324 = vmatprep.subr.bf16.mxu0 %v3724
      %5325 = vmatpush1.bf16.msra.mxu0 %v3721
      %5326 = vmatprep.subr.bf16.mxu0 %v3540
      %5327 = vmatpush1.bf16.msra.mxu0 %v3539
      %5328 = vmatprep.subr.bf16.mxu0 0
      %5329 = vmatpush2.bf16.msra.mxu0 0
      %5330 = vmatprep.subr.bf16.mxu0 0
      %5331 = vmatpush2.bf16.msra.mxu0 0
      %5332 = vmatprep.subr.bf16.mxu0 0
      %5333 = vmatpush2.bf16.msra.mxu0 0
      %5334 = vmatprep.subr.bf16.mxu0 0
      %5335 = vmatpush2.bf16.msra.mxu0 0
      %5336 = vmatprep.subr.bf16.mxu0 0
      %5337 = vmatpush2.bf16.msra.mxu0 0
      %5338 = vmatprep.subr.bf16.mxu0 0
      %5339 = vmatpush2.bf16.msra.mxu0 0
      %5340 = vmatprep.subr.bf16.mxu0 0
      %5341 = vmatpush2.bf16.msra.mxu0 0
      %5342 = vmatprep.subr.bf16.mxu0 0
      %5343 = vmatpush2.bf16.msra.mxu0 0
      %5344 = vmatprep.mubr.bf16.mxu0 0
      %5345 = vmatmul.mubr.bf16.gmra.mxu0 %v3621
      %v5346 = vpop.f32.mrf.mxu0
      %v5347 = vadd.f32 %v3094, %v5346
      %v5348 = vpop.f32.mrf.mxu0
      %v5349 = vadd.f32 %v3094, %v5348
      %v5350 = vpop.f32.mrf.mxu0
      %v5351 = vadd.f32 %v3099, %v5350
      %v5352 = vpop.f32.mrf.mxu0
      %v5353 = vadd.f32 %v3099, %v5352
      %5354 = vmatprep.mubr.bf16.mxu0 0
      %5355 = vmatmul.mubr.bf16.gmra.mxu0 %v3624
      %v5356 = vpop.f32.mrf.mxu0
      %v5357 = vadd.f32 %v3104, %v5356
      %v5358 = vpop.f32.mrf.mxu0
      %v5359 = vadd.f32 %v3104, %v5358
      %v5360 = vpop.f32.mrf.mxu0
      %v5361 = vadd.f32 %v3109, %v5360
      %v5362 = vpop.f32.mrf.mxu0
      %v5363 = vadd.f32 %v3109, %v5362
      %5364 = vmatprep.mubr.bf16.mxu0 0
      %5365 = vmatmul.mubr.bf16.gmra.mxu0 %v3627
      %v5366 = vpop.f32.mrf.mxu0
      %v5367 = vadd.f32 %v3114, %v5366
      %v5368 = vpop.f32.mrf.mxu0
      %v5369 = vadd.f32 %v3114, %v5368
      %v5370 = vpop.f32.mrf.mxu0
      %v5371 = vadd.f32 %v3119, %v5370
      %v5372 = vpop.f32.mrf.mxu0
      %v5373 = vadd.f32 %v3119, %v5372
      %5374 = vmatprep.mubr.bf16.mxu0 0
      %5375 = vmatmul.mubr.bf16.gmra.mxu0 %v3630
      %v5376 = vpop.f32.mrf.mxu0
      %v5377 = vadd.f32 %v3124, %v5376
      %v5378 = vpop.f32.mrf.mxu0
      %v5379 = vadd.f32 %v3124, %v5378
      %v5380 = vpop.f32.mrf.mxu0
      %v5381 = vadd.f32 %v3129, %v5380
      %v5382 = vpop.f32.mrf.mxu0
      %v5383 = vadd.f32 %v3129, %v5382
      %5384 = vmatprep.mubr.bf16.mxu0 0
      %5385 = vmatmul.mubr.bf16.gmra.mxu0 %v3633
      %v5386 = vpop.f32.mrf.mxu0
      %v5387 = vadd.f32 %v3134, %v5386
      %v5388 = vpop.f32.mrf.mxu0
      %v5389 = vadd.f32 %v3134, %v5388
      %v5390 = vpop.f32.mrf.mxu0
      %v5391 = vadd.f32 %v3139, %v5390
      %v5392 = vpop.f32.mrf.mxu0
      %v5393 = vadd.f32 %v3139, %v5392
      %5394 = vmatprep.mubr.bf16.mxu0 0
      %5395 = vmatmul.mubr.bf16.gmra.mxu0 %v3636
      %v5396 = vpop.f32.mrf.mxu0
      %v5397 = vadd.f32 %v3144, %v5396
      %v5398 = vpop.f32.mrf.mxu0
      %v5399 = vadd.f32 %v3144, %v5398
      %v5400 = vpop.f32.mrf.mxu0
      %v5401 = vadd.f32 %v3149, %v5400
      %v5402 = vpop.f32.mrf.mxu0
      %v5403 = vadd.f32 %v3149, %v5402
      %5404 = vmatprep.mubr.bf16.mxu0 0
      %5405 = vmatmul.mubr.bf16.gmra.mxu0 %v3639
      %v5406 = vpop.f32.mrf.mxu0
      %v5407 = vadd.f32 %v3154, %v5406
      %v5408 = vpop.f32.mrf.mxu0
      %v5409 = vadd.f32 %v3154, %v5408
      %v5410 = vpop.f32.mrf.mxu0
      %v5411 = vadd.f32 %v3159, %v5410
      %v5412 = vpop.f32.mrf.mxu0
      %v5413 = vadd.f32 %v3159, %v5412
      %5414 = vmatprep.mubr.bf16.mxu0 0
      %5415 = vmatmul.mubr.bf16.gmra.mxu0 %v3642
      %v5416 = vpop.f32.mrf.mxu0
      %v5417 = vadd.f32 %v3164, %v5416
      %v5418 = vpop.f32.mrf.mxu0
      %v5419 = vadd.f32 %v3164, %v5418
      %v5420 = vpop.f32.mrf.mxu0
      %v5421 = vadd.f32 %v3169, %v5420
      %v5422 = vpop.f32.mrf.mxu0
      %v5423 = vadd.f32 %v3169, %v5422
      %5424 = vmatprep.mubr.bf16.mxu0 0
      %5425 = vmatmul.mubr.bf16.gmra.mxu0 %v3645
      %v5426 = vpop.f32.mrf.mxu0
      %v5427 = vadd.f32 %v3174, %v5426
      %v5428 = vpop.f32.mrf.mxu0
      %v5429 = vadd.f32 %v3174, %v5428
      %v5430 = vpop.f32.mrf.mxu0
      %v5431 = vadd.f32 %v3179, %v5430
      %v5432 = vpop.f32.mrf.mxu0
      %v5433 = vadd.f32 %v3179, %v5432
      %5434 = vmatprep.mubr.bf16.mxu0 0
      %5435 = vmatmul.mubr.bf16.gmra.mxu0 %v3648
      %v5436 = vpop.f32.mrf.mxu0
      %v5437 = vadd.f32 %v3184, %v5436
      %v5438 = vpop.f32.mrf.mxu0
      %v5439 = vadd.f32 %v3184, %v5438
      %v5440 = vpop.f32.mrf.mxu0
      %v5441 = vadd.f32 %v3189, %v5440
      %v5442 = vpop.f32.mrf.mxu0
      %v5443 = vadd.f32 %v3189, %v5442
      %5444 = vmatprep.mubr.bf16.mxu0 0
      %5445 = vmatmul.mubr.bf16.gmra.mxu0 %v3651
      %v5446 = vpop.f32.mrf.mxu0
      %v5447 = vadd.f32 %v3194, %v5446
      %v5448 = vpop.f32.mrf.mxu0
      %v5449 = vadd.f32 %v3194, %v5448
      %v5450 = vpop.f32.mrf.mxu0
      %v5451 = vadd.f32 %v3199, %v5450
      %v5452 = vpop.f32.mrf.mxu0
      %v5453 = vadd.f32 %v3199, %v5452
      %5454 = vmatprep.mubr.bf16.mxu0 0
      %5455 = vmatmul.mubr.bf16.gmra.mxu0 %v3654
      %v5456 = vpop.f32.mrf.mxu0
      %v5457 = vadd.f32 %v3204, %v5456
      %v5458 = vpop.f32.mrf.mxu0
      %v5459 = vadd.f32 %v3204, %v5458
      %v5460 = vpop.f32.mrf.mxu0
      %v5461 = vadd.f32 %v3209, %v5460
      %v5462 = vpop.f32.mrf.mxu0
      %v5463 = vadd.f32 %v3209, %v5462
      %5464 = vmatprep.mubr.bf16.mxu0 0
      %5465 = vmatmul.mubr.bf16.gmra.mxu0 %v3657
      %v5466 = vpop.f32.mrf.mxu0
      %v5467 = vadd.f32 %v3214, %v5466
      %v5468 = vpop.f32.mrf.mxu0
      %v5469 = vadd.f32 %v3214, %v5468
      %v5470 = vpop.f32.mrf.mxu0
      %v5471 = vadd.f32 %v3219, %v5470
      %v5472 = vpop.f32.mrf.mxu0
      %v5473 = vadd.f32 %v3219, %v5472
      %5474 = vmatprep.mubr.bf16.mxu0 0
      %5475 = vmatmul.mubr.bf16.gmra.mxu0 %v3660
      %v5476 = vpop.f32.mrf.mxu0
      %v5477 = vadd.f32 %v3224, %v5476
      %v5478 = vpop.f32.mrf.mxu0
      %v5479 = vadd.f32 %v3224, %v5478
      %v5480 = vpop.f32.mrf.mxu0
      %v5481 = vadd.f32 %v3229, %v5480
      %v5482 = vpop.f32.mrf.mxu0
      %v5483 = vadd.f32 %v3229, %v5482
      %5484 = vmatprep.mubr.bf16.mxu0 0
      %5485 = vmatmul.mubr.bf16.gmra.mxu0 %v3663
      %v5486 = vpop.f32.mrf.mxu0
      %v5487 = vadd.f32 %v3234, %v5486
      %v5488 = vpop.f32.mrf.mxu0
      %v5489 = vadd.f32 %v3234, %v5488
      %v5490 = vpop.f32.mrf.mxu0
      %v5491 = vadd.f32 %v3239, %v5490
      %v5492 = vpop.f32.mrf.mxu0
      %v5493 = vadd.f32 %v3239, %v5492
      %5494 = vmatprep.mubr.bf16.mxu0 0
      %5495 = vmatmul.mubr.bf16.gmra.mxu0 %v3666
      %v5496 = vpop.f32.mrf.mxu0
      %v5497 = vadd.f32 %v3244, %v5496
      %v5498 = vpop.f32.mrf.mxu0
      %v5499 = vadd.f32 %v3244, %v5498
      %v5500 = vpop.f32.mrf.mxu0
      %v5501 = vadd.f32 %v3249, %v5500
      %v5502 = vpop.f32.mrf.mxu0
      %v5503 = vadd.f32 %v3249, %v5502
      %5504 = vdwg.mxu0
      %5505 = vmatprep.subr.bf16.mxu0 0
      %5506 = vmatpush1.bf16.msra.mxu0 0
      %5507 = vmatprep.subr.bf16.mxu0 0
      %5508 = vmatpush1.bf16.msra.mxu0 0
      %5509 = vmatprep.subr.bf16.mxu0 0
      %5510 = vmatpush1.bf16.msra.mxu0 0
      %5511 = vmatprep.subr.bf16.mxu0 0
      %5512 = vmatpush1.bf16.msra.mxu0 0
      %5513 = vmatprep.subr.bf16.mxu0 0
      %5514 = vmatpush1.bf16.msra.mxu0 0
      %5515 = vmatprep.subr.bf16.mxu0 0
      %5516 = vmatpush1.bf16.msra.mxu0 0
      %5517 = vmatprep.subr.bf16.mxu0 %v3730
      %5518 = vmatpush1.bf16.msra.mxu0 %v3727
      %5519 = vmatprep.subr.bf16.mxu0 %v3542
      %5520 = vmatpush1.bf16.msra.mxu0 %v3541
      %5521 = vmatprep.subr.bf16.mxu0 0
      %5522 = vmatpush2.bf16.msra.mxu0 0
      %5523 = vmatprep.subr.bf16.mxu0 0
      %5524 = vmatpush2.bf16.msra.mxu0 0
      %5525 = vmatprep.subr.bf16.mxu0 0
      %5526 = vmatpush2.bf16.msra.mxu0 0
      %5527 = vmatprep.subr.bf16.mxu0 0
      %5528 = vmatpush2.bf16.msra.mxu0 0
      %5529 = vmatprep.subr.bf16.mxu0 0
      %5530 = vmatpush2.bf16.msra.mxu0 0
      %5531 = vmatprep.subr.bf16.mxu0 0
      %5532 = vmatpush2.bf16.msra.mxu0 0
      %5533 = vmatprep.subr.bf16.mxu0 0
      %5534 = vmatpush2.bf16.msra.mxu0 0
      %5535 = vmatprep.subr.bf16.mxu0 0
      %5536 = vmatpush2.bf16.msra.mxu0 0
      %5537 = vmatprep.mubr.bf16.mxu0 0
      %5538 = vmatmul.mubr.bf16.gmra.mxu0 %v3621
      %v5539 = vpop.f32.mrf.mxu0
      %v5540 = vadd.f32 %v3094, %v5539
      %v5541 = vpop.f32.mrf.mxu0
      %v5542 = vadd.f32 %v3094, %v5541
      %v5543 = vpop.f32.mrf.mxu0
      %v5544 = vadd.f32 %v3099, %v5543
      %v5545 = vpop.f32.mrf.mxu0
      %v5546 = vadd.f32 %v3099, %v5545
      %5547 = vmatprep.mubr.bf16.mxu0 0
      %5548 = vmatmul.mubr.bf16.gmra.mxu0 %v3624
      %v5549 = vpop.f32.mrf.mxu0
      %v5550 = vadd.f32 %v3104, %v5549
      %v5551 = vpop.f32.mrf.mxu0
      %v5552 = vadd.f32 %v3104, %v5551
      %v5553 = vpop.f32.mrf.mxu0
      %v5554 = vadd.f32 %v3109, %v5553
      %v5555 = vpop.f32.mrf.mxu0
      %v5556 = vadd.f32 %v3109, %v5555
      %5557 = vmatprep.mubr.bf16.mxu0 0
      %5558 = vmatmul.mubr.bf16.gmra.mxu0 %v3627
      %v5559 = vpop.f32.mrf.mxu0
      %v5560 = vadd.f32 %v3114, %v5559
      %v5561 = vpop.f32.mrf.mxu0
      %v5562 = vadd.f32 %v3114, %v5561
      %v5563 = vpop.f32.mrf.mxu0
      %v5564 = vadd.f32 %v3119, %v5563
      %v5565 = vpop.f32.mrf.mxu0
      %v5566 = vadd.f32 %v3119, %v5565
      %5567 = vmatprep.mubr.bf16.mxu0 0
      %5568 = vmatmul.mubr.bf16.gmra.mxu0 %v3630
      %v5569 = vpop.f32.mrf.mxu0
      %v5570 = vadd.f32 %v3124, %v5569
      %v5571 = vpop.f32.mrf.mxu0
      %v5572 = vadd.f32 %v3124, %v5571
      %v5573 = vpop.f32.mrf.mxu0
      %v5574 = vadd.f32 %v3129, %v5573
      %v5575 = vpop.f32.mrf.mxu0
      %v5576 = vadd.f32 %v3129, %v5575
      %5577 = vmatprep.mubr.bf16.mxu0 0
      %5578 = vmatmul.mubr.bf16.gmra.mxu0 %v3633
      %v5579 = vpop.f32.mrf.mxu0
      %v5580 = vadd.f32 %v3134, %v5579
      %v5581 = vpop.f32.mrf.mxu0
      %v5582 = vadd.f32 %v3134, %v5581
      %v5583 = vpop.f32.mrf.mxu0
      %v5584 = vadd.f32 %v3139, %v5583
      %v5585 = vpop.f32.mrf.mxu0
      %v5586 = vadd.f32 %v3139, %v5585
      %5587 = vmatprep.mubr.bf16.mxu0 0
      %5588 = vmatmul.mubr.bf16.gmra.mxu0 %v3636
      %v5589 = vpop.f32.mrf.mxu0
      %v5590 = vadd.f32 %v3144, %v5589
      %v5591 = vpop.f32.mrf.mxu0
      %v5592 = vadd.f32 %v3144, %v5591
      %v5593 = vpop.f32.mrf.mxu0
      %v5594 = vadd.f32 %v3149, %v5593
      %v5595 = vpop.f32.mrf.mxu0
      %v5596 = vadd.f32 %v3149, %v5595
      %5597 = vmatprep.mubr.bf16.mxu0 0
      %5598 = vmatmul.mubr.bf16.gmra.mxu0 %v3639
      %v5599 = vpop.f32.mrf.mxu0
      %v5600 = vadd.f32 %v3154, %v5599
      %v5601 = vpop.f32.mrf.mxu0
      %v5602 = vadd.f32 %v3154, %v5601
      %v5603 = vpop.f32.mrf.mxu0
      %v5604 = vadd.f32 %v3159, %v5603
      %v5605 = vpop.f32.mrf.mxu0
      %v5606 = vadd.f32 %v3159, %v5605
      %5607 = vmatprep.mubr.bf16.mxu0 0
      %5608 = vmatmul.mubr.bf16.gmra.mxu0 %v3642
      %v5609 = vpop.f32.mrf.mxu0
      %v5610 = vadd.f32 %v3164, %v5609
      %v5611 = vpop.f32.mrf.mxu0
      %v5612 = vadd.f32 %v3164, %v5611
      %v5613 = vpop.f32.mrf.mxu0
      %v5614 = vadd.f32 %v3169, %v5613
      %v5615 = vpop.f32.mrf.mxu0
      %v5616 = vadd.f32 %v3169, %v5615
      %5617 = vmatprep.mubr.bf16.mxu0 0
      %5618 = vmatmul.mubr.bf16.gmra.mxu0 %v3645
      %v5619 = vpop.f32.mrf.mxu0
      %v5620 = vadd.f32 %v3174, %v5619
      %v5621 = vpop.f32.mrf.mxu0
      %v5622 = vadd.f32 %v3174, %v5621
      %v5623 = vpop.f32.mrf.mxu0
      %v5624 = vadd.f32 %v3179, %v5623
      %v5625 = vpop.f32.mrf.mxu0
      %v5626 = vadd.f32 %v3179, %v5625
      %5627 = vmatprep.mubr.bf16.mxu0 0
      %5628 = vmatmul.mubr.bf16.gmra.mxu0 %v3648
      %v5629 = vpop.f32.mrf.mxu0
      %v5630 = vadd.f32 %v3184, %v5629
      %v5631 = vpop.f32.mrf.mxu0
      %v5632 = vadd.f32 %v3184, %v5631
      %v5633 = vpop.f32.mrf.mxu0
      %v5634 = vadd.f32 %v3189, %v5633
      %v5635 = vpop.f32.mrf.mxu0
      %v5636 = vadd.f32 %v3189, %v5635
      %5637 = vmatprep.mubr.bf16.mxu0 0
      %5638 = vmatmul.mubr.bf16.gmra.mxu0 %v3651
      %v5639 = vpop.f32.mrf.mxu0
      %v5640 = vadd.f32 %v3194, %v5639
      %v5641 = vpop.f32.mrf.mxu0
      %v5642 = vadd.f32 %v3194, %v5641
      %v5643 = vpop.f32.mrf.mxu0
      %v5644 = vadd.f32 %v3199, %v5643
      %v5645 = vpop.f32.mrf.mxu0
      %v5646 = vadd.f32 %v3199, %v5645
      %5647 = vmatprep.mubr.bf16.mxu0 0
      %5648 = vmatmul.mubr.bf16.gmra.mxu0 %v3654
      %v5649 = vpop.f32.mrf.mxu0
      %v5650 = vadd.f32 %v3204, %v5649
      %v5651 = vpop.f32.mrf.mxu0
      %v5652 = vadd.f32 %v3204, %v5651
      %v5653 = vpop.f32.mrf.mxu0
      %v5654 = vadd.f32 %v3209, %v5653
      %v5655 = vpop.f32.mrf.mxu0
      %v5656 = vadd.f32 %v3209, %v5655
      %5657 = vmatprep.mubr.bf16.mxu0 0
      %5658 = vmatmul.mubr.bf16.gmra.mxu0 %v3657
      %v5659 = vpop.f32.mrf.mxu0
      %v5660 = vadd.f32 %v3214, %v5659
      %v5661 = vpop.f32.mrf.mxu0
      %v5662 = vadd.f32 %v3214, %v5661
      %v5663 = vpop.f32.mrf.mxu0
      %v5664 = vadd.f32 %v3219, %v5663
      %v5665 = vpop.f32.mrf.mxu0
      %v5666 = vadd.f32 %v3219, %v5665
      %5667 = vmatprep.mubr.bf16.mxu0 0
      %5668 = vmatmul.mubr.bf16.gmra.mxu0 %v3660
      %v5669 = vpop.f32.mrf.mxu0
      %v5670 = vadd.f32 %v3224, %v5669
      %v5671 = vpop.f32.mrf.mxu0
      %v5672 = vadd.f32 %v3224, %v5671
      %v5673 = vpop.f32.mrf.mxu0
      %v5674 = vadd.f32 %v3229, %v5673
      %v5675 = vpop.f32.mrf.mxu0
      %v5676 = vadd.f32 %v3229, %v5675
      %5677 = vmatprep.mubr.bf16.mxu0 0
      %5678 = vmatmul.mubr.bf16.gmra.mxu0 %v3663
      %v5679 = vpop.f32.mrf.mxu0
      %v5680 = vadd.f32 %v3234, %v5679
      %v5681 = vpop.f32.mrf.mxu0
      %v5682 = vadd.f32 %v3234, %v5681
      %v5683 = vpop.f32.mrf.mxu0
      %v5684 = vadd.f32 %v3239, %v5683
      %v5685 = vpop.f32.mrf.mxu0
      %v5686 = vadd.f32 %v3239, %v5685
      %5687 = vmatprep.mubr.bf16.mxu0 0
      %5688 = vmatmul.mubr.bf16.gmra.mxu0 %v3666
      %v5689 = vpop.f32.mrf.mxu0
      %v5690 = vadd.f32 %v3244, %v5689
      %v5691 = vpop.f32.mrf.mxu0
      %v5692 = vadd.f32 %v3244, %v5691
      %v5693 = vpop.f32.mrf.mxu0
      %v5694 = vadd.f32 %v3249, %v5693
      %v5695 = vpop.f32.mrf.mxu0
      %v5696 = vadd.f32 %v3249, %v5695
      %5697 = vdwg.mxu0
      %5698 = vmatprep.subr.bf16.mxu0 0
      %5699 = vmatpush1.bf16.msra.mxu0 0
      %5700 = vmatprep.subr.bf16.mxu0 0
      %5701 = vmatpush1.bf16.msra.mxu0 0
      %5702 = vmatprep.subr.bf16.mxu0 0
      %5703 = vmatpush1.bf16.msra.mxu0 0
      %5704 = vmatprep.subr.bf16.mxu0 0
      %5705 = vmatpush1.bf16.msra.mxu0 0
      %5706 = vmatprep.subr.bf16.mxu0 0
      %5707 = vmatpush1.bf16.msra.mxu0 0
      %5708 = vmatprep.subr.bf16.mxu0 0
      %5709 = vmatpush1.bf16.msra.mxu0 0
      %5710 = vmatprep.subr.bf16.mxu0 %v3736
      %5711 = vmatpush1.bf16.msra.mxu0 %v3733
      %5712 = vmatprep.subr.bf16.mxu0 %v3544
      %5713 = vmatpush1.bf16.msra.mxu0 %v3543
      %5714 = vmatprep.subr.bf16.mxu0 0
      %5715 = vmatpush2.bf16.msra.mxu0 0
      %5716 = vmatprep.subr.bf16.mxu0 0
      %5717 = vmatpush2.bf16.msra.mxu0 0
      %5718 = vmatprep.subr.bf16.mxu0 0
      %5719 = vmatpush2.bf16.msra.mxu0 0
      %5720 = vmatprep.subr.bf16.mxu0 0
      %5721 = vmatpush2.bf16.msra.mxu0 0
      %5722 = vmatprep.subr.bf16.mxu0 0
      %5723 = vmatpush2.bf16.msra.mxu0 0
      %5724 = vmatprep.subr.bf16.mxu0 0
      %5725 = vmatpush2.bf16.msra.mxu0 0
      %5726 = vmatprep.subr.bf16.mxu0 0
      %5727 = vmatpush2.bf16.msra.mxu0 0
      %5728 = vmatprep.subr.bf16.mxu0 0
      %5729 = vmatpush2.bf16.msra.mxu0 0
      %5730 = vmatprep.mubr.bf16.mxu0 0
      %5731 = vmatmul.mubr.bf16.gmra.mxu0 %v3621
      %v5732 = vpop.f32.mrf.mxu0
      %v5733 = vadd.f32 %v3094, %v5732
      %v5734 = vpop.f32.mrf.mxu0
      %v5735 = vadd.f32 %v3094, %v5734
      %v5736 = vpop.f32.mrf.mxu0
      %v5737 = vadd.f32 %v3099, %v5736
      %v5738 = vpop.f32.mrf.mxu0
      %v5739 = vadd.f32 %v3099, %v5738
      %5740 = vmatprep.mubr.bf16.mxu0 0
      %5741 = vmatmul.mubr.bf16.gmra.mxu0 %v3624
      %v5742 = vpop.f32.mrf.mxu0
      %v5743 = vadd.f32 %v3104, %v5742
      %v5744 = vpop.f32.mrf.mxu0
      %v5745 = vadd.f32 %v3104, %v5744
      %v5746 = vpop.f32.mrf.mxu0
      %v5747 = vadd.f32 %v3109, %v5746
      %v5748 = vpop.f32.mrf.mxu0
      %v5749 = vadd.f32 %v3109, %v5748
      %5750 = vmatprep.mubr.bf16.mxu0 0
      %5751 = vmatmul.mubr.bf16.gmra.mxu0 %v3627
      %v5752 = vpop.f32.mrf.mxu0
      %v5753 = vadd.f32 %v3114, %v5752
      %v5754 = vpop.f32.mrf.mxu0
      %v5755 = vadd.f32 %v3114, %v5754
      %v5756 = vpop.f32.mrf.mxu0
      %v5757 = vadd.f32 %v3119, %v5756
      %v5758 = vpop.f32.mrf.mxu0
      %v5759 = vadd.f32 %v3119, %v5758
      %5760 = vmatprep.mubr.bf16.mxu0 0
      %5761 = vmatmul.mubr.bf16.gmra.mxu0 %v3630
      %v5762 = vpop.f32.mrf.mxu0
      %v5763 = vadd.f32 %v3124, %v5762
      %v5764 = vpop.f32.mrf.mxu0
      %v5765 = vadd.f32 %v3124, %v5764
      %v5766 = vpop.f32.mrf.mxu0
      %v5767 = vadd.f32 %v3129, %v5766
      %v5768 = vpop.f32.mrf.mxu0
      %v5769 = vadd.f32 %v3129, %v5768
      %5770 = vmatprep.mubr.bf16.mxu0 0
      %5771 = vmatmul.mubr.bf16.gmra.mxu0 %v3633
      %v5772 = vpop.f32.mrf.mxu0
      %v5773 = vadd.f32 %v3134, %v5772
      %v5774 = vpop.f32.mrf.mxu0
      %v5775 = vadd.f32 %v3134, %v5774
      %v5776 = vpop.f32.mrf.mxu0
      %v5777 = vadd.f32 %v3139, %v5776
      %v5778 = vpop.f32.mrf.mxu0
      %v5779 = vadd.f32 %v3139, %v5778
      %5780 = vmatprep.mubr.bf16.mxu0 0
      %5781 = vmatmul.mubr.bf16.gmra.mxu0 %v3636
      %v5782 = vpop.f32.mrf.mxu0
      %v5783 = vadd.f32 %v3144, %v5782
      %v5784 = vpop.f32.mrf.mxu0
      %v5785 = vadd.f32 %v3144, %v5784
      %v5786 = vpop.f32.mrf.mxu0
      %v5787 = vadd.f32 %v3149, %v5786
      %v5788 = vpop.f32.mrf.mxu0
      %v5789 = vadd.f32 %v3149, %v5788
      %5790 = vmatprep.mubr.bf16.mxu0 0
      %5791 = vmatmul.mubr.bf16.gmra.mxu0 %v3639
      %v5792 = vpop.f32.mrf.mxu0
      %v5793 = vadd.f32 %v3154, %v5792
      %v5794 = vpop.f32.mrf.mxu0
      %v5795 = vadd.f32 %v3154, %v5794
      %v5796 = vpop.f32.mrf.mxu0
      %v5797 = vadd.f32 %v3159, %v5796
      %v5798 = vpop.f32.mrf.mxu0
      %v5799 = vadd.f32 %v3159, %v5798
      %5800 = vmatprep.mubr.bf16.mxu0 0
      %5801 = vmatmul.mubr.bf16.gmra.mxu0 %v3642
      %v5802 = vpop.f32.mrf.mxu0
      %v5803 = vadd.f32 %v3164, %v5802
      %v5804 = vpop.f32.mrf.mxu0
      %v5805 = vadd.f32 %v3164, %v5804
      %v5806 = vpop.f32.mrf.mxu0
      %v5807 = vadd.f32 %v3169, %v5806
      %v5808 = vpop.f32.mrf.mxu0
      %v5809 = vadd.f32 %v3169, %v5808
      %5810 = vmatprep.mubr.bf16.mxu0 0
      %5811 = vmatmul.mubr.bf16.gmra.mxu0 %v3645
      %v5812 = vpop.f32.mrf.mxu0
      %v5813 = vadd.f32 %v3174, %v5812
      %v5814 = vpop.f32.mrf.mxu0
      %v5815 = vadd.f32 %v3174, %v5814
      %v5816 = vpop.f32.mrf.mxu0
      %v5817 = vadd.f32 %v3179, %v5816
      %v5818 = vpop.f32.mrf.mxu0
      %v5819 = vadd.f32 %v3179, %v5818
      %5820 = vmatprep.mubr.bf16.mxu0 0
      %5821 = vmatmul.mubr.bf16.gmra.mxu0 %v3648
      %v5822 = vpop.f32.mrf.mxu0
      %v5823 = vadd.f32 %v3184, %v5822
      %v5824 = vpop.f32.mrf.mxu0
      %v5825 = vadd.f32 %v3184, %v5824
      %v5826 = vpop.f32.mrf.mxu0
      %v5827 = vadd.f32 %v3189, %v5826
      %v5828 = vpop.f32.mrf.mxu0
      %v5829 = vadd.f32 %v3189, %v5828
      %5830 = vmatprep.mubr.bf16.mxu0 0
      %5831 = vmatmul.mubr.bf16.gmra.mxu0 %v3651
      %v5832 = vpop.f32.mrf.mxu0
      %v5833 = vadd.f32 %v3194, %v5832
      %v5834 = vpop.f32.mrf.mxu0
      %v5835 = vadd.f32 %v3194, %v5834
      %v5836 = vpop.f32.mrf.mxu0
      %v5837 = vadd.f32 %v3199, %v5836
      %v5838 = vpop.f32.mrf.mxu0
      %v5839 = vadd.f32 %v3199, %v5838
      %5840 = vmatprep.mubr.bf16.mxu0 0
      %5841 = vmatmul.mubr.bf16.gmra.mxu0 %v3654
      %v5842 = vpop.f32.mrf.mxu0
      %v5843 = vadd.f32 %v3204, %v5842
      %v5844 = vpop.f32.mrf.mxu0
      %v5845 = vadd.f32 %v3204, %v5844
      %v5846 = vpop.f32.mrf.mxu0
      %v5847 = vadd.f32 %v3209, %v5846
      %v5848 = vpop.f32.mrf.mxu0
      %v5849 = vadd.f32 %v3209, %v5848
      %5850 = vmatprep.mubr.bf16.mxu0 0
      %5851 = vmatmul.mubr.bf16.gmra.mxu0 %v3657
      %v5852 = vpop.f32.mrf.mxu0
      %v5853 = vadd.f32 %v3214, %v5852
      %v5854 = vpop.f32.mrf.mxu0
      %v5855 = vadd.f32 %v3214, %v5854
      %v5856 = vpop.f32.mrf.mxu0
      %v5857 = vadd.f32 %v3219, %v5856
      %v5858 = vpop.f32.mrf.mxu0
      %v5859 = vadd.f32 %v3219, %v5858
      %5860 = vmatprep.mubr.bf16.mxu0 0
      %5861 = vmatmul.mubr.bf16.gmra.mxu0 %v3660
      %v5862 = vpop.f32.mrf.mxu0
      %v5863 = vadd.f32 %v3224, %v5862
      %v5864 = vpop.f32.mrf.mxu0
      %v5865 = vadd.f32 %v3224, %v5864
      %v5866 = vpop.f32.mrf.mxu0
      %v5867 = vadd.f32 %v3229, %v5866
      %v5868 = vpop.f32.mrf.mxu0
      %v5869 = vadd.f32 %v3229, %v5868
      %5870 = vmatprep.mubr.bf16.mxu0 0
      %5871 = vmatmul.mubr.bf16.gmra.mxu0 %v3663
      %v5872 = vpop.f32.mrf.mxu0
      %v5873 = vadd.f32 %v3234, %v5872
      %v5874 = vpop.f32.mrf.mxu0
      %v5875 = vadd.f32 %v3234, %v5874
      %v5876 = vpop.f32.mrf.mxu0
      %v5877 = vadd.f32 %v3239, %v5876
      %v5878 = vpop.f32.mrf.mxu0
      %v5879 = vadd.f32 %v3239, %v5878
      %5880 = vmatprep.mubr.bf16.mxu0 0
      %5881 = vmatmul.mubr.bf16.gmra.mxu0 %v3666
      %v5882 = vpop.f32.mrf.mxu0
      %v5883 = vadd.f32 %v3244, %v5882
      %v5884 = vpop.f32.mrf.mxu0
      %v5885 = vadd.f32 %v3244, %v5884
      %v5886 = vpop.f32.mrf.mxu0
      %v5887 = vadd.f32 %v3249, %v5886
      %v5888 = vpop.f32.mrf.mxu0
      %v5889 = vadd.f32 %v3249, %v5888
      %5890 = vdwg.mxu0
      %5891 = vmatprep.subr.bf16.mxu0 0
      %5892 = vmatpush1.bf16.msra.mxu0 0
      %5893 = vmatprep.subr.bf16.mxu0 0
      %5894 = vmatpush1.bf16.msra.mxu0 0
      %5895 = vmatprep.subr.bf16.mxu0 0
      %5896 = vmatpush1.bf16.msra.mxu0 0
      %5897 = vmatprep.subr.bf16.mxu0 0
      %5898 = vmatpush1.bf16.msra.mxu0 0
      %5899 = vmatprep.subr.bf16.mxu0 0
      %5900 = vmatpush1.bf16.msra.mxu0 0
      %5901 = vmatprep.subr.bf16.mxu0 0
      %5902 = vmatpush1.bf16.msra.mxu0 0
      %5903 = vmatprep.subr.bf16.mxu0 %v3742
      %5904 = vmatpush1.bf16.msra.mxu0 %v3739
      %5905 = vmatprep.subr.bf16.mxu0 %v3546
      %5906 = vmatpush1.bf16.msra.mxu0 %v3545
      %5907 = vmatprep.subr.bf16.mxu0 0
      %5908 = vmatpush2.bf16.msra.mxu0 0
      %5909 = vmatprep.subr.bf16.mxu0 0
      %5910 = vmatpush2.bf16.msra.mxu0 0
      %5911 = vmatprep.subr.bf16.mxu0 0
      %5912 = vmatpush2.bf16.msra.mxu0 0
      %5913 = vmatprep.subr.bf16.mxu0 0
      %5914 = vmatpush2.bf16.msra.mxu0 0
      %5915 = vmatprep.subr.bf16.mxu0 0
      %5916 = vmatpush2.bf16.msra.mxu0 0
      %5917 = vmatprep.subr.bf16.mxu0 0
      %5918 = vmatpush2.bf16.msra.mxu0 0
      %5919 = vmatprep.subr.bf16.mxu0 0
      %5920 = vmatpush2.bf16.msra.mxu0 0
      %5921 = vmatprep.subr.bf16.mxu0 0
      %5922 = vmatpush2.bf16.msra.mxu0 0
      %5923 = vmatprep.mubr.bf16.mxu0 0
      %5924 = vmatmul.mubr.bf16.gmra.mxu0 %v3621
      %v5925 = vpop.f32.mrf.mxu0
      %v5926 = vadd.f32 %v3094, %v5925
      %v5927 = vpop.f32.mrf.mxu0
      %v5928 = vadd.f32 %v3094, %v5927
      %v5929 = vpop.f32.mrf.mxu0
      %v5930 = vadd.f32 %v3099, %v5929
      %v5931 = vpop.f32.mrf.mxu0
      %v5932 = vadd.f32 %v3099, %v5931
      %5933 = vmatprep.mubr.bf16.mxu0 0
      %5934 = vmatmul.mubr.bf16.gmra.mxu0 %v3624
      %v5935 = vpop.f32.mrf.mxu0
      %v5936 = vadd.f32 %v3104, %v5935
      %v5937 = vpop.f32.mrf.mxu0
      %v5938 = vadd.f32 %v3104, %v5937
      %v5939 = vpop.f32.mrf.mxu0
      %v5940 = vadd.f32 %v3109, %v5939
      %v5941 = vpop.f32.mrf.mxu0
      %v5942 = vadd.f32 %v3109, %v5941
      %5943 = vmatprep.mubr.bf16.mxu0 0
      %5944 = vmatmul.mubr.bf16.gmra.mxu0 %v3627
      %v5945 = vpop.f32.mrf.mxu0
      %v5946 = vadd.f32 %v3114, %v5945
      %v5947 = vpop.f32.mrf.mxu0
      %v5948 = vadd.f32 %v3114, %v5947
      %v5949 = vpop.f32.mrf.mxu0
      %v5950 = vadd.f32 %v3119, %v5949
      %v5951 = vpop.f32.mrf.mxu0
      %v5952 = vadd.f32 %v3119, %v5951
      %5953 = vmatprep.mubr.bf16.mxu0 0
      %5954 = vmatmul.mubr.bf16.gmra.mxu0 %v3630
      %v5955 = vpop.f32.mrf.mxu0
      %v5956 = vadd.f32 %v3124, %v5955
      %v5957 = vpop.f32.mrf.mxu0
      %v5958 = vadd.f32 %v3124, %v5957
      %v5959 = vpop.f32.mrf.mxu0
      %v5960 = vadd.f32 %v3129, %v5959
      %v5961 = vpop.f32.mrf.mxu0
      %v5962 = vadd.f32 %v3129, %v5961
      %5963 = vmatprep.mubr.bf16.mxu0 0
      %5964 = vmatmul.mubr.bf16.gmra.mxu0 %v3633
      %v5965 = vpop.f32.mrf.mxu0
      %v5966 = vadd.f32 %v3134, %v5965
      %v5967 = vpop.f32.mrf.mxu0
      %v5968 = vadd.f32 %v3134, %v5967
      %v5969 = vpop.f32.mrf.mxu0
      %v5970 = vadd.f32 %v3139, %v5969
      %v5971 = vpop.f32.mrf.mxu0
      %v5972 = vadd.f32 %v3139, %v5971
      %5973 = vmatprep.mubr.bf16.mxu0 0
      %5974 = vmatmul.mubr.bf16.gmra.mxu0 %v3636
      %v5975 = vpop.f32.mrf.mxu0
      %v5976 = vadd.f32 %v3144, %v5975
      %v5977 = vpop.f32.mrf.mxu0
      %v5978 = vadd.f32 %v3144, %v5977
      %v5979 = vpop.f32.mrf.mxu0
      %v5980 = vadd.f32 %v3149, %v5979
      %v5981 = vpop.f32.mrf.mxu0
      %v5982 = vadd.f32 %v3149, %v5981
      %5983 = vmatprep.mubr.bf16.mxu0 0
      %5984 = vmatmul.mubr.bf16.gmra.mxu0 %v3639
      %v5985 = vpop.f32.mrf.mxu0
      %v5986 = vadd.f32 %v3154, %v5985
      %v5987 = vpop.f32.mrf.mxu0
      %v5988 = vadd.f32 %v3154, %v5987
      %v5989 = vpop.f32.mrf.mxu0
      %v5990 = vadd.f32 %v3159, %v5989
      %v5991 = vpop.f32.mrf.mxu0
      %v5992 = vadd.f32 %v3159, %v5991
      %5993 = vmatprep.mubr.bf16.mxu0 0
      %5994 = vmatmul.mubr.bf16.gmra.mxu0 %v3642
      %v5995 = vpop.f32.mrf.mxu0
      %v5996 = vadd.f32 %v3164, %v5995
      %v5997 = vpop.f32.mrf.mxu0
      %v5998 = vadd.f32 %v3164, %v5997
      %v5999 = vpop.f32.mrf.mxu0
      %v6000 = vadd.f32 %v3169, %v5999
      %v6001 = vpop.f32.mrf.mxu0
      %v6002 = vadd.f32 %v3169, %v6001
      %6003 = vmatprep.mubr.bf16.mxu0 0
      %6004 = vmatmul.mubr.bf16.gmra.mxu0 %v3645
      %v6005 = vpop.f32.mrf.mxu0
      %v6006 = vadd.f32 %v3174, %v6005
      %v6007 = vpop.f32.mrf.mxu0
      %v6008 = vadd.f32 %v3174, %v6007
      %v6009 = vpop.f32.mrf.mxu0
      %v6010 = vadd.f32 %v3179, %v6009
      %v6011 = vpop.f32.mrf.mxu0
      %v6012 = vadd.f32 %v3179, %v6011
      %6013 = vmatprep.mubr.bf16.mxu0 0
      %6014 = vmatmul.mubr.bf16.gmra.mxu0 %v3648
      %v6015 = vpop.f32.mrf.mxu0
      %v6016 = vadd.f32 %v3184, %v6015
      %v6017 = vpop.f32.mrf.mxu0
      %v6018 = vadd.f32 %v3184, %v6017
      %v6019 = vpop.f32.mrf.mxu0
      %v6020 = vadd.f32 %v3189, %v6019
      %v6021 = vpop.f32.mrf.mxu0
      %v6022 = vadd.f32 %v3189, %v6021
      %6023 = vmatprep.mubr.bf16.mxu0 0
      %6024 = vmatmul.mubr.bf16.gmra.mxu0 %v3651
      %v6025 = vpop.f32.mrf.mxu0
      %v6026 = vadd.f32 %v3194, %v6025
      %v6027 = vpop.f32.mrf.mxu0
      %v6028 = vadd.f32 %v3194, %v6027
      %v6029 = vpop.f32.mrf.mxu0
      %v6030 = vadd.f32 %v3199, %v6029
      %v6031 = vpop.f32.mrf.mxu0
      %v6032 = vadd.f32 %v3199, %v6031
      %6033 = vmatprep.mubr.bf16.mxu0 0
      %6034 = vmatmul.mubr.bf16.gmra.mxu0 %v3654
      %v6035 = vpop.f32.mrf.mxu0
      %v6036 = vadd.f32 %v3204, %v6035
      %v6037 = vpop.f32.mrf.mxu0
      %v6038 = vadd.f32 %v3204, %v6037
      %v6039 = vpop.f32.mrf.mxu0
      %v6040 = vadd.f32 %v3209, %v6039
      %v6041 = vpop.f32.mrf.mxu0
      %v6042 = vadd.f32 %v3209, %v6041
      %6043 = vmatprep.mubr.bf16.mxu0 0
      %6044 = vmatmul.mubr.bf16.gmra.mxu0 %v3657
      %v6045 = vpop.f32.mrf.mxu0
      %v6046 = vadd.f32 %v3214, %v6045
      %v6047 = vpop.f32.mrf.mxu0
      %v6048 = vadd.f32 %v3214, %v6047
      %v6049 = vpop.f32.mrf.mxu0
      %v6050 = vadd.f32 %v3219, %v6049
      %v6051 = vpop.f32.mrf.mxu0
      %v6052 = vadd.f32 %v3219, %v6051
      %6053 = vmatprep.mubr.bf16.mxu0 0
      %6054 = vmatmul.mubr.bf16.gmra.mxu0 %v3660
      %v6055 = vpop.f32.mrf.mxu0
      %v6056 = vadd.f32 %v3224, %v6055
      %v6057 = vpop.f32.mrf.mxu0
      %v6058 = vadd.f32 %v3224, %v6057
      %v6059 = vpop.f32.mrf.mxu0
      %v6060 = vadd.f32 %v3229, %v6059
      %v6061 = vpop.f32.mrf.mxu0
      %v6062 = vadd.f32 %v3229, %v6061
      %6063 = vmatprep.mubr.bf16.mxu0 0
      %6064 = vmatmul.mubr.bf16.gmra.mxu0 %v3663
      %v6065 = vpop.f32.mrf.mxu0
      %v6066 = vadd.f32 %v3234, %v6065
      %v6067 = vpop.f32.mrf.mxu0
      %v6068 = vadd.f32 %v3234, %v6067
      %v6069 = vpop.f32.mrf.mxu0
      %v6070 = vadd.f32 %v3239, %v6069
      %v6071 = vpop.f32.mrf.mxu0
      %v6072 = vadd.f32 %v3239, %v6071
      %6073 = vmatprep.mubr.bf16.mxu0 0
      %6074 = vmatmul.mubr.bf16.gmra.mxu0 %v3666
      %v6075 = vpop.f32.mrf.mxu0
      %v6076 = vadd.f32 %v3244, %v6075
      %v6077 = vpop.f32.mrf.mxu0
      %v6078 = vadd.f32 %v3244, %v6077
      %v6079 = vpop.f32.mrf.mxu0
      %v6080 = vadd.f32 %v3249, %v6079
      %v6081 = vpop.f32.mrf.mxu0
      %v6082 = vadd.f32 %v3249, %v6081
      %6083 = vdwg.mxu0
      %6084 = vmatprep.subr.bf16.mxu0 0
      %6085 = vmatpush1.bf16.msra.mxu0 0
      %6086 = vmatprep.subr.bf16.mxu0 0
      %6087 = vmatpush1.bf16.msra.mxu0 0
      %6088 = vmatprep.subr.bf16.mxu0 0
      %6089 = vmatpush1.bf16.msra.mxu0 0
      %6090 = vmatprep.subr.bf16.mxu0 0
      %6091 = vmatpush1.bf16.msra.mxu0 0
      %6092 = vmatprep.subr.bf16.mxu0 0
      %6093 = vmatpush1.bf16.msra.mxu0 0
      %6094 = vmatprep.subr.bf16.mxu0 0
      %6095 = vmatpush1.bf16.msra.mxu0 0
      %6096 = vmatprep.subr.bf16.mxu0 %v3748
      %6097 = vmatpush1.bf16.msra.mxu0 %v3745
      %6098 = vmatprep.subr.bf16.mxu0 %v3548
      %6099 = vmatpush1.bf16.msra.mxu0 %v3547
      %6100 = vmatprep.subr.bf16.mxu0 0
      %6101 = vmatpush2.bf16.msra.mxu0 0
      %6102 = vmatprep.subr.bf16.mxu0 0
      %6103 = vmatpush2.bf16.msra.mxu0 0
      %6104 = vmatprep.subr.bf16.mxu0 0
      %6105 = vmatpush2.bf16.msra.mxu0 0
      %6106 = vmatprep.subr.bf16.mxu0 0
      %6107 = vmatpush2.bf16.msra.mxu0 0
      %6108 = vmatprep.subr.bf16.mxu0 0
      %6109 = vmatpush2.bf16.msra.mxu0 0
      %6110 = vmatprep.subr.bf16.mxu0 0
      %6111 = vmatpush2.bf16.msra.mxu0 0
      %6112 = vmatprep.subr.bf16.mxu0 0
      %6113 = vmatpush2.bf16.msra.mxu0 0
      %6114 = vmatprep.subr.bf16.mxu0 0
      %6115 = vmatpush2.bf16.msra.mxu0 0
      %6116 = vmatprep.mubr.bf16.mxu0 0
      %6117 = vmatmul.mubr.bf16.gmra.mxu0 %v3621
      %v6118 = vpop.f32.mrf.mxu0
      %v6119 = vadd.f32 %v3094, %v6118
      %v6120 = vpop.f32.mrf.mxu0
      %v6121 = vadd.f32 %v3094, %v6120
      %v6122 = vpop.f32.mrf.mxu0
      %v6123 = vadd.f32 %v3099, %v6122
      %v6124 = vpop.f32.mrf.mxu0
      %v6125 = vadd.f32 %v3099, %v6124
      %6126 = vmatprep.mubr.bf16.mxu0 0
      %6127 = vmatmul.mubr.bf16.gmra.mxu0 %v3624
      %v6128 = vpop.f32.mrf.mxu0
      %v6129 = vadd.f32 %v3104, %v6128
      %v6130 = vpop.f32.mrf.mxu0
      %v6131 = vadd.f32 %v3104, %v6130
      %v6132 = vpop.f32.mrf.mxu0
      %v6133 = vadd.f32 %v3109, %v6132
      %v6134 = vpop.f32.mrf.mxu0
      %v6135 = vadd.f32 %v3109, %v6134
      %6136 = vmatprep.mubr.bf16.mxu0 0
      %6137 = vmatmul.mubr.bf16.gmra.mxu0 %v3627
      %v6138 = vpop.f32.mrf.mxu0
      %v6139 = vadd.f32 %v3114, %v6138
      %v6140 = vpop.f32.mrf.mxu0
      %v6141 = vadd.f32 %v3114, %v6140
      %v6142 = vpop.f32.mrf.mxu0
      %v6143 = vadd.f32 %v3119, %v6142
      %v6144 = vpop.f32.mrf.mxu0
      %v6145 = vadd.f32 %v3119, %v6144
      %6146 = vmatprep.mubr.bf16.mxu0 0
      %6147 = vmatmul.mubr.bf16.gmra.mxu0 %v3630
      %v6148 = vpop.f32.mrf.mxu0
      %v6149 = vadd.f32 %v3124, %v6148
      %v6150 = vpop.f32.mrf.mxu0
      %v6151 = vadd.f32 %v3124, %v6150
      %v6152 = vpop.f32.mrf.mxu0
      %v6153 = vadd.f32 %v3129, %v6152
      %v6154 = vpop.f32.mrf.mxu0
      %v6155 = vadd.f32 %v3129, %v6154
      %6156 = vmatprep.mubr.bf16.mxu0 0
      %6157 = vmatmul.mubr.bf16.gmra.mxu0 %v3633
      %v6158 = vpop.f32.mrf.mxu0
      %v6159 = vadd.f32 %v3134, %v6158
      %v6160 = vpop.f32.mrf.mxu0
      %v6161 = vadd.f32 %v3134, %v6160
      %v6162 = vpop.f32.mrf.mxu0
      %v6163 = vadd.f32 %v3139, %v6162
      %v6164 = vpop.f32.mrf.mxu0
      %v6165 = vadd.f32 %v3139, %v6164
      %6166 = vmatprep.mubr.bf16.mxu0 0
      %6167 = vmatmul.mubr.bf16.gmra.mxu0 %v3636
      %v6168 = vpop.f32.mrf.mxu0
      %v6169 = vadd.f32 %v3144, %v6168
      %v6170 = vpop.f32.mrf.mxu0
      %v6171 = vadd.f32 %v3144, %v6170
      %v6172 = vpop.f32.mrf.mxu0
      %v6173 = vadd.f32 %v3149, %v6172
      %v6174 = vpop.f32.mrf.mxu0
      %v6175 = vadd.f32 %v3149, %v6174
      %6176 = vmatprep.mubr.bf16.mxu0 0
      %6177 = vmatmul.mubr.bf16.gmra.mxu0 %v3639
      %v6178 = vpop.f32.mrf.mxu0
      %v6179 = vadd.f32 %v3154, %v6178
      %v6180 = vpop.f32.mrf.mxu0
      %v6181 = vadd.f32 %v3154, %v6180
      %v6182 = vpop.f32.mrf.mxu0
      %v6183 = vadd.f32 %v3159, %v6182
      %v6184 = vpop.f32.mrf.mxu0
      %v6185 = vadd.f32 %v3159, %v6184
      %6186 = vmatprep.mubr.bf16.mxu0 0
      %6187 = vmatmul.mubr.bf16.gmra.mxu0 %v3642
      %v6188 = vpop.f32.mrf.mxu0
      %v6189 = vadd.f32 %v3164, %v6188
      %v6190 = vpop.f32.mrf.mxu0
      %v6191 = vadd.f32 %v3164, %v6190
      %v6192 = vpop.f32.mrf.mxu0
      %v6193 = vadd.f32 %v3169, %v6192
      %v6194 = vpop.f32.mrf.mxu0
      %v6195 = vadd.f32 %v3169, %v6194
      %6196 = vmatprep.mubr.bf16.mxu0 0
      %6197 = vmatmul.mubr.bf16.gmra.mxu0 %v3645
      %v6198 = vpop.f32.mrf.mxu0
      %v6199 = vadd.f32 %v3174, %v6198
      %v6200 = vpop.f32.mrf.mxu0
      %v6201 = vadd.f32 %v3174, %v6200
      %v6202 = vpop.f32.mrf.mxu0
      %v6203 = vadd.f32 %v3179, %v6202
      %v6204 = vpop.f32.mrf.mxu0
      %v6205 = vadd.f32 %v3179, %v6204
      %6206 = vmatprep.mubr.bf16.mxu0 0
      %6207 = vmatmul.mubr.bf16.gmra.mxu0 %v3648
      %v6208 = vpop.f32.mrf.mxu0
      %v6209 = vadd.f32 %v3184, %v6208
      %v6210 = vpop.f32.mrf.mxu0
      %v6211 = vadd.f32 %v3184, %v6210
      %v6212 = vpop.f32.mrf.mxu0
      %v6213 = vadd.f32 %v3189, %v6212
      %v6214 = vpop.f32.mrf.mxu0
      %v6215 = vadd.f32 %v3189, %v6214
      %6216 = vmatprep.mubr.bf16.mxu0 0
      %6217 = vmatmul.mubr.bf16.gmra.mxu0 %v3651
      %v6218 = vpop.f32.mrf.mxu0
      %v6219 = vadd.f32 %v3194, %v6218
      %v6220 = vpop.f32.mrf.mxu0
      %v6221 = vadd.f32 %v3194, %v6220
      %v6222 = vpop.f32.mrf.mxu0
      %v6223 = vadd.f32 %v3199, %v6222
      %v6224 = vpop.f32.mrf.mxu0
      %v6225 = vadd.f32 %v3199, %v6224
      %6226 = vmatprep.mubr.bf16.mxu0 0
      %6227 = vmatmul.mubr.bf16.gmra.mxu0 %v3654
      %v6228 = vpop.f32.mrf.mxu0
      %v6229 = vadd.f32 %v3204, %v6228
      %v6230 = vpop.f32.mrf.mxu0
      %v6231 = vadd.f32 %v3204, %v6230
      %v6232 = vpop.f32.mrf.mxu0
      %v6233 = vadd.f32 %v3209, %v6232
      %v6234 = vpop.f32.mrf.mxu0
      %v6235 = vadd.f32 %v3209, %v6234
      %6236 = vmatprep.mubr.bf16.mxu0 0
      %6237 = vmatmul.mubr.bf16.gmra.mxu0 %v3657
      %v6238 = vpop.f32.mrf.mxu0
      %v6239 = vadd.f32 %v3214, %v6238
      %v6240 = vpop.f32.mrf.mxu0
      %v6241 = vadd.f32 %v3214, %v6240
      %v6242 = vpop.f32.mrf.mxu0
      %v6243 = vadd.f32 %v3219, %v6242
      %v6244 = vpop.f32.mrf.mxu0
      %v6245 = vadd.f32 %v3219, %v6244
      %6246 = vmatprep.mubr.bf16.mxu0 0
      %6247 = vmatmul.mubr.bf16.gmra.mxu0 %v3660
      %v6248 = vpop.f32.mrf.mxu0
      %v6249 = vadd.f32 %v3224, %v6248
      %v6250 = vpop.f32.mrf.mxu0
      %v6251 = vadd.f32 %v3224, %v6250
      %v6252 = vpop.f32.mrf.mxu0
      %v6253 = vadd.f32 %v3229, %v6252
      %v6254 = vpop.f32.mrf.mxu0
      %v6255 = vadd.f32 %v3229, %v6254
      %6256 = vmatprep.mubr.bf16.mxu0 0
      %6257 = vmatmul.mubr.bf16.gmra.mxu0 %v3663
      %v6258 = vpop.f32.mrf.mxu0
      %v6259 = vadd.f32 %v3234, %v6258
      %v6260 = vpop.f32.mrf.mxu0
      %v6261 = vadd.f32 %v3234, %v6260
      %v6262 = vpop.f32.mrf.mxu0
      %v6263 = vadd.f32 %v3239, %v6262
      %v6264 = vpop.f32.mrf.mxu0
      %v6265 = vadd.f32 %v3239, %v6264
      %6266 = vmatprep.mubr.bf16.mxu0 0
      %6267 = vmatmul.mubr.bf16.gmra.mxu0 %v3666
      %v6268 = vpop.f32.mrf.mxu0
      %v6269 = vadd.f32 %v3244, %v6268
      %v6270 = vpop.f32.mrf.mxu0
      %v6271 = vadd.f32 %v3244, %v6270
      %v6272 = vpop.f32.mrf.mxu0
      %v6273 = vadd.f32 %v3249, %v6272
      %v6274 = vpop.f32.mrf.mxu0
      %v6275 = vadd.f32 %v3249, %v6274
      %6276 = vdwg.mxu0
      %6277 = vmatprep.subr.bf16.mxu0 0
      %6278 = vmatpush1.bf16.msra.mxu0 0
      %6279 = vmatprep.subr.bf16.mxu0 0
      %6280 = vmatpush1.bf16.msra.mxu0 0
      %6281 = vmatprep.subr.bf16.mxu0 0
      %6282 = vmatpush1.bf16.msra.mxu0 0
      %6283 = vmatprep.subr.bf16.mxu0 0
      %6284 = vmatpush1.bf16.msra.mxu0 0
      %6285 = vmatprep.subr.bf16.mxu0 0
      %6286 = vmatpush1.bf16.msra.mxu0 0
      %6287 = vmatprep.subr.bf16.mxu0 0
      %6288 = vmatpush1.bf16.msra.mxu0 0
      %6289 = vmatprep.subr.bf16.mxu0 %v3754
      %6290 = vmatpush1.bf16.msra.mxu0 %v3751
      %6291 = vmatprep.subr.bf16.mxu0 %v3550
      %6292 = vmatpush1.bf16.msra.mxu0 %v3549
      %6293 = vmatprep.subr.bf16.mxu0 0
      %6294 = vmatpush2.bf16.msra.mxu0 0
      %6295 = vmatprep.subr.bf16.mxu0 0
      %6296 = vmatpush2.bf16.msra.mxu0 0
      %6297 = vmatprep.subr.bf16.mxu0 0
      %6298 = vmatpush2.bf16.msra.mxu0 0
      %6299 = vmatprep.subr.bf16.mxu0 0
      %6300 = vmatpush2.bf16.msra.mxu0 0
      %6301 = vmatprep.subr.bf16.mxu0 0
      %6302 = vmatpush2.bf16.msra.mxu0 0
      %6303 = vmatprep.subr.bf16.mxu0 0
      %6304 = vmatpush2.bf16.msra.mxu0 0
      %6305 = vmatprep.subr.bf16.mxu0 0
      %6306 = vmatpush2.bf16.msra.mxu0 0
      %6307 = vmatprep.subr.bf16.mxu0 0
      %6308 = vmatpush2.bf16.msra.mxu0 0
      %6309 = vmatprep.mubr.bf16.mxu0 0
      %6310 = vmatmul.mubr.bf16.gmra.mxu0 %v3621
      %v6311 = vpop.f32.mrf.mxu0
      %v6312 = vadd.f32 %v3094, %v6311
      %v6313 = vpop.f32.mrf.mxu0
      %v6314 = vadd.f32 %v3094, %v6313
      %v6315 = vpop.f32.mrf.mxu0
      %v6316 = vadd.f32 %v3099, %v6315
      %v6317 = vpop.f32.mrf.mxu0
      %v6318 = vadd.f32 %v3099, %v6317
      %6319 = vmatprep.mubr.bf16.mxu0 0
      %6320 = vmatmul.mubr.bf16.gmra.mxu0 %v3624
      %v6321 = vpop.f32.mrf.mxu0
      %v6322 = vadd.f32 %v3104, %v6321
      %v6323 = vpop.f32.mrf.mxu0
      %v6324 = vadd.f32 %v3104, %v6323
      %v6325 = vpop.f32.mrf.mxu0
      %v6326 = vadd.f32 %v3109, %v6325
      %v6327 = vpop.f32.mrf.mxu0
      %v6328 = vadd.f32 %v3109, %v6327
      %6329 = vmatprep.mubr.bf16.mxu0 0
      %6330 = vmatmul.mubr.bf16.gmra.mxu0 %v3627
      %v6331 = vpop.f32.mrf.mxu0
      %v6332 = vadd.f32 %v3114, %v6331
      %v6333 = vpop.f32.mrf.mxu0
      %v6334 = vadd.f32 %v3114, %v6333
      %v6335 = vpop.f32.mrf.mxu0
      %v6336 = vadd.f32 %v3119, %v6335
      %v6337 = vpop.f32.mrf.mxu0
      %v6338 = vadd.f32 %v3119, %v6337
      %6339 = vmatprep.mubr.bf16.mxu0 0
      %6340 = vmatmul.mubr.bf16.gmra.mxu0 %v3630
      %v6341 = vpop.f32.mrf.mxu0
      %v6342 = vadd.f32 %v3124, %v6341
      %v6343 = vpop.f32.mrf.mxu0
      %v6344 = vadd.f32 %v3124, %v6343
      %v6345 = vpop.f32.mrf.mxu0
      %v6346 = vadd.f32 %v3129, %v6345
      %v6347 = vpop.f32.mrf.mxu0
      %v6348 = vadd.f32 %v3129, %v6347
      %6349 = vmatprep.mubr.bf16.mxu0 0
      %6350 = vmatmul.mubr.bf16.gmra.mxu0 %v3633
      %v6351 = vpop.f32.mrf.mxu0
      %v6352 = vadd.f32 %v3134, %v6351
      %v6353 = vpop.f32.mrf.mxu0
      %v6354 = vadd.f32 %v3134, %v6353
      %v6355 = vpop.f32.mrf.mxu0
      %v6356 = vadd.f32 %v3139, %v6355
      %v6357 = vpop.f32.mrf.mxu0
      %v6358 = vadd.f32 %v3139, %v6357
      %6359 = vmatprep.mubr.bf16.mxu0 0
      %6360 = vmatmul.mubr.bf16.gmra.mxu0 %v3636
      %v6361 = vpop.f32.mrf.mxu0
      %v6362 = vadd.f32 %v3144, %v6361
      %v6363 = vpop.f32.mrf.mxu0
      %v6364 = vadd.f32 %v3144, %v6363
      %v6365 = vpop.f32.mrf.mxu0
      %v6366 = vadd.f32 %v3149, %v6365
      %v6367 = vpop.f32.mrf.mxu0
      %v6368 = vadd.f32 %v3149, %v6367
      %6369 = vmatprep.mubr.bf16.mxu0 0
      %6370 = vmatmul.mubr.bf16.gmra.mxu0 %v3639
      %v6371 = vpop.f32.mrf.mxu0
      %v6372 = vadd.f32 %v3154, %v6371
      %v6373 = vpop.f32.mrf.mxu0
      %v6374 = vadd.f32 %v3154, %v6373
      %v6375 = vpop.f32.mrf.mxu0
      %v6376 = vadd.f32 %v3159, %v6375
      %v6377 = vpop.f32.mrf.mxu0
      %v6378 = vadd.f32 %v3159, %v6377
      %6379 = vmatprep.mubr.bf16.mxu0 0
      %6380 = vmatmul.mubr.bf16.gmra.mxu0 %v3642
      %v6381 = vpop.f32.mrf.mxu0
      %v6382 = vadd.f32 %v3164, %v6381
      %v6383 = vpop.f32.mrf.mxu0
      %v6384 = vadd.f32 %v3164, %v6383
      %v6385 = vpop.f32.mrf.mxu0
      %v6386 = vadd.f32 %v3169, %v6385
      %v6387 = vpop.f32.mrf.mxu0
      %v6388 = vadd.f32 %v3169, %v6387
      %6389 = vmatprep.mubr.bf16.mxu0 0
      %6390 = vmatmul.mubr.bf16.gmra.mxu0 %v3645
      %v6391 = vpop.f32.mrf.mxu0
      %v6392 = vadd.f32 %v3174, %v6391
      %v6393 = vpop.f32.mrf.mxu0
      %v6394 = vadd.f32 %v3174, %v6393
      %v6395 = vpop.f32.mrf.mxu0
      %v6396 = vadd.f32 %v3179, %v6395
      %v6397 = vpop.f32.mrf.mxu0
      %v6398 = vadd.f32 %v3179, %v6397
      %6399 = vmatprep.mubr.bf16.mxu0 0
      %6400 = vmatmul.mubr.bf16.gmra.mxu0 %v3648
      %v6401 = vpop.f32.mrf.mxu0
      %v6402 = vadd.f32 %v3184, %v6401
      %v6403 = vpop.f32.mrf.mxu0
      %v6404 = vadd.f32 %v3184, %v6403
      %v6405 = vpop.f32.mrf.mxu0
      %v6406 = vadd.f32 %v3189, %v6405
      %v6407 = vpop.f32.mrf.mxu0
      %v6408 = vadd.f32 %v3189, %v6407
      %6409 = vmatprep.mubr.bf16.mxu0 0
      %6410 = vmatmul.mubr.bf16.gmra.mxu0 %v3651
      %v6411 = vpop.f32.mrf.mxu0
      %v6412 = vadd.f32 %v3194, %v6411
      %v6413 = vpop.f32.mrf.mxu0
      %v6414 = vadd.f32 %v3194, %v6413
      %v6415 = vpop.f32.mrf.mxu0
      %v6416 = vadd.f32 %v3199, %v6415
      %v6417 = vpop.f32.mrf.mxu0
      %v6418 = vadd.f32 %v3199, %v6417
      %6419 = vmatprep.mubr.bf16.mxu0 0
      %6420 = vmatmul.mubr.bf16.gmra.mxu0 %v3654
      %v6421 = vpop.f32.mrf.mxu0
      %v6422 = vadd.f32 %v3204, %v6421
      %v6423 = vpop.f32.mrf.mxu0
      %v6424 = vadd.f32 %v3204, %v6423
      %v6425 = vpop.f32.mrf.mxu0
      %v6426 = vadd.f32 %v3209, %v6425
      %v6427 = vpop.f32.mrf.mxu0
      %v6428 = vadd.f32 %v3209, %v6427
      %6429 = vmatprep.mubr.bf16.mxu0 0
      %6430 = vmatmul.mubr.bf16.gmra.mxu0 %v3657
      %v6431 = vpop.f32.mrf.mxu0
      %v6432 = vadd.f32 %v3214, %v6431
      %v6433 = vpop.f32.mrf.mxu0
      %v6434 = vadd.f32 %v3214, %v6433
      %v6435 = vpop.f32.mrf.mxu0
      %v6436 = vadd.f32 %v3219, %v6435
      %v6437 = vpop.f32.mrf.mxu0
      %v6438 = vadd.f32 %v3219, %v6437
      %6439 = vmatprep.mubr.bf16.mxu0 0
      %6440 = vmatmul.mubr.bf16.gmra.mxu0 %v3660
      %v6441 = vpop.f32.mrf.mxu0
      %v6442 = vadd.f32 %v3224, %v6441
      %v6443 = vpop.f32.mrf.mxu0
      %v6444 = vadd.f32 %v3224, %v6443
      %v6445 = vpop.f32.mrf.mxu0
      %v6446 = vadd.f32 %v3229, %v6445
      %v6447 = vpop.f32.mrf.mxu0
      %v6448 = vadd.f32 %v3229, %v6447
      %6449 = vmatprep.mubr.bf16.mxu0 0
      %6450 = vmatmul.mubr.bf16.gmra.mxu0 %v3663
      %v6451 = vpop.f32.mrf.mxu0
      %v6452 = vadd.f32 %v3234, %v6451
      %v6453 = vpop.f32.mrf.mxu0
      %v6454 = vadd.f32 %v3234, %v6453
      %v6455 = vpop.f32.mrf.mxu0
      %v6456 = vadd.f32 %v3239, %v6455
      %v6457 = vpop.f32.mrf.mxu0
      %v6458 = vadd.f32 %v3239, %v6457
      %6459 = vmatprep.mubr.bf16.mxu0 0
      %6460 = vmatmul.mubr.bf16.gmra.mxu0 %v3666
      %v6461 = vpop.f32.mrf.mxu0
      %v6462 = vadd.f32 %v3244, %v6461
      %v6463 = vpop.f32.mrf.mxu0
      %v6464 = vadd.f32 %v3244, %v6463
      %v6465 = vpop.f32.mrf.mxu0
      %v6466 = vadd.f32 %v3249, %v6465
      %v6467 = vpop.f32.mrf.mxu0
      %v6468 = vadd.f32 %v3249, %v6467
      %6469 = vdwg.mxu0
      %6470 = vmatprep.subr.bf16.mxu0 0
      %6471 = vmatpush1.bf16.msra.mxu0 0
      %6472 = vmatprep.subr.bf16.mxu0 0
      %6473 = vmatpush1.bf16.msra.mxu0 0
      %6474 = vmatprep.subr.bf16.mxu0 0
      %6475 = vmatpush1.bf16.msra.mxu0 0
      %6476 = vmatprep.subr.bf16.mxu0 0
      %6477 = vmatpush1.bf16.msra.mxu0 0
      %6478 = vmatprep.subr.bf16.mxu0 0
      %6479 = vmatpush1.bf16.msra.mxu0 0
      %6480 = vmatprep.subr.bf16.mxu0 0
      %6481 = vmatpush1.bf16.msra.mxu0 0
      %6482 = vmatprep.subr.bf16.mxu0 %v3760
      %6483 = vmatpush1.bf16.msra.mxu0 %v3757
      %6484 = vmatprep.subr.bf16.mxu0 %v3552
      %6485 = vmatpush1.bf16.msra.mxu0 %v3551
      %6486 = vmatprep.subr.bf16.mxu0 0
      %6487 = vmatpush2.bf16.msra.mxu0 0
      %6488 = vmatprep.subr.bf16.mxu0 0
      %6489 = vmatpush2.bf16.msra.mxu0 0
      %6490 = vmatprep.subr.bf16.mxu0 0
      %6491 = vmatpush2.bf16.msra.mxu0 0
      %6492 = vmatprep.subr.bf16.mxu0 0
      %6493 = vmatpush2.bf16.msra.mxu0 0
      %6494 = vmatprep.subr.bf16.mxu0 0
      %6495 = vmatpush2.bf16.msra.mxu0 0
      %6496 = vmatprep.subr.bf16.mxu0 0
      %6497 = vmatpush2.bf16.msra.mxu0 0
      %6498 = vmatprep.subr.bf16.mxu0 0
      %6499 = vmatpush2.bf16.msra.mxu0 0
      %6500 = vmatprep.subr.bf16.mxu0 0
      %6501 = vmatpush2.bf16.msra.mxu0 0
      %6502 = vmatprep.mubr.bf16.mxu0 0
      %6503 = vmatmul.mubr.bf16.gmra.mxu0 %v3621
      %v6504 = vpop.f32.mrf.mxu0
      %v6505 = vadd.f32 %v3094, %v6504
      %v6506 = vpop.f32.mrf.mxu0
      %v6507 = vadd.f32 %v3094, %v6506
      %v6508 = vpop.f32.mrf.mxu0
      %v6509 = vadd.f32 %v3099, %v6508
      %v6510 = vpop.f32.mrf.mxu0
      %v6511 = vadd.f32 %v3099, %v6510
      %6512 = vmatprep.mubr.bf16.mxu0 0
      %6513 = vmatmul.mubr.bf16.gmra.mxu0 %v3624
      %v6514 = vpop.f32.mrf.mxu0
      %v6515 = vadd.f32 %v3104, %v6514
      %v6516 = vpop.f32.mrf.mxu0
      %v6517 = vadd.f32 %v3104, %v6516
      %v6518 = vpop.f32.mrf.mxu0
      %v6519 = vadd.f32 %v3109, %v6518
      %v6520 = vpop.f32.mrf.mxu0
      %v6521 = vadd.f32 %v3109, %v6520
      %6522 = vmatprep.mubr.bf16.mxu0 0
      %6523 = vmatmul.mubr.bf16.gmra.mxu0 %v3627
      %v6524 = vpop.f32.mrf.mxu0
      %v6525 = vadd.f32 %v3114, %v6524
      %v6526 = vpop.f32.mrf.mxu0
      %v6527 = vadd.f32 %v3114, %v6526
      %v6528 = vpop.f32.mrf.mxu0
      %v6529 = vadd.f32 %v3119, %v6528
      %v6530 = vpop.f32.mrf.mxu0
      %v6531 = vadd.f32 %v3119, %v6530
      %6532 = vmatprep.mubr.bf16.mxu0 0
      %6533 = vmatmul.mubr.bf16.gmra.mxu0 %v3630
      %v6534 = vpop.f32.mrf.mxu0
      %v6535 = vadd.f32 %v3124, %v6534
      %v6536 = vpop.f32.mrf.mxu0
      %v6537 = vadd.f32 %v3124, %v6536
      %v6538 = vpop.f32.mrf.mxu0
      %v6539 = vadd.f32 %v3129, %v6538
      %v6540 = vpop.f32.mrf.mxu0
      %v6541 = vadd.f32 %v3129, %v6540
      %6542 = vmatprep.mubr.bf16.mxu0 0
      %6543 = vmatmul.mubr.bf16.gmra.mxu0 %v3633
      %v6544 = vpop.f32.mrf.mxu0
      %v6545 = vadd.f32 %v3134, %v6544
      %v6546 = vpop.f32.mrf.mxu0
      %v6547 = vadd.f32 %v3134, %v6546
      %v6548 = vpop.f32.mrf.mxu0
      %v6549 = vadd.f32 %v3139, %v6548
      %v6550 = vpop.f32.mrf.mxu0
      %v6551 = vadd.f32 %v3139, %v6550
      %6552 = vmatprep.mubr.bf16.mxu0 0
      %6553 = vmatmul.mubr.bf16.gmra.mxu0 %v3636
      %v6554 = vpop.f32.mrf.mxu0
      %v6555 = vadd.f32 %v3144, %v6554
      %v6556 = vpop.f32.mrf.mxu0
      %v6557 = vadd.f32 %v3144, %v6556
      %v6558 = vpop.f32.mrf.mxu0
      %v6559 = vadd.f32 %v3149, %v6558
      %v6560 = vpop.f32.mrf.mxu0
      %v6561 = vadd.f32 %v3149, %v6560
      %6562 = vmatprep.mubr.bf16.mxu0 0
      %6563 = vmatmul.mubr.bf16.gmra.mxu0 %v3639
      %v6564 = vpop.f32.mrf.mxu0
      %v6565 = vadd.f32 %v3154, %v6564
      %v6566 = vpop.f32.mrf.mxu0
      %v6567 = vadd.f32 %v3154, %v6566
      %v6568 = vpop.f32.mrf.mxu0
      %v6569 = vadd.f32 %v3159, %v6568
      %v6570 = vpop.f32.mrf.mxu0
      %v6571 = vadd.f32 %v3159, %v6570
      %6572 = vmatprep.mubr.bf16.mxu0 0
      %6573 = vmatmul.mubr.bf16.gmra.mxu0 %v3642
      %v6574 = vpop.f32.mrf.mxu0
      %v6575 = vadd.f32 %v3164, %v6574
      %v6576 = vpop.f32.mrf.mxu0
      %v6577 = vadd.f32 %v3164, %v6576
      %v6578 = vpop.f32.mrf.mxu0
      %v6579 = vadd.f32 %v3169, %v6578
      %v6580 = vpop.f32.mrf.mxu0
      %v6581 = vadd.f32 %v3169, %v6580
      %6582 = vmatprep.mubr.bf16.mxu0 0
      %6583 = vmatmul.mubr.bf16.gmra.mxu0 %v3645
      %v6584 = vpop.f32.mrf.mxu0
      %v6585 = vadd.f32 %v3174, %v6584
      %v6586 = vpop.f32.mrf.mxu0
      %v6587 = vadd.f32 %v3174, %v6586
      %v6588 = vpop.f32.mrf.mxu0
      %v6589 = vadd.f32 %v3179, %v6588
      %v6590 = vpop.f32.mrf.mxu0
      %v6591 = vadd.f32 %v3179, %v6590
      %6592 = vmatprep.mubr.bf16.mxu0 0
      %6593 = vmatmul.mubr.bf16.gmra.mxu0 %v3648
      %v6594 = vpop.f32.mrf.mxu0
      %v6595 = vadd.f32 %v3184, %v6594
      %v6596 = vpop.f32.mrf.mxu0
      %v6597 = vadd.f32 %v3184, %v6596
      %v6598 = vpop.f32.mrf.mxu0
      %v6599 = vadd.f32 %v3189, %v6598
      %v6600 = vpop.f32.mrf.mxu0
      %v6601 = vadd.f32 %v3189, %v6600
      %6602 = vmatprep.mubr.bf16.mxu0 0
      %6603 = vmatmul.mubr.bf16.gmra.mxu0 %v3651
      %v6604 = vpop.f32.mrf.mxu0
      %v6605 = vadd.f32 %v3194, %v6604
      %v6606 = vpop.f32.mrf.mxu0
      %v6607 = vadd.f32 %v3194, %v6606
      %v6608 = vpop.f32.mrf.mxu0
      %v6609 = vadd.f32 %v3199, %v6608
      %v6610 = vpop.f32.mrf.mxu0
      %v6611 = vadd.f32 %v3199, %v6610
      %6612 = vmatprep.mubr.bf16.mxu0 0
      %6613 = vmatmul.mubr.bf16.gmra.mxu0 %v3654
      %v6614 = vpop.f32.mrf.mxu0
      %v6615 = vadd.f32 %v3204, %v6614
      %v6616 = vpop.f32.mrf.mxu0
      %v6617 = vadd.f32 %v3204, %v6616
      %v6618 = vpop.f32.mrf.mxu0
      %v6619 = vadd.f32 %v3209, %v6618
      %v6620 = vpop.f32.mrf.mxu0
      %v6621 = vadd.f32 %v3209, %v6620
      %6622 = vmatprep.mubr.bf16.mxu0 0
      %6623 = vmatmul.mubr.bf16.gmra.mxu0 %v3657
      %v6624 = vpop.f32.mrf.mxu0
      %v6625 = vadd.f32 %v3214, %v6624
      %v6626 = vpop.f32.mrf.mxu0
      %v6627 = vadd.f32 %v3214, %v6626
      %v6628 = vpop.f32.mrf.mxu0
      %v6629 = vadd.f32 %v3219, %v6628
      %v6630 = vpop.f32.mrf.mxu0
      %v6631 = vadd.f32 %v3219, %v6630
      %6632 = vmatprep.mubr.bf16.mxu0 0
      %6633 = vmatmul.mubr.bf16.gmra.mxu0 %v3660
      %v6634 = vpop.f32.mrf.mxu0
      %v6635 = vadd.f32 %v3224, %v6634
      %v6636 = vpop.f32.mrf.mxu0
      %v6637 = vadd.f32 %v3224, %v6636
      %v6638 = vpop.f32.mrf.mxu0
      %v6639 = vadd.f32 %v3229, %v6638
      %v6640 = vpop.f32.mrf.mxu0
      %v6641 = vadd.f32 %v3229, %v6640
      %6642 = vmatprep.mubr.bf16.mxu0 0
      %6643 = vmatmul.mubr.bf16.gmra.mxu0 %v3663
      %v6644 = vpop.f32.mrf.mxu0
      %v6645 = vadd.f32 %v3234, %v6644
      %v6646 = vpop.f32.mrf.mxu0
      %v6647 = vadd.f32 %v3234, %v6646
      %v6648 = vpop.f32.mrf.mxu0
      %v6649 = vadd.f32 %v3239, %v6648
      %v6650 = vpop.f32.mrf.mxu0
      %v6651 = vadd.f32 %v3239, %v6650
      %6652 = vmatprep.mubr.bf16.mxu0 0
      %6653 = vmatmul.mubr.bf16.gmra.mxu0 %v3666
      %v6654 = vpop.f32.mrf.mxu0
      %v6655 = vadd.f32 %v3244, %v6654
      %v6656 = vpop.f32.mrf.mxu0
      %v6657 = vadd.f32 %v3244, %v6656
      %v6658 = vpop.f32.mrf.mxu0
      %v6659 = vadd.f32 %v3249, %v6658
      %v6660 = vpop.f32.mrf.mxu0
      %v6661 = vadd.f32 %v3249, %v6660
      %6662 = vdwg.mxu0
      %6663 = vmatprep.subr.bf16.mxu0 0
      %6664 = vmatpush1.bf16.msra.mxu0 0
      %6665 = vmatprep.subr.bf16.mxu0 0
      %6666 = vmatpush1.bf16.msra.mxu0 0
      %6667 = vmatprep.subr.bf16.mxu0 0
      %6668 = vmatpush1.bf16.msra.mxu0 0
      %6669 = vmatprep.subr.bf16.mxu0 0
      %6670 = vmatpush1.bf16.msra.mxu0 0
      %6671 = vmatprep.subr.bf16.mxu0 0
      %6672 = vmatpush1.bf16.msra.mxu0 0
      %6673 = vmatprep.subr.bf16.mxu0 0
      %6674 = vmatpush1.bf16.msra.mxu0 0
      %6675 = vmatprep.subr.bf16.mxu0 %v3766
      %6676 = vmatpush1.bf16.msra.mxu0 %v3763
      %6677 = vmatprep.subr.bf16.mxu0 %v3554
      %6678 = vmatpush1.bf16.msra.mxu0 %v3553
      %6679 = vmatprep.subr.bf16.mxu0 0
      %6680 = vmatpush2.bf16.msra.mxu0 0
      %6681 = vmatprep.subr.bf16.mxu0 0
      %6682 = vmatpush2.bf16.msra.mxu0 0
      %6683 = vmatprep.subr.bf16.mxu0 0
      %6684 = vmatpush2.bf16.msra.mxu0 0
      %6685 = vmatprep.subr.bf16.mxu0 0
      %6686 = vmatpush2.bf16.msra.mxu0 0
      %6687 = vmatprep.subr.bf16.mxu0 0
      %6688 = vmatpush2.bf16.msra.mxu0 0
      %6689 = vmatprep.subr.bf16.mxu0 0
      %6690 = vmatpush2.bf16.msra.mxu0 0
      %6691 = vmatprep.subr.bf16.mxu0 0
      %6692 = vmatpush2.bf16.msra.mxu0 0
      %6693 = vmatprep.subr.bf16.mxu0 0
      %6694 = vmatpush2.bf16.msra.mxu0 0
      %6695 = vmatprep.mubr.bf16.mxu0 0
      %6696 = vmatmul.mubr.bf16.gmra.mxu0 %v3621
      %v6697 = vpop.f32.mrf.mxu0
      %v6698 = vadd.f32 %v3094, %v6697
      %v6699 = vpop.f32.mrf.mxu0
      %v6700 = vadd.f32 %v3094, %v6699
      %v6701 = vpop.f32.mrf.mxu0
      %v6702 = vadd.f32 %v3099, %v6701
      %v6703 = vpop.f32.mrf.mxu0
      %v6704 = vadd.f32 %v3099, %v6703
      %6705 = vmatprep.mubr.bf16.mxu0 0
      %6706 = vmatmul.mubr.bf16.gmra.mxu0 %v3624
      %v6707 = vpop.f32.mrf.mxu0
      %v6708 = vadd.f32 %v3104, %v6707
      %v6709 = vpop.f32.mrf.mxu0
      %v6710 = vadd.f32 %v3104, %v6709
      %v6711 = vpop.f32.mrf.mxu0
      %v6712 = vadd.f32 %v3109, %v6711
      %v6713 = vpop.f32.mrf.mxu0
      %v6714 = vadd.f32 %v3109, %v6713
      %6715 = vmatprep.mubr.bf16.mxu0 0
      %6716 = vmatmul.mubr.bf16.gmra.mxu0 %v3627
      %v6717 = vpop.f32.mrf.mxu0
      %v6718 = vadd.f32 %v3114, %v6717
      %v6719 = vpop.f32.mrf.mxu0
      %v6720 = vadd.f32 %v3114, %v6719
      %v6721 = vpop.f32.mrf.mxu0
      %v6722 = vadd.f32 %v3119, %v6721
      %v6723 = vpop.f32.mrf.mxu0
      %v6724 = vadd.f32 %v3119, %v6723
      %6725 = vmatprep.mubr.bf16.mxu0 0
      %6726 = vmatmul.mubr.bf16.gmra.mxu0 %v3630
      %v6727 = vpop.f32.mrf.mxu0
      %v6728 = vadd.f32 %v3124, %v6727
      %v6729 = vpop.f32.mrf.mxu0
      %v6730 = vadd.f32 %v3124, %v6729
      %v6731 = vpop.f32.mrf.mxu0
      %v6732 = vadd.f32 %v3129, %v6731
      %v6733 = vpop.f32.mrf.mxu0
      %v6734 = vadd.f32 %v3129, %v6733
      %6735 = vmatprep.mubr.bf16.mxu0 0
      %6736 = vmatmul.mubr.bf16.gmra.mxu0 %v3633
      %v6737 = vpop.f32.mrf.mxu0
      %v6738 = vadd.f32 %v3134, %v6737
      %v6739 = vpop.f32.mrf.mxu0
      %v6740 = vadd.f32 %v3134, %v6739
      %v6741 = vpop.f32.mrf.mxu0
      %v6742 = vadd.f32 %v3139, %v6741
      %v6743 = vpop.f32.mrf.mxu0
      %v6744 = vadd.f32 %v3139, %v6743
      %6745 = vmatprep.mubr.bf16.mxu0 0
      %6746 = vmatmul.mubr.bf16.gmra.mxu0 %v3636
      %v6747 = vpop.f32.mrf.mxu0
      %v6748 = vadd.f32 %v3144, %v6747
      %v6749 = vpop.f32.mrf.mxu0
      %v6750 = vadd.f32 %v3144, %v6749
      %v6751 = vpop.f32.mrf.mxu0
      %v6752 = vadd.f32 %v3149, %v6751
      %v6753 = vpop.f32.mrf.mxu0
      %v6754 = vadd.f32 %v3149, %v6753
      %6755 = vmatprep.mubr.bf16.mxu0 0
      %6756 = vmatmul.mubr.bf16.gmra.mxu0 %v3639
      %v6757 = vpop.f32.mrf.mxu0
      %v6758 = vadd.f32 %v3154, %v6757
      %v6759 = vpop.f32.mrf.mxu0
      %v6760 = vadd.f32 %v3154, %v6759
      %v6761 = vpop.f32.mrf.mxu0
      %v6762 = vadd.f32 %v3159, %v6761
      %v6763 = vpop.f32.mrf.mxu0
      %v6764 = vadd.f32 %v3159, %v6763
      %6765 = vmatprep.mubr.bf16.mxu0 0
      %6766 = vmatmul.mubr.bf16.gmra.mxu0 %v3642
      %v6767 = vpop.f32.mrf.mxu0
      %v6768 = vadd.f32 %v3164, %v6767
      %v6769 = vpop.f32.mrf.mxu0
      %v6770 = vadd.f32 %v3164, %v6769
      %v6771 = vpop.f32.mrf.mxu0
      %v6772 = vadd.f32 %v3169, %v6771
      %v6773 = vpop.f32.mrf.mxu0
      %v6774 = vadd.f32 %v3169, %v6773
      %6775 = vmatprep.mubr.bf16.mxu0 0
      %6776 = vmatmul.mubr.bf16.gmra.mxu0 %v3645
      %v6777 = vpop.f32.mrf.mxu0
      %v6778 = vadd.f32 %v3174, %v6777
      %v6779 = vpop.f32.mrf.mxu0
      %v6780 = vadd.f32 %v3174, %v6779
      %v6781 = vpop.f32.mrf.mxu0
      %v6782 = vadd.f32 %v3179, %v6781
      %v6783 = vpop.f32.mrf.mxu0
      %v6784 = vadd.f32 %v3179, %v6783
      %6785 = vmatprep.mubr.bf16.mxu0 0
      %6786 = vmatmul.mubr.bf16.gmra.mxu0 %v3648
      %v6787 = vpop.f32.mrf.mxu0
      %v6788 = vadd.f32 %v3184, %v6787
      %v6789 = vpop.f32.mrf.mxu0
      %v6790 = vadd.f32 %v3184, %v6789
      %v6791 = vpop.f32.mrf.mxu0
      %v6792 = vadd.f32 %v3189, %v6791
      %v6793 = vpop.f32.mrf.mxu0
      %v6794 = vadd.f32 %v3189, %v6793
      %6795 = vmatprep.mubr.bf16.mxu0 0
      %6796 = vmatmul.mubr.bf16.gmra.mxu0 %v3651
      %v6797 = vpop.f32.mrf.mxu0
      %v6798 = vadd.f32 %v3194, %v6797
      %v6799 = vpop.f32.mrf.mxu0
      %v6800 = vadd.f32 %v3194, %v6799
      %v6801 = vpop.f32.mrf.mxu0
      %v6802 = vadd.f32 %v3199, %v6801
      %v6803 = vpop.f32.mrf.mxu0
      %v6804 = vadd.f32 %v3199, %v6803
      %6805 = vmatprep.mubr.bf16.mxu0 0
      %6806 = vmatmul.mubr.bf16.gmra.mxu0 %v3654
      %v6807 = vpop.f32.mrf.mxu0
      %v6808 = vadd.f32 %v3204, %v6807
      %v6809 = vpop.f32.mrf.mxu0
      %v6810 = vadd.f32 %v3204, %v6809
      %v6811 = vpop.f32.mrf.mxu0
      %v6812 = vadd.f32 %v3209, %v6811
      %v6813 = vpop.f32.mrf.mxu0
      %v6814 = vadd.f32 %v3209, %v6813
      %6815 = vmatprep.mubr.bf16.mxu0 0
      %6816 = vmatmul.mubr.bf16.gmra.mxu0 %v3657
      %v6817 = vpop.f32.mrf.mxu0
      %v6818 = vadd.f32 %v3214, %v6817
      %v6819 = vpop.f32.mrf.mxu0
      %v6820 = vadd.f32 %v3214, %v6819
      %v6821 = vpop.f32.mrf.mxu0
      %v6822 = vadd.f32 %v3219, %v6821
      %v6823 = vpop.f32.mrf.mxu0
      %v6824 = vadd.f32 %v3219, %v6823
      %6825 = vmatprep.mubr.bf16.mxu0 0
      %6826 = vmatmul.mubr.bf16.gmra.mxu0 %v3660
      %v6827 = vpop.f32.mrf.mxu0
      %v6828 = vadd.f32 %v3224, %v6827
      %v6829 = vpop.f32.mrf.mxu0
      %v6830 = vadd.f32 %v3224, %v6829
      %v6831 = vpop.f32.mrf.mxu0
      %v6832 = vadd.f32 %v3229, %v6831
      %v6833 = vpop.f32.mrf.mxu0
      %v6834 = vadd.f32 %v3229, %v6833
      %6835 = vmatprep.mubr.bf16.mxu0 0
      %6836 = vmatmul.mubr.bf16.gmra.mxu0 %v3663
      %v6837 = vpop.f32.mrf.mxu0
      %v6838 = vadd.f32 %v3234, %v6837
      %v6839 = vpop.f32.mrf.mxu0
      %v6840 = vadd.f32 %v3234, %v6839
      %v6841 = vpop.f32.mrf.mxu0
      %v6842 = vadd.f32 %v3239, %v6841
      %v6843 = vpop.f32.mrf.mxu0
      %v6844 = vadd.f32 %v3239, %v6843
      %6845 = vmatprep.mubr.bf16.mxu0 0
      %6846 = vmatmul.mubr.bf16.gmra.mxu0 %v3666
      %v6847 = vpop.f32.mrf.mxu0
      %v6848 = vadd.f32 %v3244, %v6847
      %v6849 = vpop.f32.mrf.mxu0
      %v6850 = vadd.f32 %v3244, %v6849
      %v6851 = vpop.f32.mrf.mxu0
      %v6852 = vadd.f32 %v3249, %v6851
      %v6853 = vpop.f32.mrf.mxu0
      %v6854 = vadd.f32 %v3249, %v6853
      %6855 = vdwg.mxu0
      %v6856 = vmul.f32 %v1363, %v2947
      %v6857 = vmul.f32 %v1364, %v2947
      %v6858 = vmul.f32 %v1365, %v2947
      %v6859 = vmul.f32 %v1366, %v2947
      %v6860 = vmul.f32 %v1367, %v2947
      %v6861 = vmul.f32 %v1368, %v2947
      %v6862 = vmul.f32 %v1369, %v2947
      %v6863 = vmul.f32 %v1370, %v2947
      %v6864 = vmul.f32 %v1371, %v2947
      %v6865 = vmul.f32 %v1372, %v2947
      %v6866 = vmul.f32 %v1373, %v2947
      %v6867 = vmul.f32 %v1374, %v2947
      %v6868 = vmul.f32 %v1375, %v2947
      %v6869 = vmul.f32 %v1376, %v2947
      %v6870 = vmul.f32 %v1377, %v2947
      %v6871 = vmul.f32 %v1378, %v2947
      %v6872 = vmul.f32 %v1379, %v2947
      %v6873 = vmul.f32 %v1380, %v2947
      %v6874 = vmul.f32 %v1381, %v2947
      %v6875 = vmul.f32 %v1382, %v2947
      %v6876 = vmul.f32 %v1383, %v2947
      %v6877 = vmul.f32 %v1384, %v2947
      %v6878 = vmul.f32 %v1385, %v2947
      %v6879 = vmul.f32 %v1386, %v2947
      %v6880 = vmul.f32 %v1387, %v2947
      %v6881 = vmul.f32 %v1388, %v2947
      %v6882 = vmul.f32 %v1389, %v2947
      %v6883 = vmul.f32 %v1390, %v2947
      %v6884 = vmul.f32 %v1391, %v2947
      %v6885 = vmul.f32 %v1392, %v2947
      %v6886 = vmul.f32 %v1393, %v2947
      %v6887 = vmul.f32 %v1394, %v2947
      %v6888 = vmul.f32 %v1395, %v2948
      %v6889 = vmul.f32 %v1396, %v2948
      %v6890 = vmul.f32 %v1397, %v2948
      %v6891 = vmul.f32 %v1398, %v2948
      %v6892 = vmul.f32 %v1399, %v2948
      %v6893 = vmul.f32 %v1400, %v2948
      %v6894 = vmul.f32 %v1401, %v2948
      %v6895 = vmul.f32 %v1402, %v2948
      %v6896 = vmul.f32 %v1403, %v2948
      %v6897 = vmul.f32 %v1404, %v2948
      %v6898 = vmul.f32 %v1405, %v2948
      %v6899 = vmul.f32 %v1406, %v2948
      %v6900 = vmul.f32 %v1407, %v2948
      %v6901 = vmul.f32 %v1408, %v2948
      %v6902 = vmul.f32 %v1409, %v2948
      %v6903 = vmul.f32 %v1410, %v2948
      %v6904 = vmul.f32 %v1411, %v2948
      %v6905 = vmul.f32 %v1412, %v2948
      %v6906 = vmul.f32 %v1413, %v2948
      %v6907 = vmul.f32 %v1414, %v2948
      %v6908 = vmul.f32 %v1415, %v2948
      %v6909 = vmul.f32 %v1416, %v2948
      %v6910 = vmul.f32 %v1417, %v2948
      %v6911 = vmul.f32 %v1418, %v2948
      %v6912 = vmul.f32 %v1419, %v2948
      %v6913 = vmul.f32 %v1420, %v2948
      %v6914 = vmul.f32 %v1421, %v2948
      %v6915 = vmul.f32 %v1422, %v2948
      %v6916 = vmul.f32 %v1423, %v2948
      %v6917 = vmul.f32 %v1424, %v2948
      %v6918 = vmul.f32 %v1425, %v2948
      %v6919 = vmul.f32 %v1426, %v2948
      %v6920 = vmul.f32 %v1427, %v2949
      %v6921 = vmul.f32 %v1428, %v2949
      %v6922 = vmul.f32 %v1429, %v2949
      %v6923 = vmul.f32 %v1430, %v2949
      %v6924 = vmul.f32 %v1431, %v2949
      %v6925 = vmul.f32 %v1432, %v2949
      %v6926 = vmul.f32 %v1433, %v2949
      %v6927 = vmul.f32 %v1434, %v2949
      %v6928 = vmul.f32 %v1435, %v2949
      %v6929 = vmul.f32 %v1436, %v2949
      %v6930 = vmul.f32 %v1437, %v2949
      %v6931 = vmul.f32 %v1438, %v2949
      %v6932 = vmul.f32 %v1439, %v2949
      %v6933 = vmul.f32 %v1440, %v2949
      %v6934 = vmul.f32 %v1441, %v2949
      %v6935 = vmul.f32 %v1442, %v2949
      %v6936 = vmul.f32 %v1443, %v2949
      %v6937 = vmul.f32 %v1444, %v2949
      %v6938 = vmul.f32 %v1445, %v2949
      %v6939 = vmul.f32 %v1446, %v2949
      %v6940 = vmul.f32 %v1447, %v2949
      %v6941 = vmul.f32 %v1448, %v2949
      %v6942 = vmul.f32 %v1449, %v2949
      %v6943 = vmul.f32 %v1450, %v2949
      %v6944 = vmul.f32 %v1451, %v2949
      %v6945 = vmul.f32 %v1452, %v2949
      %v6946 = vmul.f32 %v1453, %v2949
      %v6947 = vmul.f32 %v1454, %v2949
      %v6948 = vmul.f32 %v1455, %v2949
      %v6949 = vmul.f32 %v1456, %v2949
      %v6950 = vmul.f32 %v1457, %v2949
      %v6951 = vmul.f32 %v1458, %v2949
      %v6952 = vmul.f32 %v1459, %v2950
      %v6953 = vmul.f32 %v1460, %v2950
      %v6954 = vmul.f32 %v1461, %v2950
      %v6955 = vmul.f32 %v1462, %v2950
      %v6956 = vmul.f32 %v1463, %v2950
      %v6957 = vmul.f32 %v1464, %v2950
      %v6958 = vmul.f32 %v1465, %v2950
      %v6959 = vmul.f32 %v1466, %v2950
      %v6960 = vmul.f32 %v1467, %v2950
      %v6961 = vmul.f32 %v1468, %v2950
      %v6962 = vmul.f32 %v1469, %v2950
      %v6963 = vmul.f32 %v1470, %v2950
      %v6964 = vmul.f32 %v1471, %v2950
      %v6965 = vmul.f32 %v1472, %v2950
      %v6966 = vmul.f32 %v1473, %v2950
      %v6967 = vmul.f32 %v1474, %v2950
      %v6968 = vmul.f32 %v1475, %v2950
      %v6969 = vmul.f32 %v1476, %v2950
      %v6970 = vmul.f32 %v1477, %v2950
      %v6971 = vmul.f32 %v1478, %v2950
      %v6972 = vmul.f32 %v1479, %v2950
      %v6973 = vmul.f32 %v1480, %v2950
      %v6974 = vmul.f32 %v1481, %v2950
      %v6975 = vmul.f32 %v1482, %v2950
      %v6976 = vmul.f32 %v1483, %v2950
      %v6977 = vmul.f32 %v1484, %v2950
      %v6978 = vmul.f32 %v1485, %v2950
      %v6979 = vmul.f32 %v1486, %v2950
      %v6980 = vmul.f32 %v1487, %v2950
      %v6981 = vmul.f32 %v1488, %v2950
      %v6982 = vmul.f32 %v1489, %v2950
      %v6983 = vmul.f32 %v1490, %v2950
      %v6984 = vmul.f32 %v1491, %v2951
      %v6985 = vmul.f32 %v1492, %v2951
      %v6986 = vmul.f32 %v1493, %v2951
      %v6987 = vmul.f32 %v1494, %v2951
      %v6988 = vmul.f32 %v1495, %v2951
      %v6989 = vmul.f32 %v1496, %v2951
      %v6990 = vmul.f32 %v1497, %v2951
      %v6991 = vmul.f32 %v1498, %v2951
      %v6992 = vmul.f32 %v1499, %v2951
      %v6993 = vmul.f32 %v1500, %v2951
      %v6994 = vmul.f32 %v1501, %v2951
      %v6995 = vmul.f32 %v1502, %v2951
      %v6996 = vmul.f32 %v1503, %v2951
      %v6997 = vmul.f32 %v1504, %v2951
      %v6998 = vmul.f32 %v1505, %v2951
      %v6999 = vmul.f32 %v1506, %v2951
      %v7000 = vmul.f32 %v1507, %v2951
      %v7001 = vmul.f32 %v1508, %v2951
      %v7002 = vmul.f32 %v1509, %v2951
      %v7003 = vmul.f32 %v1510, %v2951
      %v7004 = vmul.f32 %v1511, %v2951
      %v7005 = vmul.f32 %v1512, %v2951
      %v7006 = vmul.f32 %v1513, %v2951
      %v7007 = vmul.f32 %v1514, %v2951
      %v7008 = vmul.f32 %v1515, %v2951
      %v7009 = vmul.f32 %v1516, %v2951
      %v7010 = vmul.f32 %v1517, %v2951
      %v7011 = vmul.f32 %v1518, %v2951
      %v7012 = vmul.f32 %v1519, %v2951
      %v7013 = vmul.f32 %v1520, %v2951
      %v7014 = vmul.f32 %v1521, %v2951
      %v7015 = vmul.f32 %v1522, %v2951
      %v7016 = vmul.f32 %v1523, %v2952
      %v7017 = vmul.f32 %v1524, %v2952
      %v7018 = vmul.f32 %v1525, %v2952
      %v7019 = vmul.f32 %v1526, %v2952
      %v7020 = vmul.f32 %v1527, %v2952
      %v7021 = vmul.f32 %v1528, %v2952
      %v7022 = vmul.f32 %v1529, %v2952
      %v7023 = vmul.f32 %v1530, %v2952
      %v7024 = vmul.f32 %v1531, %v2952
      %v7025 = vmul.f32 %v1532, %v2952
      %v7026 = vmul.f32 %v1533, %v2952
      %v7027 = vmul.f32 %v1534, %v2952
      %v7028 = vmul.f32 %v1535, %v2952
      %v7029 = vmul.f32 %v1536, %v2952
      %v7030 = vmul.f32 %v1537, %v2952
      %v7031 = vmul.f32 %v1538, %v2952
      %v7032 = vmul.f32 %v1539, %v2952
      %v7033 = vmul.f32 %v1540, %v2952
      %v7034 = vmul.f32 %v1541, %v2952
      %v7035 = vmul.f32 %v1542, %v2952
      %v7036 = vmul.f32 %v1543, %v2952
      %v7037 = vmul.f32 %v1544, %v2952
      %v7038 = vmul.f32 %v1545, %v2952
      %v7039 = vmul.f32 %v1546, %v2952
      %v7040 = vmul.f32 %v1547, %v2952
      %v7041 = vmul.f32 %v1548, %v2952
      %v7042 = vmul.f32 %v1549, %v2952
      %v7043 = vmul.f32 %v1550, %v2952
      %v7044 = vmul.f32 %v1551, %v2952
      %v7045 = vmul.f32 %v1552, %v2952
      %v7046 = vmul.f32 %v1553, %v2952
      %v7047 = vmul.f32 %v1554, %v2952
      %v7048 = vmul.f32 %v1555, %v2953
      %v7049 = vmul.f32 %v1556, %v2953
      %v7050 = vmul.f32 %v1557, %v2953
      %v7051 = vmul.f32 %v1558, %v2953
      %v7052 = vmul.f32 %v1559, %v2953
      %v7053 = vmul.f32 %v1560, %v2953
      %v7054 = vmul.f32 %v1561, %v2953
      %v7055 = vmul.f32 %v1562, %v2953
      %v7056 = vmul.f32 %v1563, %v2953
      %v7057 = vmul.f32 %v1564, %v2953
      %v7058 = vmul.f32 %v1565, %v2953
      %v7059 = vmul.f32 %v1566, %v2953
      %v7060 = vmul.f32 %v1567, %v2953
      %v7061 = vmul.f32 %v1568, %v2953
      %v7062 = vmul.f32 %v1569, %v2953
      %v7063 = vmul.f32 %v1570, %v2953
      %v7064 = vmul.f32 %v1571, %v2953
      %v7065 = vmul.f32 %v1572, %v2953
      %v7066 = vmul.f32 %v1573, %v2953
      %v7067 = vmul.f32 %v1574, %v2953
      %v7068 = vmul.f32 %v1575, %v2953
      %v7069 = vmul.f32 %v1576, %v2953
      %v7070 = vmul.f32 %v1577, %v2953
      %v7071 = vmul.f32 %v1578, %v2953
      %v7072 = vmul.f32 %v1579, %v2953
      %v7073 = vmul.f32 %v1580, %v2953
      %v7074 = vmul.f32 %v1581, %v2953
      %v7075 = vmul.f32 %v1582, %v2953
      %v7076 = vmul.f32 %v1583, %v2953
      %v7077 = vmul.f32 %v1584, %v2953
      %v7078 = vmul.f32 %v1585, %v2953
      %v7079 = vmul.f32 %v1586, %v2953
      %v7080 = vmul.f32 %v1587, %v2954
      %v7081 = vmul.f32 %v1588, %v2954
      %v7082 = vmul.f32 %v1589, %v2954
      %v7083 = vmul.f32 %v1590, %v2954
      %v7084 = vmul.f32 %v1591, %v2954
      %v7085 = vmul.f32 %v1592, %v2954
      %v7086 = vmul.f32 %v1593, %v2954
      %v7087 = vmul.f32 %v1594, %v2954
      %v7088 = vmul.f32 %v1595, %v2954
      %v7089 = vmul.f32 %v1596, %v2954
      %v7090 = vmul.f32 %v1597, %v2954
      %v7091 = vmul.f32 %v1598, %v2954
      %v7092 = vmul.f32 %v1599, %v2954
      %v7093 = vmul.f32 %v1600, %v2954
      %v7094 = vmul.f32 %v1601, %v2954
      %v7095 = vmul.f32 %v1602, %v2954
      %v7096 = vmul.f32 %v1603, %v2954
      %v7097 = vmul.f32 %v1604, %v2954
      %v7098 = vmul.f32 %v1605, %v2954
      %v7099 = vmul.f32 %v1606, %v2954
      %v7100 = vmul.f32 %v1607, %v2954
      %v7101 = vmul.f32 %v1608, %v2954
      %v7102 = vmul.f32 %v1609, %v2954
      %v7103 = vmul.f32 %v1610, %v2954
      %v7104 = vmul.f32 %v1611, %v2954
      %v7105 = vmul.f32 %v1612, %v2954
      %v7106 = vmul.f32 %v1613, %v2954
      %v7107 = vmul.f32 %v1614, %v2954
      %v7108 = vmul.f32 %v1615, %v2954
      %v7109 = vmul.f32 %v1616, %v2954
      %v7110 = vmul.f32 %v1617, %v2954
      %v7111 = vmul.f32 %v1618, %v2954
      %v7112 = vmul.f32 %v1619, %v2955
      %v7113 = vmul.f32 %v1620, %v2955
      %v7114 = vmul.f32 %v1621, %v2955
      %v7115 = vmul.f32 %v1622, %v2955
      %v7116 = vmul.f32 %v1623, %v2955
      %v7117 = vmul.f32 %v1624, %v2955
      %v7118 = vmul.f32 %v1625, %v2955
      %v7119 = vmul.f32 %v1626, %v2955
      %v7120 = vmul.f32 %v1627, %v2955
      %v7121 = vmul.f32 %v1628, %v2955
      %v7122 = vmul.f32 %v1629, %v2955
      %v7123 = vmul.f32 %v1630, %v2955
      %v7124 = vmul.f32 %v1631, %v2955
      %v7125 = vmul.f32 %v1632, %v2955
      %v7126 = vmul.f32 %v1633, %v2955
      %v7127 = vmul.f32 %v1634, %v2955
      %v7128 = vmul.f32 %v1635, %v2955
      %v7129 = vmul.f32 %v1636, %v2955
      %v7130 = vmul.f32 %v1637, %v2955
      %v7131 = vmul.f32 %v1638, %v2955
      %v7132 = vmul.f32 %v1639, %v2955
      %v7133 = vmul.f32 %v1640, %v2955
      %v7134 = vmul.f32 %v1641, %v2955
      %v7135 = vmul.f32 %v1642, %v2955
      %v7136 = vmul.f32 %v1643, %v2955
      %v7137 = vmul.f32 %v1644, %v2955
      %v7138 = vmul.f32 %v1645, %v2955
      %v7139 = vmul.f32 %v1646, %v2955
      %v7140 = vmul.f32 %v1647, %v2955
      %v7141 = vmul.f32 %v1648, %v2955
      %v7142 = vmul.f32 %v1649, %v2955
      %v7143 = vmul.f32 %v1650, %v2955
      %v7144 = vmul.f32 %v1651, %v2956
      %v7145 = vmul.f32 %v1652, %v2956
      %v7146 = vmul.f32 %v1653, %v2956
      %v7147 = vmul.f32 %v1654, %v2956
      %v7148 = vmul.f32 %v1655, %v2956
      %v7149 = vmul.f32 %v1656, %v2956
      %v7150 = vmul.f32 %v1657, %v2956
      %v7151 = vmul.f32 %v1658, %v2956
      %v7152 = vmul.f32 %v1659, %v2956
      %v7153 = vmul.f32 %v1660, %v2956
      %v7154 = vmul.f32 %v1661, %v2956
      %v7155 = vmul.f32 %v1662, %v2956
      %v7156 = vmul.f32 %v1663, %v2956
      %v7157 = vmul.f32 %v1664, %v2956
      %v7158 = vmul.f32 %v1665, %v2956
      %v7159 = vmul.f32 %v1666, %v2956
      %v7160 = vmul.f32 %v1667, %v2956
      %v7161 = vmul.f32 %v1668, %v2956
      %v7162 = vmul.f32 %v1669, %v2956
      %v7163 = vmul.f32 %v1670, %v2956
      %v7164 = vmul.f32 %v1671, %v2956
      %v7165 = vmul.f32 %v1672, %v2956
      %v7166 = vmul.f32 %v1673, %v2956
      %v7167 = vmul.f32 %v1674, %v2956
      %v7168 = vmul.f32 %v1675, %v2956
      %v7169 = vmul.f32 %v1676, %v2956
      %v7170 = vmul.f32 %v1677, %v2956
      %v7171 = vmul.f32 %v1678, %v2956
      %v7172 = vmul.f32 %v1679, %v2956
      %v7173 = vmul.f32 %v1680, %v2956
      %v7174 = vmul.f32 %v1681, %v2956
      %v7175 = vmul.f32 %v1682, %v2956
      %v7176 = vmul.f32 %v1683, %v2957
      %v7177 = vmul.f32 %v1684, %v2957
      %v7178 = vmul.f32 %v1685, %v2957
      %v7179 = vmul.f32 %v1686, %v2957
      %v7180 = vmul.f32 %v1687, %v2957
      %v7181 = vmul.f32 %v1688, %v2957
      %v7182 = vmul.f32 %v1689, %v2957
      %v7183 = vmul.f32 %v1690, %v2957
      %v7184 = vmul.f32 %v1691, %v2957
      %v7185 = vmul.f32 %v1692, %v2957
      %v7186 = vmul.f32 %v1693, %v2957
      %v7187 = vmul.f32 %v1694, %v2957
      %v7188 = vmul.f32 %v1695, %v2957
      %v7189 = vmul.f32 %v1696, %v2957
      %v7190 = vmul.f32 %v1697, %v2957
      %v7191 = vmul.f32 %v1698, %v2957
      %v7192 = vmul.f32 %v1699, %v2957
      %v7193 = vmul.f32 %v1700, %v2957
      %v7194 = vmul.f32 %v1701, %v2957
      %v7195 = vmul.f32 %v1702, %v2957
      %v7196 = vmul.f32 %v1703, %v2957
      %v7197 = vmul.f32 %v1704, %v2957
      %v7198 = vmul.f32 %v1705, %v2957
      %v7199 = vmul.f32 %v1706, %v2957
      %v7200 = vmul.f32 %v1707, %v2957
      %v7201 = vmul.f32 %v1708, %v2957
      %v7202 = vmul.f32 %v1709, %v2957
      %v7203 = vmul.f32 %v1710, %v2957
      %v7204 = vmul.f32 %v1711, %v2957
      %v7205 = vmul.f32 %v1712, %v2957
      %v7206 = vmul.f32 %v1713, %v2957
      %v7207 = vmul.f32 %v1714, %v2957
      %v7208 = vmul.f32 %v1715, %v2958
      %v7209 = vmul.f32 %v1716, %v2958
      %v7210 = vmul.f32 %v1717, %v2958
      %v7211 = vmul.f32 %v1718, %v2958
      %v7212 = vmul.f32 %v1719, %v2958
      %v7213 = vmul.f32 %v1720, %v2958
      %v7214 = vmul.f32 %v1721, %v2958
      %v7215 = vmul.f32 %v1722, %v2958
      %v7216 = vmul.f32 %v1723, %v2958
      %v7217 = vmul.f32 %v1724, %v2958
      %v7218 = vmul.f32 %v1725, %v2958
      %v7219 = vmul.f32 %v1726, %v2958
      %v7220 = vmul.f32 %v1727, %v2958
      %v7221 = vmul.f32 %v1728, %v2958
      %v7222 = vmul.f32 %v1729, %v2958
      %v7223 = vmul.f32 %v1730, %v2958
      %v7224 = vmul.f32 %v1731, %v2958
      %v7225 = vmul.f32 %v1732, %v2958
      %v7226 = vmul.f32 %v1733, %v2958
      %v7227 = vmul.f32 %v1734, %v2958
      %v7228 = vmul.f32 %v1735, %v2958
      %v7229 = vmul.f32 %v1736, %v2958
      %v7230 = vmul.f32 %v1737, %v2958
      %v7231 = vmul.f32 %v1738, %v2958
      %v7232 = vmul.f32 %v1739, %v2958
      %v7233 = vmul.f32 %v1740, %v2958
      %v7234 = vmul.f32 %v1741, %v2958
      %v7235 = vmul.f32 %v1742, %v2958
      %v7236 = vmul.f32 %v1743, %v2958
      %v7237 = vmul.f32 %v1744, %v2958
      %v7238 = vmul.f32 %v1745, %v2958
      %v7239 = vmul.f32 %v1746, %v2958
      %v7240 = vmul.f32 %v1747, %v2959
      %v7241 = vmul.f32 %v1748, %v2959
      %v7242 = vmul.f32 %v1749, %v2959
      %v7243 = vmul.f32 %v1750, %v2959
      %v7244 = vmul.f32 %v1751, %v2959
      %v7245 = vmul.f32 %v1752, %v2959
      %v7246 = vmul.f32 %v1753, %v2959
      %v7247 = vmul.f32 %v1754, %v2959
      %v7248 = vmul.f32 %v1755, %v2959
      %v7249 = vmul.f32 %v1756, %v2959
      %v7250 = vmul.f32 %v1757, %v2959
      %v7251 = vmul.f32 %v1758, %v2959
      %v7252 = vmul.f32 %v1759, %v2959
      %v7253 = vmul.f32 %v1760, %v2959
      %v7254 = vmul.f32 %v1761, %v2959
      %v7255 = vmul.f32 %v1762, %v2959
      %v7256 = vmul.f32 %v1763, %v2959
      %v7257 = vmul.f32 %v1764, %v2959
      %v7258 = vmul.f32 %v1765, %v2959
      %v7259 = vmul.f32 %v1766, %v2959
      %v7260 = vmul.f32 %v1767, %v2959
      %v7261 = vmul.f32 %v1768, %v2959
      %v7262 = vmul.f32 %v1769, %v2959
      %v7263 = vmul.f32 %v1770, %v2959
      %v7264 = vmul.f32 %v1771, %v2959
      %v7265 = vmul.f32 %v1772, %v2959
      %v7266 = vmul.f32 %v1773, %v2959
      %v7267 = vmul.f32 %v1774, %v2959
      %v7268 = vmul.f32 %v1775, %v2959
      %v7269 = vmul.f32 %v1776, %v2959
      %v7270 = vmul.f32 %v1777, %v2959
      %v7271 = vmul.f32 %v1778, %v2959
      %v7272 = vmul.f32 %v1779, %v2960
      %v7273 = vmul.f32 %v1780, %v2960
      %v7274 = vmul.f32 %v1781, %v2960
      %v7275 = vmul.f32 %v1782, %v2960
      %v7276 = vmul.f32 %v1783, %v2960
      %v7277 = vmul.f32 %v1784, %v2960
      %v7278 = vmul.f32 %v1785, %v2960
      %v7279 = vmul.f32 %v1786, %v2960
      %v7280 = vmul.f32 %v1787, %v2960
      %v7281 = vmul.f32 %v1788, %v2960
      %v7282 = vmul.f32 %v1789, %v2960
      %v7283 = vmul.f32 %v1790, %v2960
      %v7284 = vmul.f32 %v1791, %v2960
      %v7285 = vmul.f32 %v1792, %v2960
      %v7286 = vmul.f32 %v1793, %v2960
      %v7287 = vmul.f32 %v1794, %v2960
      %v7288 = vmul.f32 %v1795, %v2960
      %v7289 = vmul.f32 %v1796, %v2960
      %v7290 = vmul.f32 %v1797, %v2960
      %v7291 = vmul.f32 %v1798, %v2960
      %v7292 = vmul.f32 %v1799, %v2960
      %v7293 = vmul.f32 %v1800, %v2960
      %v7294 = vmul.f32 %v1801, %v2960
      %v7295 = vmul.f32 %v1802, %v2960
      %v7296 = vmul.f32 %v1803, %v2960
      %v7297 = vmul.f32 %v1804, %v2960
      %v7298 = vmul.f32 %v1805, %v2960
      %v7299 = vmul.f32 %v1806, %v2960
      %v7300 = vmul.f32 %v1807, %v2960
      %v7301 = vmul.f32 %v1808, %v2960
      %v7302 = vmul.f32 %v1809, %v2960
      %v7303 = vmul.f32 %v1810, %v2960
      %v7304 = vmul.f32 %v1811, %v2961
      %v7305 = vmul.f32 %v1812, %v2961
      %v7306 = vmul.f32 %v1813, %v2961
      %v7307 = vmul.f32 %v1814, %v2961
      %v7308 = vmul.f32 %v1815, %v2961
      %v7309 = vmul.f32 %v1816, %v2961
      %v7310 = vmul.f32 %v1817, %v2961
      %v7311 = vmul.f32 %v1818, %v2961
      %v7312 = vmul.f32 %v1819, %v2961
      %v7313 = vmul.f32 %v1820, %v2961
      %v7314 = vmul.f32 %v1821, %v2961
      %v7315 = vmul.f32 %v1822, %v2961
      %v7316 = vmul.f32 %v1823, %v2961
      %v7317 = vmul.f32 %v1824, %v2961
      %v7318 = vmul.f32 %v1825, %v2961
      %v7319 = vmul.f32 %v1826, %v2961
      %v7320 = vmul.f32 %v1827, %v2961
      %v7321 = vmul.f32 %v1828, %v2961
      %v7322 = vmul.f32 %v1829, %v2961
      %v7323 = vmul.f32 %v1830, %v2961
      %v7324 = vmul.f32 %v1831, %v2961
      %v7325 = vmul.f32 %v1832, %v2961
      %v7326 = vmul.f32 %v1833, %v2961
      %v7327 = vmul.f32 %v1834, %v2961
      %v7328 = vmul.f32 %v1835, %v2961
      %v7329 = vmul.f32 %v1836, %v2961
      %v7330 = vmul.f32 %v1837, %v2961
      %v7331 = vmul.f32 %v1838, %v2961
      %v7332 = vmul.f32 %v1839, %v2961
      %v7333 = vmul.f32 %v1840, %v2961
      %v7334 = vmul.f32 %v1841, %v2961
      %v7335 = vmul.f32 %v1842, %v2961
      %v7336 = vmul.f32 %v1843, %v2962
      %v7337 = vmul.f32 %v1844, %v2962
      %v7338 = vmul.f32 %v1845, %v2962
      %v7339 = vmul.f32 %v1846, %v2962
      %v7340 = vmul.f32 %v1847, %v2962
      %v7341 = vmul.f32 %v1848, %v2962
      %v7342 = vmul.f32 %v1849, %v2962
      %v7343 = vmul.f32 %v1850, %v2962
      %v7344 = vmul.f32 %v1851, %v2962
      %v7345 = vmul.f32 %v1852, %v2962
      %v7346 = vmul.f32 %v1853, %v2962
      %v7347 = vmul.f32 %v1854, %v2962
      %v7348 = vmul.f32 %v1855, %v2962
      %v7349 = vmul.f32 %v1856, %v2962
      %v7350 = vmul.f32 %v1857, %v2962
      %v7351 = vmul.f32 %v1858, %v2962
      %v7352 = vmul.f32 %v1859, %v2962
      %v7353 = vmul.f32 %v1860, %v2962
      %v7354 = vmul.f32 %v1861, %v2962
      %v7355 = vmul.f32 %v1862, %v2962
      %v7356 = vmul.f32 %v1863, %v2962
      %v7357 = vmul.f32 %v1864, %v2962
      %v7358 = vmul.f32 %v1865, %v2962
      %v7359 = vmul.f32 %v1866, %v2962
      %v7360 = vmul.f32 %v1867, %v2962
      %v7361 = vmul.f32 %v1868, %v2962
      %v7362 = vmul.f32 %v1869, %v2962
      %v7363 = vmul.f32 %v1870, %v2962
      %v7364 = vmul.f32 %v1871, %v2962
      %v7365 = vmul.f32 %v1872, %v2962
      %v7366 = vmul.f32 %v1873, %v2962
      %v7367 = vmul.f32 %v1874, %v2962
      %v7368 = vmul.f32 %v6856, %v3803
      %v7369 = vmul.f32 %v6857, %v3805
      %v7370 = vmul.f32 %v6858, %v3996
      %v7371 = vmul.f32 %v6859, %v3998
      %v7372 = vmul.f32 %v6860, %v4189
      %v7373 = vmul.f32 %v6861, %v4191
      %v7374 = vmul.f32 %v6862, %v4382
      %v7375 = vmul.f32 %v6863, %v4384
      %v7376 = vmul.f32 %v6864, %v4575
      %v7377 = vmul.f32 %v6865, %v4577
      %v7378 = vmul.f32 %v6866, %v4768
      %v7379 = vmul.f32 %v6867, %v4770
      %v7380 = vmul.f32 %v6868, %v4961
      %v7381 = vmul.f32 %v6869, %v4963
      %v7382 = vmul.f32 %v6870, %v5154
      %v7383 = vmul.f32 %v6871, %v5156
      %v7384 = vmul.f32 %v6872, %v5347
      %v7385 = vmul.f32 %v6873, %v5349
      %v7386 = vmul.f32 %v6874, %v5540
      %v7387 = vmul.f32 %v6875, %v5542
      %v7388 = vmul.f32 %v6876, %v5733
      %v7389 = vmul.f32 %v6877, %v5735
      %v7390 = vmul.f32 %v6878, %v5926
      %v7391 = vmul.f32 %v6879, %v5928
      %v7392 = vmul.f32 %v6880, %v6119
      %v7393 = vmul.f32 %v6881, %v6121
      %v7394 = vmul.f32 %v6882, %v6312
      %v7395 = vmul.f32 %v6883, %v6314
      %v7396 = vmul.f32 %v6884, %v6505
      %v7397 = vmul.f32 %v6885, %v6507
      %v7398 = vmul.f32 %v6886, %v6698
      %v7399 = vmul.f32 %v6887, %v6700
      %v7400 = vmul.f32 %v6888, %v3807
      %v7401 = vmul.f32 %v6889, %v3809
      %v7402 = vmul.f32 %v6890, %v4000
      %v7403 = vmul.f32 %v6891, %v4002
      %v7404 = vmul.f32 %v6892, %v4193
      %v7405 = vmul.f32 %v6893, %v4195
      %v7406 = vmul.f32 %v6894, %v4386
      %v7407 = vmul.f32 %v6895, %v4388
      %v7408 = vmul.f32 %v6896, %v4579
      %v7409 = vmul.f32 %v6897, %v4581
      %v7410 = vmul.f32 %v6898, %v4772
      %v7411 = vmul.f32 %v6899, %v4774
      %v7412 = vmul.f32 %v6900, %v4965
      %v7413 = vmul.f32 %v6901, %v4967
      %v7414 = vmul.f32 %v6902, %v5158
      %v7415 = vmul.f32 %v6903, %v5160
      %v7416 = vmul.f32 %v6904, %v5351
      %v7417 = vmul.f32 %v6905, %v5353
      %v7418 = vmul.f32 %v6906, %v5544
      %v7419 = vmul.f32 %v6907, %v5546
      %v7420 = vmul.f32 %v6908, %v5737
      %v7421 = vmul.f32 %v6909, %v5739
      %v7422 = vmul.f32 %v6910, %v5930
      %v7423 = vmul.f32 %v6911, %v5932
      %v7424 = vmul.f32 %v6912, %v6123
      %v7425 = vmul.f32 %v6913, %v6125
      %v7426 = vmul.f32 %v6914, %v6316
      %v7427 = vmul.f32 %v6915, %v6318
      %v7428 = vmul.f32 %v6916, %v6509
      %v7429 = vmul.f32 %v6917, %v6511
      %v7430 = vmul.f32 %v6918, %v6702
      %v7431 = vmul.f32 %v6919, %v6704
      %v7432 = vmul.f32 %v6920, %v3813
      %v7433 = vmul.f32 %v6921, %v3815
      %v7434 = vmul.f32 %v6922, %v4006
      %v7435 = vmul.f32 %v6923, %v4008
      %v7436 = vmul.f32 %v6924, %v4199
      %v7437 = vmul.f32 %v6925, %v4201
      %v7438 = vmul.f32 %v6926, %v4392
      %v7439 = vmul.f32 %v6927, %v4394
      %v7440 = vmul.f32 %v6928, %v4585
      %v7441 = vmul.f32 %v6929, %v4587
      %v7442 = vmul.f32 %v6930, %v4778
      %v7443 = vmul.f32 %v6931, %v4780
      %v7444 = vmul.f32 %v6932, %v4971
      %v7445 = vmul.f32 %v6933, %v4973
      %v7446 = vmul.f32 %v6934, %v5164
      %v7447 = vmul.f32 %v6935, %v5166
      %v7448 = vmul.f32 %v6936, %v5357
      %v7449 = vmul.f32 %v6937, %v5359
      %v7450 = vmul.f32 %v6938, %v5550
      %v7451 = vmul.f32 %v6939, %v5552
      %v7452 = vmul.f32 %v6940, %v5743
      %v7453 = vmul.f32 %v6941, %v5745
      %v7454 = vmul.f32 %v6942, %v5936
      %v7455 = vmul.f32 %v6943, %v5938
      %v7456 = vmul.f32 %v6944, %v6129
      %v7457 = vmul.f32 %v6945, %v6131
      %v7458 = vmul.f32 %v6946, %v6322
      %v7459 = vmul.f32 %v6947, %v6324
      %v7460 = vmul.f32 %v6948, %v6515
      %v7461 = vmul.f32 %v6949, %v6517
      %v7462 = vmul.f32 %v6950, %v6708
      %v7463 = vmul.f32 %v6951, %v6710
      %v7464 = vmul.f32 %v6952, %v3817
      %v7465 = vmul.f32 %v6953, %v3819
      %v7466 = vmul.f32 %v6954, %v4010
      %v7467 = vmul.f32 %v6955, %v4012
      %v7468 = vmul.f32 %v6956, %v4203
      %v7469 = vmul.f32 %v6957, %v4205
      %v7470 = vmul.f32 %v6958, %v4396
      %v7471 = vmul.f32 %v6959, %v4398
      %v7472 = vmul.f32 %v6960, %v4589
      %v7473 = vmul.f32 %v6961, %v4591
      %v7474 = vmul.f32 %v6962, %v4782
      %v7475 = vmul.f32 %v6963, %v4784
      %v7476 = vmul.f32 %v6964, %v4975
      %v7477 = vmul.f32 %v6965, %v4977
      %v7478 = vmul.f32 %v6966, %v5168
      %v7479 = vmul.f32 %v6967, %v5170
      %v7480 = vmul.f32 %v6968, %v5361
      %v7481 = vmul.f32 %v6969, %v5363
      %v7482 = vmul.f32 %v6970, %v5554
      %v7483 = vmul.f32 %v6971, %v5556
      %v7484 = vmul.f32 %v6972, %v5747
      %v7485 = vmul.f32 %v6973, %v5749
      %v7486 = vmul.f32 %v6974, %v5940
      %v7487 = vmul.f32 %v6975, %v5942
      %v7488 = vmul.f32 %v6976, %v6133
      %v7489 = vmul.f32 %v6977, %v6135
      %v7490 = vmul.f32 %v6978, %v6326
      %v7491 = vmul.f32 %v6979, %v6328
      %v7492 = vmul.f32 %v6980, %v6519
      %v7493 = vmul.f32 %v6981, %v6521
      %v7494 = vmul.f32 %v6982, %v6712
      %v7495 = vmul.f32 %v6983, %v6714
      %v7496 = vmul.f32 %v6984, %v3823
      %v7497 = vmul.f32 %v6985, %v3825
      %v7498 = vmul.f32 %v6986, %v4016
      %v7499 = vmul.f32 %v6987, %v4018
      %v7500 = vmul.f32 %v6988, %v4209
      %v7501 = vmul.f32 %v6989, %v4211
      %v7502 = vmul.f32 %v6990, %v4402
      %v7503 = vmul.f32 %v6991, %v4404
      %v7504 = vmul.f32 %v6992, %v4595
      %v7505 = vmul.f32 %v6993, %v4597
      %v7506 = vmul.f32 %v6994, %v4788
      %v7507 = vmul.f32 %v6995, %v4790
      %v7508 = vmul.f32 %v6996, %v4981
      %v7509 = vmul.f32 %v6997, %v4983
      %v7510 = vmul.f32 %v6998, %v5174
      %v7511 = vmul.f32 %v6999, %v5176
      %v7512 = vmul.f32 %v7000, %v5367
      %v7513 = vmul.f32 %v7001, %v5369
      %v7514 = vmul.f32 %v7002, %v5560
      %v7515 = vmul.f32 %v7003, %v5562
      %v7516 = vmul.f32 %v7004, %v5753
      %v7517 = vmul.f32 %v7005, %v5755
      %v7518 = vmul.f32 %v7006, %v5946
      %v7519 = vmul.f32 %v7007, %v5948
      %v7520 = vmul.f32 %v7008, %v6139
      %v7521 = vmul.f32 %v7009, %v6141
      %v7522 = vmul.f32 %v7010, %v6332
      %v7523 = vmul.f32 %v7011, %v6334
      %v7524 = vmul.f32 %v7012, %v6525
      %v7525 = vmul.f32 %v7013, %v6527
      %v7526 = vmul.f32 %v7014, %v6718
      %v7527 = vmul.f32 %v7015, %v6720
      %v7528 = vmul.f32 %v7016, %v3827
      %v7529 = vmul.f32 %v7017, %v3829
      %v7530 = vmul.f32 %v7018, %v4020
      %v7531 = vmul.f32 %v7019, %v4022
      %v7532 = vmul.f32 %v7020, %v4213
      %v7533 = vmul.f32 %v7021, %v4215
      %v7534 = vmul.f32 %v7022, %v4406
      %v7535 = vmul.f32 %v7023, %v4408
      %v7536 = vmul.f32 %v7024, %v4599
      %v7537 = vmul.f32 %v7025, %v4601
      %v7538 = vmul.f32 %v7026, %v4792
      %v7539 = vmul.f32 %v7027, %v4794
      %v7540 = vmul.f32 %v7028, %v4985
      %v7541 = vmul.f32 %v7029, %v4987
      %v7542 = vmul.f32 %v7030, %v5178
      %v7543 = vmul.f32 %v7031, %v5180
      %v7544 = vmul.f32 %v7032, %v5371
      %v7545 = vmul.f32 %v7033, %v5373
      %v7546 = vmul.f32 %v7034, %v5564
      %v7547 = vmul.f32 %v7035, %v5566
      %v7548 = vmul.f32 %v7036, %v5757
      %v7549 = vmul.f32 %v7037, %v5759
      %v7550 = vmul.f32 %v7038, %v5950
      %v7551 = vmul.f32 %v7039, %v5952
      %v7552 = vmul.f32 %v7040, %v6143
      %v7553 = vmul.f32 %v7041, %v6145
      %v7554 = vmul.f32 %v7042, %v6336
      %v7555 = vmul.f32 %v7043, %v6338
      %v7556 = vmul.f32 %v7044, %v6529
      %v7557 = vmul.f32 %v7045, %v6531
      %v7558 = vmul.f32 %v7046, %v6722
      %v7559 = vmul.f32 %v7047, %v6724
      %v7560 = vmul.f32 %v7048, %v3833
      %v7561 = vmul.f32 %v7049, %v3835
      %v7562 = vmul.f32 %v7050, %v4026
      %v7563 = vmul.f32 %v7051, %v4028
      %v7564 = vmul.f32 %v7052, %v4219
      %v7565 = vmul.f32 %v7053, %v4221
      %v7566 = vmul.f32 %v7054, %v4412
      %v7567 = vmul.f32 %v7055, %v4414
      %v7568 = vmul.f32 %v7056, %v4605
      %v7569 = vmul.f32 %v7057, %v4607
      %v7570 = vmul.f32 %v7058, %v4798
      %v7571 = vmul.f32 %v7059, %v4800
      %v7572 = vmul.f32 %v7060, %v4991
      %v7573 = vmul.f32 %v7061, %v4993
      %v7574 = vmul.f32 %v7062, %v5184
      %v7575 = vmul.f32 %v7063, %v5186
      %v7576 = vmul.f32 %v7064, %v5377
      %v7577 = vmul.f32 %v7065, %v5379
      %v7578 = vmul.f32 %v7066, %v5570
      %v7579 = vmul.f32 %v7067, %v5572
      %v7580 = vmul.f32 %v7068, %v5763
      %v7581 = vmul.f32 %v7069, %v5765
      %v7582 = vmul.f32 %v7070, %v5956
      %v7583 = vmul.f32 %v7071, %v5958
      %v7584 = vmul.f32 %v7072, %v6149
      %v7585 = vmul.f32 %v7073, %v6151
      %v7586 = vmul.f32 %v7074, %v6342
      %v7587 = vmul.f32 %v7075, %v6344
      %v7588 = vmul.f32 %v7076, %v6535
      %v7589 = vmul.f32 %v7077, %v6537
      %v7590 = vmul.f32 %v7078, %v6728
      %v7591 = vmul.f32 %v7079, %v6730
      %v7592 = vmul.f32 %v7080, %v3837
      %v7593 = vmul.f32 %v7081, %v3839
      %v7594 = vmul.f32 %v7082, %v4030
      %v7595 = vmul.f32 %v7083, %v4032
      %v7596 = vmul.f32 %v7084, %v4223
      %v7597 = vmul.f32 %v7085, %v4225
      %v7598 = vmul.f32 %v7086, %v4416
      %v7599 = vmul.f32 %v7087, %v4418
      %v7600 = vmul.f32 %v7088, %v4609
      %v7601 = vmul.f32 %v7089, %v4611
      %v7602 = vmul.f32 %v7090, %v4802
      %v7603 = vmul.f32 %v7091, %v4804
      %v7604 = vmul.f32 %v7092, %v4995
      %v7605 = vmul.f32 %v7093, %v4997
      %v7606 = vmul.f32 %v7094, %v5188
      %v7607 = vmul.f32 %v7095, %v5190
      %v7608 = vmul.f32 %v7096, %v5381
      %v7609 = vmul.f32 %v7097, %v5383
      %v7610 = vmul.f32 %v7098, %v5574
      %v7611 = vmul.f32 %v7099, %v5576
      %v7612 = vmul.f32 %v7100, %v5767
      %v7613 = vmul.f32 %v7101, %v5769
      %v7614 = vmul.f32 %v7102, %v5960
      %v7615 = vmul.f32 %v7103, %v5962
      %v7616 = vmul.f32 %v7104, %v6153
      %v7617 = vmul.f32 %v7105, %v6155
      %v7618 = vmul.f32 %v7106, %v6346
      %v7619 = vmul.f32 %v7107, %v6348
      %v7620 = vmul.f32 %v7108, %v6539
      %v7621 = vmul.f32 %v7109, %v6541
      %v7622 = vmul.f32 %v7110, %v6732
      %v7623 = vmul.f32 %v7111, %v6734
      %v7624 = vmul.f32 %v7112, %v3843
      %v7625 = vmul.f32 %v7113, %v3845
      %v7626 = vmul.f32 %v7114, %v4036
      %v7627 = vmul.f32 %v7115, %v4038
      %v7628 = vmul.f32 %v7116, %v4229
      %v7629 = vmul.f32 %v7117, %v4231
      %v7630 = vmul.f32 %v7118, %v4422
      %v7631 = vmul.f32 %v7119, %v4424
      %v7632 = vmul.f32 %v7120, %v4615
      %v7633 = vmul.f32 %v7121, %v4617
      %v7634 = vmul.f32 %v7122, %v4808
      %v7635 = vmul.f32 %v7123, %v4810
      %v7636 = vmul.f32 %v7124, %v5001
      %v7637 = vmul.f32 %v7125, %v5003
      %v7638 = vmul.f32 %v7126, %v5194
      %v7639 = vmul.f32 %v7127, %v5196
      %v7640 = vmul.f32 %v7128, %v5387
      %v7641 = vmul.f32 %v7129, %v5389
      %v7642 = vmul.f32 %v7130, %v5580
      %v7643 = vmul.f32 %v7131, %v5582
      %v7644 = vmul.f32 %v7132, %v5773
      %v7645 = vmul.f32 %v7133, %v5775
      %v7646 = vmul.f32 %v7134, %v5966
      %v7647 = vmul.f32 %v7135, %v5968
      %v7648 = vmul.f32 %v7136, %v6159
      %v7649 = vmul.f32 %v7137, %v6161
      %v7650 = vmul.f32 %v7138, %v6352
      %v7651 = vmul.f32 %v7139, %v6354
      %v7652 = vmul.f32 %v7140, %v6545
      %v7653 = vmul.f32 %v7141, %v6547
      %v7654 = vmul.f32 %v7142, %v6738
      %v7655 = vmul.f32 %v7143, %v6740
      %v7656 = vmul.f32 %v7144, %v3847
      %v7657 = vmul.f32 %v7145, %v3849
      %v7658 = vmul.f32 %v7146, %v4040
      %v7659 = vmul.f32 %v7147, %v4042
      %v7660 = vmul.f32 %v7148, %v4233
      %v7661 = vmul.f32 %v7149, %v4235
      %v7662 = vmul.f32 %v7150, %v4426
      %v7663 = vmul.f32 %v7151, %v4428
      %v7664 = vmul.f32 %v7152, %v4619
      %v7665 = vmul.f32 %v7153, %v4621
      %v7666 = vmul.f32 %v7154, %v4812
      %v7667 = vmul.f32 %v7155, %v4814
      %v7668 = vmul.f32 %v7156, %v5005
      %v7669 = vmul.f32 %v7157, %v5007
      %v7670 = vmul.f32 %v7158, %v5198
      %v7671 = vmul.f32 %v7159, %v5200
      %v7672 = vmul.f32 %v7160, %v5391
      %v7673 = vmul.f32 %v7161, %v5393
      %v7674 = vmul.f32 %v7162, %v5584
      %v7675 = vmul.f32 %v7163, %v5586
      %v7676 = vmul.f32 %v7164, %v5777
      %v7677 = vmul.f32 %v7165, %v5779
      %v7678 = vmul.f32 %v7166, %v5970
      %v7679 = vmul.f32 %v7167, %v5972
      %v7680 = vmul.f32 %v7168, %v6163
      %v7681 = vmul.f32 %v7169, %v6165
      %v7682 = vmul.f32 %v7170, %v6356
      %v7683 = vmul.f32 %v7171, %v6358
      %v7684 = vmul.f32 %v7172, %v6549
      %v7685 = vmul.f32 %v7173, %v6551
      %v7686 = vmul.f32 %v7174, %v6742
      %v7687 = vmul.f32 %v7175, %v6744
      %v7688 = vmul.f32 %v7176, %v3853
      %v7689 = vmul.f32 %v7177, %v3855
      %v7690 = vmul.f32 %v7178, %v4046
      %v7691 = vmul.f32 %v7179, %v4048
      %v7692 = vmul.f32 %v7180, %v4239
      %v7693 = vmul.f32 %v7181, %v4241
      %v7694 = vmul.f32 %v7182, %v4432
      %v7695 = vmul.f32 %v7183, %v4434
      %v7696 = vmul.f32 %v7184, %v4625
      %v7697 = vmul.f32 %v7185, %v4627
      %v7698 = vmul.f32 %v7186, %v4818
      %v7699 = vmul.f32 %v7187, %v4820
      %v7700 = vmul.f32 %v7188, %v5011
      %v7701 = vmul.f32 %v7189, %v5013
      %v7702 = vmul.f32 %v7190, %v5204
      %v7703 = vmul.f32 %v7191, %v5206
      %v7704 = vmul.f32 %v7192, %v5397
      %v7705 = vmul.f32 %v7193, %v5399
      %v7706 = vmul.f32 %v7194, %v5590
      %v7707 = vmul.f32 %v7195, %v5592
      %v7708 = vmul.f32 %v7196, %v5783
      %v7709 = vmul.f32 %v7197, %v5785
      %v7710 = vmul.f32 %v7198, %v5976
      %v7711 = vmul.f32 %v7199, %v5978
      %v7712 = vmul.f32 %v7200, %v6169
      %v7713 = vmul.f32 %v7201, %v6171
      %v7714 = vmul.f32 %v7202, %v6362
      %v7715 = vmul.f32 %v7203, %v6364
      %v7716 = vmul.f32 %v7204, %v6555
      %v7717 = vmul.f32 %v7205, %v6557
      %v7718 = vmul.f32 %v7206, %v6748
      %v7719 = vmul.f32 %v7207, %v6750
      %v7720 = vmul.f32 %v7208, %v3857
      %v7721 = vmul.f32 %v7209, %v3859
      %v7722 = vmul.f32 %v7210, %v4050
      %v7723 = vmul.f32 %v7211, %v4052
      %v7724 = vmul.f32 %v7212, %v4243
      %v7725 = vmul.f32 %v7213, %v4245
      %v7726 = vmul.f32 %v7214, %v4436
      %v7727 = vmul.f32 %v7215, %v4438
      %v7728 = vmul.f32 %v7216, %v4629
      %v7729 = vmul.f32 %v7217, %v4631
      %v7730 = vmul.f32 %v7218, %v4822
      %v7731 = vmul.f32 %v7219, %v4824
      %v7732 = vmul.f32 %v7220, %v5015
      %v7733 = vmul.f32 %v7221, %v5017
      %v7734 = vmul.f32 %v7222, %v5208
      %v7735 = vmul.f32 %v7223, %v5210
      %v7736 = vmul.f32 %v7224, %v5401
      %v7737 = vmul.f32 %v7225, %v5403
      %v7738 = vmul.f32 %v7226, %v5594
      %v7739 = vmul.f32 %v7227, %v5596
      %v7740 = vmul.f32 %v7228, %v5787
      %v7741 = vmul.f32 %v7229, %v5789
      %v7742 = vmul.f32 %v7230, %v5980
      %v7743 = vmul.f32 %v7231, %v5982
      %v7744 = vmul.f32 %v7232, %v6173
      %v7745 = vmul.f32 %v7233, %v6175
      %v7746 = vmul.f32 %v7234, %v6366
      %v7747 = vmul.f32 %v7235, %v6368
      %v7748 = vmul.f32 %v7236, %v6559
      %v7749 = vmul.f32 %v7237, %v6561
      %v7750 = vmul.f32 %v7238, %v6752
      %v7751 = vmul.f32 %v7239, %v6754
      %v7752 = vmul.f32 %v7240, %v3863
      %v7753 = vmul.f32 %v7241, %v3865
      %v7754 = vmul.f32 %v7242, %v4056
      %v7755 = vmul.f32 %v7243, %v4058
      %v7756 = vmul.f32 %v7244, %v4249
      %v7757 = vmul.f32 %v7245, %v4251
      %v7758 = vmul.f32 %v7246, %v4442
      %v7759 = vmul.f32 %v7247, %v4444
      %v7760 = vmul.f32 %v7248, %v4635
      %v7761 = vmul.f32 %v7249, %v4637
      %v7762 = vmul.f32 %v7250, %v4828
      %v7763 = vmul.f32 %v7251, %v4830
      %v7764 = vmul.f32 %v7252, %v5021
      %v7765 = vmul.f32 %v7253, %v5023
      %v7766 = vmul.f32 %v7254, %v5214
      %v7767 = vmul.f32 %v7255, %v5216
      %v7768 = vmul.f32 %v7256, %v5407
      %v7769 = vmul.f32 %v7257, %v5409
      %v7770 = vmul.f32 %v7258, %v5600
      %v7771 = vmul.f32 %v7259, %v5602
      %v7772 = vmul.f32 %v7260, %v5793
      %v7773 = vmul.f32 %v7261, %v5795
      %v7774 = vmul.f32 %v7262, %v5986
      %v7775 = vmul.f32 %v7263, %v5988
      %v7776 = vmul.f32 %v7264, %v6179
      %v7777 = vmul.f32 %v7265, %v6181
      %v7778 = vmul.f32 %v7266, %v6372
      %v7779 = vmul.f32 %v7267, %v6374
      %v7780 = vmul.f32 %v7268, %v6565
      %v7781 = vmul.f32 %v7269, %v6567
      %v7782 = vmul.f32 %v7270, %v6758
      %v7783 = vmul.f32 %v7271, %v6760
      %v7784 = vmul.f32 %v7272, %v3867
      %v7785 = vmul.f32 %v7273, %v3869
      %v7786 = vmul.f32 %v7274, %v4060
      %v7787 = vmul.f32 %v7275, %v4062
      %v7788 = vmul.f32 %v7276, %v4253
      %v7789 = vmul.f32 %v7277, %v4255
      %v7790 = vmul.f32 %v7278, %v4446
      %v7791 = vmul.f32 %v7279, %v4448
      %v7792 = vmul.f32 %v7280, %v4639
      %v7793 = vmul.f32 %v7281, %v4641
      %v7794 = vmul.f32 %v7282, %v4832
      %v7795 = vmul.f32 %v7283, %v4834
      %v7796 = vmul.f32 %v7284, %v5025
      %v7797 = vmul.f32 %v7285, %v5027
      %v7798 = vmul.f32 %v7286, %v5218
      %v7799 = vmul.f32 %v7287, %v5220
      %v7800 = vmul.f32 %v7288, %v5411
      %v7801 = vmul.f32 %v7289, %v5413
      %v7802 = vmul.f32 %v7290, %v5604
      %v7803 = vmul.f32 %v7291, %v5606
      %v7804 = vmul.f32 %v7292, %v5797
      %v7805 = vmul.f32 %v7293, %v5799
      %v7806 = vmul.f32 %v7294, %v5990
      %v7807 = vmul.f32 %v7295, %v5992
      %v7808 = vmul.f32 %v7296, %v6183
      %v7809 = vmul.f32 %v7297, %v6185
      %v7810 = vmul.f32 %v7298, %v6376
      %v7811 = vmul.f32 %v7299, %v6378
      %v7812 = vmul.f32 %v7300, %v6569
      %v7813 = vmul.f32 %v7301, %v6571
      %v7814 = vmul.f32 %v7302, %v6762
      %v7815 = vmul.f32 %v7303, %v6764
      %v7816 = vmul.f32 %v7304, %v3873
      %v7817 = vmul.f32 %v7305, %v3875
      %v7818 = vmul.f32 %v7306, %v4066
      %v7819 = vmul.f32 %v7307, %v4068
      %v7820 = vmul.f32 %v7308, %v4259
      %v7821 = vmul.f32 %v7309, %v4261
      %v7822 = vmul.f32 %v7310, %v4452
      %v7823 = vmul.f32 %v7311, %v4454
      %v7824 = vmul.f32 %v7312, %v4645
      %v7825 = vmul.f32 %v7313, %v4647
      %v7826 = vmul.f32 %v7314, %v4838
      %v7827 = vmul.f32 %v7315, %v4840
      %v7828 = vmul.f32 %v7316, %v5031
      %v7829 = vmul.f32 %v7317, %v5033
      %v7830 = vmul.f32 %v7318, %v5224
      %v7831 = vmul.f32 %v7319, %v5226
      %v7832 = vmul.f32 %v7320, %v5417
      %v7833 = vmul.f32 %v7321, %v5419
      %v7834 = vmul.f32 %v7322, %v5610
      %v7835 = vmul.f32 %v7323, %v5612
      %v7836 = vmul.f32 %v7324, %v5803
      %v7837 = vmul.f32 %v7325, %v5805
      %v7838 = vmul.f32 %v7326, %v5996
      %v7839 = vmul.f32 %v7327, %v5998
      %v7840 = vmul.f32 %v7328, %v6189
      %v7841 = vmul.f32 %v7329, %v6191
      %v7842 = vmul.f32 %v7330, %v6382
      %v7843 = vmul.f32 %v7331, %v6384
      %v7844 = vmul.f32 %v7332, %v6575
      %v7845 = vmul.f32 %v7333, %v6577
      %v7846 = vmul.f32 %v7334, %v6768
      %v7847 = vmul.f32 %v7335, %v6770
      %v7848 = vmul.f32 %v7336, %v3877
      %v7849 = vmul.f32 %v7337, %v3879
      %v7850 = vmul.f32 %v7338, %v4070
      %v7851 = vmul.f32 %v7339, %v4072
      %v7852 = vmul.f32 %v7340, %v4263
      %v7853 = vmul.f32 %v7341, %v4265
      %v7854 = vmul.f32 %v7342, %v4456
      %v7855 = vmul.f32 %v7343, %v4458
      %v7856 = vmul.f32 %v7344, %v4649
      %v7857 = vmul.f32 %v7345, %v4651
      %v7858 = vmul.f32 %v7346, %v4842
      %v7859 = vmul.f32 %v7347, %v4844
      %v7860 = vmul.f32 %v7348, %v5035
      %v7861 = vmul.f32 %v7349, %v5037
      %v7862 = vmul.f32 %v7350, %v5228
      %v7863 = vmul.f32 %v7351, %v5230
      %v7864 = vmul.f32 %v7352, %v5421
      %v7865 = vmul.f32 %v7353, %v5423
      %v7866 = vmul.f32 %v7354, %v5614
      %v7867 = vmul.f32 %v7355, %v5616
      %v7868 = vmul.f32 %v7356, %v5807
      %v7869 = vmul.f32 %v7357, %v5809
      %v7870 = vmul.f32 %v7358, %v6000
      %v7871 = vmul.f32 %v7359, %v6002
      %v7872 = vmul.f32 %v7360, %v6193
      %v7873 = vmul.f32 %v7361, %v6195
      %v7874 = vmul.f32 %v7362, %v6386
      %v7875 = vmul.f32 %v7363, %v6388
      %v7876 = vmul.f32 %v7364, %v6579
      %v7877 = vmul.f32 %v7365, %v6581
      %v7878 = vmul.f32 %v7366, %v6772
      %v7879 = vmul.f32 %v7367, %v6774
      %v7880 = vadd.f32 %v7368, %v3883
      %v7881 = vadd.f32 %v7369, %v3885
      %v7882 = vadd.f32 %v7370, %v4076
      %v7883 = vadd.f32 %v7371, %v4078
      %v7884 = vadd.f32 %v7372, %v4269
      %v7885 = vadd.f32 %v7373, %v4271
      %v7886 = vadd.f32 %v7374, %v4462
      %v7887 = vadd.f32 %v7375, %v4464
      %v7888 = vadd.f32 %v7376, %v4655
      %v7889 = vadd.f32 %v7377, %v4657
      %v7890 = vadd.f32 %v7378, %v4848
      %v7891 = vadd.f32 %v7379, %v4850
      %v7892 = vadd.f32 %v7380, %v5041
      %v7893 = vadd.f32 %v7381, %v5043
      %v7894 = vadd.f32 %v7382, %v5234
      %v7895 = vadd.f32 %v7383, %v5236
      %v7896 = vadd.f32 %v7384, %v5427
      %v7897 = vadd.f32 %v7385, %v5429
      %v7898 = vadd.f32 %v7386, %v5620
      %v7899 = vadd.f32 %v7387, %v5622
      %v7900 = vadd.f32 %v7388, %v5813
      %v7901 = vadd.f32 %v7389, %v5815
      %v7902 = vadd.f32 %v7390, %v6006
      %v7903 = vadd.f32 %v7391, %v6008
      %v7904 = vadd.f32 %v7392, %v6199
      %v7905 = vadd.f32 %v7393, %v6201
      %v7906 = vadd.f32 %v7394, %v6392
      %v7907 = vadd.f32 %v7395, %v6394
      %v7908 = vadd.f32 %v7396, %v6585
      %v7909 = vadd.f32 %v7397, %v6587
      %v7910 = vadd.f32 %v7398, %v6778
      %v7911 = vadd.f32 %v7399, %v6780
      %v7912 = vadd.f32 %v7400, %v3887
      %v7913 = vadd.f32 %v7401, %v3889
      %v7914 = vadd.f32 %v7402, %v4080
      %v7915 = vadd.f32 %v7403, %v4082
      %v7916 = vadd.f32 %v7404, %v4273
      %v7917 = vadd.f32 %v7405, %v4275
      %v7918 = vadd.f32 %v7406, %v4466
      %v7919 = vadd.f32 %v7407, %v4468
      %v7920 = vadd.f32 %v7408, %v4659
      %v7921 = vadd.f32 %v7409, %v4661
      %v7922 = vadd.f32 %v7410, %v4852
      %v7923 = vadd.f32 %v7411, %v4854
      %v7924 = vadd.f32 %v7412, %v5045
      %v7925 = vadd.f32 %v7413, %v5047
      %v7926 = vadd.f32 %v7414, %v5238
      %v7927 = vadd.f32 %v7415, %v5240
      %v7928 = vadd.f32 %v7416, %v5431
      %v7929 = vadd.f32 %v7417, %v5433
      %v7930 = vadd.f32 %v7418, %v5624
      %v7931 = vadd.f32 %v7419, %v5626
      %v7932 = vadd.f32 %v7420, %v5817
      %v7933 = vadd.f32 %v7421, %v5819
      %v7934 = vadd.f32 %v7422, %v6010
      %v7935 = vadd.f32 %v7423, %v6012
      %v7936 = vadd.f32 %v7424, %v6203
      %v7937 = vadd.f32 %v7425, %v6205
      %v7938 = vadd.f32 %v7426, %v6396
      %v7939 = vadd.f32 %v7427, %v6398
      %v7940 = vadd.f32 %v7428, %v6589
      %v7941 = vadd.f32 %v7429, %v6591
      %v7942 = vadd.f32 %v7430, %v6782
      %v7943 = vadd.f32 %v7431, %v6784
      %v7944 = vadd.f32 %v7432, %v3893
      %v7945 = vadd.f32 %v7433, %v3895
      %v7946 = vadd.f32 %v7434, %v4086
      %v7947 = vadd.f32 %v7435, %v4088
      %v7948 = vadd.f32 %v7436, %v4279
      %v7949 = vadd.f32 %v7437, %v4281
      %v7950 = vadd.f32 %v7438, %v4472
      %v7951 = vadd.f32 %v7439, %v4474
      %v7952 = vadd.f32 %v7440, %v4665
      %v7953 = vadd.f32 %v7441, %v4667
      %v7954 = vadd.f32 %v7442, %v4858
      %v7955 = vadd.f32 %v7443, %v4860
      %v7956 = vadd.f32 %v7444, %v5051
      %v7957 = vadd.f32 %v7445, %v5053
      %v7958 = vadd.f32 %v7446, %v5244
      %v7959 = vadd.f32 %v7447, %v5246
      %v7960 = vadd.f32 %v7448, %v5437
      %v7961 = vadd.f32 %v7449, %v5439
      %v7962 = vadd.f32 %v7450, %v5630
      %v7963 = vadd.f32 %v7451, %v5632
      %v7964 = vadd.f32 %v7452, %v5823
      %v7965 = vadd.f32 %v7453, %v5825
      %v7966 = vadd.f32 %v7454, %v6016
      %v7967 = vadd.f32 %v7455, %v6018
      %v7968 = vadd.f32 %v7456, %v6209
      %v7969 = vadd.f32 %v7457, %v6211
      %v7970 = vadd.f32 %v7458, %v6402
      %v7971 = vadd.f32 %v7459, %v6404
      %v7972 = vadd.f32 %v7460, %v6595
      %v7973 = vadd.f32 %v7461, %v6597
      %v7974 = vadd.f32 %v7462, %v6788
      %v7975 = vadd.f32 %v7463, %v6790
      %v7976 = vadd.f32 %v7464, %v3897
      %v7977 = vadd.f32 %v7465, %v3899
      %v7978 = vadd.f32 %v7466, %v4090
      %v7979 = vadd.f32 %v7467, %v4092
      %v7980 = vadd.f32 %v7468, %v4283
      %v7981 = vadd.f32 %v7469, %v4285
      %v7982 = vadd.f32 %v7470, %v4476
      %v7983 = vadd.f32 %v7471, %v4478
      %v7984 = vadd.f32 %v7472, %v4669
      %v7985 = vadd.f32 %v7473, %v4671
      %v7986 = vadd.f32 %v7474, %v4862
      %v7987 = vadd.f32 %v7475, %v4864
      %v7988 = vadd.f32 %v7476, %v5055
      %v7989 = vadd.f32 %v7477, %v5057
      %v7990 = vadd.f32 %v7478, %v5248
      %v7991 = vadd.f32 %v7479, %v5250
      %v7992 = vadd.f32 %v7480, %v5441
      %v7993 = vadd.f32 %v7481, %v5443
      %v7994 = vadd.f32 %v7482, %v5634
      %v7995 = vadd.f32 %v7483, %v5636
      %v7996 = vadd.f32 %v7484, %v5827
      %v7997 = vadd.f32 %v7485, %v5829
      %v7998 = vadd.f32 %v7486, %v6020
      %v7999 = vadd.f32 %v7487, %v6022
      %v8000 = vadd.f32 %v7488, %v6213
      %v8001 = vadd.f32 %v7489, %v6215
      %v8002 = vadd.f32 %v7490, %v6406
      %v8003 = vadd.f32 %v7491, %v6408
      %v8004 = vadd.f32 %v7492, %v6599
      %v8005 = vadd.f32 %v7493, %v6601
      %v8006 = vadd.f32 %v7494, %v6792
      %v8007 = vadd.f32 %v7495, %v6794
      %v8008 = vadd.f32 %v7496, %v3903
      %v8009 = vadd.f32 %v7497, %v3905
      %v8010 = vadd.f32 %v7498, %v4096
      %v8011 = vadd.f32 %v7499, %v4098
      %v8012 = vadd.f32 %v7500, %v4289
      %v8013 = vadd.f32 %v7501, %v4291
      %v8014 = vadd.f32 %v7502, %v4482
      %v8015 = vadd.f32 %v7503, %v4484
      %v8016 = vadd.f32 %v7504, %v4675
      %v8017 = vadd.f32 %v7505, %v4677
      %v8018 = vadd.f32 %v7506, %v4868
      %v8019 = vadd.f32 %v7507, %v4870
      %v8020 = vadd.f32 %v7508, %v5061
      %v8021 = vadd.f32 %v7509, %v5063
      %v8022 = vadd.f32 %v7510, %v5254
      %v8023 = vadd.f32 %v7511, %v5256
      %v8024 = vadd.f32 %v7512, %v5447
      %v8025 = vadd.f32 %v7513, %v5449
      %v8026 = vadd.f32 %v7514, %v5640
      %v8027 = vadd.f32 %v7515, %v5642
      %v8028 = vadd.f32 %v7516, %v5833
      %v8029 = vadd.f32 %v7517, %v5835
      %v8030 = vadd.f32 %v7518, %v6026
      %v8031 = vadd.f32 %v7519, %v6028
      %v8032 = vadd.f32 %v7520, %v6219
      %v8033 = vadd.f32 %v7521, %v6221
      %v8034 = vadd.f32 %v7522, %v6412
      %v8035 = vadd.f32 %v7523, %v6414
      %v8036 = vadd.f32 %v7524, %v6605
      %v8037 = vadd.f32 %v7525, %v6607
      %v8038 = vadd.f32 %v7526, %v6798
      %v8039 = vadd.f32 %v7527, %v6800
      %v8040 = vadd.f32 %v7528, %v3907
      %v8041 = vadd.f32 %v7529, %v3909
      %v8042 = vadd.f32 %v7530, %v4100
      %v8043 = vadd.f32 %v7531, %v4102
      %v8044 = vadd.f32 %v7532, %v4293
      %v8045 = vadd.f32 %v7533, %v4295
      %v8046 = vadd.f32 %v7534, %v4486
      %v8047 = vadd.f32 %v7535, %v4488
      %v8048 = vadd.f32 %v7536, %v4679
      %v8049 = vadd.f32 %v7537, %v4681
      %v8050 = vadd.f32 %v7538, %v4872
      %v8051 = vadd.f32 %v7539, %v4874
      %v8052 = vadd.f32 %v7540, %v5065
      %v8053 = vadd.f32 %v7541, %v5067
      %v8054 = vadd.f32 %v7542, %v5258
      %v8055 = vadd.f32 %v7543, %v5260
      %v8056 = vadd.f32 %v7544, %v5451
      %v8057 = vadd.f32 %v7545, %v5453
      %v8058 = vadd.f32 %v7546, %v5644
      %v8059 = vadd.f32 %v7547, %v5646
      %v8060 = vadd.f32 %v7548, %v5837
      %v8061 = vadd.f32 %v7549, %v5839
      %v8062 = vadd.f32 %v7550, %v6030
      %v8063 = vadd.f32 %v7551, %v6032
      %v8064 = vadd.f32 %v7552, %v6223
      %v8065 = vadd.f32 %v7553, %v6225
      %v8066 = vadd.f32 %v7554, %v6416
      %v8067 = vadd.f32 %v7555, %v6418
      %v8068 = vadd.f32 %v7556, %v6609
      %v8069 = vadd.f32 %v7557, %v6611
      %v8070 = vadd.f32 %v7558, %v6802
      %v8071 = vadd.f32 %v7559, %v6804
      %v8072 = vadd.f32 %v7560, %v3913
      %v8073 = vadd.f32 %v7561, %v3915
      %v8074 = vadd.f32 %v7562, %v4106
      %v8075 = vadd.f32 %v7563, %v4108
      %v8076 = vadd.f32 %v7564, %v4299
      %v8077 = vadd.f32 %v7565, %v4301
      %v8078 = vadd.f32 %v7566, %v4492
      %v8079 = vadd.f32 %v7567, %v4494
      %v8080 = vadd.f32 %v7568, %v4685
      %v8081 = vadd.f32 %v7569, %v4687
      %v8082 = vadd.f32 %v7570, %v4878
      %v8083 = vadd.f32 %v7571, %v4880
      %v8084 = vadd.f32 %v7572, %v5071
      %v8085 = vadd.f32 %v7573, %v5073
      %v8086 = vadd.f32 %v7574, %v5264
      %v8087 = vadd.f32 %v7575, %v5266
      %v8088 = vadd.f32 %v7576, %v5457
      %v8089 = vadd.f32 %v7577, %v5459
      %v8090 = vadd.f32 %v7578, %v5650
      %v8091 = vadd.f32 %v7579, %v5652
      %v8092 = vadd.f32 %v7580, %v5843
      %v8093 = vadd.f32 %v7581, %v5845
      %v8094 = vadd.f32 %v7582, %v6036
      %v8095 = vadd.f32 %v7583, %v6038
      %v8096 = vadd.f32 %v7584, %v6229
      %v8097 = vadd.f32 %v7585, %v6231
      %v8098 = vadd.f32 %v7586, %v6422
      %v8099 = vadd.f32 %v7587, %v6424
      %v8100 = vadd.f32 %v7588, %v6615
      %v8101 = vadd.f32 %v7589, %v6617
      %v8102 = vadd.f32 %v7590, %v6808
      %v8103 = vadd.f32 %v7591, %v6810
      %v8104 = vadd.f32 %v7592, %v3917
      %v8105 = vadd.f32 %v7593, %v3919
      %v8106 = vadd.f32 %v7594, %v4110
      %v8107 = vadd.f32 %v7595, %v4112
      %v8108 = vadd.f32 %v7596, %v4303
      %v8109 = vadd.f32 %v7597, %v4305
      %v8110 = vadd.f32 %v7598, %v4496
      %v8111 = vadd.f32 %v7599, %v4498
      %v8112 = vadd.f32 %v7600, %v4689
      %v8113 = vadd.f32 %v7601, %v4691
      %v8114 = vadd.f32 %v7602, %v4882
      %v8115 = vadd.f32 %v7603, %v4884
      %v8116 = vadd.f32 %v7604, %v5075
      %v8117 = vadd.f32 %v7605, %v5077
      %v8118 = vadd.f32 %v7606, %v5268
      %v8119 = vadd.f32 %v7607, %v5270
      %v8120 = vadd.f32 %v7608, %v5461
      %v8121 = vadd.f32 %v7609, %v5463
      %v8122 = vadd.f32 %v7610, %v5654
      %v8123 = vadd.f32 %v7611, %v5656
      %v8124 = vadd.f32 %v7612, %v5847
      %v8125 = vadd.f32 %v7613, %v5849
      %v8126 = vadd.f32 %v7614, %v6040
      %v8127 = vadd.f32 %v7615, %v6042
      %v8128 = vadd.f32 %v7616, %v6233
      %v8129 = vadd.f32 %v7617, %v6235
      %v8130 = vadd.f32 %v7618, %v6426
      %v8131 = vadd.f32 %v7619, %v6428
      %v8132 = vadd.f32 %v7620, %v6619
      %v8133 = vadd.f32 %v7621, %v6621
      %v8134 = vadd.f32 %v7622, %v6812
      %v8135 = vadd.f32 %v7623, %v6814
      %v8136 = vadd.f32 %v7624, %v3923
      %v8137 = vadd.f32 %v7625, %v3925
      %v8138 = vadd.f32 %v7626, %v4116
      %v8139 = vadd.f32 %v7627, %v4118
      %v8140 = vadd.f32 %v7628, %v4309
      %v8141 = vadd.f32 %v7629, %v4311
      %v8142 = vadd.f32 %v7630, %v4502
      %v8143 = vadd.f32 %v7631, %v4504
      %v8144 = vadd.f32 %v7632, %v4695
      %v8145 = vadd.f32 %v7633, %v4697
      %v8146 = vadd.f32 %v7634, %v4888
      %v8147 = vadd.f32 %v7635, %v4890
      %v8148 = vadd.f32 %v7636, %v5081
      %v8149 = vadd.f32 %v7637, %v5083
      %v8150 = vadd.f32 %v7638, %v5274
      %v8151 = vadd.f32 %v7639, %v5276
      %v8152 = vadd.f32 %v7640, %v5467
      %v8153 = vadd.f32 %v7641, %v5469
      %v8154 = vadd.f32 %v7642, %v5660
      %v8155 = vadd.f32 %v7643, %v5662
      %v8156 = vadd.f32 %v7644, %v5853
      %v8157 = vadd.f32 %v7645, %v5855
      %v8158 = vadd.f32 %v7646, %v6046
      %v8159 = vadd.f32 %v7647, %v6048
      %v8160 = vadd.f32 %v7648, %v6239
      %v8161 = vadd.f32 %v7649, %v6241
      %v8162 = vadd.f32 %v7650, %v6432
      %v8163 = vadd.f32 %v7651, %v6434
      %v8164 = vadd.f32 %v7652, %v6625
      %v8165 = vadd.f32 %v7653, %v6627
      %v8166 = vadd.f32 %v7654, %v6818
      %v8167 = vadd.f32 %v7655, %v6820
      %v8168 = vadd.f32 %v7656, %v3927
      %v8169 = vadd.f32 %v7657, %v3929
      %v8170 = vadd.f32 %v7658, %v4120
      %v8171 = vadd.f32 %v7659, %v4122
      %v8172 = vadd.f32 %v7660, %v4313
      %v8173 = vadd.f32 %v7661, %v4315
      %v8174 = vadd.f32 %v7662, %v4506
      %v8175 = vadd.f32 %v7663, %v4508
      %v8176 = vadd.f32 %v7664, %v4699
      %v8177 = vadd.f32 %v7665, %v4701
      %v8178 = vadd.f32 %v7666, %v4892
      %v8179 = vadd.f32 %v7667, %v4894
      %v8180 = vadd.f32 %v7668, %v5085
      %v8181 = vadd.f32 %v7669, %v5087
      %v8182 = vadd.f32 %v7670, %v5278
      %v8183 = vadd.f32 %v7671, %v5280
      %v8184 = vadd.f32 %v7672, %v5471
      %v8185 = vadd.f32 %v7673, %v5473
      %v8186 = vadd.f32 %v7674, %v5664
      %v8187 = vadd.f32 %v7675, %v5666
      %v8188 = vadd.f32 %v7676, %v5857
      %v8189 = vadd.f32 %v7677, %v5859
      %v8190 = vadd.f32 %v7678, %v6050
      %v8191 = vadd.f32 %v7679, %v6052
      %v8192 = vadd.f32 %v7680, %v6243
      %v8193 = vadd.f32 %v7681, %v6245
      %v8194 = vadd.f32 %v7682, %v6436
      %v8195 = vadd.f32 %v7683, %v6438
      %v8196 = vadd.f32 %v7684, %v6629
      %v8197 = vadd.f32 %v7685, %v6631
      %v8198 = vadd.f32 %v7686, %v6822
      %v8199 = vadd.f32 %v7687, %v6824
      %v8200 = vadd.f32 %v7688, %v3933
      %v8201 = vadd.f32 %v7689, %v3935
      %v8202 = vadd.f32 %v7690, %v4126
      %v8203 = vadd.f32 %v7691, %v4128
      %v8204 = vadd.f32 %v7692, %v4319
      %v8205 = vadd.f32 %v7693, %v4321
      %v8206 = vadd.f32 %v7694, %v4512
      %v8207 = vadd.f32 %v7695, %v4514
      %v8208 = vadd.f32 %v7696, %v4705
      %v8209 = vadd.f32 %v7697, %v4707
      %v8210 = vadd.f32 %v7698, %v4898
      %v8211 = vadd.f32 %v7699, %v4900
      %v8212 = vadd.f32 %v7700, %v5091
      %v8213 = vadd.f32 %v7701, %v5093
      %v8214 = vadd.f32 %v7702, %v5284
      %v8215 = vadd.f32 %v7703, %v5286
      %v8216 = vadd.f32 %v7704, %v5477
      %v8217 = vadd.f32 %v7705, %v5479
      %v8218 = vadd.f32 %v7706, %v5670
      %v8219 = vadd.f32 %v7707, %v5672
      %v8220 = vadd.f32 %v7708, %v5863
      %v8221 = vadd.f32 %v7709, %v5865
      %v8222 = vadd.f32 %v7710, %v6056
      %v8223 = vadd.f32 %v7711, %v6058
      %v8224 = vadd.f32 %v7712, %v6249
      %v8225 = vadd.f32 %v7713, %v6251
      %v8226 = vadd.f32 %v7714, %v6442
      %v8227 = vadd.f32 %v7715, %v6444
      %v8228 = vadd.f32 %v7716, %v6635
      %v8229 = vadd.f32 %v7717, %v6637
      %v8230 = vadd.f32 %v7718, %v6828
      %v8231 = vadd.f32 %v7719, %v6830
      %v8232 = vadd.f32 %v7720, %v3937
      %v8233 = vadd.f32 %v7721, %v3939
      %v8234 = vadd.f32 %v7722, %v4130
      %v8235 = vadd.f32 %v7723, %v4132
      %v8236 = vadd.f32 %v7724, %v4323
      %v8237 = vadd.f32 %v7725, %v4325
      %v8238 = vadd.f32 %v7726, %v4516
      %v8239 = vadd.f32 %v7727, %v4518
      %v8240 = vadd.f32 %v7728, %v4709
      %v8241 = vadd.f32 %v7729, %v4711
      %v8242 = vadd.f32 %v7730, %v4902
      %v8243 = vadd.f32 %v7731, %v4904
      %v8244 = vadd.f32 %v7732, %v5095
      %v8245 = vadd.f32 %v7733, %v5097
      %v8246 = vadd.f32 %v7734, %v5288
      %v8247 = vadd.f32 %v7735, %v5290
      %v8248 = vadd.f32 %v7736, %v5481
      %v8249 = vadd.f32 %v7737, %v5483
      %v8250 = vadd.f32 %v7738, %v5674
      %v8251 = vadd.f32 %v7739, %v5676
      %v8252 = vadd.f32 %v7740, %v5867
      %v8253 = vadd.f32 %v7741, %v5869
      %v8254 = vadd.f32 %v7742, %v6060
      %v8255 = vadd.f32 %v7743, %v6062
      %v8256 = vadd.f32 %v7744, %v6253
      %v8257 = vadd.f32 %v7745, %v6255
      %v8258 = vadd.f32 %v7746, %v6446
      %v8259 = vadd.f32 %v7747, %v6448
      %v8260 = vadd.f32 %v7748, %v6639
      %v8261 = vadd.f32 %v7749, %v6641
      %v8262 = vadd.f32 %v7750, %v6832
      %v8263 = vadd.f32 %v7751, %v6834
      %v8264 = vadd.f32 %v7752, %v3943
      %v8265 = vadd.f32 %v7753, %v3945
      %v8266 = vadd.f32 %v7754, %v4136
      %v8267 = vadd.f32 %v7755, %v4138
      %v8268 = vadd.f32 %v7756, %v4329
      %v8269 = vadd.f32 %v7757, %v4331
      %v8270 = vadd.f32 %v7758, %v4522
      %v8271 = vadd.f32 %v7759, %v4524
      %v8272 = vadd.f32 %v7760, %v4715
      %v8273 = vadd.f32 %v7761, %v4717
      %v8274 = vadd.f32 %v7762, %v4908
      %v8275 = vadd.f32 %v7763, %v4910
      %v8276 = vadd.f32 %v7764, %v5101
      %v8277 = vadd.f32 %v7765, %v5103
      %v8278 = vadd.f32 %v7766, %v5294
      %v8279 = vadd.f32 %v7767, %v5296
      %v8280 = vadd.f32 %v7768, %v5487
      %v8281 = vadd.f32 %v7769, %v5489
      %v8282 = vadd.f32 %v7770, %v5680
      %v8283 = vadd.f32 %v7771, %v5682
      %v8284 = vadd.f32 %v7772, %v5873
      %v8285 = vadd.f32 %v7773, %v5875
      %v8286 = vadd.f32 %v7774, %v6066
      %v8287 = vadd.f32 %v7775, %v6068
      %v8288 = vadd.f32 %v7776, %v6259
      %v8289 = vadd.f32 %v7777, %v6261
      %v8290 = vadd.f32 %v7778, %v6452
      %v8291 = vadd.f32 %v7779, %v6454
      %v8292 = vadd.f32 %v7780, %v6645
      %v8293 = vadd.f32 %v7781, %v6647
      %v8294 = vadd.f32 %v7782, %v6838
      %v8295 = vadd.f32 %v7783, %v6840
      %v8296 = vadd.f32 %v7784, %v3947
      %v8297 = vadd.f32 %v7785, %v3949
      %v8298 = vadd.f32 %v7786, %v4140
      %v8299 = vadd.f32 %v7787, %v4142
      %v8300 = vadd.f32 %v7788, %v4333
      %v8301 = vadd.f32 %v7789, %v4335
      %v8302 = vadd.f32 %v7790, %v4526
      %v8303 = vadd.f32 %v7791, %v4528
      %v8304 = vadd.f32 %v7792, %v4719
      %v8305 = vadd.f32 %v7793, %v4721
      %v8306 = vadd.f32 %v7794, %v4912
      %v8307 = vadd.f32 %v7795, %v4914
      %v8308 = vadd.f32 %v7796, %v5105
      %v8309 = vadd.f32 %v7797, %v5107
      %v8310 = vadd.f32 %v7798, %v5298
      %v8311 = vadd.f32 %v7799, %v5300
      %v8312 = vadd.f32 %v7800, %v5491
      %v8313 = vadd.f32 %v7801, %v5493
      %v8314 = vadd.f32 %v7802, %v5684
      %v8315 = vadd.f32 %v7803, %v5686
      %v8316 = vadd.f32 %v7804, %v5877
      %v8317 = vadd.f32 %v7805, %v5879
      %v8318 = vadd.f32 %v7806, %v6070
      %v8319 = vadd.f32 %v7807, %v6072
      %v8320 = vadd.f32 %v7808, %v6263
      %v8321 = vadd.f32 %v7809, %v6265
      %v8322 = vadd.f32 %v7810, %v6456
      %v8323 = vadd.f32 %v7811, %v6458
      %v8324 = vadd.f32 %v7812, %v6649
      %v8325 = vadd.f32 %v7813, %v6651
      %v8326 = vadd.f32 %v7814, %v6842
      %v8327 = vadd.f32 %v7815, %v6844
      %v8328 = vadd.f32 %v7816, %v3953
      %v8329 = vadd.f32 %v7817, %v3955
      %v8330 = vadd.f32 %v7818, %v4146
      %v8331 = vadd.f32 %v7819, %v4148
      %v8332 = vadd.f32 %v7820, %v4339
      %v8333 = vadd.f32 %v7821, %v4341
      %v8334 = vadd.f32 %v7822, %v4532
      %v8335 = vadd.f32 %v7823, %v4534
      %v8336 = vadd.f32 %v7824, %v4725
      %v8337 = vadd.f32 %v7825, %v4727
      %v8338 = vadd.f32 %v7826, %v4918
      %v8339 = vadd.f32 %v7827, %v4920
      %v8340 = vadd.f32 %v7828, %v5111
      %v8341 = vadd.f32 %v7829, %v5113
      %v8342 = vadd.f32 %v7830, %v5304
      %v8343 = vadd.f32 %v7831, %v5306
      %v8344 = vadd.f32 %v7832, %v5497
      %v8345 = vadd.f32 %v7833, %v5499
      %v8346 = vadd.f32 %v7834, %v5690
      %v8347 = vadd.f32 %v7835, %v5692
      %v8348 = vadd.f32 %v7836, %v5883
      %v8349 = vadd.f32 %v7837, %v5885
      %v8350 = vadd.f32 %v7838, %v6076
      %v8351 = vadd.f32 %v7839, %v6078
      %v8352 = vadd.f32 %v7840, %v6269
      %v8353 = vadd.f32 %v7841, %v6271
      %v8354 = vadd.f32 %v7842, %v6462
      %v8355 = vadd.f32 %v7843, %v6464
      %v8356 = vadd.f32 %v7844, %v6655
      %v8357 = vadd.f32 %v7845, %v6657
      %v8358 = vadd.f32 %v7846, %v6848
      %v8359 = vadd.f32 %v7847, %v6850
      %v8360 = vadd.f32 %v7848, %v3957
      %v8361 = vadd.f32 %v7849, %v3959
      %v8362 = vadd.f32 %v7850, %v4150
      %v8363 = vadd.f32 %v7851, %v4152
      %v8364 = vadd.f32 %v7852, %v4343
      %v8365 = vadd.f32 %v7853, %v4345
      %v8366 = vadd.f32 %v7854, %v4536
      %v8367 = vadd.f32 %v7855, %v4538
      %v8368 = vadd.f32 %v7856, %v4729
      %v8369 = vadd.f32 %v7857, %v4731
      %v8370 = vadd.f32 %v7858, %v4922
      %v8371 = vadd.f32 %v7859, %v4924
      %v8372 = vadd.f32 %v7860, %v5115
      %v8373 = vadd.f32 %v7861, %v5117
      %v8374 = vadd.f32 %v7862, %v5308
      %v8375 = vadd.f32 %v7863, %v5310
      %v8376 = vadd.f32 %v7864, %v5501
      %v8377 = vadd.f32 %v7865, %v5503
      %v8378 = vadd.f32 %v7866, %v5694
      %v8379 = vadd.f32 %v7867, %v5696
      %v8380 = vadd.f32 %v7868, %v5887
      %v8381 = vadd.f32 %v7869, %v5889
      %v8382 = vadd.f32 %v7870, %v6080
      %v8383 = vadd.f32 %v7871, %v6082
      %v8384 = vadd.f32 %v7872, %v6273
      %v8385 = vadd.f32 %v7873, %v6275
      %v8386 = vadd.f32 %v7874, %v6466
      %v8387 = vadd.f32 %v7875, %v6468
      %v8388 = vadd.f32 %v7876, %v6659
      %v8389 = vadd.f32 %v7877, %v6661
      %v8390 = vadd.f32 %v7878, %v6852
      %v8391 = vadd.f32 %v7879, %v6854
      %8392 = vst [vmem:[%s304] sm:$0xff] %v7880
      %8393 = vst [vmem:[%s304 + $0x8] sm:$0xff] %v7881
      %8394 = vst [vmem:[%s304 + $0x10] sm:$0xff] %v7882
      %8395 = vst [vmem:[%s304 + $0x18] sm:$0xff] %v7883
      %8396 = vst [vmem:[%s304 + $0x20] sm:$0xff] %v7884
      %8397 = vst [vmem:[%s304 + $0x28] sm:$0xff] %v7885
      %8398 = vst [vmem:[%s304 + $0x30] sm:$0xff] %v7886
      %8399 = vst [vmem:[%s304 + $0x38] sm:$0xff] %v7887
      %8400 = vst [vmem:[%s304 + $0x40] sm:$0xff] %v7888
      %8401 = vst [vmem:[%s304 + $0x48] sm:$0xff] %v7889
      %8402 = vst [vmem:[%s304 + $0x50] sm:$0xff] %v7890
      %8403 = vst [vmem:[%s304 + $0x58] sm:$0xff] %v7891
      %8404 = vst [vmem:[%s304 + $0x60] sm:$0xff] %v7892
      %8405 = vst [vmem:[%s304 + $0x68] sm:$0xff] %v7893
      %8406 = vst [vmem:[%s304 + $0x70] sm:$0xff] %v7894
      %8407 = vst [vmem:[%s304 + $0x78] sm:$0xff] %v7895
      %8408 = vst [vmem:[%s304 + $0x80] sm:$0xff] %v7896
      %8409 = vst [vmem:[%s304 + $0x88] sm:$0xff] %v7897
      %8410 = vst [vmem:[%s304 + $0x90] sm:$0xff] %v7898
      %8411 = vst [vmem:[%s304 + $0x98] sm:$0xff] %v7899
      %8412 = vst [vmem:[%s304 + $0xa0] sm:$0xff] %v7900
      %8413 = vst [vmem:[%s304 + $0xa8] sm:$0xff] %v7901
      %8414 = vst [vmem:[%s304 + $0xb0] sm:$0xff] %v7902
      %8415 = vst [vmem:[%s304 + $0xb8] sm:$0xff] %v7903
      %8416 = vst [vmem:[%s304 + $0xc0] sm:$0xff] %v7904
      %8417 = vst [vmem:[%s304 + $0xc8] sm:$0xff] %v7905
      %8418 = vst [vmem:[%s304 + $0xd0] sm:$0xff] %v7906
      %8419 = vst [vmem:[%s304 + $0xd8] sm:$0xff] %v7907
      %8420 = vst [vmem:[%s304 + $0xe0] sm:$0xff] %v7908
      %8421 = vst [vmem:[%s304 + $0xe8] sm:$0xff] %v7909
      %8422 = vst [vmem:[%s304 + $0xf0] sm:$0xff] %v7910
      %8423 = vst [vmem:[%s304 + $0xf8] sm:$0xff] %v7911
      %8424 = vst [vmem:[%s304 + $0x100] sm:$0xff] %v7912
      %8425 = vst [vmem:[%s304 + $0x108] sm:$0xff] %v7913
      %8426 = vst [vmem:[%s304 + $0x110] sm:$0xff] %v7914
      %8427 = vst [vmem:[%s304 + $0x118] sm:$0xff] %v7915
      %8428 = vst [vmem:[%s304 + $0x120] sm:$0xff] %v7916
      %8429 = vst [vmem:[%s304 + $0x128] sm:$0xff] %v7917
      %8430 = vst [vmem:[%s304 + $0x130] sm:$0xff] %v7918
      %8431 = vst [vmem:[%s304 + $0x138] sm:$0xff] %v7919
      %8432 = vst [vmem:[%s304 + $0x140] sm:$0xff] %v7920
      %8433 = vst [vmem:[%s304 + $0x148] sm:$0xff] %v7921
      %8434 = vst [vmem:[%s304 + $0x150] sm:$0xff] %v7922
      %8435 = vst [vmem:[%s304 + $0x158] sm:$0xff] %v7923
      %8436 = vst [vmem:[%s304 + $0x160] sm:$0xff] %v7924
      %8437 = vst [vmem:[%s304 + $0x168] sm:$0xff] %v7925
      %8438 = vst [vmem:[%s304 + $0x170] sm:$0xff] %v7926
      %8439 = vst [vmem:[%s304 + $0x178] sm:$0xff] %v7927
      %8440 = vst [vmem:[%s304 + $0x180] sm:$0xff] %v7928
      %8441 = vst [vmem:[%s304 + $0x188] sm:$0xff] %v7929
      %8442 = vst [vmem:[%s304 + $0x190] sm:$0xff] %v7930
      %8443 = vst [vmem:[%s304 + $0x198] sm:$0xff] %v7931
      %8444 = vst [vmem:[%s304 + $0x1a0] sm:$0xff] %v7932
      %8445 = vst [vmem:[%s304 + $0x1a8] sm:$0xff] %v7933
      %8446 = vst [vmem:[%s304 + $0x1b0] sm:$0xff] %v7934
      %8447 = vst [vmem:[%s304 + $0x1b8] sm:$0xff] %v7935
      %8448 = vst [vmem:[%s304 + $0x1c0] sm:$0xff] %v7936
      %8449 = vst [vmem:[%s304 + $0x1c8] sm:$0xff] %v7937
      %8450 = vst [vmem:[%s304 + $0x1d0] sm:$0xff] %v7938
      %8451 = vst [vmem:[%s304 + $0x1d8] sm:$0xff] %v7939
      %8452 = vst [vmem:[%s304 + $0x1e0] sm:$0xff] %v7940
      %8453 = vst [vmem:[%s304 + $0x1e8] sm:$0xff] %v7941
      %8454 = vst [vmem:[%s304 + $0x1f0] sm:$0xff] %v7942
      %8455 = vst [vmem:[%s304 + $0x1f8] sm:$0xff] %v7943
      %8456 = vst [vmem:[%s304 + $0x200] sm:$0xff] %v7944
      %8457 = vst [vmem:[%s304 + $0x208] sm:$0xff] %v7945
      %8458 = vst [vmem:[%s304 + $0x210] sm:$0xff] %v7946
      %8459 = vst [vmem:[%s304 + $0x218] sm:$0xff] %v7947
      %8460 = vst [vmem:[%s304 + $0x220] sm:$0xff] %v7948
      %8461 = vst [vmem:[%s304 + $0x228] sm:$0xff] %v7949
      %8462 = vst [vmem:[%s304 + $0x230] sm:$0xff] %v7950
      %8463 = vst [vmem:[%s304 + $0x238] sm:$0xff] %v7951
      %8464 = vst [vmem:[%s304 + $0x240] sm:$0xff] %v7952
      %8465 = vst [vmem:[%s304 + $0x248] sm:$0xff] %v7953
      %8466 = vst [vmem:[%s304 + $0x250] sm:$0xff] %v7954
      %8467 = vst [vmem:[%s304 + $0x258] sm:$0xff] %v7955
      %8468 = vst [vmem:[%s304 + $0x260] sm:$0xff] %v7956
      %8469 = vst [vmem:[%s304 + $0x268] sm:$0xff] %v7957
      %8470 = vst [vmem:[%s304 + $0x270] sm:$0xff] %v7958
      %8471 = vst [vmem:[%s304 + $0x278] sm:$0xff] %v7959
      %8472 = vst [vmem:[%s304 + $0x280] sm:$0xff] %v7960
      %8473 = vst [vmem:[%s304 + $0x288] sm:$0xff] %v7961
      %8474 = vst [vmem:[%s304 + $0x290] sm:$0xff] %v7962
      %8475 = vst [vmem:[%s304 + $0x298] sm:$0xff] %v7963
      %8476 = vst [vmem:[%s304 + $0x2a0] sm:$0xff] %v7964
      %8477 = vst [vmem:[%s304 + $0x2a8] sm:$0xff] %v7965
      %8478 = vst [vmem:[%s304 + $0x2b0] sm:$0xff] %v7966
      %8479 = vst [vmem:[%s304 + $0x2b8] sm:$0xff] %v7967
      %8480 = vst [vmem:[%s304 + $0x2c0] sm:$0xff] %v7968
      %8481 = vst [vmem:[%s304 + $0x2c8] sm:$0xff] %v7969
      %8482 = vst [vmem:[%s304 + $0x2d0] sm:$0xff] %v7970
      %8483 = vst [vmem:[%s304 + $0x2d8] sm:$0xff] %v7971
      %8484 = vst [vmem:[%s304 + $0x2e0] sm:$0xff] %v7972
      %8485 = vst [vmem:[%s304 + $0x2e8] sm:$0xff] %v7973
      %8486 = vst [vmem:[%s304 + $0x2f0] sm:$0xff] %v7974
      %8487 = vst [vmem:[%s304 + $0x2f8] sm:$0xff] %v7975
      %8488 = vst [vmem:[%s304 + $0x300] sm:$0xff] %v7976
      %8489 = vst [vmem:[%s304 + $0x308] sm:$0xff] %v7977
      %8490 = vst [vmem:[%s304 + $0x310] sm:$0xff] %v7978
      %8491 = vst [vmem:[%s304 + $0x318] sm:$0xff] %v7979
      %8492 = vst [vmem:[%s304 + $0x320] sm:$0xff] %v7980
      %8493 = vst [vmem:[%s304 + $0x328] sm:$0xff] %v7981
      %8494 = vst [vmem:[%s304 + $0x330] sm:$0xff] %v7982
      %8495 = vst [vmem:[%s304 + $0x338] sm:$0xff] %v7983
      %8496 = vst [vmem:[%s304 + $0x340] sm:$0xff] %v7984
      %8497 = vst [vmem:[%s304 + $0x348] sm:$0xff] %v7985
      %8498 = vst [vmem:[%s304 + $0x350] sm:$0xff] %v7986
      %8499 = vst [vmem:[%s304 + $0x358] sm:$0xff] %v7987
      %8500 = vst [vmem:[%s304 + $0x360] sm:$0xff] %v7988
      %8501 = vst [vmem:[%s304 + $0x368] sm:$0xff] %v7989
      %8502 = vst [vmem:[%s304 + $0x370] sm:$0xff] %v7990
      %8503 = vst [vmem:[%s304 + $0x378] sm:$0xff] %v7991
      %8504 = vst [vmem:[%s304 + $0x380] sm:$0xff] %v7992
      %8505 = vst [vmem:[%s304 + $0x388] sm:$0xff] %v7993
      %8506 = vst [vmem:[%s304 + $0x390] sm:$0xff] %v7994
      %8507 = vst [vmem:[%s304 + $0x398] sm:$0xff] %v7995
      %8508 = vst [vmem:[%s304 + $0x3a0] sm:$0xff] %v7996
      %8509 = vst [vmem:[%s304 + $0x3a8] sm:$0xff] %v7997
      %8510 = vst [vmem:[%s304 + $0x3b0] sm:$0xff] %v7998
      %8511 = vst [vmem:[%s304 + $0x3b8] sm:$0xff] %v7999
      %8512 = vst [vmem:[%s304 + $0x3c0] sm:$0xff] %v8000
      %8513 = vst [vmem:[%s304 + $0x3c8] sm:$0xff] %v8001
      %8514 = vst [vmem:[%s304 + $0x3d0] sm:$0xff] %v8002
      %8515 = vst [vmem:[%s304 + $0x3d8] sm:$0xff] %v8003
      %8516 = vst [vmem:[%s304 + $0x3e0] sm:$0xff] %v8004
      %8517 = vst [vmem:[%s304 + $0x3e8] sm:$0xff] %v8005
      %8518 = vst [vmem:[%s304 + $0x3f0] sm:$0xff] %v8006
      %8519 = vst [vmem:[%s304 + $0x3f8] sm:$0xff] %v8007
      %8520 = vst [vmem:[%s304 + $0x400] sm:$0xff] %v8008
      %8521 = vst [vmem:[%s304 + $0x408] sm:$0xff] %v8009
      %8522 = vst [vmem:[%s304 + $0x410] sm:$0xff] %v8010
      %8523 = vst [vmem:[%s304 + $0x418] sm:$0xff] %v8011
      %8524 = vst [vmem:[%s304 + $0x420] sm:$0xff] %v8012
      %8525 = vst [vmem:[%s304 + $0x428] sm:$0xff] %v8013
      %8526 = vst [vmem:[%s304 + $0x430] sm:$0xff] %v8014
      %8527 = vst [vmem:[%s304 + $0x438] sm:$0xff] %v8015
      %8528 = vst [vmem:[%s304 + $0x440] sm:$0xff] %v8016
      %8529 = vst [vmem:[%s304 + $0x448] sm:$0xff] %v8017
      %8530 = vst [vmem:[%s304 + $0x450] sm:$0xff] %v8018
      %8531 = vst [vmem:[%s304 + $0x458] sm:$0xff] %v8019
      %8532 = vst [vmem:[%s304 + $0x460] sm:$0xff] %v8020
      %8533 = vst [vmem:[%s304 + $0x468] sm:$0xff] %v8021
      %8534 = vst [vmem:[%s304 + $0x470] sm:$0xff] %v8022
      %8535 = vst [vmem:[%s304 + $0x478] sm:$0xff] %v8023
      %8536 = vst [vmem:[%s304 + $0x480] sm:$0xff] %v8024
      %8537 = vst [vmem:[%s304 + $0x488] sm:$0xff] %v8025
      %8538 = vst [vmem:[%s304 + $0x490] sm:$0xff] %v8026
      %8539 = vst [vmem:[%s304 + $0x498] sm:$0xff] %v8027
      %8540 = vst [vmem:[%s304 + $0x4a0] sm:$0xff] %v8028
      %8541 = vst [vmem:[%s304 + $0x4a8] sm:$0xff] %v8029
      %8542 = vst [vmem:[%s304 + $0x4b0] sm:$0xff] %v8030
      %8543 = vst [vmem:[%s304 + $0x4b8] sm:$0xff] %v8031
      %8544 = vst [vmem:[%s304 + $0x4c0] sm:$0xff] %v8032
      %8545 = vst [vmem:[%s304 + $0x4c8] sm:$0xff] %v8033
      %8546 = vst [vmem:[%s304 + $0x4d0] sm:$0xff] %v8034
      %8547 = vst [vmem:[%s304 + $0x4d8] sm:$0xff] %v8035
      %8548 = vst [vmem:[%s304 + $0x4e0] sm:$0xff] %v8036
      %8549 = vst [vmem:[%s304 + $0x4e8] sm:$0xff] %v8037
      %8550 = vst [vmem:[%s304 + $0x4f0] sm:$0xff] %v8038
      %8551 = vst [vmem:[%s304 + $0x4f8] sm:$0xff] %v8039
      %8552 = vst [vmem:[%s304 + $0x500] sm:$0xff] %v8040
      %8553 = vst [vmem:[%s304 + $0x508] sm:$0xff] %v8041
      %8554 = vst [vmem:[%s304 + $0x510] sm:$0xff] %v8042
      %8555 = vst [vmem:[%s304 + $0x518] sm:$0xff] %v8043
      %8556 = vst [vmem:[%s304 + $0x520] sm:$0xff] %v8044
      %8557 = vst [vmem:[%s304 + $0x528] sm:$0xff] %v8045
      %8558 = vst [vmem:[%s304 + $0x530] sm:$0xff] %v8046
      %8559 = vst [vmem:[%s304 + $0x538] sm:$0xff] %v8047
      %8560 = vst [vmem:[%s304 + $0x540] sm:$0xff] %v8048
      %8561 = vst [vmem:[%s304 + $0x548] sm:$0xff] %v8049
      %8562 = vst [vmem:[%s304 + $0x550] sm:$0xff] %v8050
      %8563 = vst [vmem:[%s304 + $0x558] sm:$0xff] %v8051
      %8564 = vst [vmem:[%s304 + $0x560] sm:$0xff] %v8052
      %8565 = vst [vmem:[%s304 + $0x568] sm:$0xff] %v8053
      %8566 = vst [vmem:[%s304 + $0x570] sm:$0xff] %v8054
      %8567 = vst [vmem:[%s304 + $0x578] sm:$0xff] %v8055
      %8568 = vst [vmem:[%s304 + $0x580] sm:$0xff] %v8056
      %8569 = vst [vmem:[%s304 + $0x588] sm:$0xff] %v8057
      %8570 = vst [vmem:[%s304 + $0x590] sm:$0xff] %v8058
      %8571 = vst [vmem:[%s304 + $0x598] sm:$0xff] %v8059
      %8572 = vst [vmem:[%s304 + $0x5a0] sm:$0xff] %v8060
      %8573 = vst [vmem:[%s304 + $0x5a8] sm:$0xff] %v8061
      %8574 = vst [vmem:[%s304 + $0x5b0] sm:$0xff] %v8062
      %8575 = vst [vmem:[%s304 + $0x5b8] sm:$0xff] %v8063
      %8576 = vst [vmem:[%s304 + $0x5c0] sm:$0xff] %v8064
      %8577 = vst [vmem:[%s304 + $0x5c8] sm:$0xff] %v8065
      %8578 = vst [vmem:[%s304 + $0x5d0] sm:$0xff] %v8066
      %8579 = vst [vmem:[%s304 + $0x5d8] sm:$0xff] %v8067
      %8580 = vst [vmem:[%s304 + $0x5e0] sm:$0xff] %v8068
      %8581 = vst [vmem:[%s304 + $0x5e8] sm:$0xff] %v8069
      %8582 = vst [vmem:[%s304 + $0x5f0] sm:$0xff] %v8070
      %8583 = vst [vmem:[%s304 + $0x5f8] sm:$0xff] %v8071
      %8584 = vst [vmem:[%s304 + $0x600] sm:$0xff] %v8072
      %8585 = vst [vmem:[%s304 + $0x608] sm:$0xff] %v8073
      %8586 = vst [vmem:[%s304 + $0x610] sm:$0xff] %v8074
      %8587 = vst [vmem:[%s304 + $0x618] sm:$0xff] %v8075
      %8588 = vst [vmem:[%s304 + $0x620] sm:$0xff] %v8076
      %8589 = vst [vmem:[%s304 + $0x628] sm:$0xff] %v8077
      %8590 = vst [vmem:[%s304 + $0x630] sm:$0xff] %v8078
      %8591 = vst [vmem:[%s304 + $0x638] sm:$0xff] %v8079
      %8592 = vst [vmem:[%s304 + $0x640] sm:$0xff] %v8080
      %8593 = vst [vmem:[%s304 + $0x648] sm:$0xff] %v8081
      %8594 = vst [vmem:[%s304 + $0x650] sm:$0xff] %v8082
      %8595 = vst [vmem:[%s304 + $0x658] sm:$0xff] %v8083
      %8596 = vst [vmem:[%s304 + $0x660] sm:$0xff] %v8084
      %8597 = vst [vmem:[%s304 + $0x668] sm:$0xff] %v8085
      %8598 = vst [vmem:[%s304 + $0x670] sm:$0xff] %v8086
      %8599 = vst [vmem:[%s304 + $0x678] sm:$0xff] %v8087
      %8600 = vst [vmem:[%s304 + $0x680] sm:$0xff] %v8088
      %8601 = vst [vmem:[%s304 + $0x688] sm:$0xff] %v8089
      %8602 = vst [vmem:[%s304 + $0x690] sm:$0xff] %v8090
      %8603 = vst [vmem:[%s304 + $0x698] sm:$0xff] %v8091
      %8604 = vst [vmem:[%s304 + $0x6a0] sm:$0xff] %v8092
      %8605 = vst [vmem:[%s304 + $0x6a8] sm:$0xff] %v8093
      %8606 = vst [vmem:[%s304 + $0x6b0] sm:$0xff] %v8094
      %8607 = vst [vmem:[%s304 + $0x6b8] sm:$0xff] %v8095
      %8608 = vst [vmem:[%s304 + $0x6c0] sm:$0xff] %v8096
      %8609 = vst [vmem:[%s304 + $0x6c8] sm:$0xff] %v8097
      %8610 = vst [vmem:[%s304 + $0x6d0] sm:$0xff] %v8098
      %8611 = vst [vmem:[%s304 + $0x6d8] sm:$0xff] %v8099
      %8612 = vst [vmem:[%s304 + $0x6e0] sm:$0xff] %v8100
      %8613 = vst [vmem:[%s304 + $0x6e8] sm:$0xff] %v8101
      %8614 = vst [vmem:[%s304 + $0x6f0] sm:$0xff] %v8102
      %8615 = vst [vmem:[%s304 + $0x6f8] sm:$0xff] %v8103
      %8616 = vst [vmem:[%s304 + $0x700] sm:$0xff] %v8104
      %8617 = vst [vmem:[%s304 + $0x708] sm:$0xff] %v8105
      %8618 = vst [vmem:[%s304 + $0x710] sm:$0xff] %v8106
      %8619 = vst [vmem:[%s304 + $0x718] sm:$0xff] %v8107
      %8620 = vst [vmem:[%s304 + $0x720] sm:$0xff] %v8108
      %8621 = vst [vmem:[%s304 + $0x728] sm:$0xff] %v8109
      %8622 = vst [vmem:[%s304 + $0x730] sm:$0xff] %v8110
      %8623 = vst [vmem:[%s304 + $0x738] sm:$0xff] %v8111
      %8624 = vst [vmem:[%s304 + $0x740] sm:$0xff] %v8112
      %8625 = vst [vmem:[%s304 + $0x748] sm:$0xff] %v8113
      %8626 = vst [vmem:[%s304 + $0x750] sm:$0xff] %v8114
      %8627 = vst [vmem:[%s304 + $0x758] sm:$0xff] %v8115
      %8628 = vst [vmem:[%s304 + $0x760] sm:$0xff] %v8116
      %8629 = vst [vmem:[%s304 + $0x768] sm:$0xff] %v8117
      %8630 = vst [vmem:[%s304 + $0x770] sm:$0xff] %v8118
      %8631 = vst [vmem:[%s304 + $0x778] sm:$0xff] %v8119
      %8632 = vst [vmem:[%s304 + $0x780] sm:$0xff] %v8120
      %8633 = vst [vmem:[%s304 + $0x788] sm:$0xff] %v8121
      %8634 = vst [vmem:[%s304 + $0x790] sm:$0xff] %v8122
      %8635 = vst [vmem:[%s304 + $0x798] sm:$0xff] %v8123
      %8636 = vst [vmem:[%s304 + $0x7a0] sm:$0xff] %v8124
      %8637 = vst [vmem:[%s304 + $0x7a8] sm:$0xff] %v8125
      %8638 = vst [vmem:[%s304 + $0x7b0] sm:$0xff] %v8126
      %8639 = vst [vmem:[%s304 + $0x7b8] sm:$0xff] %v8127
      %8640 = vst [vmem:[%s304 + $0x7c0] sm:$0xff] %v8128
      %8641 = vst [vmem:[%s304 + $0x7c8] sm:$0xff] %v8129
      %8642 = vst [vmem:[%s304 + $0x7d0] sm:$0xff] %v8130
      %8643 = vst [vmem:[%s304 + $0x7d8] sm:$0xff] %v8131
      %8644 = vst [vmem:[%s304 + $0x7e0] sm:$0xff] %v8132
      %8645 = vst [vmem:[%s304 + $0x7e8] sm:$0xff] %v8133
      %8646 = vst [vmem:[%s304 + $0x7f0] sm:$0xff] %v8134
      %8647 = vst [vmem:[%s304 + $0x7f8] sm:$0xff] %v8135
      %8648 = vst [vmem:[%s304 + $0x800] sm:$0xff] %v8136
      %8649 = vst [vmem:[%s304 + $0x808] sm:$0xff] %v8137
      %8650 = vst [vmem:[%s304 + $0x810] sm:$0xff] %v8138
      %8651 = vst [vmem:[%s304 + $0x818] sm:$0xff] %v8139
      %8652 = vst [vmem:[%s304 + $0x820] sm:$0xff] %v8140
      %8653 = vst [vmem:[%s304 + $0x828] sm:$0xff] %v8141
      %8654 = vst [vmem:[%s304 + $0x830] sm:$0xff] %v8142
      %8655 = vst [vmem:[%s304 + $0x838] sm:$0xff] %v8143
      %8656 = vst [vmem:[%s304 + $0x840] sm:$0xff] %v8144
      %8657 = vst [vmem:[%s304 + $0x848] sm:$0xff] %v8145
      %8658 = vst [vmem:[%s304 + $0x850] sm:$0xff] %v8146
      %8659 = vst [vmem:[%s304 + $0x858] sm:$0xff] %v8147
      %8660 = vst [vmem:[%s304 + $0x860] sm:$0xff] %v8148
      %8661 = vst [vmem:[%s304 + $0x868] sm:$0xff] %v8149
      %8662 = vst [vmem:[%s304 + $0x870] sm:$0xff] %v8150
      %8663 = vst [vmem:[%s304 + $0x878] sm:$0xff] %v8151
      %8664 = vst [vmem:[%s304 + $0x880] sm:$0xff] %v8152
      %8665 = vst [vmem:[%s304 + $0x888] sm:$0xff] %v8153
      %8666 = vst [vmem:[%s304 + $0x890] sm:$0xff] %v8154
      %8667 = vst [vmem:[%s304 + $0x898] sm:$0xff] %v8155
      %8668 = vst [vmem:[%s304 + $0x8a0] sm:$0xff] %v8156
      %8669 = vst [vmem:[%s304 + $0x8a8] sm:$0xff] %v8157
      %8670 = vst [vmem:[%s304 + $0x8b0] sm:$0xff] %v8158
      %8671 = vst [vmem:[%s304 + $0x8b8] sm:$0xff] %v8159
      %8672 = vst [vmem:[%s304 + $0x8c0] sm:$0xff] %v8160
      %8673 = vst [vmem:[%s304 + $0x8c8] sm:$0xff] %v8161
      %8674 = vst [vmem:[%s304 + $0x8d0] sm:$0xff] %v8162
      %8675 = vst [vmem:[%s304 + $0x8d8] sm:$0xff] %v8163
      %8676 = vst [vmem:[%s304 + $0x8e0] sm:$0xff] %v8164
      %8677 = vst [vmem:[%s304 + $0x8e8] sm:$0xff] %v8165
      %8678 = vst [vmem:[%s304 + $0x8f0] sm:$0xff] %v8166
      %8679 = vst [vmem:[%s304 + $0x8f8] sm:$0xff] %v8167
      %8680 = vst [vmem:[%s304 + $0x900] sm:$0xff] %v8168
      %8681 = vst [vmem:[%s304 + $0x908] sm:$0xff] %v8169
      %8682 = vst [vmem:[%s304 + $0x910] sm:$0xff] %v8170
      %8683 = vst [vmem:[%s304 + $0x918] sm:$0xff] %v8171
      %8684 = vst [vmem:[%s304 + $0x920] sm:$0xff] %v8172
      %8685 = vst [vmem:[%s304 + $0x928] sm:$0xff] %v8173
      %8686 = vst [vmem:[%s304 + $0x930] sm:$0xff] %v8174
      %8687 = vst [vmem:[%s304 + $0x938] sm:$0xff] %v8175
      %8688 = vst [vmem:[%s304 + $0x940] sm:$0xff] %v8176
      %8689 = vst [vmem:[%s304 + $0x948] sm:$0xff] %v8177
      %8690 = vst [vmem:[%s304 + $0x950] sm:$0xff] %v8178
      %8691 = vst [vmem:[%s304 + $0x958] sm:$0xff] %v8179
      %8692 = vst [vmem:[%s304 + $0x960] sm:$0xff] %v8180
      %8693 = vst [vmem:[%s304 + $0x968] sm:$0xff] %v8181
      %8694 = vst [vmem:[%s304 + $0x970] sm:$0xff] %v8182
      %8695 = vst [vmem:[%s304 + $0x978] sm:$0xff] %v8183
      %8696 = vst [vmem:[%s304 + $0x980] sm:$0xff] %v8184
      %8697 = vst [vmem:[%s304 + $0x988] sm:$0xff] %v8185
      %8698 = vst [vmem:[%s304 + $0x990] sm:$0xff] %v8186
      %8699 = vst [vmem:[%s304 + $0x998] sm:$0xff] %v8187
      %8700 = vst [vmem:[%s304 + $0x9a0] sm:$0xff] %v8188
      %8701 = vst [vmem:[%s304 + $0x9a8] sm:$0xff] %v8189
      %8702 = vst [vmem:[%s304 + $0x9b0] sm:$0xff] %v8190
      %8703 = vst [vmem:[%s304 + $0x9b8] sm:$0xff] %v8191
      %8704 = vst [vmem:[%s304 + $0x9c0] sm:$0xff] %v8192
      %8705 = vst [vmem:[%s304 + $0x9c8] sm:$0xff] %v8193
      %8706 = vst [vmem:[%s304 + $0x9d0] sm:$0xff] %v8194
      %8707 = vst [vmem:[%s304 + $0x9d8] sm:$0xff] %v8195
      %8708 = vst [vmem:[%s304 + $0x9e0] sm:$0xff] %v8196
      %8709 = vst [vmem:[%s304 + $0x9e8] sm:$0xff] %v8197
      %8710 = vst [vmem:[%s304 + $0x9f0] sm:$0xff] %v8198
      %8711 = vst [vmem:[%s304 + $0x9f8] sm:$0xff] %v8199
      %8712 = vst [vmem:[%s304 + $0xa00] sm:$0xff] %v8200
      %8713 = vst [vmem:[%s304 + $0xa08] sm:$0xff] %v8201
      %8714 = vst [vmem:[%s304 + $0xa10] sm:$0xff] %v8202
      %8715 = vst [vmem:[%s304 + $0xa18] sm:$0xff] %v8203
      %8716 = vst [vmem:[%s304 + $0xa20] sm:$0xff] %v8204
      %8717 = vst [vmem:[%s304 + $0xa28] sm:$0xff] %v8205
      %8718 = vst [vmem:[%s304 + $0xa30] sm:$0xff] %v8206
      %8719 = vst [vmem:[%s304 + $0xa38] sm:$0xff] %v8207
      %8720 = vst [vmem:[%s304 + $0xa40] sm:$0xff] %v8208
      %8721 = vst [vmem:[%s304 + $0xa48] sm:$0xff] %v8209
      %8722 = vst [vmem:[%s304 + $0xa50] sm:$0xff] %v8210
      %8723 = vst [vmem:[%s304 + $0xa58] sm:$0xff] %v8211
      %8724 = vst [vmem:[%s304 + $0xa60] sm:$0xff] %v8212
      %8725 = vst [vmem:[%s304 + $0xa68] sm:$0xff] %v8213
      %8726 = vst [vmem:[%s304 + $0xa70] sm:$0xff] %v8214
      %8727 = vst [vmem:[%s304 + $0xa78] sm:$0xff] %v8215
      %8728 = vst [vmem:[%s304 + $0xa80] sm:$0xff] %v8216
      %8729 = vst [vmem:[%s304 + $0xa88] sm:$0xff] %v8217
      %8730 = vst [vmem:[%s304 + $0xa90] sm:$0xff] %v8218
      %8731 = vst [vmem:[%s304 + $0xa98] sm:$0xff] %v8219
      %8732 = vst [vmem:[%s304 + $0xaa0] sm:$0xff] %v8220
      %8733 = vst [vmem:[%s304 + $0xaa8] sm:$0xff] %v8221
      %8734 = vst [vmem:[%s304 + $0xab0] sm:$0xff] %v8222
      %8735 = vst [vmem:[%s304 + $0xab8] sm:$0xff] %v8223
      %8736 = vst [vmem:[%s304 + $0xac0] sm:$0xff] %v8224
      %8737 = vst [vmem:[%s304 + $0xac8] sm:$0xff] %v8225
      %8738 = vst [vmem:[%s304 + $0xad0] sm:$0xff] %v8226
      %8739 = vst [vmem:[%s304 + $0xad8] sm:$0xff] %v8227
      %8740 = vst [vmem:[%s304 + $0xae0] sm:$0xff] %v8228
      %8741 = vst [vmem:[%s304 + $0xae8] sm:$0xff] %v8229
      %8742 = vst [vmem:[%s304 + $0xaf0] sm:$0xff] %v8230
      %8743 = vst [vmem:[%s304 + $0xaf8] sm:$0xff] %v8231
      %8744 = vst [vmem:[%s304 + $0xb00] sm:$0xff] %v8232
      %8745 = vst [vmem:[%s304 + $0xb08] sm:$0xff] %v8233
      %8746 = vst [vmem:[%s304 + $0xb10] sm:$0xff] %v8234
      %8747 = vst [vmem:[%s304 + $0xb18] sm:$0xff] %v8235
      %8748 = vst [vmem:[%s304 + $0xb20] sm:$0xff] %v8236
      %8749 = vst [vmem:[%s304 + $0xb28] sm:$0xff] %v8237
      %8750 = vst [vmem:[%s304 + $0xb30] sm:$0xff] %v8238
      %8751 = vst [vmem:[%s304 + $0xb38] sm:$0xff] %v8239
      %8752 = vst [vmem:[%s304 + $0xb40] sm:$0xff] %v8240
      %8753 = vst [vmem:[%s304 + $0xb48] sm:$0xff] %v8241
      %8754 = vst [vmem:[%s304 + $0xb50] sm:$0xff] %v8242
      %8755 = vst [vmem:[%s304 + $0xb58] sm:$0xff] %v8243
      %8756 = vst [vmem:[%s304 + $0xb60] sm:$0xff] %v8244
      %8757 = vst [vmem:[%s304 + $0xb68] sm:$0xff] %v8245
      %8758 = vst [vmem:[%s304 + $0xb70] sm:$0xff] %v8246
      %8759 = vst [vmem:[%s304 + $0xb78] sm:$0xff] %v8247
      %8760 = vst [vmem:[%s304 + $0xb80] sm:$0xff] %v8248
      %8761 = vst [vmem:[%s304 + $0xb88] sm:$0xff] %v8249
      %8762 = vst [vmem:[%s304 + $0xb90] sm:$0xff] %v8250
      %8763 = vst [vmem:[%s304 + $0xb98] sm:$0xff] %v8251
      %8764 = vst [vmem:[%s304 + $0xba0] sm:$0xff] %v8252
      %8765 = vst [vmem:[%s304 + $0xba8] sm:$0xff] %v8253
      %8766 = vst [vmem:[%s304 + $0xbb0] sm:$0xff] %v8254
      %8767 = vst [vmem:[%s304 + $0xbb8] sm:$0xff] %v8255
      %8768 = vst [vmem:[%s304 + $0xbc0] sm:$0xff] %v8256
      %8769 = vst [vmem:[%s304 + $0xbc8] sm:$0xff] %v8257
      %8770 = vst [vmem:[%s304 + $0xbd0] sm:$0xff] %v8258
      %8771 = vst [vmem:[%s304 + $0xbd8] sm:$0xff] %v8259
      %8772 = vst [vmem:[%s304 + $0xbe0] sm:$0xff] %v8260
      %8773 = vst [vmem:[%s304 + $0xbe8] sm:$0xff] %v8261
      %8774 = vst [vmem:[%s304 + $0xbf0] sm:$0xff] %v8262
      %8775 = vst [vmem:[%s304 + $0xbf8] sm:$0xff] %v8263
      %8776 = vst [vmem:[%s304 + $0xc00] sm:$0xff] %v8264
      %8777 = vst [vmem:[%s304 + $0xc08] sm:$0xff] %v8265
      %8778 = vst [vmem:[%s304 + $0xc10] sm:$0xff] %v8266
      %8779 = vst [vmem:[%s304 + $0xc18] sm:$0xff] %v8267
      %8780 = vst [vmem:[%s304 + $0xc20] sm:$0xff] %v8268
      %8781 = vst [vmem:[%s304 + $0xc28] sm:$0xff] %v8269
      %8782 = vst [vmem:[%s304 + $0xc30] sm:$0xff] %v8270
      %8783 = vst [vmem:[%s304 + $0xc38] sm:$0xff] %v8271
      %8784 = vst [vmem:[%s304 + $0xc40] sm:$0xff] %v8272
      %8785 = vst [vmem:[%s304 + $0xc48] sm:$0xff] %v8273
      %8786 = vst [vmem:[%s304 + $0xc50] sm:$0xff] %v8274
      %8787 = vst [vmem:[%s304 + $0xc58] sm:$0xff] %v8275
      %8788 = vst [vmem:[%s304 + $0xc60] sm:$0xff] %v8276
      %8789 = vst [vmem:[%s304 + $0xc68] sm:$0xff] %v8277
      %8790 = vst [vmem:[%s304 + $0xc70] sm:$0xff] %v8278
      %8791 = vst [vmem:[%s304 + $0xc78] sm:$0xff] %v8279
      %8792 = vst [vmem:[%s304 + $0xc80] sm:$0xff] %v8280
      %8793 = vst [vmem:[%s304 + $0xc88] sm:$0xff] %v8281
      %8794 = vst [vmem:[%s304 + $0xc90] sm:$0xff] %v8282
      %8795 = vst [vmem:[%s304 + $0xc98] sm:$0xff] %v8283
      %8796 = vst [vmem:[%s304 + $0xca0] sm:$0xff] %v8284
      %8797 = vst [vmem:[%s304 + $0xca8] sm:$0xff] %v8285
      %8798 = vst [vmem:[%s304 + $0xcb0] sm:$0xff] %v8286
      %8799 = vst [vmem:[%s304 + $0xcb8] sm:$0xff] %v8287
      %8800 = vst [vmem:[%s304 + $0xcc0] sm:$0xff] %v8288
      %8801 = vst [vmem:[%s304 + $0xcc8] sm:$0xff] %v8289
      %8802 = vst [vmem:[%s304 + $0xcd0] sm:$0xff] %v8290
      %8803 = vst [vmem:[%s304 + $0xcd8] sm:$0xff] %v8291
      %8804 = vst [vmem:[%s304 + $0xce0] sm:$0xff] %v8292
      %8805 = vst [vmem:[%s304 + $0xce8] sm:$0xff] %v8293
      %8806 = vst [vmem:[%s304 + $0xcf0] sm:$0xff] %v8294
      %8807 = vst [vmem:[%s304 + $0xcf8] sm:$0xff] %v8295
      %8808 = vst [vmem:[%s304 + $0xd00] sm:$0xff] %v8296
      %8809 = vst [vmem:[%s304 + $0xd08] sm:$0xff] %v8297
      %8810 = vst [vmem:[%s304 + $0xd10] sm:$0xff] %v8298
      %8811 = vst [vmem:[%s304 + $0xd18] sm:$0xff] %v8299
      %8812 = vst [vmem:[%s304 + $0xd20] sm:$0xff] %v8300
      %8813 = vst [vmem:[%s304 + $0xd28] sm:$0xff] %v8301
      %8814 = vst [vmem:[%s304 + $0xd30] sm:$0xff] %v8302
      %8815 = vst [vmem:[%s304 + $0xd38] sm:$0xff] %v8303
      %8816 = vst [vmem:[%s304 + $0xd40] sm:$0xff] %v8304
      %8817 = vst [vmem:[%s304 + $0xd48] sm:$0xff] %v8305
      %8818 = vst [vmem:[%s304 + $0xd50] sm:$0xff] %v8306
      %8819 = vst [vmem:[%s304 + $0xd58] sm:$0xff] %v8307
      %8820 = vst [vmem:[%s304 + $0xd60] sm:$0xff] %v8308
      %8821 = vst [vmem:[%s304 + $0xd68] sm:$0xff] %v8309
      %8822 = vst [vmem:[%s304 + $0xd70] sm:$0xff] %v8310
      %8823 = vst [vmem:[%s304 + $0xd78] sm:$0xff] %v8311
      %8824 = vst [vmem:[%s304 + $0xd80] sm:$0xff] %v8312
      %8825 = vst [vmem:[%s304 + $0xd88] sm:$0xff] %v8313
      %8826 = vst [vmem:[%s304 + $0xd90] sm:$0xff] %v8314
      %8827 = vst [vmem:[%s304 + $0xd98] sm:$0xff] %v8315
      %8828 = vst [vmem:[%s304 + $0xda0] sm:$0xff] %v8316
      %8829 = vst [vmem:[%s304 + $0xda8] sm:$0xff] %v8317
      %8830 = vst [vmem:[%s304 + $0xdb0] sm:$0xff] %v8318
      %8831 = vst [vmem:[%s304 + $0xdb8] sm:$0xff] %v8319
      %8832 = vst [vmem:[%s304 + $0xdc0] sm:$0xff] %v8320
      %8833 = vst [vmem:[%s304 + $0xdc8] sm:$0xff] %v8321
      %8834 = vst [vmem:[%s304 + $0xdd0] sm:$0xff] %v8322
      %8835 = vst [vmem:[%s304 + $0xdd8] sm:$0xff] %v8323
      %8836 = vst [vmem:[%s304 + $0xde0] sm:$0xff] %v8324
      %8837 = vst [vmem:[%s304 + $0xde8] sm:$0xff] %v8325
      %8838 = vst [vmem:[%s304 + $0xdf0] sm:$0xff] %v8326
      %8839 = vst [vmem:[%s304 + $0xdf8] sm:$0xff] %v8327
      %8840 = vst [vmem:[%s304 + $0xe00] sm:$0xff] %v8328
      %8841 = vst [vmem:[%s304 + $0xe08] sm:$0xff] %v8329
      %8842 = vst [vmem:[%s304 + $0xe10] sm:$0xff] %v8330
      %8843 = vst [vmem:[%s304 + $0xe18] sm:$0xff] %v8331
      %8844 = vst [vmem:[%s304 + $0xe20] sm:$0xff] %v8332
      %8845 = vst [vmem:[%s304 + $0xe28] sm:$0xff] %v8333
      %8846 = vst [vmem:[%s304 + $0xe30] sm:$0xff] %v8334
      %8847 = vst [vmem:[%s304 + $0xe38] sm:$0xff] %v8335
      %8848 = vst [vmem:[%s304 + $0xe40] sm:$0xff] %v8336
      %8849 = vst [vmem:[%s304 + $0xe48] sm:$0xff] %v8337
      %8850 = vst [vmem:[%s304 + $0xe50] sm:$0xff] %v8338
      %8851 = vst [vmem:[%s304 + $0xe58] sm:$0xff] %v8339
      %8852 = vst [vmem:[%s304 + $0xe60] sm:$0xff] %v8340
      %8853 = vst [vmem:[%s304 + $0xe68] sm:$0xff] %v8341
      %8854 = vst [vmem:[%s304 + $0xe70] sm:$0xff] %v8342
      %8855 = vst [vmem:[%s304 + $0xe78] sm:$0xff] %v8343
      %8856 = vst [vmem:[%s304 + $0xe80] sm:$0xff] %v8344
      %8857 = vst [vmem:[%s304 + $0xe88] sm:$0xff] %v8345
      %8858 = vst [vmem:[%s304 + $0xe90] sm:$0xff] %v8346
      %8859 = vst [vmem:[%s304 + $0xe98] sm:$0xff] %v8347
      %8860 = vst [vmem:[%s304 + $0xea0] sm:$0xff] %v8348
      %8861 = vst [vmem:[%s304 + $0xea8] sm:$0xff] %v8349
      %8862 = vst [vmem:[%s304 + $0xeb0] sm:$0xff] %v8350
      %8863 = vst [vmem:[%s304 + $0xeb8] sm:$0xff] %v8351
      %8864 = vst [vmem:[%s304 + $0xec0] sm:$0xff] %v8352
      %8865 = vst [vmem:[%s304 + $0xec8] sm:$0xff] %v8353
      %8866 = vst [vmem:[%s304 + $0xed0] sm:$0xff] %v8354
      %8867 = vst [vmem:[%s304 + $0xed8] sm:$0xff] %v8355
      %8868 = vst [vmem:[%s304 + $0xee0] sm:$0xff] %v8356
      %8869 = vst [vmem:[%s304 + $0xee8] sm:$0xff] %v8357
      %8870 = vst [vmem:[%s304 + $0xef0] sm:$0xff] %v8358
      %8871 = vst [vmem:[%s304 + $0xef8] sm:$0xff] %v8359
      %8872 = vst [vmem:[%s304 + $0xf00] sm:$0xff] %v8360
      %8873 = vst [vmem:[%s304 + $0xf08] sm:$0xff] %v8361
      %8874 = vst [vmem:[%s304 + $0xf10] sm:$0xff] %v8362
      %8875 = vst [vmem:[%s304 + $0xf18] sm:$0xff] %v8363
      %8876 = vst [vmem:[%s304 + $0xf20] sm:$0xff] %v8364
      %8877 = vst [vmem:[%s304 + $0xf28] sm:$0xff] %v8365
      %8878 = vst [vmem:[%s304 + $0xf30] sm:$0xff] %v8366
      %8879 = vst [vmem:[%s304 + $0xf38] sm:$0xff] %v8367
      %8880 = vst [vmem:[%s304 + $0xf40] sm:$0xff] %v8368
      %8881 = vst [vmem:[%s304 + $0xf48] sm:$0xff] %v8369
      %8882 = vst [vmem:[%s304 + $0xf50] sm:$0xff] %v8370
      %8883 = vst [vmem:[%s304 + $0xf58] sm:$0xff] %v8371
      %8884 = vst [vmem:[%s304 + $0xf60] sm:$0xff] %v8372
      %8885 = vst [vmem:[%s304 + $0xf68] sm:$0xff] %v8373
      %8886 = vst [vmem:[%s304 + $0xf70] sm:$0xff] %v8374
      %8887 = vst [vmem:[%s304 + $0xf78] sm:$0xff] %v8375
      %8888 = vst [vmem:[%s304 + $0xf80] sm:$0xff] %v8376
      %8889 = vst [vmem:[%s304 + $0xf88] sm:$0xff] %v8377
      %8890 = vst [vmem:[%s304 + $0xf90] sm:$0xff] %v8378
      %8891 = vst [vmem:[%s304 + $0xf98] sm:$0xff] %v8379
      %8892 = vst [vmem:[%s304 + $0xfa0] sm:$0xff] %v8380
      %8893 = vst [vmem:[%s304 + $0xfa8] sm:$0xff] %v8381
      %8894 = vst [vmem:[%s304 + $0xfb0] sm:$0xff] %v8382
      %8895 = vst [vmem:[%s304 + $0xfb8] sm:$0xff] %v8383
      %8896 = vst [vmem:[%s304 + $0xfc0] sm:$0xff] %v8384
      %8897 = vst [vmem:[%s304 + $0xfc8] sm:$0xff] %v8385
      %8898 = vst [vmem:[%s304 + $0xfd0] sm:$0xff] %v8386
      %8899 = vst [vmem:[%s304 + $0xfd8] sm:$0xff] %v8387
      %8900 = vst [vmem:[%s304 + $0xfe0] sm:$0xff] %v8388
      %8901 = vst [vmem:[%s304 + $0xfe8] sm:$0xff] %v8389
      %8902 = vst [vmem:[%s304 + $0xff0] sm:$0xff] %v8390
      %8903 = vst [vmem:[%s304 + $0xff8] sm:$0xff] %v8391
      %s8904 = smul.u32 16, %s20
      %p8905 = scmp.lt.s32.totalorder %s19, 1
      %s8906 = scalar_select %p8905, %s19, 1
      %p8907 = scmp.lt.s32.totalorder %s8904, 15
      %s8908 = scalar_select %p8907, %s8904, 15
      %s8909 = smul.addr %s8908, 32
      %s8910 = smul.addr %s8906, 512
      %s8911 = sadd.s32 %s8909, %s8910
      %s8912 = smul.addr %s8911, 8
      %s8913 = scalar_lea.vmem %s4, %s8912
      // Predicated region
      $region37: #{basic_spade.1} parent=35 // pred_check
        %p8914 = pneg %p153
      $region38: #{basic_spade.1} parent=35 // pred_check_branch
        %8916 = sbr.rel (%p8914) target = $region40
      $region39: #{basic_spade.1} parent=35 // pred_region
        %s8917 = smul.u32 16, %s20
      $region40: #{basic_spade.1} parent=35 // pred_fallthru
        _
    $region36: #{basic_spade.1} parent=5 // pred_fallthru
      _
    %p8918 = scmp.le.s32.totalorder 2, %s10
    // Predicated region
    $region41: #{basic_spade.1} parent=5 // pred_check
      %p8919 = pneg %p8918
    $region42: #{basic_spade.1} parent=5 // pred_check_branch
      %8921 = sbr.rel (%p8919) target = $region44
    $region43: #{basic_spade.1} parent=5 // pred_region
      %s8922 = ssub.s32 %s10, 2
      // Predicated region
      $region45: #{basic_spade.1} parent=43 // pred_check
        %p8923 = pneg %p159
      $region46: #{basic_spade.1} parent=43 // pred_check_branch
        %8925 = sbr.rel (%p8923) target = $region48
      $region47: #{basic_spade.1} parent=43 // pred_region
        %s8926 = smul.u32 16, %s22
        %p8927 = scmp.lt.s32.totalorder %s21, 1
        %s8928 = scalar_select %p8927, %s21, 1
        %p8929 = scmp.lt.s32.totalorder %s8926, 15
        %s8930 = scalar_select %p8929, %s8926, 15
        %s8931 = smul.addr %s8930, 32
        %s8932 = smul.addr %s8928, 512
        %s8933 = sadd.s32 %s8931, %s8932
        %s8934 = smul.addr %s8933, 8
        %s8935 = scalar_lea.vmem %s4, %s8934
      $region48: #{basic_spade.1} parent=43 // pred_fallthru
        _
    $region44: #{basic_spade.1} parent=5 // pred_fallthru
      _
  $region6: #{basic_spade.1} parent=0 // loop_footer
    %s14 = sadd.s32 1, %s10
  $region7: #{basic_spade.1} parent=0 // loop_footer_branch
    %9 = sbr.rel target = $region3
  $region8: #{basic_spade.1} parent=0 // loop_exit
    _

</llo_original>
